<compile_context>
chip_gen: v6e
topology: v6e:2x2x1
jax: 0.10.0
libtpu: 0.0.40
codegen_flags: <defaults>
</compile_context>

<pallas_src>
import math
import jax
import jax.numpy as jnp
from jax.experimental import pallas as pl
from jax.experimental.pallas import tpu as pltpu

IN_DIM = 28 * 28                 # 784
PAD = {12: 128, 3: 128}          # zero-pad narrow latent dims to full 128-lane vregs

_MAX_TILE_B = 512                # v7x-safe: per-core footprint stays well under 64 MiB
_MIN_TILE_B = 128
_MIN_GRID_STEPS = 4              # >=2 pipelined steps per TensorCore under megacore sharding


def ae_kernel(x_ref,
              w1, b1, w2, b2, w3, b3, w4, b4,      # encoder params
              w5, b5, w6, b6, w7, b7, w8, b8,      # decoder params
              o_ref):
    def dense(h, w_ref, b_ref):
        # bf16 MXU inputs, f32 accumulation; bias add stays f32 on the VPU.
        return jnp.dot(h.astype(w_ref.dtype), w_ref[...],
                       preferred_element_type=jnp.float32) + b_ref[...]

    h = x_ref[...]                                   # (tile_b, 784) f32

    # ---- encoder ----
    h = jnp.maximum(dense(h, w1, b1), 0.0)
    h = jnp.maximum(dense(h, w2, b2), 0.0)
    h = jnp.maximum(dense(h, w3, b3), 0.0)
    h = dense(h, w4, b4)                             # latent (no activation)

    # ---- decoder ----
    h = jnp.maximum(dense(h, w5, b5), 0.0)
    h = jnp.maximum(dense(h, w6, b6), 0.0)
    h = jnp.maximum(dense(h, w7, b7), 0.0)
    h = jnp.tanh(dense(h, w8, b8))

    o_ref[...] = h.astype(o_ref.dtype)


def _pick_tile_b(batch):
    """Largest tile <= _MAX_TILE_B that still leaves >= _MIN_GRID_STEPS grid steps."""
    cap = (batch // _MIN_GRID_STEPS) // _MIN_TILE_B * _MIN_TILE_B
    return max(_MIN_TILE_B, min(_MAX_TILE_B, cap))


def _vmem_limit_bytes(tile_b):
    # x/out f32 double buffers + live f32/bf16 layer intermediates + padded bf16
    # weights (single-buffered), with headroom.  ~21 MiB at tile_b=512.
    est = 12 * tile_b * IN_DIM * 4 + (2 << 20)
    return int(min(48 << 20, max(16 << 20, est)))


def _call_kernel(x, flat_params, tile_b, n_tiles, single_buffer_weights):
    if single_buffer_weights:
        # Grid-invariant blocks: DMA'd once, never revisited -> one buffer suffices.
        full = lambda a: pl.BlockSpec(a.shape, lambda i: (0,) * a.ndim,
                                      pipeline_mode=pl.Buffered(1))
    else:
        full = lambda a: pl.BlockSpec(a.shape, lambda i: (0,) * a.ndim)

    return pl.pallas_call(
        ae_kernel,
        out_shape=jax.ShapeDtypeStruct(x.shape, jnp.float32),
        grid=(n_tiles,),
        in_specs=[pl.BlockSpec((tile_b, IN_DIM), lambda i: (i, 0))]
                 + [full(a) for a in flat_params],
        out_specs=pl.BlockSpec((tile_b, IN_DIM), lambda i: (i, 0)),
        compiler_params=pltpu.CompilerParams(
            dimension_semantics=("parallel",),       # megacore sharding on v7x
            vmem_limit_bytes=_vmem_limit_bytes(tile_b)),
    )(x, *flat_params)


def autoencoder_forward(x, flat_params, *, tile_b=None):
    """x: (B, 784) float32. flat_params: [W1,b1,...,W8,b8] (already padded/cast)."""
    B, D = x.shape
    assert D == IN_DIM
    if tile_b is None:
        tile_b = _pick_tile_b(B)
    n_tiles = pl.cdiv(B, tile_b)
    Bp = n_tiles * tile_b
    if Bp != B:                                      # pad ragged batch, slice back below
        x = jnp.pad(x, ((0, Bp - B), (0, 0)))

    try:
        out = _call_kernel(x, flat_params, tile_b, n_tiles, True)
    except Exception:
        # Fallback for jax versions that reject single-buffered BlockSpecs.
        out = _call_kernel(x, flat_params, tile_b, n_tiles, False)
    return out[:B] if Bp != B else out


def init_params(key):
    """PyTorch nn.Linear default init: U(-1/sqrt(fan_in), 1/sqrt(fan_in)). W is (in, out)."""
    dims = [(784, 128), (128, 64), (64, 12), (12, 3),      # encoder
            (3, 12), (12, 64), (64, 128), (128, 784)]      # decoder
    params = []
    for fin, fout in dims:
        key, kw, kb = jax.random.split(key, 3)
        bound = 1.0 / math.sqrt(fin)
        W = jax.random.uniform(kw, (fin, fout), jnp.float32, -bound, bound)
        b = jax.random.uniform(kb, (fout,), jnp.float32, -bound, bound)
        params.append((W, b))
    return params


def prepare_params(params, weight_dtype=jnp.bfloat16):
    """Zero-pad latent dims (12->128, 3->128) and cast weights to bf16; biases stay f32."""
    flat = []
    for W, b in params:
        fin, fout = W.shape
        fin_p, fout_p = PAD.get(fin, fin), PAD.get(fout, fout)
        Wp = jnp.zeros((fin_p, fout_p), jnp.float32).at[:fin, :fout].set(W)
        bp = jnp.zeros((1, fout_p), jnp.float32).at[0, :fout].set(b)
        flat.extend([Wp.astype(weight_dtype), bp])
    return flat


def reference_forward(x, params, weight_dtype=jnp.float32):
    """Pure-JAX reference of the PyTorch forward (optionally with bf16 matmul inputs)."""
    h = x
    for i, (W, b) in enumerate(params):
        h = jnp.dot(h.astype(weight_dtype), W.astype(weight_dtype),
                    preferred_element_type=jnp.float32) + b
        if i in (0, 1, 2, 4, 5, 6):
            h = jnp.maximum(h, 0.0)
        elif i == 7:
            h = jnp.tanh(h)
    return h


if __name__ == "__main__":
    key = jax.random.PRNGKey(0)
    params = init_params(key)
    flat = prepare_params(params, weight_dtype=jnp.bfloat16)

    # MNIST-style flattened input; batch sized so the auto-picked tile (256)
    # gives 4 grid steps (>=2 per TensorCore when megacore-sharded).
    B = 1024
    x = jax.random.normal(jax.random.fold_in(key, 123), (B, 28 * 28), jnp.float32)

    out = jax.block_until_ready(autoencoder_forward(x, flat))
    assert out.shape == (B, 784) and out.dtype == jnp.float32

    # Tight check against a reference using the same bf16 matmul inputs.
    ref_bf16 = reference_forward(x, params, weight_dtype=jnp.bfloat16)
    assert jnp.allclose(out, ref_bf16, atol=2e-3, rtol=2e-3), \
        float(jnp.max(jnp.abs(out - ref_bf16)))

    # Sanity check against the exact f32 PyTorch-equivalent forward.
    ref_f32 = reference_forward(x, params, weight_dtype=jnp.float32)
    assert float(jnp.max(jnp.abs(out - ref_f32))) < 0.1

    # Exercise the ragged-batch path (tile padding + slice-back) once too.
    out_ragged = jax.block_until_ready(autoencoder_forward(x[:200], flat))
    assert out_ragged.shape == (200, 784)
    assert jnp.allclose(out_ragged, ref_bf16[:200], atol=2e-3, rtol=2e-3)

    print("KERNEL_OK")
</pallas_src>

<mosaic_0001>
module attributes {stable_mosaic.version = 11 : i64} {
  func.func @ae_kernel(%arg0: i32, %arg1: memref<256x784xf32, #tpu.memory_space<vmem>>, %arg2: memref<784x128xbf16, #tpu.memory_space<vmem>>, %arg3: memref<1x128xf32, #tpu.memory_space<vmem>>, %arg4: memref<128x64xbf16, #tpu.memory_space<vmem>>, %arg5: memref<1x64xf32, #tpu.memory_space<vmem>>, %arg6: memref<64x128xbf16, #tpu.memory_space<vmem>>, %arg7: memref<1x128xf32, #tpu.memory_space<vmem>>, %arg8: memref<128x128xbf16, #tpu.memory_space<vmem>>, %arg9: memref<1x128xf32, #tpu.memory_space<vmem>>, %arg10: memref<128x128xbf16, #tpu.memory_space<vmem>>, %arg11: memref<1x128xf32, #tpu.memory_space<vmem>>, %arg12: memref<128x64xbf16, #tpu.memory_space<vmem>>, %arg13: memref<1x64xf32, #tpu.memory_space<vmem>>, %arg14: memref<64x128xbf16, #tpu.memory_space<vmem>>, %arg15: memref<1x128xf32, #tpu.memory_space<vmem>>, %arg16: memref<128x784xbf16, #tpu.memory_space<vmem>>, %arg17: memref<1x784xf32, #tpu.memory_space<vmem>>, %arg18: memref<256x784xf32, #tpu.memory_space<vmem>>) attributes {dimension_semantics = [#tpu.dimension_semantics<parallel>], iteration_bounds = array<i64: 4>, scalar_prefetch = 0 : i64, scratch_operands = 0 : i64, tpu.core_type = #tpu.core_type<tc>, window_params = [{transform_indices = @transform_0, window_bounds = array<i64: 256, 784>}, {pipeline_mode = #tpu.pipeline_mode<synchronous>, transform_indices = @transform_1, window_bounds = array<i64: 784, 128>}, {pipeline_mode = #tpu.pipeline_mode<synchronous>, transform_indices = @transform_2, window_bounds = array<i64: 1, 128>}, {pipeline_mode = #tpu.pipeline_mode<synchronous>, transform_indices = @transform_3, window_bounds = array<i64: 128, 64>}, {pipeline_mode = #tpu.pipeline_mode<synchronous>, transform_indices = @transform_4, window_bounds = array<i64: 1, 64>}, {pipeline_mode = #tpu.pipeline_mode<synchronous>, transform_indices = @transform_5, window_bounds = array<i64: 64, 128>}, {pipeline_mode = #tpu.pipeline_mode<synchronous>, transform_indices = @transform_6, window_bounds = array<i64: 1, 128>}, {pipeline_mode = #tpu.pipeline_mode<synchronous>, transform_indices = @transform_7, window_bounds = array<i64: 128, 128>}, {pipeline_mode = #tpu.pipeline_mode<synchronous>, transform_indices = @transform_8, window_bounds = array<i64: 1, 128>}, {pipeline_mode = #tpu.pipeline_mode<synchronous>, transform_indices = @transform_9, window_bounds = array<i64: 128, 128>}, {pipeline_mode = #tpu.pipeline_mode<synchronous>, transform_indices = @transform_10, window_bounds = array<i64: 1, 128>}, {pipeline_mode = #tpu.pipeline_mode<synchronous>, transform_indices = @transform_11, window_bounds = array<i64: 128, 64>}, {pipeline_mode = #tpu.pipeline_mode<synchronous>, transform_indices = @transform_12, window_bounds = array<i64: 1, 64>}, {pipeline_mode = #tpu.pipeline_mode<synchronous>, transform_indices = @transform_13, window_bounds = array<i64: 64, 128>}, {pipeline_mode = #tpu.pipeline_mode<synchronous>, transform_indices = @transform_14, window_bounds = array<i64: 1, 128>}, {pipeline_mode = #tpu.pipeline_mode<synchronous>, transform_indices = @transform_15, window_bounds = array<i64: 128, 784>}, {pipeline_mode = #tpu.pipeline_mode<synchronous>, transform_indices = @transform_16, window_bounds = array<i64: 1, 784>}, {transform_indices = @transform_17, window_bounds = array<i64: 256, 784>}]} {
    %c0 = arith.constant 0 : index
    %c0_0 = arith.constant 0 : index
    %0 = vector.load %arg1[%c0, %c0_0] : memref<256x784xf32, #tpu.memory_space<vmem>>, vector<256x784xf32>
    %1 = arith.truncf %0 : vector<256x784xf32> to vector<256x784xbf16>
    %c0_1 = arith.constant 0 : index
    %c0_2 = arith.constant 0 : index
    %2 = vector.load %arg2[%c0_1, %c0_2] : memref<784x128xbf16, #tpu.memory_space<vmem>>, vector<784x128xbf16>
    %cst = arith.constant dense<0.000000e+00> : vector<256x128xf32>
    %3 = tpu.matmul %1, %2, %cst {dimension_numbers = #tpu.dot_dimension_numbers<[1], [0], [0], [1], [0, 0, 1, 1], [], []>} : vector<256x784xbf16>, vector<784x128xbf16>, vector<256x128xf32> -> vector<256x128xf32>
    %c0_3 = arith.constant 0 : index
    %c0_4 = arith.constant 0 : index
    %4 = vector.load %arg3[%c0_3, %c0_4] : memref<1x128xf32, #tpu.memory_space<vmem>>, vector<1x128xf32>
    %5 = vector.broadcast %4 : vector<1x128xf32> to vector<256x128xf32>
    %6 = arith.addf %3, %5 : vector<256x128xf32>
    %cst_5 = arith.constant 0.000000e+00 : f32
    %7 = vector.broadcast %cst_5 : f32 to vector<256x128xf32>
    %8 = arith.maximumf %6, %7 : vector<256x128xf32>
    %9 = arith.truncf %8 : vector<256x128xf32> to vector<256x128xbf16>
    %c0_6 = arith.constant 0 : index
    %c0_7 = arith.constant 0 : index
    %10 = vector.load %arg4[%c0_6, %c0_7] : memref<128x64xbf16, #tpu.memory_space<vmem>>, vector<128x64xbf16>
    %cst_8 = arith.constant dense<0.000000e+00> : vector<256x64xf32>
    %11 = tpu.matmul %9, %10, %cst_8 {dimension_numbers = #tpu.dot_dimension_numbers<[1], [0], [0], [1], [0, 0, 1, 1], [], []>} : vector<256x128xbf16>, vector<128x64xbf16>, vector<256x64xf32> -> vector<256x64xf32>
    %c0_9 = arith.constant 0 : index
    %c0_10 = arith.constant 0 : index
    %12 = vector.load %arg5[%c0_9, %c0_10] : memref<1x64xf32, #tpu.memory_space<vmem>>, vector<1x64xf32>
    %13 = vector.broadcast %12 : vector<1x64xf32> to vector<256x64xf32>
    %14 = arith.addf %11, %13 : vector<256x64xf32>
    %cst_11 = arith.constant 0.000000e+00 : f32
    %15 = vector.broadcast %cst_11 : f32 to vector<256x64xf32>
    %16 = arith.maximumf %14, %15 : vector<256x64xf32>
    %17 = arith.truncf %16 : vector<256x64xf32> to vector<256x64xbf16>
    %c0_12 = arith.constant 0 : index
    %c0_13 = arith.constant 0 : index
    %18 = vector.load %arg6[%c0_12, %c0_13] : memref<64x128xbf16, #tpu.memory_space<vmem>>, vector<64x128xbf16>
    %cst_14 = arith.constant dense<0.000000e+00> : vector<256x128xf32>
    %19 = tpu.matmul %17, %18, %cst_14 {dimension_numbers = #tpu.dot_dimension_numbers<[1], [0], [0], [1], [0, 0, 1, 1], [], []>} : vector<256x64xbf16>, vector<64x128xbf16>, vector<256x128xf32> -> vector<256x128xf32>
    %c0_15 = arith.constant 0 : index
    %c0_16 = arith.constant 0 : index
    %20 = vector.load %arg7[%c0_15, %c0_16] : memref<1x128xf32, #tpu.memory_space<vmem>>, vector<1x128xf32>
    %21 = vector.broadcast %20 : vector<1x128xf32> to vector<256x128xf32>
    %22 = arith.addf %19, %21 : vector<256x128xf32>
    %cst_17 = arith.constant 0.000000e+00 : f32
    %23 = vector.broadcast %cst_17 : f32 to vector<256x128xf32>
    %24 = arith.maximumf %22, %23 : vector<256x128xf32>
    %25 = arith.truncf %24 : vector<256x128xf32> to vector<256x128xbf16>
    %c0_18 = arith.constant 0 : index
    %c0_19 = arith.constant 0 : index
    %26 = vector.load %arg8[%c0_18, %c0_19] : memref<128x128xbf16, #tpu.memory_space<vmem>>, vector<128x128xbf16>
    %cst_20 = arith.constant dense<0.000000e+00> : vector<256x128xf32>
    %27 = tpu.matmul %25, %26, %cst_20 {dimension_numbers = #tpu.dot_dimension_numbers<[1], [0], [0], [1], [0, 0, 1, 1], [], []>} : vector<256x128xbf16>, vector<128x128xbf16>, vector<256x128xf32> -> vector<256x128xf32>
    %c0_21 = arith.constant 0 : index
    %c0_22 = arith.constant 0 : index
    %28 = vector.load %arg9[%c0_21, %c0_22] : memref<1x128xf32, #tpu.memory_space<vmem>>, vector<1x128xf32>
    %29 = vector.broadcast %28 : vector<1x128xf32> to vector<256x128xf32>
    %30 = arith.addf %27, %29 : vector<256x128xf32>
    %31 = arith.truncf %30 : vector<256x128xf32> to vector<256x128xbf16>
    %c0_23 = arith.constant 0 : index
    %c0_24 = arith.constant 0 : index
    %32 = vector.load %arg10[%c0_23, %c0_24] : memref<128x128xbf16, #tpu.memory_space<vmem>>, vector<128x128xbf16>
    %cst_25 = arith.constant dense<0.000000e+00> : vector<256x128xf32>
    %33 = tpu.matmul %31, %32, %cst_25 {dimension_numbers = #tpu.dot_dimension_numbers<[1], [0], [0], [1], [0, 0, 1, 1], [], []>} : vector<256x128xbf16>, vector<128x128xbf16>, vector<256x128xf32> -> vector<256x128xf32>
    %c0_26 = arith.constant 0 : index
    %c0_27 = arith.constant 0 : index
    %34 = vector.load %arg11[%c0_26, %c0_27] : memref<1x128xf32, #tpu.memory_space<vmem>>, vector<1x128xf32>
    %35 = vector.broadcast %34 : vector<1x128xf32> to vector<256x128xf32>
    %36 = arith.addf %33, %35 : vector<256x128xf32>
    %cst_28 = arith.constant 0.000000e+00 : f32
    %37 = vector.broadcast %cst_28 : f32 to vector<256x128xf32>
    %38 = arith.maximumf %36, %37 : vector<256x128xf32>
    %39 = arith.truncf %38 : vector<256x128xf32> to vector<256x128xbf16>
    %c0_29 = arith.constant 0 : index
    %c0_30 = arith.constant 0 : index
    %40 = vector.load %arg12[%c0_29, %c0_30] : memref<128x64xbf16, #tpu.memory_space<vmem>>, vector<128x64xbf16>
    %cst_31 = arith.constant dense<0.000000e+00> : vector<256x64xf32>
    %41 = tpu.matmul %39, %40, %cst_31 {dimension_numbers = #tpu.dot_dimension_numbers<[1], [0], [0], [1], [0, 0, 1, 1], [], []>} : vector<256x128xbf16>, vector<128x64xbf16>, vector<256x64xf32> -> vector<256x64xf32>
    %c0_32 = arith.constant 0 : index
    %c0_33 = arith.constant 0 : index
    %42 = vector.load %arg13[%c0_32, %c0_33] : memref<1x64xf32, #tpu.memory_space<vmem>>, vector<1x64xf32>
    %43 = vector.broadcast %42 : vector<1x64xf32> to vector<256x64xf32>
    %44 = arith.addf %41, %43 : vector<256x64xf32>
    %cst_34 = arith.constant 0.000000e+00 : f32
    %45 = vector.broadcast %cst_34 : f32 to vector<256x64xf32>
    %46 = arith.maximumf %44, %45 : vector<256x64xf32>
    %47 = arith.truncf %46 : vector<256x64xf32> to vector<256x64xbf16>
    %c0_35 = arith.constant 0 : index
    %c0_36 = arith.constant 0 : index
    %48 = vector.load %arg14[%c0_35, %c0_36] : memref<64x128xbf16, #tpu.memory_space<vmem>>, vector<64x128xbf16>
    %cst_37 = arith.constant dense<0.000000e+00> : vector<256x128xf32>
    %49 = tpu.matmul %47, %48, %cst_37 {dimension_numbers = #tpu.dot_dimension_numbers<[1], [0], [0], [1], [0, 0, 1, 1], [], []>} : vector<256x64xbf16>, vector<64x128xbf16>, vector<256x128xf32> -> vector<256x128xf32>
    %c0_38 = arith.constant 0 : index
    %c0_39 = arith.constant 0 : index
    %50 = vector.load %arg15[%c0_38, %c0_39] : memref<1x128xf32, #tpu.memory_space<vmem>>, vector<1x128xf32>
    %51 = vector.broadcast %50 : vector<1x128xf32> to vector<256x128xf32>
    %52 = arith.addf %49, %51 : vector<256x128xf32>
    %cst_40 = arith.constant 0.000000e+00 : f32
    %53 = vector.broadcast %cst_40 : f32 to vector<256x128xf32>
    %54 = arith.maximumf %52, %53 : vector<256x128xf32>
    %55 = arith.truncf %54 : vector<256x128xf32> to vector<256x128xbf16>
    %c0_41 = arith.constant 0 : index
    %c0_42 = arith.constant 0 : index
    %56 = vector.load %arg16[%c0_41, %c0_42] : memref<128x784xbf16, #tpu.memory_space<vmem>>, vector<128x784xbf16>
    %cst_43 = arith.constant dense<0.000000e+00> : vector<256x784xf32>
    %57 = tpu.matmul %55, %56, %cst_43 {dimension_numbers = #tpu.dot_dimension_numbers<[1], [0], [0], [1], [0, 0, 1, 1], [], []>} : vector<256x128xbf16>, vector<128x784xbf16>, vector<256x784xf32> -> vector<256x784xf32>
    %c0_44 = arith.constant 0 : index
    %c0_45 = arith.constant 0 : index
    %58 = vector.load %arg17[%c0_44, %c0_45] : memref<1x784xf32, #tpu.memory_space<vmem>>, vector<1x784xf32>
    %59 = vector.broadcast %58 : vector<1x784xf32> to vector<256x784xf32>
    %60 = arith.addf %57, %59 : vector<256x784xf32>
    %61 = math.tanh %60 : vector<256x784xf32>
    %c0_46 = arith.constant 0 : index
    %c0_47 = arith.constant 0 : index
    %62 = vector.load %arg18[%c0_46, %c0_47] : memref<256x784xf32, #tpu.memory_space<vmem>>, vector<256x784xf32>
    tpu.vector_store %arg18[%c0_46, %c0_47], %61 {strides = array<i32>} : memref<256x784xf32, #tpu.memory_space<vmem>>, vector<256x784xf32>,
    return
  }
  func.func @transform_0(%arg0: i32) -> (i32, i32) {
    %c0_i32 = arith.constant 0 : i32
    %c0_i32_0 = arith.constant 0 : i32
    return %arg0, %c0_i32 : i32, i32
  }
  func.func @transform_1(%arg0: i32) -> (i32, i32) {
    %c0_i32 = arith.constant 0 : i32
    %c0_i32_0 = arith.constant 0 : i32
    %c0_i32_1 = arith.constant 0 : i32
    return %c0_i32, %c0_i32_0 : i32, i32
  }
  func.func @transform_2(%arg0: i32) -> (i32, i32) {
    %c0_i32 = arith.constant 0 : i32
    %c0_i32_0 = arith.constant 0 : i32
    %c0_i32_1 = arith.constant 0 : i32
    return %c0_i32, %c0_i32_0 : i32, i32
  }
  func.func @transform_3(%arg0: i32) -> (i32, i32) {
    %c0_i32 = arith.constant 0 : i32
    %c0_i32_0 = arith.constant 0 : i32
    %c0_i32_1 = arith.constant 0 : i32
    return %c0_i32, %c0_i32_0 : i32, i32
  }
  func.func @transform_4(%arg0: i32) -> (i32, i32) {
    %c0_i32 = arith.constant 0 : i32
    %c0_i32_0 = arith.constant 0 : i32
    %c0_i32_1 = arith.constant 0 : i32
    return %c0_i32, %c0_i32_0 : i32, i32
  }
  func.func @transform_5(%arg0: i32) -> (i32, i32) {
    %c0_i32 = arith.constant 0 : i32
    %c0_i32_0 = arith.constant 0 : i32
    %c0_i32_1 = arith.constant 0 : i32
    return %c0_i32, %c0_i32_0 : i32, i32
  }
  func.func @transform_6(%arg0: i32) -> (i32, i32) {
    %c0_i32 = arith.constant 0 : i32
    %c0_i32_0 = arith.constant 0 : i32
    %c0_i32_1 = arith.constant 0 : i32
    return %c0_i32, %c0_i32_0 : i32, i32
  }
  func.func @transform_7(%arg0: i32) -> (i32, i32) {
    %c0_i32 = arith.constant 0 : i32
    %c0_i32_0 = arith.constant 0 : i32
    %c0_i32_1 = arith.constant 0 : i32
    return %c0_i32, %c0_i32_0 : i32, i32
  }
  func.func @transform_8(%arg0: i32) -> (i32, i32) {
    %c0_i32 = arith.constant 0 : i32
    %c0_i32_0 = arith.constant 0 : i32
    %c0_i32_1 = arith.constant 0 : i32
    return %c0_i32, %c0_i32_0 : i32, i32
  }
  func.func @transform_9(%arg0: i32) -> (i32, i32) {
    %c0_i32 = arith.constant 0 : i32
    %c0_i32_0 = arith.constant 0 : i32
    %c0_i32_1 = arith.constant 0 : i32
    return %c0_i32, %c0_i32_0 : i32, i32
  }
  func.func @transform_10(%arg0: i32) -> (i32, i32) {
    %c0_i32 = arith.constant 0 : i32
    %c0_i32_0 = arith.constant 0 : i32
    %c0_i32_1 = arith.constant 0 : i32
    return %c0_i32, %c0_i32_0 : i32, i32
  }
  func.func @transform_11(%arg0: i32) -> (i32, i32) {
    %c0_i32 = arith.constant 0 : i32
    %c0_i32_0 = arith.constant 0 : i32
    %c0_i32_1 = arith.constant 0 : i32
    return %c0_i32, %c0_i32_0 : i32, i32
  }
  func.func @transform_12(%arg0: i32) -> (i32, i32) {
    %c0_i32 = arith.constant 0 : i32
    %c0_i32_0 = arith.constant 0 : i32
    %c0_i32_1 = arith.constant 0 : i32
    return %c0_i32, %c0_i32_0 : i32, i32
  }
  func.func @transform_13(%arg0: i32) -> (i32, i32) {
    %c0_i32 = arith.constant 0 : i32
    %c0_i32_0 = arith.constant 0 : i32
    %c0_i32_1 = arith.constant 0 : i32
    return %c0_i32, %c0_i32_0 : i32, i32
  }
  func.func @transform_14(%arg0: i32) -> (i32, i32) {
    %c0_i32 = arith.constant 0 : i32
    %c0_i32_0 = arith.constant 0 : i32
    %c0_i32_1 = arith.constant 0 : i32
    return %c0_i32, %c0_i32_0 : i32, i32
  }
  func.func @transform_15(%arg0: i32) -> (i32, i32) {
    %c0_i32 = arith.constant 0 : i32
    %c0_i32_0 = arith.constant 0 : i32
    %c0_i32_1 = arith.constant 0 : i32
    return %c0_i32, %c0_i32_0 : i32, i32
  }
  func.func @transform_16(%arg0: i32) -> (i32, i32) {
    %c0_i32 = arith.constant 0 : i32
    %c0_i32_0 = arith.constant 0 : i32
    %c0_i32_1 = arith.constant 0 : i32
    return %c0_i32, %c0_i32_0 : i32, i32
  }
  func.func @transform_17(%arg0: i32) -> (i32, i32) {
    %c0_i32 = arith.constant 0 : i32
    %c0_i32_0 = arith.constant 0 : i32
    return %arg0, %c0_i32 : i32, i32
  }
}

module attributes {stable_mosaic.version = 11 : i64} {
  func.func @ae_kernel(%arg0: i32, %arg1: memref<256x784xf32, #tpu.memory_space<vmem>>, %arg2: memref<784x128xbf16, #tpu.memory_space<vmem>>, %arg3: memref<1x128xf32, #tpu.memory_space<vmem>>, %arg4: memref<128x64xbf16, #tpu.memory_space<vmem>>, %arg5: memref<1x64xf32, #tpu.memory_space<vmem>>, %arg6: memref<64x128xbf16, #tpu.memory_space<vmem>>, %arg7: memref<1x128xf32, #tpu.memory_space<vmem>>, %arg8: memref<128x128xbf16, #tpu.memory_space<vmem>>, %arg9: memref<1x128xf32, #tpu.memory_space<vmem>>, %arg10: memref<128x128xbf16, #tpu.memory_space<vmem>>, %arg11: memref<1x128xf32, #tpu.memory_space<vmem>>, %arg12: memref<128x64xbf16, #tpu.memory_space<vmem>>, %arg13: memref<1x64xf32, #tpu.memory_space<vmem>>, %arg14: memref<64x128xbf16, #tpu.memory_space<vmem>>, %arg15: memref<1x128xf32, #tpu.memory_space<vmem>>, %arg16: memref<128x784xbf16, #tpu.memory_space<vmem>>, %arg17: memref<1x784xf32, #tpu.memory_space<vmem>>, %arg18: memref<256x784xf32, #tpu.memory_space<vmem>>) attributes {dimension_semantics = [#tpu.dimension_semantics<parallel>], iteration_bounds = array<i64: 4>, scalar_prefetch = 0 : i64, scratch_operands = 0 : i64, tpu.core_type = #tpu.core_type<tc>, window_params = [{transform_indices = @transform_0, window_bounds = array<i64: 256, 784>}, {pipeline_mode = #tpu.pipeline_mode<synchronous>, transform_indices = @transform_1, window_bounds = array<i64: 784, 128>}, {pipeline_mode = #tpu.pipeline_mode<synchronous>, transform_indices = @transform_2, window_bounds = array<i64: 1, 128>}, {pipeline_mode = #tpu.pipeline_mode<synchronous>, transform_indices = @transform_3, window_bounds = array<i64: 128, 64>}, {pipeline_mode = #tpu.pipeline_mode<synchronous>, transform_indices = @transform_4, window_bounds = array<i64: 1, 64>}, {pipeline_mode = #tpu.pipeline_mode<synchronous>, transform_indices = @transform_5, window_bounds = array<i64: 64, 128>}, {pipeline_mode = #tpu.pipeline_mode<synchronous>, transform_indices = @transform_6, window_bounds = array<i64: 1, 128>}, {pipeline_mode = #tpu.pipeline_mode<synchronous>, transform_indices = @transform_7, window_bounds = array<i64: 128, 128>}, {pipeline_mode = #tpu.pipeline_mode<synchronous>, transform_indices = @transform_8, window_bounds = array<i64: 1, 128>}, {pipeline_mode = #tpu.pipeline_mode<synchronous>, transform_indices = @transform_9, window_bounds = array<i64: 128, 128>}, {pipeline_mode = #tpu.pipeline_mode<synchronous>, transform_indices = @transform_10, window_bounds = array<i64: 1, 128>}, {pipeline_mode = #tpu.pipeline_mode<synchronous>, transform_indices = @transform_11, window_bounds = array<i64: 128, 64>}, {pipeline_mode = #tpu.pipeline_mode<synchronous>, transform_indices = @transform_12, window_bounds = array<i64: 1, 64>}, {pipeline_mode = #tpu.pipeline_mode<synchronous>, transform_indices = @transform_13, window_bounds = array<i64: 64, 128>}, {pipeline_mode = #tpu.pipeline_mode<synchronous>, transform_indices = @transform_14, window_bounds = array<i64: 1, 128>}, {pipeline_mode = #tpu.pipeline_mode<synchronous>, transform_indices = @transform_15, window_bounds = array<i64: 128, 784>}, {pipeline_mode = #tpu.pipeline_mode<synchronous>, transform_indices = @transform_16, window_bounds = array<i64: 1, 784>}, {transform_indices = @transform_17, window_bounds = array<i64: 256, 784>}]} {
    %c0 = arith.constant 0 : index
    %c0_0 = arith.constant 0 : index
    %0 = vector.load %arg1[%c0, %c0_0] : memref<256x784xf32, #tpu.memory_space<vmem>>, vector<256x784xf32>
    %1 = arith.truncf %0 : vector<256x784xf32> to vector<256x784xbf16>
    %c0_1 = arith.constant 0 : index
    %c0_2 = arith.constant 0 : index
    %2 = vector.load %arg2[%c0_1, %c0_2] : memref<784x128xbf16, #tpu.memory_space<vmem>>, vector<784x128xbf16>
    %cst = arith.constant dense<0.000000e+00> : vector<256x128xf32>
    %3 = tpu.matmul %1, %2, %cst {dimension_numbers = #tpu.dot_dimension_numbers<[1], [0], [0], [1], [0, 0, 1, 1], [], []>} : vector<256x784xbf16>, vector<784x128xbf16>, vector<256x128xf32> -> vector<256x128xf32>
    %c0_3 = arith.constant 0 : index
    %c0_4 = arith.constant 0 : index
    %4 = vector.load %arg3[%c0_3, %c0_4] : memref<1x128xf32, #tpu.memory_space<vmem>>, vector<1x128xf32>
    %5 = vector.broadcast %4 : vector<1x128xf32> to vector<256x128xf32>
    %6 = arith.addf %3, %5 : vector<256x128xf32>
    %cst_5 = arith.constant 0.000000e+00 : f32
    %7 = vector.broadcast %cst_5 : f32 to vector<256x128xf32>
    %8 = arith.maximumf %6, %7 : vector<256x128xf32>
    %9 = arith.truncf %8 : vector<256x128xf32> to vector<256x128xbf16>
    %c0_6 = arith.constant 0 : index
    %c0_7 = arith.constant 0 : index
    %10 = vector.load %arg4[%c0_6, %c0_7] : memref<128x64xbf16, #tpu.memory_space<vmem>>, vector<128x64xbf16>
    %cst_8 = arith.constant dense<0.000000e+00> : vector<256x64xf32>
    %11 = tpu.matmul %9, %10, %cst_8 {dimension_numbers = #tpu.dot_dimension_numbers<[1], [0], [0], [1], [0, 0, 1, 1], [], []>} : vector<256x128xbf16>, vector<128x64xbf16>, vector<256x64xf32> -> vector<256x64xf32>
    %c0_9 = arith.constant 0 : index
    %c0_10 = arith.constant 0 : index
    %12 = vector.load %arg5[%c0_9, %c0_10] : memref<1x64xf32, #tpu.memory_space<vmem>>, vector<1x64xf32>
    %13 = vector.broadcast %12 : vector<1x64xf32> to vector<256x64xf32>
    %14 = arith.addf %11, %13 : vector<256x64xf32>
    %cst_11 = arith.constant 0.000000e+00 : f32
    %15 = vector.broadcast %cst_11 : f32 to vector<256x64xf32>
    %16 = arith.maximumf %14, %15 : vector<256x64xf32>
    %17 = arith.truncf %16 : vector<256x64xf32> to vector<256x64xbf16>
    %c0_12 = arith.constant 0 : index
    %c0_13 = arith.constant 0 : index
    %18 = vector.load %arg6[%c0_12, %c0_13] : memref<64x128xbf16, #tpu.memory_space<vmem>>, vector<64x128xbf16>
    %cst_14 = arith.constant dense<0.000000e+00> : vector<256x128xf32>
    %19 = tpu.matmul %17, %18, %cst_14 {dimension_numbers = #tpu.dot_dimension_numbers<[1], [0], [0], [1], [0, 0, 1, 1], [], []>} : vector<256x64xbf16>, vector<64x128xbf16>, vector<256x128xf32> -> vector<256x128xf32>
    %c0_15 = arith.constant 0 : index
    %c0_16 = arith.constant 0 : index
    %20 = vector.load %arg7[%c0_15, %c0_16] : memref<1x128xf32, #tpu.memory_space<vmem>>, vector<1x128xf32>
    %21 = vector.broadcast %20 : vector<1x128xf32> to vector<256x128xf32>
    %22 = arith.addf %19, %21 : vector<256x128xf32>
    %cst_17 = arith.constant 0.000000e+00 : f32
    %23 = vector.broadcast %cst_17 : f32 to vector<256x128xf32>
    %24 = arith.maximumf %22, %23 : vector<256x128xf32>
    %25 = arith.truncf %24 : vector<256x128xf32> to vector<256x128xbf16>
    %c0_18 = arith.constant 0 : index
    %c0_19 = arith.constant 0 : index
    %26 = vector.load %arg8[%c0_18, %c0_19] : memref<128x128xbf16, #tpu.memory_space<vmem>>, vector<128x128xbf16>
    %cst_20 = arith.constant dense<0.000000e+00> : vector<256x128xf32>
    %27 = tpu.matmul %25, %26, %cst_20 {dimension_numbers = #tpu.dot_dimension_numbers<[1], [0], [0], [1], [0, 0, 1, 1], [], []>} : vector<256x128xbf16>, vector<128x128xbf16>, vector<256x128xf32> -> vector<256x128xf32>
    %c0_21 = arith.constant 0 : index
    %c0_22 = arith.constant 0 : index
    %28 = vector.load %arg9[%c0_21, %c0_22] : memref<1x128xf32, #tpu.memory_space<vmem>>, vector<1x128xf32>
    %29 = vector.broadcast %28 : vector<1x128xf32> to vector<256x128xf32>
    %30 = arith.addf %27, %29 : vector<256x128xf32>
    %31 = arith.truncf %30 : vector<256x128xf32> to vector<256x128xbf16>
    %c0_23 = arith.constant 0 : index
    %c0_24 = arith.constant 0 : index
    %32 = vector.load %arg10[%c0_23, %c0_24] : memref<128x128xbf16, #tpu.memory_space<vmem>>, vector<128x128xbf16>
    %cst_25 = arith.constant dense<0.000000e+00> : vector<256x128xf32>
    %33 = tpu.matmul %31, %32, %cst_25 {dimension_numbers = #tpu.dot_dimension_numbers<[1], [0], [0], [1], [0, 0, 1, 1], [], []>} : vector<256x128xbf16>, vector<128x128xbf16>, vector<256x128xf32> -> vector<256x128xf32>
    %c0_26 = arith.constant 0 : index
    %c0_27 = arith.constant 0 : index
    %34 = vector.load %arg11[%c0_26, %c0_27] : memref<1x128xf32, #tpu.memory_space<vmem>>, vector<1x128xf32>
    %35 = vector.broadcast %34 : vector<1x128xf32> to vector<256x128xf32>
    %36 = arith.addf %33, %35 : vector<256x128xf32>
    %cst_28 = arith.constant 0.000000e+00 : f32
    %37 = vector.broadcast %cst_28 : f32 to vector<256x128xf32>
    %38 = arith.maximumf %36, %37 : vector<256x128xf32>
    %39 = arith.truncf %38 : vector<256x128xf32> to vector<256x128xbf16>
    %c0_29 = arith.constant 0 : index
    %c0_30 = arith.constant 0 : index
    %40 = vector.load %arg12[%c0_29, %c0_30] : memref<128x64xbf16, #tpu.memory_space<vmem>>, vector<128x64xbf16>
    %cst_31 = arith.constant dense<0.000000e+00> : vector<256x64xf32>
    %41 = tpu.matmul %39, %40, %cst_31 {dimension_numbers = #tpu.dot_dimension_numbers<[1], [0], [0], [1], [0, 0, 1, 1], [], []>} : vector<256x128xbf16>, vector<128x64xbf16>, vector<256x64xf32> -> vector<256x64xf32>
    %c0_32 = arith.constant 0 : index
    %c0_33 = arith.constant 0 : index
    %42 = vector.load %arg13[%c0_32, %c0_33] : memref<1x64xf32, #tpu.memory_space<vmem>>, vector<1x64xf32>
    %43 = vector.broadcast %42 : vector<1x64xf32> to vector<256x64xf32>
    %44 = arith.addf %41, %43 : vector<256x64xf32>
    %cst_34 = arith.constant 0.000000e+00 : f32
    %45 = vector.broadcast %cst_34 : f32 to vector<256x64xf32>
    %46 = arith.maximumf %44, %45 : vector<256x64xf32>
    %47 = arith.truncf %46 : vector<256x64xf32> to vector<256x64xbf16>
    %c0_35 = arith.constant 0 : index
    %c0_36 = arith.constant 0 : index
    %48 = vector.load %arg14[%c0_35, %c0_36] : memref<64x128xbf16, #tpu.memory_space<vmem>>, vector<64x128xbf16>
    %cst_37 = arith.constant dense<0.000000e+00> : vector<256x128xf32>
    %49 = tpu.matmul %47, %48, %cst_37 {dimension_numbers = #tpu.dot_dimension_numbers<[1], [0], [0], [1], [0, 0, 1, 1], [], []>} : vector<256x64xbf16>, vector<64x128xbf16>, vector<256x128xf32> -> vector<256x128xf32>
    %c0_38 = arith.constant 0 : index
    %c0_39 = arith.constant 0 : index
    %50 = vector.load %arg15[%c0_38, %c0_39] : memref<1x128xf32, #tpu.memory_space<vmem>>, vector<1x128xf32>
    %51 = vector.broadcast %50 : vector<1x128xf32> to vector<256x128xf32>
    %52 = arith.addf %49, %51 : vector<256x128xf32>
    %cst_40 = arith.constant 0.000000e+00 : f32
    %53 = vector.broadcast %cst_40 : f32 to vector<256x128xf32>
    %54 = arith.maximumf %52, %53 : vector<256x128xf32>
    %55 = arith.truncf %54 : vector<256x128xf32> to vector<256x128xbf16>
    %c0_41 = arith.constant 0 : index
    %c0_42 = arith.constant 0 : index
    %56 = vector.load %arg16[%c0_41, %c0_42] : memref<128x784xbf16, #tpu.memory_space<vmem>>, vector<128x784xbf16>
    %cst_43 = arith.constant dense<0.000000e+00> : vector<256x784xf32>
    %57 = tpu.matmul %55, %56, %cst_43 {dimension_numbers = #tpu.dot_dimension_numbers<[1], [0], [0], [1], [0, 0, 1, 1], [], []>} : vector<256x128xbf16>, vector<128x784xbf16>, vector<256x784xf32> -> vector<256x784xf32>
    %c0_44 = arith.constant 0 : index
    %c0_45 = arith.constant 0 : index
    %58 = vector.load %arg17[%c0_44, %c0_45] : memref<1x784xf32, #tpu.memory_space<vmem>>, vector<1x784xf32>
    %59 = vector.broadcast %58 : vector<1x784xf32> to vector<256x784xf32>
    %60 = arith.addf %57, %59 : vector<256x784xf32>
    %61 = math.tanh %60 : vector<256x784xf32>
    %c0_46 = arith.constant 0 : index
    %c0_47 = arith.constant 0 : index
    %62 = vector.load %arg18[%c0_46, %c0_47] : memref<256x784xf32, #tpu.memory_space<vmem>>, vector<256x784xf32>
    tpu.vector_store %arg18[%c0_46, %c0_47], %61 {strides = array<i32>} : memref<256x784xf32, #tpu.memory_space<vmem>>, vector<256x784xf32>,
    return
  }
  func.func @transform_0(%arg0: i32) -> (i32, i32) {
    %c0_i32 = arith.constant 0 : i32
    %c0_i32_0 = arith.constant 0 : i32
    return %arg0, %c0_i32 : i32, i32
  }
  func.func @transform_1(%arg0: i32) -> (i32, i32) {
    %c0_i32 = arith.constant 0 : i32
    %c0_i32_0 = arith.constant 0 : i32
    %c0_i32_1 = arith.constant 0 : i32
    return %c0_i32, %c0_i32_0 : i32, i32
  }
  func.func @transform_2(%arg0: i32) -> (i32, i32) {
    %c0_i32 = arith.constant 0 : i32
    %c0_i32_0 = arith.constant 0 : i32
    %c0_i32_1 = arith.constant 0 : i32
    return %c0_i32, %c0_i32_0 : i32, i32
  }
  func.func @transform_3(%arg0: i32) -> (i32, i32) {
    %c0_i32 = arith.constant 0 : i32
    %c0_i32_0 = arith.constant 0 : i32
    %c0_i32_1 = arith.constant 0 : i32
    return %c0_i32, %c0_i32_0 : i32, i32
  }
  func.func @transform_4(%arg0: i32) -> (i32, i32) {
    %c0_i32 = arith.constant 0 : i32
    %c0_i32_0 = arith.constant 0 : i32
    %c0_i32_1 = arith.constant 0 : i32
    return %c0_i32, %c0_i32_0 : i32, i32
  }
  func.func @transform_5(%arg0: i32) -> (i32, i32) {
    %c0_i32 = arith.constant 0 : i32
    %c0_i32_0 = arith.constant 0 : i32
    %c0_i32_1 = arith.constant 0 : i32
    return %c0_i32, %c0_i32_0 : i32, i32
  }
  func.func @transform_6(%arg0: i32) -> (i32, i32) {
    %c0_i32 = arith.constant 0 : i32
    %c0_i32_0 = arith.constant 0 : i32
    %c0_i32_1 = arith.constant 0 : i32
    return %c0_i32, %c0_i32_0 : i32, i32
  }
  func.func @transform_7(%arg0: i32) -> (i32, i32) {
    %c0_i32 = arith.constant 0 : i32
    %c0_i32_0 = arith.constant 0 : i32
    %c0_i32_1 = arith.constant 0 : i32
    return %c0_i32, %c0_i32_0 : i32, i32
  }
  func.func @transform_8(%arg0: i32) -> (i32, i32) {
    %c0_i32 = arith.constant 0 : i32
    %c0_i32_0 = arith.constant 0 : i32
    %c0_i32_1 = arith.constant 0 : i32
    return %c0_i32, %c0_i32_0 : i32, i32
  }
  func.func @transform_9(%arg0: i32) -> (i32, i32) {
    %c0_i32 = arith.constant 0 : i32
    %c0_i32_0 = arith.constant 0 : i32
    %c0_i32_1 = arith.constant 0 : i32
    return %c0_i32, %c0_i32_0 : i32, i32
  }
  func.func @transform_10(%arg0: i32) -> (i32, i32) {
    %c0_i32 = arith.constant 0 : i32
    %c0_i32_0 = arith.constant 0 : i32
    %c0_i32_1 = arith.constant 0 : i32
    return %c0_i32, %c0_i32_0 : i32, i32
  }
  func.func @transform_11(%arg0: i32) -> (i32, i32) {
    %c0_i32 = arith.constant 0 : i32
    %c0_i32_0 = arith.constant 0 : i32
    %c0_i32_1 = arith.constant 0 : i32
    return %c0_i32, %c0_i32_0 : i32, i32
  }
  func.func @transform_12(%arg0: i32) -> (i32, i32) {
    %c0_i32 = arith.constant 0 : i32
    %c0_i32_0 = arith.constant 0 : i32
    %c0_i32_1 = arith.constant 0 : i32
    return %c0_i32, %c0_i32_0 : i32, i32
  }
  func.func @transform_13(%arg0: i32) -> (i32, i32) {
    %c0_i32 = arith.constant 0 : i32
    %c0_i32_0 = arith.constant 0 : i32
    %c0_i32_1 = arith.constant 0 : i32
    return %c0_i32, %c0_i32_0 : i32, i32
  }
  func.func @transform_14(%arg0: i32) -> (i32, i32) {
    %c0_i32 = arith.constant 0 : i32
    %c0_i32_0 = arith.constant 0 : i32
    %c0_i32_1 = arith.constant 0 : i32
    return %c0_i32, %c0_i32_0 : i32, i32
  }
  func.func @transform_15(%arg0: i32) -> (i32, i32) {
    %c0_i32 = arith.constant 0 : i32
    %c0_i32_0 = arith.constant 0 : i32
    %c0_i32_1 = arith.constant 0 : i32
    return %c0_i32, %c0_i32_0 : i32, i32
  }
  func.func @transform_16(%arg0: i32) -> (i32, i32) {
    %c0_i32 = arith.constant 0 : i32
    %c0_i32_0 = arith.constant 0 : i32
    %c0_i32_1 = arith.constant 0 : i32
    return %c0_i32, %c0_i32_0 : i32, i32
  }
  func.func @transform_17(%arg0: i32) -> (i32, i32) {
    %c0_i32 = arith.constant 0 : i32
    %c0_i32_0 = arith.constant 0 : i32
    return %arg0, %c0_i32 : i32, i32
  }
}

</mosaic_0001>

<llo_original>
// kernel: tpu_custom_call.1
$region0: #{tpu_custom_call.1}
  #allocation0 [shape = 'u32[]', space=smem, size = 0x4, offset = 0x4, fixed_abs, tag = 'smem constant byte address 0x4 - core index']
  #allocation1 [shape = 'u32[144,128]{1,0:T(1,128)}', space=vmem, size = 0x12000, scoped, tag = 'internal scratch']
  %s0 = inlined_call_operand.vmem [shape: f32[1024,784], index: 0, kind: input, shape index: {}]
  %s1 = inlined_call_operand.vmem [shape: bf16[784,128], index: 1, kind: input, shape index: {}]
  %s2 = inlined_call_operand.vmem [shape: f32[1,128], index: 2, kind: input, shape index: {}]
  %s3 = inlined_call_operand.vmem [shape: bf16[128,64], index: 3, kind: input, shape index: {}]
  %s4 = inlined_call_operand.vmem [shape: f32[1,64], index: 4, kind: input, shape index: {}]
  %s5 = inlined_call_operand.vmem [shape: bf16[64,128], index: 5, kind: input, shape index: {}]
  %s6 = inlined_call_operand.vmem [shape: f32[1,128], index: 6, kind: input, shape index: {}]
  %s7 = inlined_call_operand.vmem [shape: bf16[128,128], index: 7, kind: input, shape index: {}]
  %s8 = inlined_call_operand.vmem [shape: f32[1,128], index: 8, kind: input, shape index: {}]
  %s9 = inlined_call_operand.vmem [shape: bf16[128,128], index: 9, kind: input, shape index: {}]
  %s10 = inlined_call_operand.vmem [shape: f32[1,128], index: 10, kind: input, shape index: {}]
  %s11 = inlined_call_operand.vmem [shape: bf16[128,64], index: 11, kind: input, shape index: {}]
  %s12 = inlined_call_operand.vmem [shape: f32[1,64], index: 12, kind: input, shape index: {}]
  %s13 = inlined_call_operand.vmem [shape: bf16[64,128], index: 13, kind: input, shape index: {}]
  %s14 = inlined_call_operand.vmem [shape: f32[1,128], index: 14, kind: input, shape index: {}]
  %s15 = inlined_call_operand.vmem [shape: bf16[128,784], index: 15, kind: input, shape index: {}]
  %s16 = inlined_call_operand.vmem [shape: f32[1,784], index: 16, kind: input, shape index: {}]
  %s17 = inlined_call_operand.vmem [shape: f32[1024,784], index: 17, kind: output, shape index: {}]
  %s18 = sld [smem:[#allocation0]]
  $region101: #{tpu_custom_call.1} parent=0
    _
  %s20 = ssub.s32 1, %s18
  %s21 = scalar_select 0, %s20, %s18
  loop: start=0, step=1, limit=6
  $region2: #{tpu_custom_call.1} parent=0 // loop_pre_header
    _
  $region3: #{tpu_custom_call.1} parent=0 // loop_header
    %s23 = sphi 0, %s27
    %p24 = scmp.ge.s32.totalorder %s23, 6
    %s33 = sphi 0, %s35
    %s36 = sphi 0, %s33
    %s37 = sphi 0, %s36
    %s53 = sphi 0, %s37
    %s57 = sphi 0, %s57
    %s59 = sphi 0, %s57
    %s60 = sphi 0, %s59
    %s74 = sphi 0, %s60
    %s78 = sphi 0, %s78
    %s80 = sphi 0, %s78
    %s81 = sphi 0, %s80
    %s95 = sphi 0, %s81
    %s99 = sphi 0, %s99
    %s101 = sphi 0, %s99
    %s102 = sphi 0, %s101
    %s116 = sphi 0, %s102
    %s120 = sphi 0, %s120
    %s122 = sphi 0, %s120
    %s123 = sphi 0, %s122
    %s137 = sphi 0, %s123
    %s141 = sphi 0, %s141
    %s143 = sphi 0, %s141
    %s144 = sphi 0, %s143
    %s158 = sphi 0, %s144
    %s162 = sphi 0, %s162
    %s164 = sphi 0, %s162
    %s165 = sphi 0, %s164
    %s179 = sphi 0, %s165
    %s183 = sphi 0, %s183
    %s185 = sphi 0, %s183
    %s186 = sphi 0, %s185
    %s200 = sphi 0, %s186
    %s204 = sphi 0, %s204
    %s206 = sphi 0, %s204
    %s207 = sphi 0, %s206
    %s221 = sphi 0, %s207
    %s225 = sphi 0, %s225
    %s227 = sphi 0, %s225
    %s228 = sphi 0, %s227
    %s242 = sphi 0, %s228
    %s246 = sphi 0, %s246
    %s248 = sphi 0, %s246
    %s249 = sphi 0, %s248
    %s263 = sphi 0, %s249
    %s267 = sphi 0, %s267
    %s269 = sphi 0, %s267
    %s270 = sphi 0, %s269
    %s284 = sphi 0, %s270
    %s288 = sphi 0, %s288
    %s290 = sphi 0, %s288
    %s291 = sphi 0, %s290
    %s305 = sphi 0, %s291
    %s309 = sphi 0, %s309
    %s311 = sphi 0, %s309
    %s312 = sphi 0, %s311
    %s326 = sphi 0, %s312
    %s330 = sphi 0, %s330
    %s332 = sphi 0, %s330
    %s333 = sphi 0, %s332
    %s347 = sphi 0, %s333
    %s351 = sphi 0, %s351
    %s353 = sphi 0, %s351
    %s354 = sphi 0, %s353
    %s368 = sphi 0, %s354
    %s372 = sphi 0, %s372
    %s374 = sphi 0, %s372
    %s375 = sphi 0, %s374
    %s389 = sphi 0, %s375
    %s395 = sphi 0, %s397
    %s398 = sphi 0, %s395
    %s399 = sphi 0, %s398
    %s415 = sphi 0, %s399
  $region4: #{tpu_custom_call.1} parent=0 // loop_header_branch
    %26 = sbr.rel (%p24) target = $region8
  $region5: #{tpu_custom_call.1} parent=0 // loop_body
    %s28 = ssub.s32 %s23, 1
    %s29 = ssub.s32 %s23, 2
    %s30 = sadd.s32 %s23, 1
    %s31 = ssub.s32 %s23, %s30
    %p32 = scmp.eq.s32.totalorder %s31, 0
    %s34 = sadd.s32 %s33, 1
    %s35 = scalar_select %p32, %s33, %s34
    %p38 = pneg %p32
    %p39 = scmp.eq.s32.totalorder %s23, 3
    %p40 = por %p38, %p39
    %p41 = scmp.ne.s32.totalorder %s33, %s36
    %p42 = scmp.eq.s32.totalorder %s23, 0
    %p43 = por %p41, %p42
    %p44 = scmp.ne.s32.totalorder %s33, %s36
    %p45 = scmp.eq.s32.totalorder %s28, 3
    %p46 = por %p44, %p45
    %p47 = scmp.ne.s32.totalorder %s36, %s37
    %p48 = scmp.eq.s32.totalorder %s28, 0
    %p49 = por %p47, %p48
    %p50 = scmp.ne.s32.totalorder %s36, %s37
    %p51 = scmp.eq.s32.totalorder %s29, 3
    %p52 = por %p50, %p51
    %p54 = scmp.ne.s32.totalorder %s37, %s53
    %p55 = scmp.eq.s32.totalorder %s29, 0
    %p56 = por %p54, %p55
    %s58 = sadd.s32 %s57, 1
    %p61 = scmp.eq.s32.totalorder %s23, 3
    %p62 = scmp.ne.s32.totalorder %s57, %s59
    %p63 = scmp.eq.s32.totalorder %s23, 0
    %p64 = por %p62, %p63
    %p65 = scmp.ne.s32.totalorder %s57, %s59
    %p66 = scmp.eq.s32.totalorder %s28, 3
    %p67 = por %p65, %p66
    %p68 = scmp.ne.s32.totalorder %s59, %s60
    %p69 = scmp.eq.s32.totalorder %s28, 0
    %p70 = por %p68, %p69
    %p71 = scmp.ne.s32.totalorder %s59, %s60
    %p72 = scmp.eq.s32.totalorder %s29, 3
    %p73 = por %p71, %p72
    %p75 = scmp.ne.s32.totalorder %s60, %s74
    %p76 = scmp.eq.s32.totalorder %s29, 0
    %p77 = por %p75, %p76
    %s79 = sadd.s32 %s78, 1
    %p82 = scmp.eq.s32.totalorder %s23, 3
    %p83 = scmp.ne.s32.totalorder %s78, %s80
    %p84 = scmp.eq.s32.totalorder %s23, 0
    %p85 = por %p83, %p84
    %p86 = scmp.ne.s32.totalorder %s78, %s80
    %p87 = scmp.eq.s32.totalorder %s28, 3
    %p88 = por %p86, %p87
    %p89 = scmp.ne.s32.totalorder %s80, %s81
    %p90 = scmp.eq.s32.totalorder %s28, 0
    %p91 = por %p89, %p90
    %p92 = scmp.ne.s32.totalorder %s80, %s81
    %p93 = scmp.eq.s32.totalorder %s29, 3
    %p94 = por %p92, %p93
    %p96 = scmp.ne.s32.totalorder %s81, %s95
    %p97 = scmp.eq.s32.totalorder %s29, 0
    %p98 = por %p96, %p97
    %s100 = sadd.s32 %s99, 1
    %p103 = scmp.eq.s32.totalorder %s23, 3
    %p104 = scmp.ne.s32.totalorder %s99, %s101
    %p105 = scmp.eq.s32.totalorder %s23, 0
    %p106 = por %p104, %p105
    %p107 = scmp.ne.s32.totalorder %s99, %s101
    %p108 = scmp.eq.s32.totalorder %s28, 3
    %p109 = por %p107, %p108
    %p110 = scmp.ne.s32.totalorder %s101, %s102
    %p111 = scmp.eq.s32.totalorder %s28, 0
    %p112 = por %p110, %p111
    %p113 = scmp.ne.s32.totalorder %s101, %s102
    %p114 = scmp.eq.s32.totalorder %s29, 3
    %p115 = por %p113, %p114
    %p117 = scmp.ne.s32.totalorder %s102, %s116
    %p118 = scmp.eq.s32.totalorder %s29, 0
    %p119 = por %p117, %p118
    %s121 = sadd.s32 %s120, 1
    %p124 = scmp.eq.s32.totalorder %s23, 3
    %p125 = scmp.ne.s32.totalorder %s120, %s122
    %p126 = scmp.eq.s32.totalorder %s23, 0
    %p127 = por %p125, %p126
    %p128 = scmp.ne.s32.totalorder %s120, %s122
    %p129 = scmp.eq.s32.totalorder %s28, 3
    %p130 = por %p128, %p129
    %p131 = scmp.ne.s32.totalorder %s122, %s123
    %p132 = scmp.eq.s32.totalorder %s28, 0
    %p133 = por %p131, %p132
    %p134 = scmp.ne.s32.totalorder %s122, %s123
    %p135 = scmp.eq.s32.totalorder %s29, 3
    %p136 = por %p134, %p135
    %p138 = scmp.ne.s32.totalorder %s123, %s137
    %p139 = scmp.eq.s32.totalorder %s29, 0
    %p140 = por %p138, %p139
    %s142 = sadd.s32 %s141, 1
    %p145 = scmp.eq.s32.totalorder %s23, 3
    %p146 = scmp.ne.s32.totalorder %s141, %s143
    %p147 = scmp.eq.s32.totalorder %s23, 0
    %p148 = por %p146, %p147
    %p149 = scmp.ne.s32.totalorder %s141, %s143
    %p150 = scmp.eq.s32.totalorder %s28, 3
    %p151 = por %p149, %p150
    %p152 = scmp.ne.s32.totalorder %s143, %s144
    %p153 = scmp.eq.s32.totalorder %s28, 0
    %p154 = por %p152, %p153
    %p155 = scmp.ne.s32.totalorder %s143, %s144
    %p156 = scmp.eq.s32.totalorder %s29, 3
    %p157 = por %p155, %p156
    %p159 = scmp.ne.s32.totalorder %s144, %s158
    %p160 = scmp.eq.s32.totalorder %s29, 0
    %p161 = por %p159, %p160
    %s163 = sadd.s32 %s162, 1
    %p166 = scmp.eq.s32.totalorder %s23, 3
    %p167 = scmp.ne.s32.totalorder %s162, %s164
    %p168 = scmp.eq.s32.totalorder %s23, 0
    %p169 = por %p167, %p168
    %p170 = scmp.ne.s32.totalorder %s162, %s164
    %p171 = scmp.eq.s32.totalorder %s28, 3
    %p172 = por %p170, %p171
    %p173 = scmp.ne.s32.totalorder %s164, %s165
    %p174 = scmp.eq.s32.totalorder %s28, 0
    %p175 = por %p173, %p174
    %p176 = scmp.ne.s32.totalorder %s164, %s165
    %p177 = scmp.eq.s32.totalorder %s29, 3
    %p178 = por %p176, %p177
    %p180 = scmp.ne.s32.totalorder %s165, %s179
    %p181 = scmp.eq.s32.totalorder %s29, 0
    %p182 = por %p180, %p181
    %s184 = sadd.s32 %s183, 1
    %p187 = scmp.eq.s32.totalorder %s23, 3
    %p188 = scmp.ne.s32.totalorder %s183, %s185
    %p189 = scmp.eq.s32.totalorder %s23, 0
    %p190 = por %p188, %p189
    %p191 = scmp.ne.s32.totalorder %s183, %s185
    %p192 = scmp.eq.s32.totalorder %s28, 3
    %p193 = por %p191, %p192
    %p194 = scmp.ne.s32.totalorder %s185, %s186
    %p195 = scmp.eq.s32.totalorder %s28, 0
    %p196 = por %p194, %p195
    %p197 = scmp.ne.s32.totalorder %s185, %s186
    %p198 = scmp.eq.s32.totalorder %s29, 3
    %p199 = por %p197, %p198
    %p201 = scmp.ne.s32.totalorder %s186, %s200
    %p202 = scmp.eq.s32.totalorder %s29, 0
    %p203 = por %p201, %p202
    %s205 = sadd.s32 %s204, 1
    %p208 = scmp.eq.s32.totalorder %s23, 3
    %p209 = scmp.ne.s32.totalorder %s204, %s206
    %p210 = scmp.eq.s32.totalorder %s23, 0
    %p211 = por %p209, %p210
    %p212 = scmp.ne.s32.totalorder %s204, %s206
    %p213 = scmp.eq.s32.totalorder %s28, 3
    %p214 = por %p212, %p213
    %p215 = scmp.ne.s32.totalorder %s206, %s207
    %p216 = scmp.eq.s32.totalorder %s28, 0
    %p217 = por %p215, %p216
    %p218 = scmp.ne.s32.totalorder %s206, %s207
    %p219 = scmp.eq.s32.totalorder %s29, 3
    %p220 = por %p218, %p219
    %p222 = scmp.ne.s32.totalorder %s207, %s221
    %p223 = scmp.eq.s32.totalorder %s29, 0
    %p224 = por %p222, %p223
    %s226 = sadd.s32 %s225, 1
    %p229 = scmp.eq.s32.totalorder %s23, 3
    %p230 = scmp.ne.s32.totalorder %s225, %s227
    %p231 = scmp.eq.s32.totalorder %s23, 0
    %p232 = por %p230, %p231
    %p233 = scmp.ne.s32.totalorder %s225, %s227
    %p234 = scmp.eq.s32.totalorder %s28, 3
    %p235 = por %p233, %p234
    %p236 = scmp.ne.s32.totalorder %s227, %s228
    %p237 = scmp.eq.s32.totalorder %s28, 0
    %p238 = por %p236, %p237
    %p239 = scmp.ne.s32.totalorder %s227, %s228
    %p240 = scmp.eq.s32.totalorder %s29, 3
    %p241 = por %p239, %p240
    %p243 = scmp.ne.s32.totalorder %s228, %s242
    %p244 = scmp.eq.s32.totalorder %s29, 0
    %p245 = por %p243, %p244
    %s247 = sadd.s32 %s246, 1
    %p250 = scmp.eq.s32.totalorder %s23, 3
    %p251 = scmp.ne.s32.totalorder %s246, %s248
    %p252 = scmp.eq.s32.totalorder %s23, 0
    %p253 = por %p251, %p252
    %p254 = scmp.ne.s32.totalorder %s246, %s248
    %p255 = scmp.eq.s32.totalorder %s28, 3
    %p256 = por %p254, %p255
    %p257 = scmp.ne.s32.totalorder %s248, %s249
    %p258 = scmp.eq.s32.totalorder %s28, 0
    %p259 = por %p257, %p258
    %p260 = scmp.ne.s32.totalorder %s248, %s249
    %p261 = scmp.eq.s32.totalorder %s29, 3
    %p262 = por %p260, %p261
    %p264 = scmp.ne.s32.totalorder %s249, %s263
    %p265 = scmp.eq.s32.totalorder %s29, 0
    %p266 = por %p264, %p265
    %s268 = sadd.s32 %s267, 1
    %p271 = scmp.eq.s32.totalorder %s23, 3
    %p272 = scmp.ne.s32.totalorder %s267, %s269
    %p273 = scmp.eq.s32.totalorder %s23, 0
    %p274 = por %p272, %p273
    %p275 = scmp.ne.s32.totalorder %s267, %s269
    %p276 = scmp.eq.s32.totalorder %s28, 3
    %p277 = por %p275, %p276
    %p278 = scmp.ne.s32.totalorder %s269, %s270
    %p279 = scmp.eq.s32.totalorder %s28, 0
    %p280 = por %p278, %p279
    %p281 = scmp.ne.s32.totalorder %s269, %s270
    %p282 = scmp.eq.s32.totalorder %s29, 3
    %p283 = por %p281, %p282
    %p285 = scmp.ne.s32.totalorder %s270, %s284
    %p286 = scmp.eq.s32.totalorder %s29, 0
    %p287 = por %p285, %p286
    %s289 = sadd.s32 %s288, 1
    %p292 = scmp.eq.s32.totalorder %s23, 3
    %p293 = scmp.ne.s32.totalorder %s288, %s290
    %p294 = scmp.eq.s32.totalorder %s23, 0
    %p295 = por %p293, %p294
    %p296 = scmp.ne.s32.totalorder %s288, %s290
    %p297 = scmp.eq.s32.totalorder %s28, 3
    %p298 = por %p296, %p297
    %p299 = scmp.ne.s32.totalorder %s290, %s291
    %p300 = scmp.eq.s32.totalorder %s28, 0
    %p301 = por %p299, %p300
    %p302 = scmp.ne.s32.totalorder %s290, %s291
    %p303 = scmp.eq.s32.totalorder %s29, 3
    %p304 = por %p302, %p303
    %p306 = scmp.ne.s32.totalorder %s291, %s305
    %p307 = scmp.eq.s32.totalorder %s29, 0
    %p308 = por %p306, %p307
    %s310 = sadd.s32 %s309, 1
    %p313 = scmp.eq.s32.totalorder %s23, 3
    %p314 = scmp.ne.s32.totalorder %s309, %s311
    %p315 = scmp.eq.s32.totalorder %s23, 0
    %p316 = por %p314, %p315
    %p317 = scmp.ne.s32.totalorder %s309, %s311
    %p318 = scmp.eq.s32.totalorder %s28, 3
    %p319 = por %p317, %p318
    %p320 = scmp.ne.s32.totalorder %s311, %s312
    %p321 = scmp.eq.s32.totalorder %s28, 0
    %p322 = por %p320, %p321
    %p323 = scmp.ne.s32.totalorder %s311, %s312
    %p324 = scmp.eq.s32.totalorder %s29, 3
    %p325 = por %p323, %p324
    %p327 = scmp.ne.s32.totalorder %s312, %s326
    %p328 = scmp.eq.s32.totalorder %s29, 0
    %p329 = por %p327, %p328
    %s331 = sadd.s32 %s330, 1
    %p334 = scmp.eq.s32.totalorder %s23, 3
    %p335 = scmp.ne.s32.totalorder %s330, %s332
    %p336 = scmp.eq.s32.totalorder %s23, 0
    %p337 = por %p335, %p336
    %p338 = scmp.ne.s32.totalorder %s330, %s332
    %p339 = scmp.eq.s32.totalorder %s28, 3
    %p340 = por %p338, %p339
    %p341 = scmp.ne.s32.totalorder %s332, %s333
    %p342 = scmp.eq.s32.totalorder %s28, 0
    %p343 = por %p341, %p342
    %p344 = scmp.ne.s32.totalorder %s332, %s333
    %p345 = scmp.eq.s32.totalorder %s29, 3
    %p346 = por %p344, %p345
    %p348 = scmp.ne.s32.totalorder %s333, %s347
    %p349 = scmp.eq.s32.totalorder %s29, 0
    %p350 = por %p348, %p349
    %s352 = sadd.s32 %s351, 1
    %p355 = scmp.eq.s32.totalorder %s23, 3
    %p356 = scmp.ne.s32.totalorder %s351, %s353
    %p357 = scmp.eq.s32.totalorder %s23, 0
    %p358 = por %p356, %p357
    %p359 = scmp.ne.s32.totalorder %s351, %s353
    %p360 = scmp.eq.s32.totalorder %s28, 3
    %p361 = por %p359, %p360
    %p362 = scmp.ne.s32.totalorder %s353, %s354
    %p363 = scmp.eq.s32.totalorder %s28, 0
    %p364 = por %p362, %p363
    %p365 = scmp.ne.s32.totalorder %s353, %s354
    %p366 = scmp.eq.s32.totalorder %s29, 3
    %p367 = por %p365, %p366
    %p369 = scmp.ne.s32.totalorder %s354, %s368
    %p370 = scmp.eq.s32.totalorder %s29, 0
    %p371 = por %p369, %p370
    %s373 = sadd.s32 %s372, 1
    %p376 = scmp.eq.s32.totalorder %s23, 3
    %p377 = scmp.ne.s32.totalorder %s372, %s374
    %p378 = scmp.eq.s32.totalorder %s23, 0
    %p379 = por %p377, %p378
    %p380 = scmp.ne.s32.totalorder %s372, %s374
    %p381 = scmp.eq.s32.totalorder %s28, 3
    %p382 = por %p380, %p381
    %p383 = scmp.ne.s32.totalorder %s374, %s375
    %p384 = scmp.eq.s32.totalorder %s28, 0
    %p385 = por %p383, %p384
    %p386 = scmp.ne.s32.totalorder %s374, %s375
    %p387 = scmp.eq.s32.totalorder %s29, 3
    %p388 = por %p386, %p387
    %p390 = scmp.ne.s32.totalorder %s375, %s389
    %p391 = scmp.eq.s32.totalorder %s29, 0
    %p392 = por %p390, %p391
    %s393 = ssub.s32 %s23, %s30
    %p394 = scmp.eq.s32.totalorder %s393, 0
    %s396 = sadd.s32 %s395, 1
    %s397 = scalar_select %p394, %s395, %s396
    %p400 = pneg %p394
    %p401 = scmp.eq.s32.totalorder %s23, 3
    %p402 = por %p400, %p401
    %p403 = scmp.ne.s32.totalorder %s395, %s398
    %p404 = scmp.eq.s32.totalorder %s23, 0
    %p405 = por %p403, %p404
    %p406 = scmp.ne.s32.totalorder %s395, %s398
    %p407 = scmp.eq.s32.totalorder %s28, 3
    %p408 = por %p406, %p407
    %p409 = scmp.ne.s32.totalorder %s398, %s399
    %p410 = scmp.eq.s32.totalorder %s28, 0
    %p411 = por %p409, %p410
    %p412 = scmp.ne.s32.totalorder %s398, %s399
    %p413 = scmp.eq.s32.totalorder %s29, 3
    %p414 = por %p412, %p413
    %p416 = scmp.ne.s32.totalorder %s399, %s415
    %p417 = scmp.eq.s32.totalorder %s29, 0
    %p418 = por %p416, %p417
    %p419 = scmp.le.s32.totalorder 1, %s23
    %p420 = scmp.lt.s32.totalorder %s23, 5
    %p421 = pnand %p419, %p420
    %p422 = pneg %p421
    // Predicated region
    $region9: #{tpu_custom_call.1} parent=5 // pred_check
      _
    $region10: #{tpu_custom_call.1} parent=5 // pred_check_branch
      %424 = sbr.rel (%p421) target = $region12
    $region11: #{tpu_custom_call.1} parent=5 // pred_region
      %s425 = ssub.s32 %s23, 1
      // Predicated region
      $region13: #{tpu_custom_call.1} parent=11 // pred_check
        %p426 = pneg %p70
      $region14: #{tpu_custom_call.1} parent=11 // pred_check_branch
        %428 = sbr.rel (%p426) target = $region16
      $region15: #{tpu_custom_call.1} parent=11 // pred_region
        _
      $region16: #{tpu_custom_call.1} parent=11 // pred_fallthru
        _
      // Predicated region
      $region17: #{tpu_custom_call.1} parent=11 // pred_check
        %p429 = pneg %p91
      $region18: #{tpu_custom_call.1} parent=11 // pred_check_branch
        %431 = sbr.rel (%p429) target = $region20
      $region19: #{tpu_custom_call.1} parent=11 // pred_region
        _
      $region20: #{tpu_custom_call.1} parent=11 // pred_fallthru
        _
      // Predicated region
      $region21: #{tpu_custom_call.1} parent=11 // pred_check
        %p432 = pneg %p112
      $region22: #{tpu_custom_call.1} parent=11 // pred_check_branch
        %434 = sbr.rel (%p432) target = $region24
      $region23: #{tpu_custom_call.1} parent=11 // pred_region
        _
      $region24: #{tpu_custom_call.1} parent=11 // pred_fallthru
        _
      // Predicated region
      $region25: #{tpu_custom_call.1} parent=11 // pred_check
        %p435 = pneg %p133
      $region26: #{tpu_custom_call.1} parent=11 // pred_check_branch
        %437 = sbr.rel (%p435) target = $region28
      $region27: #{tpu_custom_call.1} parent=11 // pred_region
        _
      $region28: #{tpu_custom_call.1} parent=11 // pred_fallthru
        _
      // Predicated region
      $region29: #{tpu_custom_call.1} parent=11 // pred_check
        %p438 = pneg %p154
      $region30: #{tpu_custom_call.1} parent=11 // pred_check_branch
        %440 = sbr.rel (%p438) target = $region32
      $region31: #{tpu_custom_call.1} parent=11 // pred_region
        _
      $region32: #{tpu_custom_call.1} parent=11 // pred_fallthru
        _
      // Predicated region
      $region33: #{tpu_custom_call.1} parent=11 // pred_check
        %p441 = pneg %p175
      $region34: #{tpu_custom_call.1} parent=11 // pred_check_branch
        %443 = sbr.rel (%p441) target = $region36
      $region35: #{tpu_custom_call.1} parent=11 // pred_region
        _
      $region36: #{tpu_custom_call.1} parent=11 // pred_fallthru
        _
      // Predicated region
      $region37: #{tpu_custom_call.1} parent=11 // pred_check
        %p444 = pneg %p196
      $region38: #{tpu_custom_call.1} parent=11 // pred_check_branch
        %446 = sbr.rel (%p444) target = $region40
      $region39: #{tpu_custom_call.1} parent=11 // pred_region
        _
      $region40: #{tpu_custom_call.1} parent=11 // pred_fallthru
        _
      // Predicated region
      $region41: #{tpu_custom_call.1} parent=11 // pred_check
        %p447 = pneg %p217
      $region42: #{tpu_custom_call.1} parent=11 // pred_check_branch
        %449 = sbr.rel (%p447) target = $region44
      $region43: #{tpu_custom_call.1} parent=11 // pred_region
        _
      $region44: #{tpu_custom_call.1} parent=11 // pred_fallthru
        _
      // Predicated region
      $region45: #{tpu_custom_call.1} parent=11 // pred_check
        %p450 = pneg %p238
      $region46: #{tpu_custom_call.1} parent=11 // pred_check_branch
        %452 = sbr.rel (%p450) target = $region48
      $region47: #{tpu_custom_call.1} parent=11 // pred_region
        _
      $region48: #{tpu_custom_call.1} parent=11 // pred_fallthru
        _
      // Predicated region
      $region49: #{tpu_custom_call.1} parent=11 // pred_check
        %p453 = pneg %p259
      $region50: #{tpu_custom_call.1} parent=11 // pred_check_branch
        %455 = sbr.rel (%p453) target = $region52
      $region51: #{tpu_custom_call.1} parent=11 // pred_region
        _
      $region52: #{tpu_custom_call.1} parent=11 // pred_fallthru
        _
      // Predicated region
      $region53: #{tpu_custom_call.1} parent=11 // pred_check
        %p456 = pneg %p280
      $region54: #{tpu_custom_call.1} parent=11 // pred_check_branch
        %458 = sbr.rel (%p456) target = $region56
      $region55: #{tpu_custom_call.1} parent=11 // pred_region
        _
      $region56: #{tpu_custom_call.1} parent=11 // pred_fallthru
        _
      // Predicated region
      $region57: #{tpu_custom_call.1} parent=11 // pred_check
        %p459 = pneg %p301
      $region58: #{tpu_custom_call.1} parent=11 // pred_check_branch
        %461 = sbr.rel (%p459) target = $region60
      $region59: #{tpu_custom_call.1} parent=11 // pred_region
        _
      $region60: #{tpu_custom_call.1} parent=11 // pred_fallthru
        _
      // Predicated region
      $region61: #{tpu_custom_call.1} parent=11 // pred_check
        %p462 = pneg %p322
      $region62: #{tpu_custom_call.1} parent=11 // pred_check_branch
        %464 = sbr.rel (%p462) target = $region64
      $region63: #{tpu_custom_call.1} parent=11 // pred_region
        _
      $region64: #{tpu_custom_call.1} parent=11 // pred_fallthru
        _
      // Predicated region
      $region65: #{tpu_custom_call.1} parent=11 // pred_check
        %p465 = pneg %p343
      $region66: #{tpu_custom_call.1} parent=11 // pred_check_branch
        %467 = sbr.rel (%p465) target = $region68
      $region67: #{tpu_custom_call.1} parent=11 // pred_region
        _
      $region68: #{tpu_custom_call.1} parent=11 // pred_fallthru
        _
      // Predicated region
      $region69: #{tpu_custom_call.1} parent=11 // pred_check
        %p468 = pneg %p364
      $region70: #{tpu_custom_call.1} parent=11 // pred_check_branch
        %470 = sbr.rel (%p468) target = $region72
      $region71: #{tpu_custom_call.1} parent=11 // pred_region
        _
      $region72: #{tpu_custom_call.1} parent=11 // pred_fallthru
        _
      // Predicated region
      $region73: #{tpu_custom_call.1} parent=11 // pred_check
        %p471 = pneg %p385
      $region74: #{tpu_custom_call.1} parent=11 // pred_check_branch
        %473 = sbr.rel (%p471) target = $region76
      $region75: #{tpu_custom_call.1} parent=11 // pred_region
        _
      $region76: #{tpu_custom_call.1} parent=11 // pred_fallthru
        _
    $region12: #{tpu_custom_call.1} parent=5 // pred_fallthru
      _
    %p474 = scmp.lt.s32.totalorder %s23, 4
    // Predicated region
    $region77: #{tpu_custom_call.1} parent=5 // pred_check
      %p475 = pneg %p474
    $region78: #{tpu_custom_call.1} parent=5 // pred_check_branch
      %477 = sbr.rel (%p475) target = $region80
    $region79: #{tpu_custom_call.1} parent=5 // pred_region
      // Predicated region
      $region81: #{tpu_custom_call.1} parent=79 // pred_check
        %p478 = pneg %p43
      $region82: #{tpu_custom_call.1} parent=79 // pred_check_branch
        %480 = sbr.rel (%p478) target = $region84
      $region83: #{tpu_custom_call.1} parent=79 // pred_region
        %s481 = smul.u32 32, %s23
        %p482 = scmp.lt.s32.totalorder %s481, 127
        %s483 = scalar_select %p482, %s481, 127
        %s484 = smul.addr %s483, 7
        %s485 = smul.addr %s484, 8
        %s486 = scalar_lea.vmem %s0, %s485
        %s487 = smul.u32 32, %s23
      $region84: #{tpu_custom_call.1} parent=79 // pred_fallthru
        _
    $region80: #{tpu_custom_call.1} parent=5 // pred_fallthru
      _
    %p488 = scmp.le.s32.totalorder 1, %s23
    %p489 = scmp.lt.s32.totalorder %s23, 5
    %p490 = pnand %p488, %p489
    %p491 = pneg %p490
    // Predicated region
    $region85: #{tpu_custom_call.1} parent=5 // pred_check
      _
    $region86: #{tpu_custom_call.1} parent=5 // pred_check_branch
      %493 = sbr.rel (%p490) target = $region88
    $region87: #{tpu_custom_call.1} parent=5 // pred_region
      %s494 = ssub.s32 %s23, 1
      %s495 = smul.u32 32, %s28
      %p496 = scmp.lt.s32.totalorder %s495, 127
      %s497 = scalar_select %p496, %s495, 127
      %s498 = smul.addr %s497, 7
      %s499 = smul.addr %s498, 8
      %s500 = scalar_lea.vmem %s0, %s499
      %p501 = pneg %p49
      %p502 = pneg %p46
      %p503 = pneg %p70
      %p504 = pneg %p67
      %p505 = pneg %p91
      %p506 = pneg %p88
      %p507 = pneg %p112
      %p508 = pneg %p109
      %p509 = pneg %p133
      %p510 = pneg %p130
      %p511 = pneg %p154
      %p512 = pneg %p151
      %p513 = pneg %p175
      %p514 = pneg %p172
      %p515 = pneg %p196
      %p516 = pneg %p193
      %p517 = pneg %p217
      %p518 = pneg %p214
      %p519 = pneg %p238
      %p520 = pneg %p235
      %p521 = pneg %p259
      %p522 = pneg %p256
      %p523 = pneg %p280
      %p524 = pneg %p277
      %p525 = pneg %p301
      %p526 = pneg %p298
      %p527 = pneg %p322
      %p528 = pneg %p319
      %p529 = pneg %p343
      %p530 = pneg %p340
      %p531 = pneg %p364
      %p532 = pneg %p361
      %p533 = pneg %p385
      %p534 = pneg %p382
      %p535 = pneg %p411
      %p536 = pneg %p408
      %s537 = smul.u32 32, %s28
      %p538 = scmp.lt.s32.totalorder %s537, 127
      %s539 = scalar_select %p538, %s537, 127
      %s540 = smul.addr %s539, 7
      %s541 = smul.addr %s540, 8
      %s542 = scalar_lea.vmem %s17, %s541
      %s543 = smul.u32 32, %s28
      %p544 = scmp.lt.s32.totalorder %s543, 127
      %s545 = scalar_select %p544, %s543, 127
      %s546 = smul.addr %s545, 7
      %s547 = smul.addr %s546, 8
      %s548 = scalar_lea.vmem %s0, %s547
      %s549 = smul.u32 32, %s28
      %s550 = smul.u32 32, %s28
      %p551 = scmp.lt.s32.totalorder %s550, 127
      %s552 = scalar_select %p551, %s550, 127
      %s553 = smul.addr %s552, 7
      %s554 = smul.addr %s553, 8
      %s555 = scalar_lea.vmem %s17, %s554
      %s556 = smul.u32 32, %s28
      %v558 = vld [vmem:[%s548] sm:$0xff]
      %v559 = vld [vmem:[%s548 + $0x8] sm:$0xff]
      %v560 = vld [vmem:[%s548 + $0x10] sm:$0xff]
      %v561 = vld [vmem:[%s548 + $0x18] sm:$0xff]
      %v562 = vld [vmem:[%s548 + $0x20] sm:$0xff]
      %v563 = vld [vmem:[%s548 + $0x28] sm:$0xff]
      %v564 = vld [vmem:[%s548 + $0x30] sm:$0xff]
      %v565 = vld [vmem:[%s548 + $0x38] sm:$0xff]
      %v566 = vld [vmem:[%s548 + $0x40] sm:$0xff]
      %v567 = vld [vmem:[%s548 + $0x48] sm:$0xff]
      %v568 = vld [vmem:[%s548 + $0x50] sm:$0xff]
      %v569 = vld [vmem:[%s548 + $0x58] sm:$0xff]
      %v570 = vld [vmem:[%s548 + $0x60] sm:$0xff]
      %v571 = vld [vmem:[%s548 + $0x68] sm:$0xff]
      %v572 = vld [vmem:[%s548 + $0x70] sm:$0xff]
      %v573 = vld [vmem:[%s548 + $0x78] sm:$0xff]
      %v574 = vld [vmem:[%s548 + $0x80] sm:$0xff]
      %v575 = vld [vmem:[%s548 + $0x88] sm:$0xff]
      %v576 = vld [vmem:[%s548 + $0x90] sm:$0xff]
      %v577 = vld [vmem:[%s548 + $0x98] sm:$0xff]
      %v578 = vld [vmem:[%s548 + $0xa0] sm:$0xff]
      %v579 = vld [vmem:[%s548 + $0xa8] sm:$0xff]
      %v580 = vld [vmem:[%s548 + $0xb0] sm:$0xff]
      %v581 = vld [vmem:[%s548 + $0xb8] sm:$0xff]
      %v582 = vld [vmem:[%s548 + $0xc0] sm:$0xff]
      %v583 = vld [vmem:[%s548 + $0xc8] sm:$0xff]
      %v584 = vld [vmem:[%s548 + $0xd0] sm:$0xff]
      %v585 = vld [vmem:[%s548 + $0xd8] sm:$0xff]
      %v586 = vld [vmem:[%s548 + $0xe0] sm:$0xff]
      %v587 = vld [vmem:[%s548 + $0xe8] sm:$0xff]
      %v588 = vld [vmem:[%s548 + $0xf0] sm:$0xff]
      %v589 = vld [vmem:[%s548 + $0xf8] sm:$0xff]
      %v590 = vld [vmem:[%s548 + $0x100] sm:$0xff]
      %v591 = vld [vmem:[%s548 + $0x108] sm:$0xff]
      %v592 = vld [vmem:[%s548 + $0x110] sm:$0xff]
      %v593 = vld [vmem:[%s548 + $0x118] sm:$0xff]
      %v594 = vld [vmem:[%s548 + $0x120] sm:$0xff]
      %v595 = vld [vmem:[%s548 + $0x128] sm:$0xff]
      %v596 = vld [vmem:[%s548 + $0x130] sm:$0xff]
      %v597 = vld [vmem:[%s548 + $0x138] sm:$0xff]
      %v598 = vld [vmem:[%s548 + $0x140] sm:$0xff]
      %v599 = vld [vmem:[%s548 + $0x148] sm:$0xff]
      %v600 = vld [vmem:[%s548 + $0x150] sm:$0xff]
      %v601 = vld [vmem:[%s548 + $0x158] sm:$0xff]
      %v602 = vld [vmem:[%s548 + $0x160] sm:$0xff]
      %v603 = vld [vmem:[%s548 + $0x168] sm:$0xff]
      %v604 = vld [vmem:[%s548 + $0x170] sm:$0xff]
      %v605 = vld [vmem:[%s548 + $0x178] sm:$0xff]
      %v606 = vld [vmem:[%s548 + $0x180] sm:$0xff]
      %v607 = vld [vmem:[%s548 + $0x188] sm:$0xff]
      %v608 = vld [vmem:[%s548 + $0x190] sm:$0xff]
      %v609 = vld [vmem:[%s548 + $0x198] sm:$0xff]
      %v610 = vld [vmem:[%s548 + $0x1a0] sm:$0xff]
      %v611 = vld [vmem:[%s548 + $0x1a8] sm:$0xff]
      %v612 = vld [vmem:[%s548 + $0x1b0] sm:$0xff]
      %v613 = vld [vmem:[%s548 + $0x1b8] sm:$0xff]
      %v614 = vld [vmem:[%s548 + $0x1c0] sm:$0xff]
      %v615 = vld [vmem:[%s548 + $0x1c8] sm:$0xff]
      %v616 = vld [vmem:[%s548 + $0x1d0] sm:$0xff]
      %v617 = vld [vmem:[%s548 + $0x1d8] sm:$0xff]
      %v618 = vld [vmem:[%s548 + $0x1e0] sm:$0xff]
      %v619 = vld [vmem:[%s548 + $0x1e8] sm:$0xff]
      %v620 = vld [vmem:[%s548 + $0x1f0] sm:$0xff]
      %v621 = vld [vmem:[%s548 + $0x1f8] sm:$0xff]
      %v622 = vld [vmem:[%s548 + $0x200] sm:$0xff]
      %v623 = vld [vmem:[%s548 + $0x208] sm:$0xff]
      %v624 = vld [vmem:[%s548 + $0x210] sm:$0xff]
      %v625 = vld [vmem:[%s548 + $0x218] sm:$0xff]
      %v626 = vld [vmem:[%s548 + $0x220] sm:$0xff]
      %v627 = vld [vmem:[%s548 + $0x228] sm:$0xff]
      %v628 = vld [vmem:[%s548 + $0x230] sm:$0xff]
      %v629 = vld [vmem:[%s548 + $0x238] sm:$0xff]
      %v630 = vld [vmem:[%s548 + $0x240] sm:$0xff]
      %v631 = vld [vmem:[%s548 + $0x248] sm:$0xff]
      %v632 = vld [vmem:[%s548 + $0x250] sm:$0xff]
      %v633 = vld [vmem:[%s548 + $0x258] sm:$0xff]
      %v634 = vld [vmem:[%s548 + $0x260] sm:$0xff]
      %v635 = vld [vmem:[%s548 + $0x268] sm:$0xff]
      %v636 = vld [vmem:[%s548 + $0x270] sm:$0xff]
      %v637 = vld [vmem:[%s548 + $0x278] sm:$0xff]
      %v638 = vld [vmem:[%s548 + $0x280] sm:$0xff]
      %v639 = vld [vmem:[%s548 + $0x288] sm:$0xff]
      %v640 = vld [vmem:[%s548 + $0x290] sm:$0xff]
      %v641 = vld [vmem:[%s548 + $0x298] sm:$0xff]
      %v642 = vld [vmem:[%s548 + $0x2a0] sm:$0xff]
      %v643 = vld [vmem:[%s548 + $0x2a8] sm:$0xff]
      %v644 = vld [vmem:[%s548 + $0x2b0] sm:$0xff]
      %v645 = vld [vmem:[%s548 + $0x2b8] sm:$0xff]
      %v646 = vld [vmem:[%s548 + $0x2c0] sm:$0xff]
      %v647 = vld [vmem:[%s548 + $0x2c8] sm:$0xff]
      %v648 = vld [vmem:[%s548 + $0x2d0] sm:$0xff]
      %v649 = vld [vmem:[%s548 + $0x2d8] sm:$0xff]
      %v650 = vld [vmem:[%s548 + $0x2e0] sm:$0xff]
      %v651 = vld [vmem:[%s548 + $0x2e8] sm:$0xff]
      %v652 = vld [vmem:[%s548 + $0x2f0] sm:$0xff]
      %v653 = vld [vmem:[%s548 + $0x2f8] sm:$0xff]
      %v654 = vld [vmem:[%s548 + $0x300] sm:$0xff]
      %v655 = vld [vmem:[%s548 + $0x308] sm:$0xff]
      %v656 = vld [vmem:[%s548 + $0x310] sm:$0xff]
      %v657 = vld [vmem:[%s548 + $0x318] sm:$0xff]
      %v658 = vld [vmem:[%s548 + $0x320] sm:$0xff]
      %v659 = vld [vmem:[%s548 + $0x328] sm:$0xff]
      %v660 = vld [vmem:[%s548 + $0x330] sm:$0xff]
      %v661 = vld [vmem:[%s548 + $0x338] sm:$0xff]
      %v662 = vld [vmem:[%s548 + $0x340] sm:$0xff]
      %v663 = vld [vmem:[%s548 + $0x348] sm:$0xff]
      %v664 = vld [vmem:[%s548 + $0x350] sm:$0xff]
      %v665 = vld [vmem:[%s548 + $0x358] sm:$0xff]
      %v666 = vld [vmem:[%s548 + $0x360] sm:$0xff]
      %v667 = vld [vmem:[%s548 + $0x368] sm:$0xff]
      %v668 = vld [vmem:[%s548 + $0x370] sm:$0xff]
      %v669 = vld [vmem:[%s548 + $0x378] sm:$0xff]
      %v670 = vld [vmem:[%s548 + $0x380] sm:$0xff]
      %v671 = vld [vmem:[%s548 + $0x388] sm:$0xff]
      %v672 = vld [vmem:[%s548 + $0x390] sm:$0xff]
      %v673 = vld [vmem:[%s548 + $0x398] sm:$0xff]
      %v674 = vld [vmem:[%s548 + $0x3a0] sm:$0xff]
      %v675 = vld [vmem:[%s548 + $0x3a8] sm:$0xff]
      %v676 = vld [vmem:[%s548 + $0x3b0] sm:$0xff]
      %v677 = vld [vmem:[%s548 + $0x3b8] sm:$0xff]
      %v678 = vld [vmem:[%s548 + $0x3c0] sm:$0xff]
      %v679 = vld [vmem:[%s548 + $0x3c8] sm:$0xff]
      %v680 = vld [vmem:[%s548 + $0x3d0] sm:$0xff]
      %v681 = vld [vmem:[%s548 + $0x3d8] sm:$0xff]
      %v682 = vld [vmem:[%s548 + $0x3e0] sm:$0xff]
      %v683 = vld [vmem:[%s548 + $0x3e8] sm:$0xff]
      %v684 = vld [vmem:[%s548 + $0x3f0] sm:$0xff]
      %v685 = vld [vmem:[%s548 + $0x3f8] sm:$0xff]
      %v686 = vld [vmem:[%s548 + $0x400] sm:$0xff]
      %v687 = vld [vmem:[%s548 + $0x408] sm:$0xff]
      %v688 = vld [vmem:[%s548 + $0x410] sm:$0xff]
      %v689 = vld [vmem:[%s548 + $0x418] sm:$0xff]
      %v690 = vld [vmem:[%s548 + $0x420] sm:$0xff]
      %v691 = vld [vmem:[%s548 + $0x428] sm:$0xff]
      %v692 = vld [vmem:[%s548 + $0x430] sm:$0xff]
      %v693 = vld [vmem:[%s548 + $0x438] sm:$0xff]
      %v694 = vld [vmem:[%s548 + $0x440] sm:$0xff]
      %v695 = vld [vmem:[%s548 + $0x448] sm:$0xff]
      %v696 = vld [vmem:[%s548 + $0x450] sm:$0xff]
      %v697 = vld [vmem:[%s548 + $0x458] sm:$0xff]
      %v698 = vld [vmem:[%s548 + $0x460] sm:$0xff]
      %v699 = vld [vmem:[%s548 + $0x468] sm:$0xff]
      %v700 = vld [vmem:[%s548 + $0x470] sm:$0xff]
      %v701 = vld [vmem:[%s548 + $0x478] sm:$0xff]
      %v702 = vld [vmem:[%s548 + $0x480] sm:$0xff]
      %v703 = vld [vmem:[%s548 + $0x488] sm:$0xff]
      %v704 = vld [vmem:[%s548 + $0x490] sm:$0xff]
      %v705 = vld [vmem:[%s548 + $0x498] sm:$0xff]
      %v706 = vld [vmem:[%s548 + $0x4a0] sm:$0xff]
      %v707 = vld [vmem:[%s548 + $0x4a8] sm:$0xff]
      %v708 = vld [vmem:[%s548 + $0x4b0] sm:$0xff]
      %v709 = vld [vmem:[%s548 + $0x4b8] sm:$0xff]
      %v710 = vld [vmem:[%s548 + $0x4c0] sm:$0xff]
      %v711 = vld [vmem:[%s548 + $0x4c8] sm:$0xff]
      %v712 = vld [vmem:[%s548 + $0x4d0] sm:$0xff]
      %v713 = vld [vmem:[%s548 + $0x4d8] sm:$0xff]
      %v714 = vld [vmem:[%s548 + $0x4e0] sm:$0xff]
      %v715 = vld [vmem:[%s548 + $0x4e8] sm:$0xff]
      %v716 = vld [vmem:[%s548 + $0x4f0] sm:$0xff]
      %v717 = vld [vmem:[%s548 + $0x4f8] sm:$0xff]
      %v718 = vld [vmem:[%s548 + $0x500] sm:$0xff]
      %v719 = vld [vmem:[%s548 + $0x508] sm:$0xff]
      %v720 = vld [vmem:[%s548 + $0x510] sm:$0xff]
      %v721 = vld [vmem:[%s548 + $0x518] sm:$0xff]
      %v722 = vld [vmem:[%s548 + $0x520] sm:$0xff]
      %v723 = vld [vmem:[%s548 + $0x528] sm:$0xff]
      %v724 = vld [vmem:[%s548 + $0x530] sm:$0xff]
      %v725 = vld [vmem:[%s548 + $0x538] sm:$0xff]
      %v726 = vld [vmem:[%s548 + $0x540] sm:$0xff]
      %v727 = vld [vmem:[%s548 + $0x548] sm:$0xff]
      %v728 = vld [vmem:[%s548 + $0x550] sm:$0xff]
      %v729 = vld [vmem:[%s548 + $0x558] sm:$0xff]
      %v730 = vld [vmem:[%s548 + $0x560] sm:$0xff]
      %v731 = vld [vmem:[%s548 + $0x568] sm:$0xff]
      %v732 = vld [vmem:[%s548 + $0x570] sm:$0xff]
      %v733 = vld [vmem:[%s548 + $0x578] sm:$0xff]
      %v734 = vld [vmem:[%s548 + $0x580] sm:$0xff]
      %v735 = vld [vmem:[%s548 + $0x588] sm:$0xff]
      %v736 = vld [vmem:[%s548 + $0x590] sm:$0xff]
      %v737 = vld [vmem:[%s548 + $0x598] sm:$0xff]
      %v738 = vld [vmem:[%s548 + $0x5a0] sm:$0xff]
      %v739 = vld [vmem:[%s548 + $0x5a8] sm:$0xff]
      %v740 = vld [vmem:[%s548 + $0x5b0] sm:$0xff]
      %v741 = vld [vmem:[%s548 + $0x5b8] sm:$0xff]
      %v742 = vld [vmem:[%s548 + $0x5c0] sm:$0xff]
      %v743 = vld [vmem:[%s548 + $0x5c8] sm:$0xff]
      %v744 = vld [vmem:[%s548 + $0x5d0] sm:$0xff]
      %v745 = vld [vmem:[%s548 + $0x5d8] sm:$0xff]
      %v746 = vld [vmem:[%s548 + $0x5e0] sm:$0xff]
      %v747 = vld [vmem:[%s548 + $0x5e8] sm:$0xff]
      %v748 = vld [vmem:[%s548 + $0x5f0] sm:$0xff]
      %v749 = vld [vmem:[%s548 + $0x5f8] sm:$0xff]
      %v750 = vld [vmem:[%s548 + $0x600] sm:$0xff]
      %v751 = vld [vmem:[%s548 + $0x608] sm:$0xff]
      %v752 = vld [vmem:[%s548 + $0x610] sm:$0xff]
      %v753 = vld [vmem:[%s548 + $0x618] sm:$0xff]
      %v754 = vld [vmem:[%s548 + $0x620] sm:$0xff]
      %v755 = vld [vmem:[%s548 + $0x628] sm:$0xff]
      %v756 = vld [vmem:[%s548 + $0x630] sm:$0xff]
      %v757 = vld [vmem:[%s548 + $0x638] sm:$0xff]
      %v758 = vld [vmem:[%s548 + $0x640] sm:$0xff]
      %v759 = vld [vmem:[%s548 + $0x648] sm:$0xff]
      %v760 = vld [vmem:[%s548 + $0x650] sm:$0xff]
      %v761 = vld [vmem:[%s548 + $0x658] sm:$0xff]
      %v762 = vld [vmem:[%s548 + $0x660] sm:$0xff]
      %v763 = vld [vmem:[%s548 + $0x668] sm:$0xff]
      %v764 = vld [vmem:[%s548 + $0x670] sm:$0xff]
      %v765 = vld [vmem:[%s548 + $0x678] sm:$0xff]
      %v766 = vld [vmem:[%s548 + $0x680] sm:$0xff]
      %v767 = vld [vmem:[%s548 + $0x688] sm:$0xff]
      %v768 = vld [vmem:[%s548 + $0x690] sm:$0xff]
      %v769 = vld [vmem:[%s548 + $0x698] sm:$0xff]
      %v770 = vld [vmem:[%s548 + $0x6a0] sm:$0xff]
      %v771 = vld [vmem:[%s548 + $0x6a8] sm:$0xff]
      %v772 = vld [vmem:[%s548 + $0x6b0] sm:$0xff]
      %v773 = vld [vmem:[%s548 + $0x6b8] sm:$0xff]
      %v774 = vld [vmem:[%s548 + $0x6c0] sm:$0xff]
      %v775 = vld [vmem:[%s548 + $0x6c8] sm:$0xff]
      %v776 = vld [vmem:[%s548 + $0x6d0] sm:$0xff]
      %v777 = vld [vmem:[%s548 + $0x6d8] sm:$0xff]
      %v778 = vld [vmem:[%s548 + $0x6e0] sm:$0xff]
      %v779 = vld [vmem:[%s548 + $0x6e8] sm:$0xff]
      %v780 = vld [vmem:[%s548 + $0x6f0] sm:$0xff]
      %v781 = vld [vmem:[%s548 + $0x6f8] sm:$0xff]
      %v782 = vpack.c.bf16 %v565, %v558
      %v783 = vpack.c.bf16 %v566, %v559
      %v784 = vpack.c.bf16 %v567, %v560
      %v785 = vpack.c.bf16 %v568, %v561
      %v786 = vpack.c.bf16 %v569, %v562
      %v787 = vpack.c.bf16 %v570, %v563
      %v788 = vpack.c.bf16 %v571, %v564
      %v789 = vpack.c.bf16 %v579, %v572
      %v790 = vpack.c.bf16 %v580, %v573
      %v791 = vpack.c.bf16 %v581, %v574
      %v792 = vpack.c.bf16 %v582, %v575
      %v793 = vpack.c.bf16 %v583, %v576
      %v794 = vpack.c.bf16 %v584, %v577
      %v795 = vpack.c.bf16 %v585, %v578
      %v796 = vpack.c.bf16 %v593, %v586
      %v797 = vpack.c.bf16 %v594, %v587
      %v798 = vpack.c.bf16 %v595, %v588
      %v799 = vpack.c.bf16 %v596, %v589
      %v800 = vpack.c.bf16 %v597, %v590
      %v801 = vpack.c.bf16 %v598, %v591
      %v802 = vpack.c.bf16 %v599, %v592
      %v803 = vpack.c.bf16 %v607, %v600
      %v804 = vpack.c.bf16 %v608, %v601
      %v805 = vpack.c.bf16 %v609, %v602
      %v806 = vpack.c.bf16 %v610, %v603
      %v807 = vpack.c.bf16 %v611, %v604
      %v808 = vpack.c.bf16 %v612, %v605
      %v809 = vpack.c.bf16 %v613, %v606
      %v810 = vpack.c.bf16 %v621, %v614
      %v811 = vpack.c.bf16 %v622, %v615
      %v812 = vpack.c.bf16 %v623, %v616
      %v813 = vpack.c.bf16 %v624, %v617
      %v814 = vpack.c.bf16 %v625, %v618
      %v815 = vpack.c.bf16 %v626, %v619
      %v816 = vpack.c.bf16 %v627, %v620
      %v817 = vpack.c.bf16 %v635, %v628
      %v818 = vpack.c.bf16 %v636, %v629
      %v819 = vpack.c.bf16 %v637, %v630
      %v820 = vpack.c.bf16 %v638, %v631
      %v821 = vpack.c.bf16 %v639, %v632
      %v822 = vpack.c.bf16 %v640, %v633
      %v823 = vpack.c.bf16 %v641, %v634
      %v824 = vpack.c.bf16 %v649, %v642
      %v825 = vpack.c.bf16 %v650, %v643
      %v826 = vpack.c.bf16 %v651, %v644
      %v827 = vpack.c.bf16 %v652, %v645
      %v828 = vpack.c.bf16 %v653, %v646
      %v829 = vpack.c.bf16 %v654, %v647
      %v830 = vpack.c.bf16 %v655, %v648
      %v831 = vpack.c.bf16 %v663, %v656
      %v832 = vpack.c.bf16 %v664, %v657
      %v833 = vpack.c.bf16 %v665, %v658
      %v834 = vpack.c.bf16 %v666, %v659
      %v835 = vpack.c.bf16 %v667, %v660
      %v836 = vpack.c.bf16 %v668, %v661
      %v837 = vpack.c.bf16 %v669, %v662
      %v838 = vpack.c.bf16 %v677, %v670
      %v839 = vpack.c.bf16 %v678, %v671
      %v840 = vpack.c.bf16 %v679, %v672
      %v841 = vpack.c.bf16 %v680, %v673
      %v842 = vpack.c.bf16 %v681, %v674
      %v843 = vpack.c.bf16 %v682, %v675
      %v844 = vpack.c.bf16 %v683, %v676
      %v845 = vpack.c.bf16 %v691, %v684
      %v846 = vpack.c.bf16 %v692, %v685
      %v847 = vpack.c.bf16 %v693, %v686
      %v848 = vpack.c.bf16 %v694, %v687
      %v849 = vpack.c.bf16 %v695, %v688
      %v850 = vpack.c.bf16 %v696, %v689
      %v851 = vpack.c.bf16 %v697, %v690
      %v852 = vpack.c.bf16 %v705, %v698
      %v853 = vpack.c.bf16 %v706, %v699
      %v854 = vpack.c.bf16 %v707, %v700
      %v855 = vpack.c.bf16 %v708, %v701
      %v856 = vpack.c.bf16 %v709, %v702
      %v857 = vpack.c.bf16 %v710, %v703
      %v858 = vpack.c.bf16 %v711, %v704
      %v859 = vpack.c.bf16 %v719, %v712
      %v860 = vpack.c.bf16 %v720, %v713
      %v861 = vpack.c.bf16 %v721, %v714
      %v862 = vpack.c.bf16 %v722, %v715
      %v863 = vpack.c.bf16 %v723, %v716
      %v864 = vpack.c.bf16 %v724, %v717
      %v865 = vpack.c.bf16 %v725, %v718
      %v866 = vpack.c.bf16 %v733, %v726
      %v867 = vpack.c.bf16 %v734, %v727
      %v868 = vpack.c.bf16 %v735, %v728
      %v869 = vpack.c.bf16 %v736, %v729
      %v870 = vpack.c.bf16 %v737, %v730
      %v871 = vpack.c.bf16 %v738, %v731
      %v872 = vpack.c.bf16 %v739, %v732
      %v873 = vpack.c.bf16 %v747, %v740
      %v874 = vpack.c.bf16 %v748, %v741
      %v875 = vpack.c.bf16 %v749, %v742
      %v876 = vpack.c.bf16 %v750, %v743
      %v877 = vpack.c.bf16 %v751, %v744
      %v878 = vpack.c.bf16 %v752, %v745
      %v879 = vpack.c.bf16 %v753, %v746
      %v880 = vpack.c.bf16 %v761, %v754
      %v881 = vpack.c.bf16 %v762, %v755
      %v882 = vpack.c.bf16 %v763, %v756
      %v883 = vpack.c.bf16 %v764, %v757
      %v884 = vpack.c.bf16 %v765, %v758
      %v885 = vpack.c.bf16 %v766, %v759
      %v886 = vpack.c.bf16 %v767, %v760
      %v887 = vpack.c.bf16 %v775, %v768
      %v888 = vpack.c.bf16 %v776, %v769
      %v889 = vpack.c.bf16 %v777, %v770
      %v890 = vpack.c.bf16 %v778, %v771
      %v891 = vpack.c.bf16 %v779, %v772
      %v892 = vpack.c.bf16 %v780, %v773
      %v893 = vpack.c.bf16 %v781, %v774
      %v894 = vld [vmem:[%s1] sm:$0xf]
      %v895 = vld [vmem:[%s1 + $0x4] sm:$0xf]
      %v896 = vld [vmem:[%s1 + $0x8] sm:$0xf]
      %v897 = vld [vmem:[%s1 + $0xc] sm:$0xf]
      %v898 = vld [vmem:[%s1 + $0x10] sm:$0xf]
      %v899 = vld [vmem:[%s1 + $0x14] sm:$0xf]
      %v900 = vld [vmem:[%s1 + $0x18] sm:$0xf]
      %v901 = vld [vmem:[%s1 + $0x1c] sm:$0xf]
      %v902 = vld [vmem:[%s1 + $0x20] sm:$0xf]
      %v903 = vld [vmem:[%s1 + $0x24] sm:$0xf]
      %v904 = vld [vmem:[%s1 + $0x28] sm:$0xf]
      %v905 = vld [vmem:[%s1 + $0x2c] sm:$0xf]
      %v906 = vld [vmem:[%s1 + $0x30] sm:$0xf]
      %v907 = vld [vmem:[%s1 + $0x34] sm:$0xf]
      %v908 = vld [vmem:[%s1 + $0x38] sm:$0xf]
      %v909 = vld [vmem:[%s1 + $0x3c] sm:$0xf]
      %v910 = vld [vmem:[%s1 + $0x40] sm:$0xf]
      %v911 = vld [vmem:[%s1 + $0x44] sm:$0xf]
      %v912 = vld [vmem:[%s1 + $0x48] sm:$0xf]
      %v913 = vld [vmem:[%s1 + $0x4c] sm:$0xf]
      %v914 = vld [vmem:[%s1 + $0x50] sm:$0xf]
      %v915 = vld [vmem:[%s1 + $0x54] sm:$0xf]
      %v916 = vld [vmem:[%s1 + $0x58] sm:$0xf]
      %v917 = vld [vmem:[%s1 + $0x5c] sm:$0xf]
      %v918 = vld [vmem:[%s1 + $0x60] sm:$0xf]
      %v919 = vld [vmem:[%s1 + $0x64] sm:$0xf]
      %v920 = vld [vmem:[%s1 + $0x68] sm:$0xf]
      %v921 = vld [vmem:[%s1 + $0x6c] sm:$0xf]
      %v922 = vld [vmem:[%s1 + $0x70] sm:$0xf]
      %v923 = vld [vmem:[%s1 + $0x74] sm:$0xf]
      %v924 = vld [vmem:[%s1 + $0x78] sm:$0xf]
      %v925 = vld [vmem:[%s1 + $0x7c] sm:$0xf]
      %v926 = vld [vmem:[%s1 + $0x80] sm:$0xf]
      %v927 = vld [vmem:[%s1 + $0x84] sm:$0xf]
      %v928 = vld [vmem:[%s1 + $0x88] sm:$0xf]
      %v929 = vld [vmem:[%s1 + $0x8c] sm:$0xf]
      %v930 = vld [vmem:[%s1 + $0x90] sm:$0xf]
      %v931 = vld [vmem:[%s1 + $0x94] sm:$0xf]
      %v932 = vld [vmem:[%s1 + $0x98] sm:$0xf]
      %v933 = vld [vmem:[%s1 + $0x9c] sm:$0xf]
      %v934 = vld [vmem:[%s1 + $0xa0] sm:$0xf]
      %v935 = vld [vmem:[%s1 + $0xa4] sm:$0xf]
      %v936 = vld [vmem:[%s1 + $0xa8] sm:$0xf]
      %v937 = vld [vmem:[%s1 + $0xac] sm:$0xf]
      %v938 = vld [vmem:[%s1 + $0xb0] sm:$0xf]
      %v939 = vld [vmem:[%s1 + $0xb4] sm:$0xf]
      %v940 = vld [vmem:[%s1 + $0xb8] sm:$0xf]
      %v941 = vld [vmem:[%s1 + $0xbc] sm:$0xf]
      %v942 = vld [vmem:[%s1 + $0xc0] sm:$0xf]
      %v943 = vld [vmem:[%s1 + $0xc4] sm:$0xf]
      %v944 = vld [vmem:[%s1 + $0xc8] sm:$0xf]
      %v945 = vld [vmem:[%s1 + $0xcc] sm:$0xf]
      %v946 = vld [vmem:[%s1 + $0xd0] sm:$0xf]
      %v947 = vld [vmem:[%s1 + $0xd4] sm:$0xf]
      %v948 = vld [vmem:[%s1 + $0xd8] sm:$0xf]
      %v949 = vld [vmem:[%s1 + $0xdc] sm:$0xf]
      %v950 = vld [vmem:[%s1 + $0xe0] sm:$0xf]
      %v951 = vld [vmem:[%s1 + $0xe4] sm:$0xf]
      %v952 = vld [vmem:[%s1 + $0xe8] sm:$0xf]
      %v953 = vld [vmem:[%s1 + $0xec] sm:$0xf]
      %v954 = vld [vmem:[%s1 + $0xf0] sm:$0xf]
      %v955 = vld [vmem:[%s1 + $0xf4] sm:$0xf]
      %v956 = vld [vmem:[%s1 + $0xf8] sm:$0xf]
      %v957 = vld [vmem:[%s1 + $0xfc] sm:$0xf]
      %v958 = vld [vmem:[%s1 + $0x100] sm:$0xf]
      %v959 = vld [vmem:[%s1 + $0x104] sm:$0xf]
      %v960 = vld [vmem:[%s1 + $0x108] sm:$0xf]
      %v961 = vld [vmem:[%s1 + $0x10c] sm:$0xf]
      %v962 = vld [vmem:[%s1 + $0x110] sm:$0xf]
      %v963 = vld [vmem:[%s1 + $0x114] sm:$0xf]
      %v964 = vld [vmem:[%s1 + $0x118] sm:$0xf]
      %v965 = vld [vmem:[%s1 + $0x11c] sm:$0xf]
      %v966 = vld [vmem:[%s1 + $0x120] sm:$0xf]
      %v967 = vld [vmem:[%s1 + $0x124] sm:$0xf]
      %v968 = vld [vmem:[%s1 + $0x128] sm:$0xf]
      %v969 = vld [vmem:[%s1 + $0x12c] sm:$0xf]
      %v970 = vld [vmem:[%s1 + $0x130] sm:$0xf]
      %v971 = vld [vmem:[%s1 + $0x134] sm:$0xf]
      %v972 = vld [vmem:[%s1 + $0x138] sm:$0xf]
      %v973 = vld [vmem:[%s1 + $0x13c] sm:$0xf]
      %v974 = vld [vmem:[%s1 + $0x140] sm:$0xf]
      %v975 = vld [vmem:[%s1 + $0x144] sm:$0xf]
      %v976 = vld [vmem:[%s1 + $0x148] sm:$0xf]
      %v977 = vld [vmem:[%s1 + $0x14c] sm:$0xf]
      %v978 = vld [vmem:[%s1 + $0x150] sm:$0xf]
      %v979 = vld [vmem:[%s1 + $0x154] sm:$0xf]
      %v980 = vld [vmem:[%s1 + $0x158] sm:$0xf]
      %v981 = vld [vmem:[%s1 + $0x15c] sm:$0xf]
      %v982 = vld [vmem:[%s1 + $0x160] sm:$0xf]
      %v983 = vld [vmem:[%s1 + $0x164] sm:$0xf]
      %v984 = vld [vmem:[%s1 + $0x168] sm:$0xf]
      %v985 = vld [vmem:[%s1 + $0x16c] sm:$0xf]
      %v986 = vld [vmem:[%s1 + $0x170] sm:$0xf]
      %v987 = vld [vmem:[%s1 + $0x174] sm:$0xf]
      %v988 = vld [vmem:[%s1 + $0x178] sm:$0xf]
      %v989 = vld [vmem:[%s1 + $0x17c] sm:$0xf]
      %v990 = vld [vmem:[%s1 + $0x180] sm:$0xf]
      %v991 = vld [vmem:[%s1 + $0x184] sm:$0xf]
      %v992 = vld [vmem:[%s2] sm:$0x1]
      %v994 = vlaneseq
      %v995 = vshrl.u32 %v994, 7
      %v996 = vsub.s32 0, %v995
      %v997 = vrot.slane %v992, %v996
      %v1097 = vunpack.c.l.b16 %v894
      %v1098 = vunpack.c.l.b16 %v895
      %v1099 = vunpack.c.l.b16 %v896
      %v1100 = vunpack.c.l.b16 %v897
      %v1101 = vunpack.c.l.b16 %v898
      %v1102 = vunpack.c.l.b16 %v899
      %v1103 = vunpack.c.l.b16 %v900
      %v1104 = vunpack.c.l.b16 %v901
      %v1105 = vunpack.c.l.b16 %v902
      %v1106 = vunpack.c.l.b16 %v903
      %v1107 = vunpack.c.l.b16 %v904
      %v1108 = vunpack.c.l.b16 %v905
      %v1109 = vunpack.c.l.b16 %v906
      %v1110 = vunpack.c.l.b16 %v907
      %v1111 = vunpack.c.l.b16 %v908
      %v1112 = vunpack.c.l.b16 %v909
      %v1113 = vunpack.c.l.b16 %v910
      %v1114 = vunpack.c.l.b16 %v911
      %v1115 = vunpack.c.l.b16 %v912
      %v1116 = vunpack.c.l.b16 %v913
      %v1117 = vunpack.c.l.b16 %v914
      %v1118 = vunpack.c.l.b16 %v915
      %v1119 = vunpack.c.l.b16 %v916
      %v1120 = vunpack.c.l.b16 %v917
      %v1121 = vunpack.c.l.b16 %v918
      %v1122 = vunpack.c.l.b16 %v919
      %v1123 = vunpack.c.l.b16 %v920
      %v1124 = vunpack.c.l.b16 %v921
      %v1125 = vunpack.c.l.b16 %v922
      %v1126 = vunpack.c.l.b16 %v923
      %v1127 = vunpack.c.l.b16 %v924
      %v1128 = vunpack.c.l.b16 %v925
      %v1129 = vunpack.c.l.b16 %v926
      %v1130 = vunpack.c.l.b16 %v927
      %v1131 = vunpack.c.l.b16 %v928
      %v1132 = vunpack.c.l.b16 %v929
      %v1133 = vunpack.c.l.b16 %v930
      %v1134 = vunpack.c.l.b16 %v931
      %v1135 = vunpack.c.l.b16 %v932
      %v1136 = vunpack.c.l.b16 %v933
      %v1137 = vunpack.c.l.b16 %v934
      %v1138 = vunpack.c.l.b16 %v935
      %v1139 = vunpack.c.l.b16 %v936
      %v1140 = vunpack.c.l.b16 %v937
      %v1141 = vunpack.c.l.b16 %v938
      %v1142 = vunpack.c.l.b16 %v939
      %v1143 = vunpack.c.l.b16 %v940
      %v1144 = vunpack.c.l.b16 %v941
      %v1145 = vunpack.c.l.b16 %v942
      %v1146 = vunpack.c.l.b16 %v943
      %v1147 = vunpack.c.l.b16 %v944
      %v1148 = vunpack.c.l.b16 %v945
      %v1149 = vunpack.c.l.b16 %v946
      %v1150 = vunpack.c.l.b16 %v947
      %v1151 = vunpack.c.l.b16 %v948
      %v1152 = vunpack.c.l.b16 %v949
      %v1153 = vunpack.c.l.b16 %v950
      %v1154 = vunpack.c.l.b16 %v951
      %v1155 = vunpack.c.l.b16 %v952
      %v1156 = vunpack.c.l.b16 %v953
      %v1157 = vunpack.c.l.b16 %v954
      %v1158 = vunpack.c.l.b16 %v955
      %v1159 = vunpack.c.l.b16 %v956
      %v1160 = vunpack.c.l.b16 %v957
      %v1161 = vunpack.c.l.b16 %v958
      %v1162 = vunpack.c.l.b16 %v959
      %v1163 = vunpack.c.l.b16 %v960
      %v1164 = vunpack.c.l.b16 %v961
      %v1165 = vunpack.c.l.b16 %v962
      %v1166 = vunpack.c.l.b16 %v963
      %v1167 = vunpack.c.l.b16 %v964
      %v1168 = vunpack.c.l.b16 %v965
      %v1169 = vunpack.c.l.b16 %v966
      %v1170 = vunpack.c.l.b16 %v967
      %v1171 = vunpack.c.l.b16 %v968
      %v1172 = vunpack.c.l.b16 %v969
      %v1173 = vunpack.c.l.b16 %v970
      %v1174 = vunpack.c.l.b16 %v971
      %v1175 = vunpack.c.l.b16 %v972
      %v1176 = vunpack.c.l.b16 %v973
      %v1177 = vunpack.c.l.b16 %v974
      %v1178 = vunpack.c.l.b16 %v975
      %v1179 = vunpack.c.l.b16 %v976
      %v1180 = vunpack.c.l.b16 %v977
      %v1181 = vunpack.c.l.b16 %v978
      %v1182 = vunpack.c.l.b16 %v979
      %v1183 = vunpack.c.l.b16 %v980
      %v1184 = vunpack.c.l.b16 %v981
      %v1185 = vunpack.c.l.b16 %v982
      %v1186 = vunpack.c.l.b16 %v983
      %v1187 = vunpack.c.l.b16 %v984
      %v1188 = vunpack.c.l.b16 %v985
      %v1189 = vunpack.c.l.b16 %v986
      %v1190 = vunpack.c.l.b16 %v987
      %v1191 = vunpack.c.l.b16 %v988
      %v1192 = vunpack.c.l.b16 %v989
      %v1193 = vunpack.c.l.b16 %v990
      %v1194 = vunpack.c.l.b16 %v991
      %v1195 = vpack.c.b16 %v1098, %v1097
      %v1196 = vpack.c.b16 %v1100, %v1099
      %v1197 = vpack.c.b16 %v1102, %v1101
      %v1198 = vpack.c.b16 %v1104, %v1103
      %v1199 = vpack.c.b16 %v1106, %v1105
      %v1200 = vpack.c.b16 %v1108, %v1107
      %v1201 = vpack.c.b16 %v1110, %v1109
      %v1202 = vpack.c.b16 %v1112, %v1111
      %v1203 = vpack.c.b16 %v1114, %v1113
      %v1204 = vpack.c.b16 %v1116, %v1115
      %v1205 = vpack.c.b16 %v1118, %v1117
      %v1206 = vpack.c.b16 %v1120, %v1119
      %v1207 = vpack.c.b16 %v1122, %v1121
      %v1208 = vpack.c.b16 %v1124, %v1123
      %v1209 = vpack.c.b16 %v1126, %v1125
      %v1210 = vpack.c.b16 %v1128, %v1127
      %v1211 = vpack.c.b16 %v1130, %v1129
      %v1212 = vpack.c.b16 %v1132, %v1131
      %v1213 = vpack.c.b16 %v1134, %v1133
      %v1214 = vpack.c.b16 %v1136, %v1135
      %v1215 = vpack.c.b16 %v1138, %v1137
      %v1216 = vpack.c.b16 %v1140, %v1139
      %v1217 = vpack.c.b16 %v1142, %v1141
      %v1218 = vpack.c.b16 %v1144, %v1143
      %v1219 = vpack.c.b16 %v1146, %v1145
      %v1220 = vpack.c.b16 %v1148, %v1147
      %v1221 = vpack.c.b16 %v1150, %v1149
      %v1222 = vpack.c.b16 %v1152, %v1151
      %v1223 = vpack.c.b16 %v1154, %v1153
      %v1224 = vpack.c.b16 %v1156, %v1155
      %v1225 = vpack.c.b16 %v1158, %v1157
      %v1226 = vpack.c.b16 %v1160, %v1159
      %v1227 = vpack.c.b16 %v1162, %v1161
      %v1228 = vpack.c.b16 %v1164, %v1163
      %v1229 = vpack.c.b16 %v1166, %v1165
      %v1230 = vpack.c.b16 %v1168, %v1167
      %v1231 = vpack.c.b16 %v1170, %v1169
      %v1232 = vpack.c.b16 %v1172, %v1171
      %v1233 = vpack.c.b16 %v1174, %v1173
      %v1234 = vpack.c.b16 %v1176, %v1175
      %v1235 = vpack.c.b16 %v1178, %v1177
      %v1236 = vpack.c.b16 %v1180, %v1179
      %v1237 = vpack.c.b16 %v1182, %v1181
      %v1238 = vpack.c.b16 %v1184, %v1183
      %v1239 = vpack.c.b16 %v1186, %v1185
      %v1240 = vpack.c.b16 %v1188, %v1187
      %v1241 = vpack.c.b16 %v1190, %v1189
      %v1242 = vpack.c.b16 %v1192, %v1191
      %v1243 = vpack.c.b16 %v1194, %v1193
      %vm1293 = vcmask 130048
      %v1295 = vsel %vm1293, %v788, 0
      %v1298 = vsel %vm1293, %v795, 0
      %v1301 = vsel %vm1293, %v802, 0
      %v1304 = vsel %vm1293, %v809, 0
      %v1307 = vsel %vm1293, %v816, 0
      %v1310 = vsel %vm1293, %v823, 0
      %v1313 = vsel %vm1293, %v830, 0
      %v1316 = vsel %vm1293, %v837, 0
      %v1319 = vsel %vm1293, %v844, 0
      %v1322 = vsel %vm1293, %v851, 0
      %v1325 = vsel %vm1293, %v858, 0
      %v1328 = vsel %vm1293, %v865, 0
      %v1331 = vsel %vm1293, %v872, 0
      %v1334 = vsel %vm1293, %v879, 0
      %v1337 = vsel %vm1293, %v886, 0
      %v1340 = vsel %vm1293, %v893, 0
      %1342 = vmatprep.subr.bf16.mxu0 0
      %1343 = vmatpush1.bf16.msra.mxu0 %v1202
      %1344 = vmatprep.subr.bf16.mxu0 0
      %1345 = vmatpush1.bf16.msra.mxu0 %v1201
      %1346 = vmatprep.subr.bf16.mxu0 0
      %1347 = vmatpush1.bf16.msra.mxu0 %v1200
      %1348 = vmatprep.subr.bf16.mxu0 0
      %1349 = vmatpush1.bf16.msra.mxu0 %v1199
      %1350 = vmatprep.subr.bf16.mxu0 0
      %1351 = vmatpush1.bf16.msra.mxu0 %v1198
      %1352 = vmatprep.subr.bf16.mxu0 0
      %1353 = vmatpush1.bf16.msra.mxu0 %v1197
      %1354 = vmatprep.subr.bf16.mxu0 0
      %1355 = vmatpush1.bf16.msra.mxu0 %v1196
      %1356 = vmatprep.subr.bf16.mxu0 0
      %1357 = vmatpush1.bf16.msra.mxu0 %v1195
      %1358 = vmatprep.subr.bf16.mxu0 0
      %1359 = vmatpush2.bf16.msra.mxu0 %v1210
      %1360 = vmatprep.subr.bf16.mxu0 0
      %1361 = vmatpush2.bf16.msra.mxu0 %v1209
      %1362 = vmatprep.subr.bf16.mxu0 0
      %1363 = vmatpush2.bf16.msra.mxu0 %v1208
      %1364 = vmatprep.subr.bf16.mxu0 0
      %1365 = vmatpush2.bf16.msra.mxu0 %v1207
      %1366 = vmatprep.subr.bf16.mxu0 0
      %1367 = vmatpush2.bf16.msra.mxu0 %v1206
      %1368 = vmatprep.subr.bf16.mxu0 0
      %1369 = vmatpush2.bf16.msra.mxu0 %v1205
      %1370 = vmatprep.subr.bf16.mxu0 0
      %1371 = vmatpush2.bf16.msra.mxu0 %v1204
      %1372 = vmatprep.subr.bf16.mxu0 0
      %1373 = vmatpush2.bf16.msra.mxu0 %v1203
      %1374 = vmatprep.mubr.bf16.mxu0 %v783
      %1375 = vmatmul.mubr.bf16.gmra.mxu0 %v782
      %v1376 = vpop.f32.mrf.mxu0
      %v1377 = vadd.f32 %v997, %v1376
      %v1378 = vpop.f32.mrf.mxu0
      %v1379 = vpop.f32.mrf.mxu0
      %v1380 = vadd.f32 %v997, %v1379
      %v1381 = vpop.f32.mrf.mxu0
      %1382 = vmatprep.mubr.bf16.mxu0 %v790
      %1383 = vmatmul.mubr.bf16.gmra.mxu0 %v789
      %v1384 = vpop.f32.mrf.mxu0
      %v1385 = vadd.f32 %v997, %v1384
      %v1386 = vpop.f32.mrf.mxu0
      %v1387 = vpop.f32.mrf.mxu0
      %v1388 = vadd.f32 %v997, %v1387
      %v1389 = vpop.f32.mrf.mxu0
      %1390 = vmatprep.mubr.bf16.mxu0 %v797
      %1391 = vmatmul.mubr.bf16.gmra.mxu0 %v796
      %v1392 = vpop.f32.mrf.mxu0
      %v1393 = vadd.f32 %v997, %v1392
      %v1394 = vpop.f32.mrf.mxu0
      %v1395 = vpop.f32.mrf.mxu0
      %v1396 = vadd.f32 %v997, %v1395
      %v1397 = vpop.f32.mrf.mxu0
      %1398 = vmatprep.mubr.bf16.mxu0 %v804
      %1399 = vmatmul.mubr.bf16.gmra.mxu0 %v803
      %v1400 = vpop.f32.mrf.mxu0
      %v1401 = vadd.f32 %v997, %v1400
      %v1402 = vpop.f32.mrf.mxu0
      %v1403 = vpop.f32.mrf.mxu0
      %v1404 = vadd.f32 %v997, %v1403
      %v1405 = vpop.f32.mrf.mxu0
      %1406 = vmatprep.mubr.bf16.mxu0 %v811
      %1407 = vmatmul.mubr.bf16.gmra.mxu0 %v810
      %v1408 = vpop.f32.mrf.mxu0
      %v1409 = vadd.f32 %v997, %v1408
      %v1410 = vpop.f32.mrf.mxu0
      %v1411 = vpop.f32.mrf.mxu0
      %v1412 = vadd.f32 %v997, %v1411
      %v1413 = vpop.f32.mrf.mxu0
      %1414 = vmatprep.mubr.bf16.mxu0 %v818
      %1415 = vmatmul.mubr.bf16.gmra.mxu0 %v817
      %v1416 = vpop.f32.mrf.mxu0
      %v1417 = vadd.f32 %v997, %v1416
      %v1418 = vpop.f32.mrf.mxu0
      %v1419 = vpop.f32.mrf.mxu0
      %v1420 = vadd.f32 %v997, %v1419
      %v1421 = vpop.f32.mrf.mxu0
      %1422 = vmatprep.mubr.bf16.mxu0 %v825
      %1423 = vmatmul.mubr.bf16.gmra.mxu0 %v824
      %v1424 = vpop.f32.mrf.mxu0
      %v1425 = vadd.f32 %v997, %v1424
      %v1426 = vpop.f32.mrf.mxu0
      %v1427 = vpop.f32.mrf.mxu0
      %v1428 = vadd.f32 %v997, %v1427
      %v1429 = vpop.f32.mrf.mxu0
      %1430 = vmatprep.mubr.bf16.mxu0 %v832
      %1431 = vmatmul.mubr.bf16.gmra.mxu0 %v831
      %v1432 = vpop.f32.mrf.mxu0
      %v1433 = vadd.f32 %v997, %v1432
      %v1434 = vpop.f32.mrf.mxu0
      %v1435 = vpop.f32.mrf.mxu0
      %v1436 = vadd.f32 %v997, %v1435
      %v1437 = vpop.f32.mrf.mxu0
      %1438 = vmatprep.mubr.bf16.mxu0 %v839
      %1439 = vmatmul.mubr.bf16.gmra.mxu0 %v838
      %v1440 = vpop.f32.mrf.mxu0
      %v1441 = vadd.f32 %v997, %v1440
      %v1442 = vpop.f32.mrf.mxu0
      %v1443 = vpop.f32.mrf.mxu0
      %v1444 = vadd.f32 %v997, %v1443
      %v1445 = vpop.f32.mrf.mxu0
      %1446 = vmatprep.mubr.bf16.mxu0 %v846
      %1447 = vmatmul.mubr.bf16.gmra.mxu0 %v845
      %v1448 = vpop.f32.mrf.mxu0
      %v1449 = vadd.f32 %v997, %v1448
      %v1450 = vpop.f32.mrf.mxu0
      %v1451 = vpop.f32.mrf.mxu0
      %v1452 = vadd.f32 %v997, %v1451
      %v1453 = vpop.f32.mrf.mxu0
      %1454 = vmatprep.mubr.bf16.mxu0 %v853
      %1455 = vmatmul.mubr.bf16.gmra.mxu0 %v852
      %v1456 = vpop.f32.mrf.mxu0
      %v1457 = vadd.f32 %v997, %v1456
      %v1458 = vpop.f32.mrf.mxu0
      %v1459 = vpop.f32.mrf.mxu0
      %v1460 = vadd.f32 %v997, %v1459
      %v1461 = vpop.f32.mrf.mxu0
      %1462 = vmatprep.mubr.bf16.mxu0 %v860
      %1463 = vmatmul.mubr.bf16.gmra.mxu0 %v859
      %v1464 = vpop.f32.mrf.mxu0
      %v1465 = vadd.f32 %v997, %v1464
      %v1466 = vpop.f32.mrf.mxu0
      %v1467 = vpop.f32.mrf.mxu0
      %v1468 = vadd.f32 %v997, %v1467
      %v1469 = vpop.f32.mrf.mxu0
      %1470 = vmatprep.mubr.bf16.mxu0 %v867
      %1471 = vmatmul.mubr.bf16.gmra.mxu0 %v866
      %v1472 = vpop.f32.mrf.mxu0
      %v1473 = vadd.f32 %v997, %v1472
      %v1474 = vpop.f32.mrf.mxu0
      %v1475 = vpop.f32.mrf.mxu0
      %v1476 = vadd.f32 %v997, %v1475
      %v1477 = vpop.f32.mrf.mxu0
      %1478 = vmatprep.mubr.bf16.mxu0 %v874
      %1479 = vmatmul.mubr.bf16.gmra.mxu0 %v873
      %v1480 = vpop.f32.mrf.mxu0
      %v1481 = vadd.f32 %v997, %v1480
      %v1482 = vpop.f32.mrf.mxu0
      %v1483 = vpop.f32.mrf.mxu0
      %v1484 = vadd.f32 %v997, %v1483
      %v1485 = vpop.f32.mrf.mxu0
      %1486 = vmatprep.mubr.bf16.mxu0 %v881
      %1487 = vmatmul.mubr.bf16.gmra.mxu0 %v880
      %v1488 = vpop.f32.mrf.mxu0
      %v1489 = vadd.f32 %v997, %v1488
      %v1490 = vpop.f32.mrf.mxu0
      %v1491 = vpop.f32.mrf.mxu0
      %v1492 = vadd.f32 %v997, %v1491
      %v1493 = vpop.f32.mrf.mxu0
      %1494 = vmatprep.mubr.bf16.mxu0 %v888
      %1495 = vmatmul.mubr.bf16.gmra.mxu0 %v887
      %v1496 = vpop.f32.mrf.mxu0
      %v1497 = vadd.f32 %v997, %v1496
      %v1498 = vpop.f32.mrf.mxu0
      %v1499 = vpop.f32.mrf.mxu0
      %v1500 = vadd.f32 %v997, %v1499
      %v1501 = vpop.f32.mrf.mxu0
      %1502 = vdwg.mxu0
      %1503 = vmatprep.subr.bf16.mxu0 0
      %1504 = vmatpush1.bf16.msra.mxu0 %v1218
      %1505 = vmatprep.subr.bf16.mxu0 0
      %1506 = vmatpush1.bf16.msra.mxu0 %v1217
      %1507 = vmatprep.subr.bf16.mxu0 0
      %1508 = vmatpush1.bf16.msra.mxu0 %v1216
      %1509 = vmatprep.subr.bf16.mxu0 0
      %1510 = vmatpush1.bf16.msra.mxu0 %v1215
      %1511 = vmatprep.subr.bf16.mxu0 0
      %1512 = vmatpush1.bf16.msra.mxu0 %v1214
      %1513 = vmatprep.subr.bf16.mxu0 0
      %1514 = vmatpush1.bf16.msra.mxu0 %v1213
      %1515 = vmatprep.subr.bf16.mxu0 0
      %1516 = vmatpush1.bf16.msra.mxu0 %v1212
      %1517 = vmatprep.subr.bf16.mxu0 0
      %1518 = vmatpush1.bf16.msra.mxu0 %v1211
      %1519 = vmatprep.subr.bf16.mxu0 0
      %1520 = vmatpush2.bf16.msra.mxu0 %v1226
      %1521 = vmatprep.subr.bf16.mxu0 0
      %1522 = vmatpush2.bf16.msra.mxu0 %v1225
      %1523 = vmatprep.subr.bf16.mxu0 0
      %1524 = vmatpush2.bf16.msra.mxu0 %v1224
      %1525 = vmatprep.subr.bf16.mxu0 0
      %1526 = vmatpush2.bf16.msra.mxu0 %v1223
      %1527 = vmatprep.subr.bf16.mxu0 0
      %1528 = vmatpush2.bf16.msra.mxu0 %v1222
      %1529 = vmatprep.subr.bf16.mxu0 0
      %1530 = vmatpush2.bf16.msra.mxu0 %v1221
      %1531 = vmatprep.subr.bf16.mxu0 0
      %1532 = vmatpush2.bf16.msra.mxu0 %v1220
      %1533 = vmatprep.subr.bf16.mxu0 0
      %1534 = vmatpush2.bf16.msra.mxu0 %v1219
      %1535 = vmatprep.mubr.bf16.mxu0 %v785
      %1536 = vmatmul.mubr.bf16.gmra.mxu0 %v784
      %v1537 = vpop.f32.mrf.mxu0
      %v1538 = vadd.f32 %v1377, %v1537
      %v1539 = vpop.f32.mrf.mxu0
      %v1540 = vpop.f32.mrf.mxu0
      %v1541 = vadd.f32 %v1380, %v1540
      %v1542 = vpop.f32.mrf.mxu0
      %1543 = vmatprep.mubr.bf16.mxu0 %v792
      %1544 = vmatmul.mubr.bf16.gmra.mxu0 %v791
      %v1545 = vpop.f32.mrf.mxu0
      %v1546 = vadd.f32 %v1385, %v1545
      %v1547 = vpop.f32.mrf.mxu0
      %v1548 = vpop.f32.mrf.mxu0
      %v1549 = vadd.f32 %v1388, %v1548
      %v1550 = vpop.f32.mrf.mxu0
      %1551 = vmatprep.mubr.bf16.mxu0 %v799
      %1552 = vmatmul.mubr.bf16.gmra.mxu0 %v798
      %v1553 = vpop.f32.mrf.mxu0
      %v1554 = vadd.f32 %v1393, %v1553
      %v1555 = vpop.f32.mrf.mxu0
      %v1556 = vpop.f32.mrf.mxu0
      %v1557 = vadd.f32 %v1396, %v1556
      %v1558 = vpop.f32.mrf.mxu0
      %1559 = vmatprep.mubr.bf16.mxu0 %v806
      %1560 = vmatmul.mubr.bf16.gmra.mxu0 %v805
      %v1561 = vpop.f32.mrf.mxu0
      %v1562 = vadd.f32 %v1401, %v1561
      %v1563 = vpop.f32.mrf.mxu0
      %v1564 = vpop.f32.mrf.mxu0
      %v1565 = vadd.f32 %v1404, %v1564
      %v1566 = vpop.f32.mrf.mxu0
      %1567 = vmatprep.mubr.bf16.mxu0 %v813
      %1568 = vmatmul.mubr.bf16.gmra.mxu0 %v812
      %v1569 = vpop.f32.mrf.mxu0
      %v1570 = vadd.f32 %v1409, %v1569
      %v1571 = vpop.f32.mrf.mxu0
      %v1572 = vpop.f32.mrf.mxu0
      %v1573 = vadd.f32 %v1412, %v1572
      %v1574 = vpop.f32.mrf.mxu0
      %1575 = vmatprep.mubr.bf16.mxu0 %v820
      %1576 = vmatmul.mubr.bf16.gmra.mxu0 %v819
      %v1577 = vpop.f32.mrf.mxu0
      %v1578 = vadd.f32 %v1417, %v1577
      %v1579 = vpop.f32.mrf.mxu0
      %v1580 = vpop.f32.mrf.mxu0
      %v1581 = vadd.f32 %v1420, %v1580
      %v1582 = vpop.f32.mrf.mxu0
      %1583 = vmatprep.mubr.bf16.mxu0 %v827
      %1584 = vmatmul.mubr.bf16.gmra.mxu0 %v826
      %v1585 = vpop.f32.mrf.mxu0
      %v1586 = vadd.f32 %v1425, %v1585
      %v1587 = vpop.f32.mrf.mxu0
      %v1588 = vpop.f32.mrf.mxu0
      %v1589 = vadd.f32 %v1428, %v1588
      %v1590 = vpop.f32.mrf.mxu0
      %1591 = vmatprep.mubr.bf16.mxu0 %v834
      %1592 = vmatmul.mubr.bf16.gmra.mxu0 %v833
      %v1593 = vpop.f32.mrf.mxu0
      %v1594 = vadd.f32 %v1433, %v1593
      %v1595 = vpop.f32.mrf.mxu0
      %v1596 = vpop.f32.mrf.mxu0
      %v1597 = vadd.f32 %v1436, %v1596
      %v1598 = vpop.f32.mrf.mxu0
      %1599 = vmatprep.mubr.bf16.mxu0 %v841
      %1600 = vmatmul.mubr.bf16.gmra.mxu0 %v840
      %v1601 = vpop.f32.mrf.mxu0
      %v1602 = vadd.f32 %v1441, %v1601
      %v1603 = vpop.f32.mrf.mxu0
      %v1604 = vpop.f32.mrf.mxu0
      %v1605 = vadd.f32 %v1444, %v1604
      %v1606 = vpop.f32.mrf.mxu0
      %1607 = vmatprep.mubr.bf16.mxu0 %v848
      %1608 = vmatmul.mubr.bf16.gmra.mxu0 %v847
      %v1609 = vpop.f32.mrf.mxu0
      %v1610 = vadd.f32 %v1449, %v1609
      %v1611 = vpop.f32.mrf.mxu0
      %v1612 = vpop.f32.mrf.mxu0
      %v1613 = vadd.f32 %v1452, %v1612
      %v1614 = vpop.f32.mrf.mxu0
      %1615 = vmatprep.mubr.bf16.mxu0 %v855
      %1616 = vmatmul.mubr.bf16.gmra.mxu0 %v854
      %v1617 = vpop.f32.mrf.mxu0
      %v1618 = vadd.f32 %v1457, %v1617
      %v1619 = vpop.f32.mrf.mxu0
      %v1620 = vpop.f32.mrf.mxu0
      %v1621 = vadd.f32 %v1460, %v1620
      %v1622 = vpop.f32.mrf.mxu0
      %1623 = vmatprep.mubr.bf16.mxu0 %v862
      %1624 = vmatmul.mubr.bf16.gmra.mxu0 %v861
      %v1625 = vpop.f32.mrf.mxu0
      %v1626 = vadd.f32 %v1465, %v1625
      %v1627 = vpop.f32.mrf.mxu0
      %v1628 = vpop.f32.mrf.mxu0
      %v1629 = vadd.f32 %v1468, %v1628
      %v1630 = vpop.f32.mrf.mxu0
      %1631 = vmatprep.mubr.bf16.mxu0 %v869
      %1632 = vmatmul.mubr.bf16.gmra.mxu0 %v868
      %v1633 = vpop.f32.mrf.mxu0
      %v1634 = vadd.f32 %v1473, %v1633
      %v1635 = vpop.f32.mrf.mxu0
      %v1636 = vpop.f32.mrf.mxu0
      %v1637 = vadd.f32 %v1476, %v1636
      %v1638 = vpop.f32.mrf.mxu0
      %1639 = vmatprep.mubr.bf16.mxu0 %v876
      %1640 = vmatmul.mubr.bf16.gmra.mxu0 %v875
      %v1641 = vpop.f32.mrf.mxu0
      %v1642 = vadd.f32 %v1481, %v1641
      %v1643 = vpop.f32.mrf.mxu0
      %v1644 = vpop.f32.mrf.mxu0
      %v1645 = vadd.f32 %v1484, %v1644
      %v1646 = vpop.f32.mrf.mxu0
      %1647 = vmatprep.mubr.bf16.mxu0 %v883
      %1648 = vmatmul.mubr.bf16.gmra.mxu0 %v882
      %v1649 = vpop.f32.mrf.mxu0
      %v1650 = vadd.f32 %v1489, %v1649
      %v1651 = vpop.f32.mrf.mxu0
      %v1652 = vpop.f32.mrf.mxu0
      %v1653 = vadd.f32 %v1492, %v1652
      %v1654 = vpop.f32.mrf.mxu0
      %1655 = vmatprep.mubr.bf16.mxu0 %v890
      %1656 = vmatmul.mubr.bf16.gmra.mxu0 %v889
      %v1657 = vpop.f32.mrf.mxu0
      %v1658 = vadd.f32 %v1497, %v1657
      %v1659 = vpop.f32.mrf.mxu0
      %v1660 = vpop.f32.mrf.mxu0
      %v1661 = vadd.f32 %v1500, %v1660
      %v1662 = vpop.f32.mrf.mxu0
      %1663 = vdwg.mxu0
      %1664 = vmatprep.subr.bf16.mxu0 0
      %1665 = vmatpush1.bf16.msra.mxu0 %v1234
      %1666 = vmatprep.subr.bf16.mxu0 0
      %1667 = vmatpush1.bf16.msra.mxu0 %v1233
      %1668 = vmatprep.subr.bf16.mxu0 0
      %1669 = vmatpush1.bf16.msra.mxu0 %v1232
      %1670 = vmatprep.subr.bf16.mxu0 0
      %1671 = vmatpush1.bf16.msra.mxu0 %v1231
      %1672 = vmatprep.subr.bf16.mxu0 0
      %1673 = vmatpush1.bf16.msra.mxu0 %v1230
      %1674 = vmatprep.subr.bf16.mxu0 0
      %1675 = vmatpush1.bf16.msra.mxu0 %v1229
      %1676 = vmatprep.subr.bf16.mxu0 0
      %1677 = vmatpush1.bf16.msra.mxu0 %v1228
      %1678 = vmatprep.subr.bf16.mxu0 0
      %1679 = vmatpush1.bf16.msra.mxu0 %v1227
      %1680 = vmatprep.subr.bf16.mxu0 0
      %1681 = vmatpush2.bf16.msra.mxu0 %v1242
      %1682 = vmatprep.subr.bf16.mxu0 0
      %1683 = vmatpush2.bf16.msra.mxu0 %v1241
      %1684 = vmatprep.subr.bf16.mxu0 0
      %1685 = vmatpush2.bf16.msra.mxu0 %v1240
      %1686 = vmatprep.subr.bf16.mxu0 0
      %1687 = vmatpush2.bf16.msra.mxu0 %v1239
      %1688 = vmatprep.subr.bf16.mxu0 0
      %1689 = vmatpush2.bf16.msra.mxu0 %v1238
      %1690 = vmatprep.subr.bf16.mxu0 0
      %1691 = vmatpush2.bf16.msra.mxu0 %v1237
      %1692 = vmatprep.subr.bf16.mxu0 0
      %1693 = vmatpush2.bf16.msra.mxu0 %v1236
      %1694 = vmatprep.subr.bf16.mxu0 0
      %1695 = vmatpush2.bf16.msra.mxu0 %v1235
      %1696 = vmatprep.mubr.bf16.mxu0 %v787
      %1697 = vmatmul.mubr.bf16.gmra.mxu0 %v786
      %v1698 = vpop.f32.mrf.mxu0
      %v1699 = vadd.f32 %v1538, %v1698
      %v1700 = vpop.f32.mrf.mxu0
      %v1701 = vpop.f32.mrf.mxu0
      %v1702 = vadd.f32 %v1541, %v1701
      %v1703 = vpop.f32.mrf.mxu0
      %1704 = vmatprep.mubr.bf16.mxu0 %v794
      %1705 = vmatmul.mubr.bf16.gmra.mxu0 %v793
      %v1706 = vpop.f32.mrf.mxu0
      %v1707 = vadd.f32 %v1546, %v1706
      %v1708 = vpop.f32.mrf.mxu0
      %v1709 = vpop.f32.mrf.mxu0
      %v1710 = vadd.f32 %v1549, %v1709
      %v1711 = vpop.f32.mrf.mxu0
      %1712 = vmatprep.mubr.bf16.mxu0 %v801
      %1713 = vmatmul.mubr.bf16.gmra.mxu0 %v800
      %v1714 = vpop.f32.mrf.mxu0
      %v1715 = vadd.f32 %v1554, %v1714
      %v1716 = vpop.f32.mrf.mxu0
      %v1717 = vpop.f32.mrf.mxu0
      %v1718 = vadd.f32 %v1557, %v1717
      %v1719 = vpop.f32.mrf.mxu0
      %1720 = vmatprep.mubr.bf16.mxu0 %v808
      %1721 = vmatmul.mubr.bf16.gmra.mxu0 %v807
      %v1722 = vpop.f32.mrf.mxu0
      %v1723 = vadd.f32 %v1562, %v1722
      %v1724 = vpop.f32.mrf.mxu0
      %v1725 = vpop.f32.mrf.mxu0
      %v1726 = vadd.f32 %v1565, %v1725
      %v1727 = vpop.f32.mrf.mxu0
      %1728 = vmatprep.mubr.bf16.mxu0 %v815
      %1729 = vmatmul.mubr.bf16.gmra.mxu0 %v814
      %v1730 = vpop.f32.mrf.mxu0
      %v1731 = vadd.f32 %v1570, %v1730
      %v1732 = vpop.f32.mrf.mxu0
      %v1733 = vpop.f32.mrf.mxu0
      %v1734 = vadd.f32 %v1573, %v1733
      %v1735 = vpop.f32.mrf.mxu0
      %1736 = vmatprep.mubr.bf16.mxu0 %v822
      %1737 = vmatmul.mubr.bf16.gmra.mxu0 %v821
      %v1738 = vpop.f32.mrf.mxu0
      %v1739 = vadd.f32 %v1578, %v1738
      %v1740 = vpop.f32.mrf.mxu0
      %v1741 = vpop.f32.mrf.mxu0
      %v1742 = vadd.f32 %v1581, %v1741
      %v1743 = vpop.f32.mrf.mxu0
      %1744 = vmatprep.mubr.bf16.mxu0 %v829
      %1745 = vmatmul.mubr.bf16.gmra.mxu0 %v828
      %v1746 = vpop.f32.mrf.mxu0
      %v1747 = vadd.f32 %v1586, %v1746
      %v1748 = vpop.f32.mrf.mxu0
      %v1749 = vpop.f32.mrf.mxu0
      %v1750 = vadd.f32 %v1589, %v1749
      %v1751 = vpop.f32.mrf.mxu0
      %1752 = vmatprep.mubr.bf16.mxu0 %v836
      %1753 = vmatmul.mubr.bf16.gmra.mxu0 %v835
      %v1754 = vpop.f32.mrf.mxu0
      %v1755 = vadd.f32 %v1594, %v1754
      %v1756 = vpop.f32.mrf.mxu0
      %v1757 = vpop.f32.mrf.mxu0
      %v1758 = vadd.f32 %v1597, %v1757
      %v1759 = vpop.f32.mrf.mxu0
      %1760 = vmatprep.mubr.bf16.mxu0 %v843
      %1761 = vmatmul.mubr.bf16.gmra.mxu0 %v842
      %v1762 = vpop.f32.mrf.mxu0
      %v1763 = vadd.f32 %v1602, %v1762
      %v1764 = vpop.f32.mrf.mxu0
      %v1765 = vpop.f32.mrf.mxu0
      %v1766 = vadd.f32 %v1605, %v1765
      %v1767 = vpop.f32.mrf.mxu0
      %1768 = vmatprep.mubr.bf16.mxu0 %v850
      %1769 = vmatmul.mubr.bf16.gmra.mxu0 %v849
      %v1770 = vpop.f32.mrf.mxu0
      %v1771 = vadd.f32 %v1610, %v1770
      %v1772 = vpop.f32.mrf.mxu0
      %v1773 = vpop.f32.mrf.mxu0
      %v1774 = vadd.f32 %v1613, %v1773
      %v1775 = vpop.f32.mrf.mxu0
      %1776 = vmatprep.mubr.bf16.mxu0 %v857
      %1777 = vmatmul.mubr.bf16.gmra.mxu0 %v856
      %v1778 = vpop.f32.mrf.mxu0
      %v1779 = vadd.f32 %v1618, %v1778
      %v1780 = vpop.f32.mrf.mxu0
      %v1781 = vpop.f32.mrf.mxu0
      %v1782 = vadd.f32 %v1621, %v1781
      %v1783 = vpop.f32.mrf.mxu0
      %1784 = vmatprep.mubr.bf16.mxu0 %v864
      %1785 = vmatmul.mubr.bf16.gmra.mxu0 %v863
      %v1786 = vpop.f32.mrf.mxu0
      %v1787 = vadd.f32 %v1626, %v1786
      %v1788 = vpop.f32.mrf.mxu0
      %v1789 = vpop.f32.mrf.mxu0
      %v1790 = vadd.f32 %v1629, %v1789
      %v1791 = vpop.f32.mrf.mxu0
      %1792 = vmatprep.mubr.bf16.mxu0 %v871
      %1793 = vmatmul.mubr.bf16.gmra.mxu0 %v870
      %v1794 = vpop.f32.mrf.mxu0
      %v1795 = vadd.f32 %v1634, %v1794
      %v1796 = vpop.f32.mrf.mxu0
      %v1797 = vpop.f32.mrf.mxu0
      %v1798 = vadd.f32 %v1637, %v1797
      %v1799 = vpop.f32.mrf.mxu0
      %1800 = vmatprep.mubr.bf16.mxu0 %v878
      %1801 = vmatmul.mubr.bf16.gmra.mxu0 %v877
      %v1802 = vpop.f32.mrf.mxu0
      %v1803 = vadd.f32 %v1642, %v1802
      %v1804 = vpop.f32.mrf.mxu0
      %v1805 = vpop.f32.mrf.mxu0
      %v1806 = vadd.f32 %v1645, %v1805
      %v1807 = vpop.f32.mrf.mxu0
      %1808 = vmatprep.mubr.bf16.mxu0 %v885
      %1809 = vmatmul.mubr.bf16.gmra.mxu0 %v884
      %v1810 = vpop.f32.mrf.mxu0
      %v1811 = vadd.f32 %v1650, %v1810
      %v1812 = vpop.f32.mrf.mxu0
      %v1813 = vpop.f32.mrf.mxu0
      %v1814 = vadd.f32 %v1653, %v1813
      %v1815 = vpop.f32.mrf.mxu0
      %1816 = vmatprep.mubr.bf16.mxu0 %v892
      %1817 = vmatmul.mubr.bf16.gmra.mxu0 %v891
      %v1818 = vpop.f32.mrf.mxu0
      %v1819 = vadd.f32 %v1658, %v1818
      %v1820 = vpop.f32.mrf.mxu0
      %v1821 = vpop.f32.mrf.mxu0
      %v1822 = vadd.f32 %v1661, %v1821
      %v1823 = vpop.f32.mrf.mxu0
      %1824 = vdwg.mxu0
      %1825 = vmatprep.subr.bf16.mxu0 0
      %1826 = vmatpush1.bf16.msra.mxu0 0
      %1827 = vmatprep.subr.bf16.mxu0 0
      %1828 = vmatpush1.bf16.msra.mxu0 0
      %1829 = vmatprep.subr.bf16.mxu0 0
      %1830 = vmatpush1.bf16.msra.mxu0 0
      %1831 = vmatprep.subr.bf16.mxu0 0
      %1832 = vmatpush1.bf16.msra.mxu0 0
      %1833 = vmatprep.subr.bf16.mxu0 0
      %1834 = vmatpush1.bf16.msra.mxu0 0
      %1835 = vmatprep.subr.bf16.mxu0 0
      %1836 = vmatpush1.bf16.msra.mxu0 0
      %1837 = vmatprep.subr.bf16.mxu0 0
      %1838 = vmatpush1.bf16.msra.mxu0 0
      %1839 = vmatprep.subr.bf16.mxu0 0
      %1840 = vmatpush1.bf16.msra.mxu0 %v1243
      %1841 = vmatprep.subr.bf16.mxu0 0
      %1842 = vmatpush2.bf16.msra.mxu0 0
      %1843 = vmatprep.subr.bf16.mxu0 0
      %1844 = vmatpush2.bf16.msra.mxu0 0
      %1845 = vmatprep.subr.bf16.mxu0 0
      %1846 = vmatpush2.bf16.msra.mxu0 0
      %1847 = vmatprep.subr.bf16.mxu0 0
      %1848 = vmatpush2.bf16.msra.mxu0 0
      %1849 = vmatprep.subr.bf16.mxu0 0
      %1850 = vmatpush2.bf16.msra.mxu0 0
      %1851 = vmatprep.subr.bf16.mxu0 0
      %1852 = vmatpush2.bf16.msra.mxu0 0
      %1853 = vmatprep.subr.bf16.mxu0 0
      %1854 = vmatpush2.bf16.msra.mxu0 0
      %1855 = vmatprep.subr.bf16.mxu0 0
      %1856 = vmatpush2.bf16.msra.mxu0 0
      %1857 = vmatprep.mubr.bf16.mxu0 0
      %1858 = vmatmul.mubr.bf16.gmra.mxu0 %v1295
      %v1859 = vpop.f32.mrf.mxu0
      %v1860 = vadd.f32 %v1699, %v1859
      %v1861 = vpop.f32.mrf.mxu0
      %v1862 = vpop.f32.mrf.mxu0
      %v1863 = vadd.f32 %v1702, %v1862
      %v1864 = vpop.f32.mrf.mxu0
      %1865 = vmatprep.mubr.bf16.mxu0 0
      %1866 = vmatmul.mubr.bf16.gmra.mxu0 %v1298
      %v1867 = vpop.f32.mrf.mxu0
      %v1868 = vadd.f32 %v1707, %v1867
      %v1869 = vpop.f32.mrf.mxu0
      %v1870 = vpop.f32.mrf.mxu0
      %v1871 = vadd.f32 %v1710, %v1870
      %v1872 = vpop.f32.mrf.mxu0
      %1873 = vmatprep.mubr.bf16.mxu0 0
      %1874 = vmatmul.mubr.bf16.gmra.mxu0 %v1301
      %v1875 = vpop.f32.mrf.mxu0
      %v1876 = vadd.f32 %v1715, %v1875
      %v1877 = vpop.f32.mrf.mxu0
      %v1878 = vpop.f32.mrf.mxu0
      %v1879 = vadd.f32 %v1718, %v1878
      %v1880 = vpop.f32.mrf.mxu0
      %1881 = vmatprep.mubr.bf16.mxu0 0
      %1882 = vmatmul.mubr.bf16.gmra.mxu0 %v1304
      %v1883 = vpop.f32.mrf.mxu0
      %v1884 = vadd.f32 %v1723, %v1883
      %v1885 = vpop.f32.mrf.mxu0
      %v1886 = vpop.f32.mrf.mxu0
      %v1887 = vadd.f32 %v1726, %v1886
      %v1888 = vpop.f32.mrf.mxu0
      %1889 = vmatprep.mubr.bf16.mxu0 0
      %1890 = vmatmul.mubr.bf16.gmra.mxu0 %v1307
      %v1891 = vpop.f32.mrf.mxu0
      %v1892 = vadd.f32 %v1731, %v1891
      %v1893 = vpop.f32.mrf.mxu0
      %v1894 = vpop.f32.mrf.mxu0
      %v1895 = vadd.f32 %v1734, %v1894
      %v1896 = vpop.f32.mrf.mxu0
      %1897 = vmatprep.mubr.bf16.mxu0 0
      %1898 = vmatmul.mubr.bf16.gmra.mxu0 %v1310
      %v1899 = vpop.f32.mrf.mxu0
      %v1900 = vadd.f32 %v1739, %v1899
      %v1901 = vpop.f32.mrf.mxu0
      %v1902 = vpop.f32.mrf.mxu0
      %v1903 = vadd.f32 %v1742, %v1902
      %v1904 = vpop.f32.mrf.mxu0
      %1905 = vmatprep.mubr.bf16.mxu0 0
      %1906 = vmatmul.mubr.bf16.gmra.mxu0 %v1313
      %v1907 = vpop.f32.mrf.mxu0
      %v1908 = vadd.f32 %v1747, %v1907
      %v1909 = vpop.f32.mrf.mxu0
      %v1910 = vpop.f32.mrf.mxu0
      %v1911 = vadd.f32 %v1750, %v1910
      %v1912 = vpop.f32.mrf.mxu0
      %1913 = vmatprep.mubr.bf16.mxu0 0
      %1914 = vmatmul.mubr.bf16.gmra.mxu0 %v1316
      %v1915 = vpop.f32.mrf.mxu0
      %v1916 = vadd.f32 %v1755, %v1915
      %v1917 = vpop.f32.mrf.mxu0
      %v1918 = vpop.f32.mrf.mxu0
      %v1919 = vadd.f32 %v1758, %v1918
      %v1920 = vpop.f32.mrf.mxu0
      %1921 = vmatprep.mubr.bf16.mxu0 0
      %1922 = vmatmul.mubr.bf16.gmra.mxu0 %v1319
      %v1923 = vpop.f32.mrf.mxu0
      %v1924 = vadd.f32 %v1763, %v1923
      %v1925 = vpop.f32.mrf.mxu0
      %v1926 = vpop.f32.mrf.mxu0
      %v1927 = vadd.f32 %v1766, %v1926
      %v1928 = vpop.f32.mrf.mxu0
      %1929 = vmatprep.mubr.bf16.mxu0 0
      %1930 = vmatmul.mubr.bf16.gmra.mxu0 %v1322
      %v1931 = vpop.f32.mrf.mxu0
      %v1932 = vadd.f32 %v1771, %v1931
      %v1933 = vpop.f32.mrf.mxu0
      %v1934 = vpop.f32.mrf.mxu0
      %v1935 = vadd.f32 %v1774, %v1934
      %v1936 = vpop.f32.mrf.mxu0
      %1937 = vmatprep.mubr.bf16.mxu0 0
      %1938 = vmatmul.mubr.bf16.gmra.mxu0 %v1325
      %v1939 = vpop.f32.mrf.mxu0
      %v1940 = vadd.f32 %v1779, %v1939
      %v1941 = vpop.f32.mrf.mxu0
      %v1942 = vpop.f32.mrf.mxu0
      %v1943 = vadd.f32 %v1782, %v1942
      %v1944 = vpop.f32.mrf.mxu0
      %1945 = vmatprep.mubr.bf16.mxu0 0
      %1946 = vmatmul.mubr.bf16.gmra.mxu0 %v1328
      %v1947 = vpop.f32.mrf.mxu0
      %v1948 = vadd.f32 %v1787, %v1947
      %v1949 = vpop.f32.mrf.mxu0
      %v1950 = vpop.f32.mrf.mxu0
      %v1951 = vadd.f32 %v1790, %v1950
      %v1952 = vpop.f32.mrf.mxu0
      %1953 = vmatprep.mubr.bf16.mxu0 0
      %1954 = vmatmul.mubr.bf16.gmra.mxu0 %v1331
      %v1955 = vpop.f32.mrf.mxu0
      %v1956 = vadd.f32 %v1795, %v1955
      %v1957 = vpop.f32.mrf.mxu0
      %v1958 = vpop.f32.mrf.mxu0
      %v1959 = vadd.f32 %v1798, %v1958
      %v1960 = vpop.f32.mrf.mxu0
      %1961 = vmatprep.mubr.bf16.mxu0 0
      %1962 = vmatmul.mubr.bf16.gmra.mxu0 %v1334
      %v1963 = vpop.f32.mrf.mxu0
      %v1964 = vadd.f32 %v1803, %v1963
      %v1965 = vpop.f32.mrf.mxu0
      %v1966 = vpop.f32.mrf.mxu0
      %v1967 = vadd.f32 %v1806, %v1966
      %v1968 = vpop.f32.mrf.mxu0
      %1969 = vmatprep.mubr.bf16.mxu0 0
      %1970 = vmatmul.mubr.bf16.gmra.mxu0 %v1337
      %v1971 = vpop.f32.mrf.mxu0
      %v1972 = vadd.f32 %v1811, %v1971
      %v1973 = vpop.f32.mrf.mxu0
      %v1974 = vpop.f32.mrf.mxu0
      %v1975 = vadd.f32 %v1814, %v1974
      %v1976 = vpop.f32.mrf.mxu0
      %1977 = vmatprep.mubr.bf16.mxu0 0
      %1978 = vmatmul.mubr.bf16.gmra.mxu0 %v1340
      %v1979 = vpop.f32.mrf.mxu0
      %v1980 = vadd.f32 %v1819, %v1979
      %v1981 = vpop.f32.mrf.mxu0
      %v1982 = vpop.f32.mrf.mxu0
      %v1983 = vadd.f32 %v1822, %v1982
      %v1984 = vpop.f32.mrf.mxu0
      %1985 = vdwg.mxu0
      %v1986 = vmax.f32 %v1860, 0.0
      %v1987 = vmax.f32 %v1863, 0.0
      %v1988 = vmax.f32 %v1868, 0.0
      %v1989 = vmax.f32 %v1871, 0.0
      %v1990 = vmax.f32 %v1876, 0.0
      %v1991 = vmax.f32 %v1879, 0.0
      %v1992 = vmax.f32 %v1884, 0.0
      %v1993 = vmax.f32 %v1887, 0.0
      %v1994 = vmax.f32 %v1892, 0.0
      %v1995 = vmax.f32 %v1895, 0.0
      %v1996 = vmax.f32 %v1900, 0.0
      %v1997 = vmax.f32 %v1903, 0.0
      %v1998 = vmax.f32 %v1908, 0.0
      %v1999 = vmax.f32 %v1911, 0.0
      %v2000 = vmax.f32 %v1916, 0.0
      %v2001 = vmax.f32 %v1919, 0.0
      %v2002 = vmax.f32 %v1924, 0.0
      %v2003 = vmax.f32 %v1927, 0.0
      %v2004 = vmax.f32 %v1932, 0.0
      %v2005 = vmax.f32 %v1935, 0.0
      %v2006 = vmax.f32 %v1940, 0.0
      %v2007 = vmax.f32 %v1943, 0.0
      %v2008 = vmax.f32 %v1948, 0.0
      %v2009 = vmax.f32 %v1951, 0.0
      %v2010 = vmax.f32 %v1956, 0.0
      %v2011 = vmax.f32 %v1959, 0.0
      %v2012 = vmax.f32 %v1964, 0.0
      %v2013 = vmax.f32 %v1967, 0.0
      %v2014 = vmax.f32 %v1972, 0.0
      %v2015 = vmax.f32 %v1975, 0.0
      %v2016 = vmax.f32 %v1980, 0.0
      %v2017 = vmax.f32 %v1983, 0.0
      %v2018 = vpack.c.bf16 %v1987, %v1986
      %v2019 = vpack.c.bf16 %v1989, %v1988
      %v2020 = vpack.c.bf16 %v1991, %v1990
      %v2021 = vpack.c.bf16 %v1993, %v1992
      %v2022 = vpack.c.bf16 %v1995, %v1994
      %v2023 = vpack.c.bf16 %v1997, %v1996
      %v2024 = vpack.c.bf16 %v1999, %v1998
      %v2025 = vpack.c.bf16 %v2001, %v2000
      %v2026 = vpack.c.bf16 %v2003, %v2002
      %v2027 = vpack.c.bf16 %v2005, %v2004
      %v2028 = vpack.c.bf16 %v2007, %v2006
      %v2029 = vpack.c.bf16 %v2009, %v2008
      %v2030 = vpack.c.bf16 %v2011, %v2010
      %v2031 = vpack.c.bf16 %v2013, %v2012
      %v2032 = vpack.c.bf16 %v2015, %v2014
      %v2033 = vpack.c.bf16 %v2017, %v2016
      %v2034 = vld [vmem:[%s3] sm:$0xf]
      %v2035 = vld [vmem:[%s3 + $0x4] sm:$0xf]
      %v2036 = vld [vmem:[%s3 + $0x8] sm:$0xf]
      %v2037 = vld [vmem:[%s3 + $0xc] sm:$0xf]
      %v2038 = vld [vmem:[%s3 + $0x10] sm:$0xf]
      %v2039 = vld [vmem:[%s3 + $0x14] sm:$0xf]
      %v2040 = vld [vmem:[%s3 + $0x18] sm:$0xf]
      %v2041 = vld [vmem:[%s3 + $0x1c] sm:$0xf]
      %v2042 = vld [vmem:[%s3 + $0x20] sm:$0xf]
      %v2043 = vld [vmem:[%s3 + $0x24] sm:$0xf]
      %v2044 = vld [vmem:[%s3 + $0x28] sm:$0xf]
      %v2045 = vld [vmem:[%s3 + $0x2c] sm:$0xf]
      %v2046 = vld [vmem:[%s3 + $0x30] sm:$0xf]
      %v2047 = vld [vmem:[%s3 + $0x34] sm:$0xf]
      %v2048 = vld [vmem:[%s3 + $0x38] sm:$0xf]
      %v2049 = vld [vmem:[%s3 + $0x3c] sm:$0xf]
      %v2050 = vld [vmem:[%s4] sm:$0x1]
      %v2052 = vlaneseq
      %v2053 = vshrl.u32 %v2052, 7
      %v2054 = vsub.s32 0, %v2053
      %v2055 = vrot.slane %v2050, %v2054
      %v2073 = vunpack.c.l.b16 %v2034
      %v2074 = vunpack.c.l.b16 %v2035
      %v2075 = vunpack.c.l.b16 %v2036
      %v2076 = vunpack.c.l.b16 %v2037
      %v2077 = vunpack.c.l.b16 %v2038
      %v2078 = vunpack.c.l.b16 %v2039
      %v2079 = vunpack.c.l.b16 %v2040
      %v2080 = vunpack.c.l.b16 %v2041
      %v2081 = vunpack.c.l.b16 %v2042
      %v2082 = vunpack.c.l.b16 %v2043
      %v2083 = vunpack.c.l.b16 %v2044
      %v2084 = vunpack.c.l.b16 %v2045
      %v2085 = vunpack.c.l.b16 %v2046
      %v2086 = vunpack.c.l.b16 %v2047
      %v2087 = vunpack.c.l.b16 %v2048
      %v2088 = vunpack.c.l.b16 %v2049
      %v2089 = vpack.c.b16 %v2074, %v2073
      %v2090 = vpack.c.b16 %v2076, %v2075
      %v2091 = vpack.c.b16 %v2078, %v2077
      %v2092 = vpack.c.b16 %v2080, %v2079
      %v2093 = vpack.c.b16 %v2082, %v2081
      %v2094 = vpack.c.b16 %v2084, %v2083
      %v2095 = vpack.c.b16 %v2086, %v2085
      %v2096 = vpack.c.b16 %v2088, %v2087
      %2105 = vmatprep.subr.bf16.mxu0 0
      %2106 = vmatpush1.bf16.msra.mxu0 %v2096
      %2107 = vmatprep.subr.bf16.mxu0 0
      %2108 = vmatpush1.bf16.msra.mxu0 %v2095
      %2109 = vmatprep.subr.bf16.mxu0 0
      %2110 = vmatpush1.bf16.msra.mxu0 %v2094
      %2111 = vmatprep.subr.bf16.mxu0 0
      %2112 = vmatpush1.bf16.msra.mxu0 %v2093
      %2113 = vmatprep.subr.bf16.mxu0 0
      %2114 = vmatpush1.bf16.msra.mxu0 %v2092
      %2115 = vmatprep.subr.bf16.mxu0 0
      %2116 = vmatpush1.bf16.msra.mxu0 %v2091
      %2117 = vmatprep.subr.bf16.mxu0 0
      %2118 = vmatpush1.bf16.msra.mxu0 %v2090
      %2119 = vmatprep.subr.bf16.mxu0 0
      %2120 = vmatpush1.bf16.msra.mxu0 %v2089
      %2121 = vmatprep.subr.bf16.mxu0 0
      %2122 = vmatpush2.bf16.msra.mxu0 0
      %2123 = vmatprep.subr.bf16.mxu0 0
      %2124 = vmatpush2.bf16.msra.mxu0 0
      %2125 = vmatprep.subr.bf16.mxu0 0
      %2126 = vmatpush2.bf16.msra.mxu0 0
      %2127 = vmatprep.subr.bf16.mxu0 0
      %2128 = vmatpush2.bf16.msra.mxu0 0
      %2129 = vmatprep.subr.bf16.mxu0 0
      %2130 = vmatpush2.bf16.msra.mxu0 0
      %2131 = vmatprep.subr.bf16.mxu0 0
      %2132 = vmatpush2.bf16.msra.mxu0 0
      %2133 = vmatprep.subr.bf16.mxu0 0
      %2134 = vmatpush2.bf16.msra.mxu0 0
      %2135 = vmatprep.subr.bf16.mxu0 0
      %2136 = vmatpush2.bf16.msra.mxu0 0
      %2137 = vmatprep.mubr.bf16.mxu0 0
      %2138 = vmatmul.mubr.bf16.gmra.mxu0 %v2018
      %v2139 = vpop.f32.mrf.mxu0
      %v2140 = vadd.f32 %v2055, %v2139
      %v2141 = vpop.f32.mrf.mxu0
      %v2142 = vpop.f32.mrf.mxu0
      %v2143 = vadd.f32 %v2055, %v2142
      %v2144 = vpop.f32.mrf.mxu0
      %2145 = vmatprep.mubr.bf16.mxu0 0
      %2146 = vmatmul.mubr.bf16.gmra.mxu0 %v2019
      %v2147 = vpop.f32.mrf.mxu0
      %v2148 = vadd.f32 %v2055, %v2147
      %v2149 = vpop.f32.mrf.mxu0
      %v2150 = vpop.f32.mrf.mxu0
      %v2151 = vadd.f32 %v2055, %v2150
      %v2152 = vpop.f32.mrf.mxu0
      %2153 = vmatprep.mubr.bf16.mxu0 0
      %2154 = vmatmul.mubr.bf16.gmra.mxu0 %v2020
      %v2155 = vpop.f32.mrf.mxu0
      %v2156 = vadd.f32 %v2055, %v2155
      %v2157 = vpop.f32.mrf.mxu0
      %v2158 = vpop.f32.mrf.mxu0
      %v2159 = vadd.f32 %v2055, %v2158
      %v2160 = vpop.f32.mrf.mxu0
      %2161 = vmatprep.mubr.bf16.mxu0 0
      %2162 = vmatmul.mubr.bf16.gmra.mxu0 %v2021
      %v2163 = vpop.f32.mrf.mxu0
      %v2164 = vadd.f32 %v2055, %v2163
      %v2165 = vpop.f32.mrf.mxu0
      %v2166 = vpop.f32.mrf.mxu0
      %v2167 = vadd.f32 %v2055, %v2166
      %v2168 = vpop.f32.mrf.mxu0
      %2169 = vmatprep.mubr.bf16.mxu0 0
      %2170 = vmatmul.mubr.bf16.gmra.mxu0 %v2022
      %v2171 = vpop.f32.mrf.mxu0
      %v2172 = vadd.f32 %v2055, %v2171
      %v2173 = vpop.f32.mrf.mxu0
      %v2174 = vpop.f32.mrf.mxu0
      %v2175 = vadd.f32 %v2055, %v2174
      %v2176 = vpop.f32.mrf.mxu0
      %2177 = vmatprep.mubr.bf16.mxu0 0
      %2178 = vmatmul.mubr.bf16.gmra.mxu0 %v2023
      %v2179 = vpop.f32.mrf.mxu0
      %v2180 = vadd.f32 %v2055, %v2179
      %v2181 = vpop.f32.mrf.mxu0
      %v2182 = vpop.f32.mrf.mxu0
      %v2183 = vadd.f32 %v2055, %v2182
      %v2184 = vpop.f32.mrf.mxu0
      %2185 = vmatprep.mubr.bf16.mxu0 0
      %2186 = vmatmul.mubr.bf16.gmra.mxu0 %v2024
      %v2187 = vpop.f32.mrf.mxu0
      %v2188 = vadd.f32 %v2055, %v2187
      %v2189 = vpop.f32.mrf.mxu0
      %v2190 = vpop.f32.mrf.mxu0
      %v2191 = vadd.f32 %v2055, %v2190
      %v2192 = vpop.f32.mrf.mxu0
      %2193 = vmatprep.mubr.bf16.mxu0 0
      %2194 = vmatmul.mubr.bf16.gmra.mxu0 %v2025
      %v2195 = vpop.f32.mrf.mxu0
      %v2196 = vadd.f32 %v2055, %v2195
      %v2197 = vpop.f32.mrf.mxu0
      %v2198 = vpop.f32.mrf.mxu0
      %v2199 = vadd.f32 %v2055, %v2198
      %v2200 = vpop.f32.mrf.mxu0
      %2201 = vmatprep.mubr.bf16.mxu0 0
      %2202 = vmatmul.mubr.bf16.gmra.mxu0 %v2026
      %v2203 = vpop.f32.mrf.mxu0
      %v2204 = vadd.f32 %v2055, %v2203
      %v2205 = vpop.f32.mrf.mxu0
      %v2206 = vpop.f32.mrf.mxu0
      %v2207 = vadd.f32 %v2055, %v2206
      %v2208 = vpop.f32.mrf.mxu0
      %2209 = vmatprep.mubr.bf16.mxu0 0
      %2210 = vmatmul.mubr.bf16.gmra.mxu0 %v2027
      %v2211 = vpop.f32.mrf.mxu0
      %v2212 = vadd.f32 %v2055, %v2211
      %v2213 = vpop.f32.mrf.mxu0
      %v2214 = vpop.f32.mrf.mxu0
      %v2215 = vadd.f32 %v2055, %v2214
      %v2216 = vpop.f32.mrf.mxu0
      %2217 = vmatprep.mubr.bf16.mxu0 0
      %2218 = vmatmul.mubr.bf16.gmra.mxu0 %v2028
      %v2219 = vpop.f32.mrf.mxu0
      %v2220 = vadd.f32 %v2055, %v2219
      %v2221 = vpop.f32.mrf.mxu0
      %v2222 = vpop.f32.mrf.mxu0
      %v2223 = vadd.f32 %v2055, %v2222
      %v2224 = vpop.f32.mrf.mxu0
      %2225 = vmatprep.mubr.bf16.mxu0 0
      %2226 = vmatmul.mubr.bf16.gmra.mxu0 %v2029
      %v2227 = vpop.f32.mrf.mxu0
      %v2228 = vadd.f32 %v2055, %v2227
      %v2229 = vpop.f32.mrf.mxu0
      %v2230 = vpop.f32.mrf.mxu0
      %v2231 = vadd.f32 %v2055, %v2230
      %v2232 = vpop.f32.mrf.mxu0
      %2233 = vmatprep.mubr.bf16.mxu0 0
      %2234 = vmatmul.mubr.bf16.gmra.mxu0 %v2030
      %v2235 = vpop.f32.mrf.mxu0
      %v2236 = vadd.f32 %v2055, %v2235
      %v2237 = vpop.f32.mrf.mxu0
      %v2238 = vpop.f32.mrf.mxu0
      %v2239 = vadd.f32 %v2055, %v2238
      %v2240 = vpop.f32.mrf.mxu0
      %2241 = vmatprep.mubr.bf16.mxu0 0
      %2242 = vmatmul.mubr.bf16.gmra.mxu0 %v2031
      %v2243 = vpop.f32.mrf.mxu0
      %v2244 = vadd.f32 %v2055, %v2243
      %v2245 = vpop.f32.mrf.mxu0
      %v2246 = vpop.f32.mrf.mxu0
      %v2247 = vadd.f32 %v2055, %v2246
      %v2248 = vpop.f32.mrf.mxu0
      %2249 = vmatprep.mubr.bf16.mxu0 0
      %2250 = vmatmul.mubr.bf16.gmra.mxu0 %v2032
      %v2251 = vpop.f32.mrf.mxu0
      %v2252 = vadd.f32 %v2055, %v2251
      %v2253 = vpop.f32.mrf.mxu0
      %v2254 = vpop.f32.mrf.mxu0
      %v2255 = vadd.f32 %v2055, %v2254
      %v2256 = vpop.f32.mrf.mxu0
      %2257 = vmatprep.mubr.bf16.mxu0 0
      %2258 = vmatmul.mubr.bf16.gmra.mxu0 %v2033
      %v2259 = vpop.f32.mrf.mxu0
      %v2260 = vadd.f32 %v2055, %v2259
      %v2261 = vpop.f32.mrf.mxu0
      %v2262 = vpop.f32.mrf.mxu0
      %v2263 = vadd.f32 %v2055, %v2262
      %v2264 = vpop.f32.mrf.mxu0
      %2265 = vdwg.mxu0
      %v2266 = vmax.f32 %v2140, 0.0
      %v2267 = vmax.f32 %v2143, 0.0
      %v2268 = vmax.f32 %v2148, 0.0
      %v2269 = vmax.f32 %v2151, 0.0
      %v2270 = vmax.f32 %v2156, 0.0
      %v2271 = vmax.f32 %v2159, 0.0
      %v2272 = vmax.f32 %v2164, 0.0
      %v2273 = vmax.f32 %v2167, 0.0
      %v2274 = vmax.f32 %v2172, 0.0
      %v2275 = vmax.f32 %v2175, 0.0
      %v2276 = vmax.f32 %v2180, 0.0
      %v2277 = vmax.f32 %v2183, 0.0
      %v2278 = vmax.f32 %v2188, 0.0
      %v2279 = vmax.f32 %v2191, 0.0
      %v2280 = vmax.f32 %v2196, 0.0
      %v2281 = vmax.f32 %v2199, 0.0
      %v2282 = vmax.f32 %v2204, 0.0
      %v2283 = vmax.f32 %v2207, 0.0
      %v2284 = vmax.f32 %v2212, 0.0
      %v2285 = vmax.f32 %v2215, 0.0
      %v2286 = vmax.f32 %v2220, 0.0
      %v2287 = vmax.f32 %v2223, 0.0
      %v2288 = vmax.f32 %v2228, 0.0
      %v2289 = vmax.f32 %v2231, 0.0
      %v2290 = vmax.f32 %v2236, 0.0
      %v2291 = vmax.f32 %v2239, 0.0
      %v2292 = vmax.f32 %v2244, 0.0
      %v2293 = vmax.f32 %v2247, 0.0
      %v2294 = vmax.f32 %v2252, 0.0
      %v2295 = vmax.f32 %v2255, 0.0
      %v2296 = vmax.f32 %v2260, 0.0
      %v2297 = vmax.f32 %v2263, 0.0
      %v2298 = vpack.c.bf16 %v2267, %v2266
      %v2299 = vpack.c.bf16 %v2269, %v2268
      %v2300 = vpack.c.bf16 %v2271, %v2270
      %v2301 = vpack.c.bf16 %v2273, %v2272
      %v2302 = vpack.c.bf16 %v2275, %v2274
      %v2303 = vpack.c.bf16 %v2277, %v2276
      %v2304 = vpack.c.bf16 %v2279, %v2278
      %v2305 = vpack.c.bf16 %v2281, %v2280
      %v2306 = vpack.c.bf16 %v2283, %v2282
      %v2307 = vpack.c.bf16 %v2285, %v2284
      %v2308 = vpack.c.bf16 %v2287, %v2286
      %v2309 = vpack.c.bf16 %v2289, %v2288
      %v2310 = vpack.c.bf16 %v2291, %v2290
      %v2311 = vpack.c.bf16 %v2293, %v2292
      %v2312 = vpack.c.bf16 %v2295, %v2294
      %v2313 = vpack.c.bf16 %v2297, %v2296
      %v2314 = vld [vmem:[%s5] sm:$0xf]
      %v2315 = vld [vmem:[%s5 + $0x4] sm:$0xf]
      %v2316 = vld [vmem:[%s5 + $0x8] sm:$0xf]
      %v2317 = vld [vmem:[%s5 + $0xc] sm:$0xf]
      %v2318 = vld [vmem:[%s5 + $0x10] sm:$0xf]
      %v2319 = vld [vmem:[%s5 + $0x14] sm:$0xf]
      %v2320 = vld [vmem:[%s5 + $0x18] sm:$0xf]
      %v2321 = vld [vmem:[%s5 + $0x1c] sm:$0xf]
      %v2322 = vld [vmem:[%s6] sm:$0x1]
      %v2324 = vlaneseq
      %v2325 = vshrl.u32 %v2324, 7
      %v2326 = vsub.s32 0, %v2325
      %v2327 = vrot.slane %v2322, %v2326
      %v2337 = vunpack.c.l.b16 %v2314
      %v2338 = vunpack.c.l.b16 %v2315
      %v2339 = vunpack.c.l.b16 %v2316
      %v2340 = vunpack.c.l.b16 %v2317
      %v2341 = vunpack.c.l.b16 %v2318
      %v2342 = vunpack.c.l.b16 %v2319
      %v2343 = vunpack.c.l.b16 %v2320
      %v2344 = vunpack.c.l.b16 %v2321
      %v2345 = vpack.c.b16 %v2338, %v2337
      %v2346 = vpack.c.b16 %v2340, %v2339
      %v2347 = vpack.c.b16 %v2342, %v2341
      %v2348 = vpack.c.b16 %v2344, %v2343
      %vm2353 = vcmask 523264
      %v2355 = vsel %vm2353, %v2298, 0
      %v2358 = vsel %vm2353, %v2299, 0
      %v2361 = vsel %vm2353, %v2300, 0
      %v2364 = vsel %vm2353, %v2301, 0
      %v2367 = vsel %vm2353, %v2302, 0
      %v2370 = vsel %vm2353, %v2303, 0
      %v2373 = vsel %vm2353, %v2304, 0
      %v2376 = vsel %vm2353, %v2305, 0
      %v2379 = vsel %vm2353, %v2306, 0
      %v2382 = vsel %vm2353, %v2307, 0
      %v2385 = vsel %vm2353, %v2308, 0
      %v2388 = vsel %vm2353, %v2309, 0
      %v2391 = vsel %vm2353, %v2310, 0
      %v2394 = vsel %vm2353, %v2311, 0
      %v2397 = vsel %vm2353, %v2312, 0
      %v2400 = vsel %vm2353, %v2313, 0
      %2402 = vmatprep.subr.bf16.mxu0 0
      %2403 = vmatpush1.bf16.msra.mxu0 0
      %2404 = vmatprep.subr.bf16.mxu0 0
      %2405 = vmatpush1.bf16.msra.mxu0 0
      %2406 = vmatprep.subr.bf16.mxu0 0
      %2407 = vmatpush1.bf16.msra.mxu0 0
      %2408 = vmatprep.subr.bf16.mxu0 0
      %2409 = vmatpush1.bf16.msra.mxu0 0
      %2410 = vmatprep.subr.bf16.mxu0 0
      %2411 = vmatpush1.bf16.msra.mxu0 %v2348
      %2412 = vmatprep.subr.bf16.mxu0 0
      %2413 = vmatpush1.bf16.msra.mxu0 %v2347
      %2414 = vmatprep.subr.bf16.mxu0 0
      %2415 = vmatpush1.bf16.msra.mxu0 %v2346
      %2416 = vmatprep.subr.bf16.mxu0 0
      %2417 = vmatpush1.bf16.msra.mxu0 %v2345
      %2418 = vmatprep.subr.bf16.mxu0 0
      %2419 = vmatpush2.bf16.msra.mxu0 0
      %2420 = vmatprep.subr.bf16.mxu0 0
      %2421 = vmatpush2.bf16.msra.mxu0 0
      %2422 = vmatprep.subr.bf16.mxu0 0
      %2423 = vmatpush2.bf16.msra.mxu0 0
      %2424 = vmatprep.subr.bf16.mxu0 0
      %2425 = vmatpush2.bf16.msra.mxu0 0
      %2426 = vmatprep.subr.bf16.mxu0 0
      %2427 = vmatpush2.bf16.msra.mxu0 0
      %2428 = vmatprep.subr.bf16.mxu0 0
      %2429 = vmatpush2.bf16.msra.mxu0 0
      %2430 = vmatprep.subr.bf16.mxu0 0
      %2431 = vmatpush2.bf16.msra.mxu0 0
      %2432 = vmatprep.subr.bf16.mxu0 0
      %2433 = vmatpush2.bf16.msra.mxu0 0
      %2434 = vmatprep.mubr.bf16.mxu0 0
      %2435 = vmatmul.mubr.bf16.gmra.mxu0 %v2355
      %v2436 = vpop.f32.mrf.mxu0
      %v2437 = vadd.f32 %v2327, %v2436
      %v2438 = vpop.f32.mrf.mxu0
      %v2439 = vpop.f32.mrf.mxu0
      %v2440 = vadd.f32 %v2327, %v2439
      %v2441 = vpop.f32.mrf.mxu0
      %2442 = vmatprep.mubr.bf16.mxu0 0
      %2443 = vmatmul.mubr.bf16.gmra.mxu0 %v2358
      %v2444 = vpop.f32.mrf.mxu0
      %v2445 = vadd.f32 %v2327, %v2444
      %v2446 = vpop.f32.mrf.mxu0
      %v2447 = vpop.f32.mrf.mxu0
      %v2448 = vadd.f32 %v2327, %v2447
      %v2449 = vpop.f32.mrf.mxu0
      %2450 = vmatprep.mubr.bf16.mxu0 0
      %2451 = vmatmul.mubr.bf16.gmra.mxu0 %v2361
      %v2452 = vpop.f32.mrf.mxu0
      %v2453 = vadd.f32 %v2327, %v2452
      %v2454 = vpop.f32.mrf.mxu0
      %v2455 = vpop.f32.mrf.mxu0
      %v2456 = vadd.f32 %v2327, %v2455
      %v2457 = vpop.f32.mrf.mxu0
      %2458 = vmatprep.mubr.bf16.mxu0 0
      %2459 = vmatmul.mubr.bf16.gmra.mxu0 %v2364
      %v2460 = vpop.f32.mrf.mxu0
      %v2461 = vadd.f32 %v2327, %v2460
      %v2462 = vpop.f32.mrf.mxu0
      %v2463 = vpop.f32.mrf.mxu0
      %v2464 = vadd.f32 %v2327, %v2463
      %v2465 = vpop.f32.mrf.mxu0
      %2466 = vmatprep.mubr.bf16.mxu0 0
      %2467 = vmatmul.mubr.bf16.gmra.mxu0 %v2367
      %v2468 = vpop.f32.mrf.mxu0
      %v2469 = vadd.f32 %v2327, %v2468
      %v2470 = vpop.f32.mrf.mxu0
      %v2471 = vpop.f32.mrf.mxu0
      %v2472 = vadd.f32 %v2327, %v2471
      %v2473 = vpop.f32.mrf.mxu0
      %2474 = vmatprep.mubr.bf16.mxu0 0
      %2475 = vmatmul.mubr.bf16.gmra.mxu0 %v2370
      %v2476 = vpop.f32.mrf.mxu0
      %v2477 = vadd.f32 %v2327, %v2476
      %v2478 = vpop.f32.mrf.mxu0
      %v2479 = vpop.f32.mrf.mxu0
      %v2480 = vadd.f32 %v2327, %v2479
      %v2481 = vpop.f32.mrf.mxu0
      %2482 = vmatprep.mubr.bf16.mxu0 0
      %2483 = vmatmul.mubr.bf16.gmra.mxu0 %v2373
      %v2484 = vpop.f32.mrf.mxu0
      %v2485 = vadd.f32 %v2327, %v2484
      %v2486 = vpop.f32.mrf.mxu0
      %v2487 = vpop.f32.mrf.mxu0
      %v2488 = vadd.f32 %v2327, %v2487
      %v2489 = vpop.f32.mrf.mxu0
      %2490 = vmatprep.mubr.bf16.mxu0 0
      %2491 = vmatmul.mubr.bf16.gmra.mxu0 %v2376
      %v2492 = vpop.f32.mrf.mxu0
      %v2493 = vadd.f32 %v2327, %v2492
      %v2494 = vpop.f32.mrf.mxu0
      %v2495 = vpop.f32.mrf.mxu0
      %v2496 = vadd.f32 %v2327, %v2495
      %v2497 = vpop.f32.mrf.mxu0
      %2498 = vmatprep.mubr.bf16.mxu0 0
      %2499 = vmatmul.mubr.bf16.gmra.mxu0 %v2379
      %v2500 = vpop.f32.mrf.mxu0
      %v2501 = vadd.f32 %v2327, %v2500
      %v2502 = vpop.f32.mrf.mxu0
      %v2503 = vpop.f32.mrf.mxu0
      %v2504 = vadd.f32 %v2327, %v2503
      %v2505 = vpop.f32.mrf.mxu0
      %2506 = vmatprep.mubr.bf16.mxu0 0
      %2507 = vmatmul.mubr.bf16.gmra.mxu0 %v2382
      %v2508 = vpop.f32.mrf.mxu0
      %v2509 = vadd.f32 %v2327, %v2508
      %v2510 = vpop.f32.mrf.mxu0
      %v2511 = vpop.f32.mrf.mxu0
      %v2512 = vadd.f32 %v2327, %v2511
      %v2513 = vpop.f32.mrf.mxu0
      %2514 = vmatprep.mubr.bf16.mxu0 0
      %2515 = vmatmul.mubr.bf16.gmra.mxu0 %v2385
      %v2516 = vpop.f32.mrf.mxu0
      %v2517 = vadd.f32 %v2327, %v2516
      %v2518 = vpop.f32.mrf.mxu0
      %v2519 = vpop.f32.mrf.mxu0
      %v2520 = vadd.f32 %v2327, %v2519
      %v2521 = vpop.f32.mrf.mxu0
      %2522 = vmatprep.mubr.bf16.mxu0 0
      %2523 = vmatmul.mubr.bf16.gmra.mxu0 %v2388
      %v2524 = vpop.f32.mrf.mxu0
      %v2525 = vadd.f32 %v2327, %v2524
      %v2526 = vpop.f32.mrf.mxu0
      %v2527 = vpop.f32.mrf.mxu0
      %v2528 = vadd.f32 %v2327, %v2527
      %v2529 = vpop.f32.mrf.mxu0
      %2530 = vmatprep.mubr.bf16.mxu0 0
      %2531 = vmatmul.mubr.bf16.gmra.mxu0 %v2391
      %v2532 = vpop.f32.mrf.mxu0
      %v2533 = vadd.f32 %v2327, %v2532
      %v2534 = vpop.f32.mrf.mxu0
      %v2535 = vpop.f32.mrf.mxu0
      %v2536 = vadd.f32 %v2327, %v2535
      %v2537 = vpop.f32.mrf.mxu0
      %2538 = vmatprep.mubr.bf16.mxu0 0
      %2539 = vmatmul.mubr.bf16.gmra.mxu0 %v2394
      %v2540 = vpop.f32.mrf.mxu0
      %v2541 = vadd.f32 %v2327, %v2540
      %v2542 = vpop.f32.mrf.mxu0
      %v2543 = vpop.f32.mrf.mxu0
      %v2544 = vadd.f32 %v2327, %v2543
      %v2545 = vpop.f32.mrf.mxu0
      %2546 = vmatprep.mubr.bf16.mxu0 0
      %2547 = vmatmul.mubr.bf16.gmra.mxu0 %v2397
      %v2548 = vpop.f32.mrf.mxu0
      %v2549 = vadd.f32 %v2327, %v2548
      %v2550 = vpop.f32.mrf.mxu0
      %v2551 = vpop.f32.mrf.mxu0
      %v2552 = vadd.f32 %v2327, %v2551
      %v2553 = vpop.f32.mrf.mxu0
      %2554 = vmatprep.mubr.bf16.mxu0 0
      %2555 = vmatmul.mubr.bf16.gmra.mxu0 %v2400
      %v2556 = vpop.f32.mrf.mxu0
      %v2557 = vadd.f32 %v2327, %v2556
      %v2558 = vpop.f32.mrf.mxu0
      %v2559 = vpop.f32.mrf.mxu0
      %v2560 = vadd.f32 %v2327, %v2559
      %v2561 = vpop.f32.mrf.mxu0
      %2562 = vdwg.mxu0
      %v2563 = vmax.f32 %v2437, 0.0
      %v2564 = vmax.f32 %v2440, 0.0
      %v2565 = vmax.f32 %v2445, 0.0
      %v2566 = vmax.f32 %v2448, 0.0
      %v2567 = vmax.f32 %v2453, 0.0
      %v2568 = vmax.f32 %v2456, 0.0
      %v2569 = vmax.f32 %v2461, 0.0
      %v2570 = vmax.f32 %v2464, 0.0
      %v2571 = vmax.f32 %v2469, 0.0
      %v2572 = vmax.f32 %v2472, 0.0
      %v2573 = vmax.f32 %v2477, 0.0
      %v2574 = vmax.f32 %v2480, 0.0
      %v2575 = vmax.f32 %v2485, 0.0
      %v2576 = vmax.f32 %v2488, 0.0
      %v2577 = vmax.f32 %v2493, 0.0
      %v2578 = vmax.f32 %v2496, 0.0
      %v2579 = vmax.f32 %v2501, 0.0
      %v2580 = vmax.f32 %v2504, 0.0
      %v2581 = vmax.f32 %v2509, 0.0
      %v2582 = vmax.f32 %v2512, 0.0
      %v2583 = vmax.f32 %v2517, 0.0
      %v2584 = vmax.f32 %v2520, 0.0
      %v2585 = vmax.f32 %v2525, 0.0
      %v2586 = vmax.f32 %v2528, 0.0
      %v2587 = vmax.f32 %v2533, 0.0
      %v2588 = vmax.f32 %v2536, 0.0
      %v2589 = vmax.f32 %v2541, 0.0
      %v2590 = vmax.f32 %v2544, 0.0
      %v2591 = vmax.f32 %v2549, 0.0
      %v2592 = vmax.f32 %v2552, 0.0
      %v2593 = vmax.f32 %v2557, 0.0
      %v2594 = vmax.f32 %v2560, 0.0
      %v2595 = vpack.c.bf16 %v2564, %v2563
      %v2596 = vpack.c.bf16 %v2566, %v2565
      %v2597 = vpack.c.bf16 %v2568, %v2567
      %v2598 = vpack.c.bf16 %v2570, %v2569
      %v2599 = vpack.c.bf16 %v2572, %v2571
      %v2600 = vpack.c.bf16 %v2574, %v2573
      %v2601 = vpack.c.bf16 %v2576, %v2575
      %v2602 = vpack.c.bf16 %v2578, %v2577
      %v2603 = vpack.c.bf16 %v2580, %v2579
      %v2604 = vpack.c.bf16 %v2582, %v2581
      %v2605 = vpack.c.bf16 %v2584, %v2583
      %v2606 = vpack.c.bf16 %v2586, %v2585
      %v2607 = vpack.c.bf16 %v2588, %v2587
      %v2608 = vpack.c.bf16 %v2590, %v2589
      %v2609 = vpack.c.bf16 %v2592, %v2591
      %v2610 = vpack.c.bf16 %v2594, %v2593
      %v2611 = vld [vmem:[%s7] sm:$0xf]
      %v2612 = vld [vmem:[%s7 + $0x4] sm:$0xf]
      %v2613 = vld [vmem:[%s7 + $0x8] sm:$0xf]
      %v2614 = vld [vmem:[%s7 + $0xc] sm:$0xf]
      %v2615 = vld [vmem:[%s7 + $0x10] sm:$0xf]
      %v2616 = vld [vmem:[%s7 + $0x14] sm:$0xf]
      %v2617 = vld [vmem:[%s7 + $0x18] sm:$0xf]
      %v2618 = vld [vmem:[%s7 + $0x1c] sm:$0xf]
      %v2619 = vld [vmem:[%s7 + $0x20] sm:$0xf]
      %v2620 = vld [vmem:[%s7 + $0x24] sm:$0xf]
      %v2621 = vld [vmem:[%s7 + $0x28] sm:$0xf]
      %v2622 = vld [vmem:[%s7 + $0x2c] sm:$0xf]
      %v2623 = vld [vmem:[%s7 + $0x30] sm:$0xf]
      %v2624 = vld [vmem:[%s7 + $0x34] sm:$0xf]
      %v2625 = vld [vmem:[%s7 + $0x38] sm:$0xf]
      %v2626 = vld [vmem:[%s7 + $0x3c] sm:$0xf]
      %v2627 = vld [vmem:[%s8] sm:$0x1]
      %v2629 = vlaneseq
      %v2630 = vshrl.u32 %v2629, 7
      %v2631 = vsub.s32 0, %v2630
      %v2632 = vrot.slane %v2627, %v2631
      %v2650 = vunpack.c.l.b16 %v2611
      %v2651 = vunpack.c.l.b16 %v2612
      %v2652 = vunpack.c.l.b16 %v2613
      %v2653 = vunpack.c.l.b16 %v2614
      %v2654 = vunpack.c.l.b16 %v2615
      %v2655 = vunpack.c.l.b16 %v2616
      %v2656 = vunpack.c.l.b16 %v2617
      %v2657 = vunpack.c.l.b16 %v2618
      %v2658 = vunpack.c.l.b16 %v2619
      %v2659 = vunpack.c.l.b16 %v2620
      %v2660 = vunpack.c.l.b16 %v2621
      %v2661 = vunpack.c.l.b16 %v2622
      %v2662 = vunpack.c.l.b16 %v2623
      %v2663 = vunpack.c.l.b16 %v2624
      %v2664 = vunpack.c.l.b16 %v2625
      %v2665 = vunpack.c.l.b16 %v2626
      %v2666 = vpack.c.b16 %v2651, %v2650
      %v2667 = vpack.c.b16 %v2653, %v2652
      %v2668 = vpack.c.b16 %v2655, %v2654
      %v2669 = vpack.c.b16 %v2657, %v2656
      %v2670 = vpack.c.b16 %v2659, %v2658
      %v2671 = vpack.c.b16 %v2661, %v2660
      %v2672 = vpack.c.b16 %v2663, %v2662
      %v2673 = vpack.c.b16 %v2665, %v2664
      %2682 = vmatprep.subr.bf16.mxu0 0
      %2683 = vmatpush1.bf16.msra.mxu0 %v2673
      %2684 = vmatprep.subr.bf16.mxu0 0
      %2685 = vmatpush1.bf16.msra.mxu0 %v2672
      %2686 = vmatprep.subr.bf16.mxu0 0
      %2687 = vmatpush1.bf16.msra.mxu0 %v2671
      %2688 = vmatprep.subr.bf16.mxu0 0
      %2689 = vmatpush1.bf16.msra.mxu0 %v2670
      %2690 = vmatprep.subr.bf16.mxu0 0
      %2691 = vmatpush1.bf16.msra.mxu0 %v2669
      %2692 = vmatprep.subr.bf16.mxu0 0
      %2693 = vmatpush1.bf16.msra.mxu0 %v2668
      %2694 = vmatprep.subr.bf16.mxu0 0
      %2695 = vmatpush1.bf16.msra.mxu0 %v2667
      %2696 = vmatprep.subr.bf16.mxu0 0
      %2697 = vmatpush1.bf16.msra.mxu0 %v2666
      %2698 = vmatprep.subr.bf16.mxu0 0
      %2699 = vmatpush2.bf16.msra.mxu0 0
      %2700 = vmatprep.subr.bf16.mxu0 0
      %2701 = vmatpush2.bf16.msra.mxu0 0
      %2702 = vmatprep.subr.bf16.mxu0 0
      %2703 = vmatpush2.bf16.msra.mxu0 0
      %2704 = vmatprep.subr.bf16.mxu0 0
      %2705 = vmatpush2.bf16.msra.mxu0 0
      %2706 = vmatprep.subr.bf16.mxu0 0
      %2707 = vmatpush2.bf16.msra.mxu0 0
      %2708 = vmatprep.subr.bf16.mxu0 0
      %2709 = vmatpush2.bf16.msra.mxu0 0
      %2710 = vmatprep.subr.bf16.mxu0 0
      %2711 = vmatpush2.bf16.msra.mxu0 0
      %2712 = vmatprep.subr.bf16.mxu0 0
      %2713 = vmatpush2.bf16.msra.mxu0 0
      %2714 = vmatprep.mubr.bf16.mxu0 0
      %2715 = vmatmul.mubr.bf16.gmra.mxu0 %v2595
      %v2716 = vpop.f32.mrf.mxu0
      %v2717 = vadd.f32 %v2632, %v2716
      %v2718 = vpop.f32.mrf.mxu0
      %v2719 = vpop.f32.mrf.mxu0
      %v2720 = vadd.f32 %v2632, %v2719
      %v2721 = vpop.f32.mrf.mxu0
      %2722 = vmatprep.mubr.bf16.mxu0 0
      %2723 = vmatmul.mubr.bf16.gmra.mxu0 %v2596
      %v2724 = vpop.f32.mrf.mxu0
      %v2725 = vadd.f32 %v2632, %v2724
      %v2726 = vpop.f32.mrf.mxu0
      %v2727 = vpop.f32.mrf.mxu0
      %v2728 = vadd.f32 %v2632, %v2727
      %v2729 = vpop.f32.mrf.mxu0
      %2730 = vmatprep.mubr.bf16.mxu0 0
      %2731 = vmatmul.mubr.bf16.gmra.mxu0 %v2597
      %v2732 = vpop.f32.mrf.mxu0
      %v2733 = vadd.f32 %v2632, %v2732
      %v2734 = vpop.f32.mrf.mxu0
      %v2735 = vpop.f32.mrf.mxu0
      %v2736 = vadd.f32 %v2632, %v2735
      %v2737 = vpop.f32.mrf.mxu0
      %2738 = vmatprep.mubr.bf16.mxu0 0
      %2739 = vmatmul.mubr.bf16.gmra.mxu0 %v2598
      %v2740 = vpop.f32.mrf.mxu0
      %v2741 = vadd.f32 %v2632, %v2740
      %v2742 = vpop.f32.mrf.mxu0
      %v2743 = vpop.f32.mrf.mxu0
      %v2744 = vadd.f32 %v2632, %v2743
      %v2745 = vpop.f32.mrf.mxu0
      %2746 = vmatprep.mubr.bf16.mxu0 0
      %2747 = vmatmul.mubr.bf16.gmra.mxu0 %v2599
      %v2748 = vpop.f32.mrf.mxu0
      %v2749 = vadd.f32 %v2632, %v2748
      %v2750 = vpop.f32.mrf.mxu0
      %v2751 = vpop.f32.mrf.mxu0
      %v2752 = vadd.f32 %v2632, %v2751
      %v2753 = vpop.f32.mrf.mxu0
      %2754 = vmatprep.mubr.bf16.mxu0 0
      %2755 = vmatmul.mubr.bf16.gmra.mxu0 %v2600
      %v2756 = vpop.f32.mrf.mxu0
      %v2757 = vadd.f32 %v2632, %v2756
      %v2758 = vpop.f32.mrf.mxu0
      %v2759 = vpop.f32.mrf.mxu0
      %v2760 = vadd.f32 %v2632, %v2759
      %v2761 = vpop.f32.mrf.mxu0
      %2762 = vmatprep.mubr.bf16.mxu0 0
      %2763 = vmatmul.mubr.bf16.gmra.mxu0 %v2601
      %v2764 = vpop.f32.mrf.mxu0
      %v2765 = vadd.f32 %v2632, %v2764
      %v2766 = vpop.f32.mrf.mxu0
      %v2767 = vpop.f32.mrf.mxu0
      %v2768 = vadd.f32 %v2632, %v2767
      %v2769 = vpop.f32.mrf.mxu0
      %2770 = vmatprep.mubr.bf16.mxu0 0
      %2771 = vmatmul.mubr.bf16.gmra.mxu0 %v2602
      %v2772 = vpop.f32.mrf.mxu0
      %v2773 = vadd.f32 %v2632, %v2772
      %v2774 = vpop.f32.mrf.mxu0
      %v2775 = vpop.f32.mrf.mxu0
      %v2776 = vadd.f32 %v2632, %v2775
      %v2777 = vpop.f32.mrf.mxu0
      %2778 = vmatprep.mubr.bf16.mxu0 0
      %2779 = vmatmul.mubr.bf16.gmra.mxu0 %v2603
      %v2780 = vpop.f32.mrf.mxu0
      %v2781 = vadd.f32 %v2632, %v2780
      %v2782 = vpop.f32.mrf.mxu0
      %v2783 = vpop.f32.mrf.mxu0
      %v2784 = vadd.f32 %v2632, %v2783
      %v2785 = vpop.f32.mrf.mxu0
      %2786 = vmatprep.mubr.bf16.mxu0 0
      %2787 = vmatmul.mubr.bf16.gmra.mxu0 %v2604
      %v2788 = vpop.f32.mrf.mxu0
      %v2789 = vadd.f32 %v2632, %v2788
      %v2790 = vpop.f32.mrf.mxu0
      %v2791 = vpop.f32.mrf.mxu0
      %v2792 = vadd.f32 %v2632, %v2791
      %v2793 = vpop.f32.mrf.mxu0
      %2794 = vmatprep.mubr.bf16.mxu0 0
      %2795 = vmatmul.mubr.bf16.gmra.mxu0 %v2605
      %v2796 = vpop.f32.mrf.mxu0
      %v2797 = vadd.f32 %v2632, %v2796
      %v2798 = vpop.f32.mrf.mxu0
      %v2799 = vpop.f32.mrf.mxu0
      %v2800 = vadd.f32 %v2632, %v2799
      %v2801 = vpop.f32.mrf.mxu0
      %2802 = vmatprep.mubr.bf16.mxu0 0
      %2803 = vmatmul.mubr.bf16.gmra.mxu0 %v2606
      %v2804 = vpop.f32.mrf.mxu0
      %v2805 = vadd.f32 %v2632, %v2804
      %v2806 = vpop.f32.mrf.mxu0
      %v2807 = vpop.f32.mrf.mxu0
      %v2808 = vadd.f32 %v2632, %v2807
      %v2809 = vpop.f32.mrf.mxu0
      %2810 = vmatprep.mubr.bf16.mxu0 0
      %2811 = vmatmul.mubr.bf16.gmra.mxu0 %v2607
      %v2812 = vpop.f32.mrf.mxu0
      %v2813 = vadd.f32 %v2632, %v2812
      %v2814 = vpop.f32.mrf.mxu0
      %v2815 = vpop.f32.mrf.mxu0
      %v2816 = vadd.f32 %v2632, %v2815
      %v2817 = vpop.f32.mrf.mxu0
      %2818 = vmatprep.mubr.bf16.mxu0 0
      %2819 = vmatmul.mubr.bf16.gmra.mxu0 %v2608
      %v2820 = vpop.f32.mrf.mxu0
      %v2821 = vadd.f32 %v2632, %v2820
      %v2822 = vpop.f32.mrf.mxu0
      %v2823 = vpop.f32.mrf.mxu0
      %v2824 = vadd.f32 %v2632, %v2823
      %v2825 = vpop.f32.mrf.mxu0
      %2826 = vmatprep.mubr.bf16.mxu0 0
      %2827 = vmatmul.mubr.bf16.gmra.mxu0 %v2609
      %v2828 = vpop.f32.mrf.mxu0
      %v2829 = vadd.f32 %v2632, %v2828
      %v2830 = vpop.f32.mrf.mxu0
      %v2831 = vpop.f32.mrf.mxu0
      %v2832 = vadd.f32 %v2632, %v2831
      %v2833 = vpop.f32.mrf.mxu0
      %2834 = vmatprep.mubr.bf16.mxu0 0
      %2835 = vmatmul.mubr.bf16.gmra.mxu0 %v2610
      %v2836 = vpop.f32.mrf.mxu0
      %v2837 = vadd.f32 %v2632, %v2836
      %v2838 = vpop.f32.mrf.mxu0
      %v2839 = vpop.f32.mrf.mxu0
      %v2840 = vadd.f32 %v2632, %v2839
      %v2841 = vpop.f32.mrf.mxu0
      %2842 = vdwg.mxu0
      %v2843 = vpack.c.bf16 %v2720, %v2717
      %v2844 = vpack.c.bf16 %v2728, %v2725
      %v2845 = vpack.c.bf16 %v2736, %v2733
      %v2846 = vpack.c.bf16 %v2744, %v2741
      %v2847 = vpack.c.bf16 %v2752, %v2749
      %v2848 = vpack.c.bf16 %v2760, %v2757
      %v2849 = vpack.c.bf16 %v2768, %v2765
      %v2850 = vpack.c.bf16 %v2776, %v2773
      %v2851 = vpack.c.bf16 %v2784, %v2781
      %v2852 = vpack.c.bf16 %v2792, %v2789
      %v2853 = vpack.c.bf16 %v2800, %v2797
      %v2854 = vpack.c.bf16 %v2808, %v2805
      %v2855 = vpack.c.bf16 %v2816, %v2813
      %v2856 = vpack.c.bf16 %v2824, %v2821
      %v2857 = vpack.c.bf16 %v2832, %v2829
      %v2858 = vpack.c.bf16 %v2840, %v2837
      %v2859 = vld [vmem:[%s9] sm:$0xf]
      %v2860 = vld [vmem:[%s9 + $0x4] sm:$0xf]
      %v2861 = vld [vmem:[%s9 + $0x8] sm:$0xf]
      %v2862 = vld [vmem:[%s9 + $0xc] sm:$0xf]
      %v2863 = vld [vmem:[%s9 + $0x10] sm:$0xf]
      %v2864 = vld [vmem:[%s9 + $0x14] sm:$0xf]
      %v2865 = vld [vmem:[%s9 + $0x18] sm:$0xf]
      %v2866 = vld [vmem:[%s9 + $0x1c] sm:$0xf]
      %v2867 = vld [vmem:[%s9 + $0x20] sm:$0xf]
      %v2868 = vld [vmem:[%s9 + $0x24] sm:$0xf]
      %v2869 = vld [vmem:[%s9 + $0x28] sm:$0xf]
      %v2870 = vld [vmem:[%s9 + $0x2c] sm:$0xf]
      %v2871 = vld [vmem:[%s9 + $0x30] sm:$0xf]
      %v2872 = vld [vmem:[%s9 + $0x34] sm:$0xf]
      %v2873 = vld [vmem:[%s9 + $0x38] sm:$0xf]
      %v2874 = vld [vmem:[%s9 + $0x3c] sm:$0xf]
      %v2875 = vld [vmem:[%s10] sm:$0x1]
      %v2877 = vlaneseq
      %v2878 = vshrl.u32 %v2877, 7
      %v2879 = vsub.s32 0, %v2878
      %v2880 = vrot.slane %v2875, %v2879
      %v2898 = vunpack.c.l.b16 %v2859
      %v2899 = vunpack.c.l.b16 %v2860
      %v2900 = vunpack.c.l.b16 %v2861
      %v2901 = vunpack.c.l.b16 %v2862
      %v2902 = vunpack.c.l.b16 %v2863
      %v2903 = vunpack.c.l.b16 %v2864
      %v2904 = vunpack.c.l.b16 %v2865
      %v2905 = vunpack.c.l.b16 %v2866
      %v2906 = vunpack.c.l.b16 %v2867
      %v2907 = vunpack.c.l.b16 %v2868
      %v2908 = vunpack.c.l.b16 %v2869
      %v2909 = vunpack.c.l.b16 %v2870
      %v2910 = vunpack.c.l.b16 %v2871
      %v2911 = vunpack.c.l.b16 %v2872
      %v2912 = vunpack.c.l.b16 %v2873
      %v2913 = vunpack.c.l.b16 %v2874
      %v2914 = vpack.c.b16 %v2899, %v2898
      %v2915 = vpack.c.b16 %v2901, %v2900
      %v2916 = vpack.c.b16 %v2903, %v2902
      %v2917 = vpack.c.b16 %v2905, %v2904
      %v2918 = vpack.c.b16 %v2907, %v2906
      %v2919 = vpack.c.b16 %v2909, %v2908
      %v2920 = vpack.c.b16 %v2911, %v2910
      %v2921 = vpack.c.b16 %v2913, %v2912
      %2930 = vmatprep.subr.bf16.mxu0 0
      %2931 = vmatpush1.bf16.msra.mxu0 %v2921
      %2932 = vmatprep.subr.bf16.mxu0 0
      %2933 = vmatpush1.bf16.msra.mxu0 %v2920
      %2934 = vmatprep.subr.bf16.mxu0 0
      %2935 = vmatpush1.bf16.msra.mxu0 %v2919
      %2936 = vmatprep.subr.bf16.mxu0 0
      %2937 = vmatpush1.bf16.msra.mxu0 %v2918
      %2938 = vmatprep.subr.bf16.mxu0 0
      %2939 = vmatpush1.bf16.msra.mxu0 %v2917
      %2940 = vmatprep.subr.bf16.mxu0 0
      %2941 = vmatpush1.bf16.msra.mxu0 %v2916
      %2942 = vmatprep.subr.bf16.mxu0 0
      %2943 = vmatpush1.bf16.msra.mxu0 %v2915
      %2944 = vmatprep.subr.bf16.mxu0 0
      %2945 = vmatpush1.bf16.msra.mxu0 %v2914
      %2946 = vmatprep.subr.bf16.mxu0 0
      %2947 = vmatpush2.bf16.msra.mxu0 0
      %2948 = vmatprep.subr.bf16.mxu0 0
      %2949 = vmatpush2.bf16.msra.mxu0 0
      %2950 = vmatprep.subr.bf16.mxu0 0
      %2951 = vmatpush2.bf16.msra.mxu0 0
      %2952 = vmatprep.subr.bf16.mxu0 0
      %2953 = vmatpush2.bf16.msra.mxu0 0
      %2954 = vmatprep.subr.bf16.mxu0 0
      %2955 = vmatpush2.bf16.msra.mxu0 0
      %2956 = vmatprep.subr.bf16.mxu0 0
      %2957 = vmatpush2.bf16.msra.mxu0 0
      %2958 = vmatprep.subr.bf16.mxu0 0
      %2959 = vmatpush2.bf16.msra.mxu0 0
      %2960 = vmatprep.subr.bf16.mxu0 0
      %2961 = vmatpush2.bf16.msra.mxu0 0
      %2962 = vmatprep.mubr.bf16.mxu0 0
      %2963 = vmatmul.mubr.bf16.gmra.mxu0 %v2843
      %v2964 = vpop.f32.mrf.mxu0
      %v2965 = vadd.f32 %v2880, %v2964
      %v2966 = vpop.f32.mrf.mxu0
      %v2967 = vpop.f32.mrf.mxu0
      %v2968 = vadd.f32 %v2880, %v2967
      %v2969 = vpop.f32.mrf.mxu0
      %2970 = vmatprep.mubr.bf16.mxu0 0
      %2971 = vmatmul.mubr.bf16.gmra.mxu0 %v2844
      %v2972 = vpop.f32.mrf.mxu0
      %v2973 = vadd.f32 %v2880, %v2972
      %v2974 = vpop.f32.mrf.mxu0
      %v2975 = vpop.f32.mrf.mxu0
      %v2976 = vadd.f32 %v2880, %v2975
      %v2977 = vpop.f32.mrf.mxu0
      %2978 = vmatprep.mubr.bf16.mxu0 0
      %2979 = vmatmul.mubr.bf16.gmra.mxu0 %v2845
      %v2980 = vpop.f32.mrf.mxu0
      %v2981 = vadd.f32 %v2880, %v2980
      %v2982 = vpop.f32.mrf.mxu0
      %v2983 = vpop.f32.mrf.mxu0
      %v2984 = vadd.f32 %v2880, %v2983
      %v2985 = vpop.f32.mrf.mxu0
      %2986 = vmatprep.mubr.bf16.mxu0 0
      %2987 = vmatmul.mubr.bf16.gmra.mxu0 %v2846
      %v2988 = vpop.f32.mrf.mxu0
      %v2989 = vadd.f32 %v2880, %v2988
      %v2990 = vpop.f32.mrf.mxu0
      %v2991 = vpop.f32.mrf.mxu0
      %v2992 = vadd.f32 %v2880, %v2991
      %v2993 = vpop.f32.mrf.mxu0
      %2994 = vmatprep.mubr.bf16.mxu0 0
      %2995 = vmatmul.mubr.bf16.gmra.mxu0 %v2847
      %v2996 = vpop.f32.mrf.mxu0
      %v2997 = vadd.f32 %v2880, %v2996
      %v2998 = vpop.f32.mrf.mxu0
      %v2999 = vpop.f32.mrf.mxu0
      %v3000 = vadd.f32 %v2880, %v2999
      %v3001 = vpop.f32.mrf.mxu0
      %3002 = vmatprep.mubr.bf16.mxu0 0
      %3003 = vmatmul.mubr.bf16.gmra.mxu0 %v2848
      %v3004 = vpop.f32.mrf.mxu0
      %v3005 = vadd.f32 %v2880, %v3004
      %v3006 = vpop.f32.mrf.mxu0
      %v3007 = vpop.f32.mrf.mxu0
      %v3008 = vadd.f32 %v2880, %v3007
      %v3009 = vpop.f32.mrf.mxu0
      %3010 = vmatprep.mubr.bf16.mxu0 0
      %3011 = vmatmul.mubr.bf16.gmra.mxu0 %v2849
      %v3012 = vpop.f32.mrf.mxu0
      %v3013 = vadd.f32 %v2880, %v3012
      %v3014 = vpop.f32.mrf.mxu0
      %v3015 = vpop.f32.mrf.mxu0
      %v3016 = vadd.f32 %v2880, %v3015
      %v3017 = vpop.f32.mrf.mxu0
      %3018 = vmatprep.mubr.bf16.mxu0 0
      %3019 = vmatmul.mubr.bf16.gmra.mxu0 %v2850
      %v3020 = vpop.f32.mrf.mxu0
      %v3021 = vadd.f32 %v2880, %v3020
      %v3022 = vpop.f32.mrf.mxu0
      %v3023 = vpop.f32.mrf.mxu0
      %v3024 = vadd.f32 %v2880, %v3023
      %v3025 = vpop.f32.mrf.mxu0
      %3026 = vmatprep.mubr.bf16.mxu0 0
      %3027 = vmatmul.mubr.bf16.gmra.mxu0 %v2851
      %v3028 = vpop.f32.mrf.mxu0
      %v3029 = vadd.f32 %v2880, %v3028
      %v3030 = vpop.f32.mrf.mxu0
      %v3031 = vpop.f32.mrf.mxu0
      %v3032 = vadd.f32 %v2880, %v3031
      %v3033 = vpop.f32.mrf.mxu0
      %3034 = vmatprep.mubr.bf16.mxu0 0
      %3035 = vmatmul.mubr.bf16.gmra.mxu0 %v2852
      %v3036 = vpop.f32.mrf.mxu0
      %v3037 = vadd.f32 %v2880, %v3036
      %v3038 = vpop.f32.mrf.mxu0
      %v3039 = vpop.f32.mrf.mxu0
      %v3040 = vadd.f32 %v2880, %v3039
      %v3041 = vpop.f32.mrf.mxu0
      %3042 = vmatprep.mubr.bf16.mxu0 0
      %3043 = vmatmul.mubr.bf16.gmra.mxu0 %v2853
      %v3044 = vpop.f32.mrf.mxu0
      %v3045 = vadd.f32 %v2880, %v3044
      %v3046 = vpop.f32.mrf.mxu0
      %v3047 = vpop.f32.mrf.mxu0
      %v3048 = vadd.f32 %v2880, %v3047
      %v3049 = vpop.f32.mrf.mxu0
      %3050 = vmatprep.mubr.bf16.mxu0 0
      %3051 = vmatmul.mubr.bf16.gmra.mxu0 %v2854
      %v3052 = vpop.f32.mrf.mxu0
      %v3053 = vadd.f32 %v2880, %v3052
      %v3054 = vpop.f32.mrf.mxu0
      %v3055 = vpop.f32.mrf.mxu0
      %v3056 = vadd.f32 %v2880, %v3055
      %v3057 = vpop.f32.mrf.mxu0
      %3058 = vmatprep.mubr.bf16.mxu0 0
      %3059 = vmatmul.mubr.bf16.gmra.mxu0 %v2855
      %v3060 = vpop.f32.mrf.mxu0
      %v3061 = vadd.f32 %v2880, %v3060
      %v3062 = vpop.f32.mrf.mxu0
      %v3063 = vpop.f32.mrf.mxu0
      %v3064 = vadd.f32 %v2880, %v3063
      %v3065 = vpop.f32.mrf.mxu0
      %3066 = vmatprep.mubr.bf16.mxu0 0
      %3067 = vmatmul.mubr.bf16.gmra.mxu0 %v2856
      %v3068 = vpop.f32.mrf.mxu0
      %v3069 = vadd.f32 %v2880, %v3068
      %v3070 = vpop.f32.mrf.mxu0
      %v3071 = vpop.f32.mrf.mxu0
      %v3072 = vadd.f32 %v2880, %v3071
      %v3073 = vpop.f32.mrf.mxu0
      %3074 = vmatprep.mubr.bf16.mxu0 0
      %3075 = vmatmul.mubr.bf16.gmra.mxu0 %v2857
      %v3076 = vpop.f32.mrf.mxu0
      %v3077 = vadd.f32 %v2880, %v3076
      %v3078 = vpop.f32.mrf.mxu0
      %v3079 = vpop.f32.mrf.mxu0
      %v3080 = vadd.f32 %v2880, %v3079
      %v3081 = vpop.f32.mrf.mxu0
      %3082 = vmatprep.mubr.bf16.mxu0 0
      %3083 = vmatmul.mubr.bf16.gmra.mxu0 %v2858
      %v3084 = vpop.f32.mrf.mxu0
      %v3085 = vadd.f32 %v2880, %v3084
      %v3086 = vpop.f32.mrf.mxu0
      %v3087 = vpop.f32.mrf.mxu0
      %v3088 = vadd.f32 %v2880, %v3087
      %v3089 = vpop.f32.mrf.mxu0
      %3090 = vdwg.mxu0
      %v3091 = vmax.f32 %v2965, 0.0
      %v3092 = vmax.f32 %v2968, 0.0
      %v3093 = vmax.f32 %v2973, 0.0
      %v3094 = vmax.f32 %v2976, 0.0
      %v3095 = vmax.f32 %v2981, 0.0
      %v3096 = vmax.f32 %v2984, 0.0
      %v3097 = vmax.f32 %v2989, 0.0
      %v3098 = vmax.f32 %v2992, 0.0
      %v3099 = vmax.f32 %v2997, 0.0
      %v3100 = vmax.f32 %v3000, 0.0
      %v3101 = vmax.f32 %v3005, 0.0
      %v3102 = vmax.f32 %v3008, 0.0
      %v3103 = vmax.f32 %v3013, 0.0
      %v3104 = vmax.f32 %v3016, 0.0
      %v3105 = vmax.f32 %v3021, 0.0
      %v3106 = vmax.f32 %v3024, 0.0
      %v3107 = vmax.f32 %v3029, 0.0
      %v3108 = vmax.f32 %v3032, 0.0
      %v3109 = vmax.f32 %v3037, 0.0
      %v3110 = vmax.f32 %v3040, 0.0
      %v3111 = vmax.f32 %v3045, 0.0
      %v3112 = vmax.f32 %v3048, 0.0
      %v3113 = vmax.f32 %v3053, 0.0
      %v3114 = vmax.f32 %v3056, 0.0
      %v3115 = vmax.f32 %v3061, 0.0
      %v3116 = vmax.f32 %v3064, 0.0
      %v3117 = vmax.f32 %v3069, 0.0
      %v3118 = vmax.f32 %v3072, 0.0
      %v3119 = vmax.f32 %v3077, 0.0
      %v3120 = vmax.f32 %v3080, 0.0
      %v3121 = vmax.f32 %v3085, 0.0
      %v3122 = vmax.f32 %v3088, 0.0
      %v3123 = vpack.c.bf16 %v3092, %v3091
      %v3124 = vpack.c.bf16 %v3094, %v3093
      %v3125 = vpack.c.bf16 %v3096, %v3095
      %v3126 = vpack.c.bf16 %v3098, %v3097
      %v3127 = vpack.c.bf16 %v3100, %v3099
      %v3128 = vpack.c.bf16 %v3102, %v3101
      %v3129 = vpack.c.bf16 %v3104, %v3103
      %v3130 = vpack.c.bf16 %v3106, %v3105
      %v3131 = vpack.c.bf16 %v3108, %v3107
      %v3132 = vpack.c.bf16 %v3110, %v3109
      %v3133 = vpack.c.bf16 %v3112, %v3111
      %v3134 = vpack.c.bf16 %v3114, %v3113
      %v3135 = vpack.c.bf16 %v3116, %v3115
      %v3136 = vpack.c.bf16 %v3118, %v3117
      %v3137 = vpack.c.bf16 %v3120, %v3119
      %v3138 = vpack.c.bf16 %v3122, %v3121
      %v3139 = vld [vmem:[%s11] sm:$0xf]
      %v3140 = vld [vmem:[%s11 + $0x4] sm:$0xf]
      %v3141 = vld [vmem:[%s11 + $0x8] sm:$0xf]
      %v3142 = vld [vmem:[%s11 + $0xc] sm:$0xf]
      %v3143 = vld [vmem:[%s11 + $0x10] sm:$0xf]
      %v3144 = vld [vmem:[%s11 + $0x14] sm:$0xf]
      %v3145 = vld [vmem:[%s11 + $0x18] sm:$0xf]
      %v3146 = vld [vmem:[%s11 + $0x1c] sm:$0xf]
      %v3147 = vld [vmem:[%s11 + $0x20] sm:$0xf]
      %v3148 = vld [vmem:[%s11 + $0x24] sm:$0xf]
      %v3149 = vld [vmem:[%s11 + $0x28] sm:$0xf]
      %v3150 = vld [vmem:[%s11 + $0x2c] sm:$0xf]
      %v3151 = vld [vmem:[%s11 + $0x30] sm:$0xf]
      %v3152 = vld [vmem:[%s11 + $0x34] sm:$0xf]
      %v3153 = vld [vmem:[%s11 + $0x38] sm:$0xf]
      %v3154 = vld [vmem:[%s11 + $0x3c] sm:$0xf]
      %v3155 = vld [vmem:[%s12] sm:$0x1]
      %v3157 = vlaneseq
      %v3158 = vshrl.u32 %v3157, 7
      %v3159 = vsub.s32 0, %v3158
      %v3160 = vrot.slane %v3155, %v3159
      %v3178 = vunpack.c.l.b16 %v3139
      %v3179 = vunpack.c.l.b16 %v3140
      %v3180 = vunpack.c.l.b16 %v3141
      %v3181 = vunpack.c.l.b16 %v3142
      %v3182 = vunpack.c.l.b16 %v3143
      %v3183 = vunpack.c.l.b16 %v3144
      %v3184 = vunpack.c.l.b16 %v3145
      %v3185 = vunpack.c.l.b16 %v3146
      %v3186 = vunpack.c.l.b16 %v3147
      %v3187 = vunpack.c.l.b16 %v3148
      %v3188 = vunpack.c.l.b16 %v3149
      %v3189 = vunpack.c.l.b16 %v3150
      %v3190 = vunpack.c.l.b16 %v3151
      %v3191 = vunpack.c.l.b16 %v3152
      %v3192 = vunpack.c.l.b16 %v3153
      %v3193 = vunpack.c.l.b16 %v3154
      %v3194 = vpack.c.b16 %v3179, %v3178
      %v3195 = vpack.c.b16 %v3181, %v3180
      %v3196 = vpack.c.b16 %v3183, %v3182
      %v3197 = vpack.c.b16 %v3185, %v3184
      %v3198 = vpack.c.b16 %v3187, %v3186
      %v3199 = vpack.c.b16 %v3189, %v3188
      %v3200 = vpack.c.b16 %v3191, %v3190
      %v3201 = vpack.c.b16 %v3193, %v3192
      %3210 = vmatprep.subr.bf16.mxu0 0
      %3211 = vmatpush1.bf16.msra.mxu0 %v3201
      %3212 = vmatprep.subr.bf16.mxu0 0
      %3213 = vmatpush1.bf16.msra.mxu0 %v3200
      %3214 = vmatprep.subr.bf16.mxu0 0
      %3215 = vmatpush1.bf16.msra.mxu0 %v3199
      %3216 = vmatprep.subr.bf16.mxu0 0
      %3217 = vmatpush1.bf16.msra.mxu0 %v3198
      %3218 = vmatprep.subr.bf16.mxu0 0
      %3219 = vmatpush1.bf16.msra.mxu0 %v3197
      %3220 = vmatprep.subr.bf16.mxu0 0
      %3221 = vmatpush1.bf16.msra.mxu0 %v3196
      %3222 = vmatprep.subr.bf16.mxu0 0
      %3223 = vmatpush1.bf16.msra.mxu0 %v3195
      %3224 = vmatprep.subr.bf16.mxu0 0
      %3225 = vmatpush1.bf16.msra.mxu0 %v3194
      %3226 = vmatprep.subr.bf16.mxu0 0
      %3227 = vmatpush2.bf16.msra.mxu0 0
      %3228 = vmatprep.subr.bf16.mxu0 0
      %3229 = vmatpush2.bf16.msra.mxu0 0
      %3230 = vmatprep.subr.bf16.mxu0 0
      %3231 = vmatpush2.bf16.msra.mxu0 0
      %3232 = vmatprep.subr.bf16.mxu0 0
      %3233 = vmatpush2.bf16.msra.mxu0 0
      %3234 = vmatprep.subr.bf16.mxu0 0
      %3235 = vmatpush2.bf16.msra.mxu0 0
      %3236 = vmatprep.subr.bf16.mxu0 0
      %3237 = vmatpush2.bf16.msra.mxu0 0
      %3238 = vmatprep.subr.bf16.mxu0 0
      %3239 = vmatpush2.bf16.msra.mxu0 0
      %3240 = vmatprep.subr.bf16.mxu0 0
      %3241 = vmatpush2.bf16.msra.mxu0 0
      %3242 = vmatprep.mubr.bf16.mxu0 0
      %3243 = vmatmul.mubr.bf16.gmra.mxu0 %v3123
      %v3244 = vpop.f32.mrf.mxu0
      %v3245 = vadd.f32 %v3160, %v3244
      %v3246 = vpop.f32.mrf.mxu0
      %v3247 = vpop.f32.mrf.mxu0
      %v3248 = vadd.f32 %v3160, %v3247
      %v3249 = vpop.f32.mrf.mxu0
      %3250 = vmatprep.mubr.bf16.mxu0 0
      %3251 = vmatmul.mubr.bf16.gmra.mxu0 %v3124
      %v3252 = vpop.f32.mrf.mxu0
      %v3253 = vadd.f32 %v3160, %v3252
      %v3254 = vpop.f32.mrf.mxu0
      %v3255 = vpop.f32.mrf.mxu0
      %v3256 = vadd.f32 %v3160, %v3255
      %v3257 = vpop.f32.mrf.mxu0
      %3258 = vmatprep.mubr.bf16.mxu0 0
      %3259 = vmatmul.mubr.bf16.gmra.mxu0 %v3125
      %v3260 = vpop.f32.mrf.mxu0
      %v3261 = vadd.f32 %v3160, %v3260
      %v3262 = vpop.f32.mrf.mxu0
      %v3263 = vpop.f32.mrf.mxu0
      %v3264 = vadd.f32 %v3160, %v3263
      %v3265 = vpop.f32.mrf.mxu0
      %3266 = vmatprep.mubr.bf16.mxu0 0
      %3267 = vmatmul.mubr.bf16.gmra.mxu0 %v3126
      %v3268 = vpop.f32.mrf.mxu0
      %v3269 = vadd.f32 %v3160, %v3268
      %v3270 = vpop.f32.mrf.mxu0
      %v3271 = vpop.f32.mrf.mxu0
      %v3272 = vadd.f32 %v3160, %v3271
      %v3273 = vpop.f32.mrf.mxu0
      %3274 = vmatprep.mubr.bf16.mxu0 0
      %3275 = vmatmul.mubr.bf16.gmra.mxu0 %v3127
      %v3276 = vpop.f32.mrf.mxu0
      %v3277 = vadd.f32 %v3160, %v3276
      %v3278 = vpop.f32.mrf.mxu0
      %v3279 = vpop.f32.mrf.mxu0
      %v3280 = vadd.f32 %v3160, %v3279
      %v3281 = vpop.f32.mrf.mxu0
      %3282 = vmatprep.mubr.bf16.mxu0 0
      %3283 = vmatmul.mubr.bf16.gmra.mxu0 %v3128
      %v3284 = vpop.f32.mrf.mxu0
      %v3285 = vadd.f32 %v3160, %v3284
      %v3286 = vpop.f32.mrf.mxu0
      %v3287 = vpop.f32.mrf.mxu0
      %v3288 = vadd.f32 %v3160, %v3287
      %v3289 = vpop.f32.mrf.mxu0
      %3290 = vmatprep.mubr.bf16.mxu0 0
      %3291 = vmatmul.mubr.bf16.gmra.mxu0 %v3129
      %v3292 = vpop.f32.mrf.mxu0
      %v3293 = vadd.f32 %v3160, %v3292
      %v3294 = vpop.f32.mrf.mxu0
      %v3295 = vpop.f32.mrf.mxu0
      %v3296 = vadd.f32 %v3160, %v3295
      %v3297 = vpop.f32.mrf.mxu0
      %3298 = vmatprep.mubr.bf16.mxu0 0
      %3299 = vmatmul.mubr.bf16.gmra.mxu0 %v3130
      %v3300 = vpop.f32.mrf.mxu0
      %v3301 = vadd.f32 %v3160, %v3300
      %v3302 = vpop.f32.mrf.mxu0
      %v3303 = vpop.f32.mrf.mxu0
      %v3304 = vadd.f32 %v3160, %v3303
      %v3305 = vpop.f32.mrf.mxu0
      %3306 = vmatprep.mubr.bf16.mxu0 0
      %3307 = vmatmul.mubr.bf16.gmra.mxu0 %v3131
      %v3308 = vpop.f32.mrf.mxu0
      %v3309 = vadd.f32 %v3160, %v3308
      %v3310 = vpop.f32.mrf.mxu0
      %v3311 = vpop.f32.mrf.mxu0
      %v3312 = vadd.f32 %v3160, %v3311
      %v3313 = vpop.f32.mrf.mxu0
      %3314 = vmatprep.mubr.bf16.mxu0 0
      %3315 = vmatmul.mubr.bf16.gmra.mxu0 %v3132
      %v3316 = vpop.f32.mrf.mxu0
      %v3317 = vadd.f32 %v3160, %v3316
      %v3318 = vpop.f32.mrf.mxu0
      %v3319 = vpop.f32.mrf.mxu0
      %v3320 = vadd.f32 %v3160, %v3319
      %v3321 = vpop.f32.mrf.mxu0
      %3322 = vmatprep.mubr.bf16.mxu0 0
      %3323 = vmatmul.mubr.bf16.gmra.mxu0 %v3133
      %v3324 = vpop.f32.mrf.mxu0
      %v3325 = vadd.f32 %v3160, %v3324
      %v3326 = vpop.f32.mrf.mxu0
      %v3327 = vpop.f32.mrf.mxu0
      %v3328 = vadd.f32 %v3160, %v3327
      %v3329 = vpop.f32.mrf.mxu0
      %3330 = vmatprep.mubr.bf16.mxu0 0
      %3331 = vmatmul.mubr.bf16.gmra.mxu0 %v3134
      %v3332 = vpop.f32.mrf.mxu0
      %v3333 = vadd.f32 %v3160, %v3332
      %v3334 = vpop.f32.mrf.mxu0
      %v3335 = vpop.f32.mrf.mxu0
      %v3336 = vadd.f32 %v3160, %v3335
      %v3337 = vpop.f32.mrf.mxu0
      %3338 = vmatprep.mubr.bf16.mxu0 0
      %3339 = vmatmul.mubr.bf16.gmra.mxu0 %v3135
      %v3340 = vpop.f32.mrf.mxu0
      %v3341 = vadd.f32 %v3160, %v3340
      %v3342 = vpop.f32.mrf.mxu0
      %v3343 = vpop.f32.mrf.mxu0
      %v3344 = vadd.f32 %v3160, %v3343
      %v3345 = vpop.f32.mrf.mxu0
      %3346 = vmatprep.mubr.bf16.mxu0 0
      %3347 = vmatmul.mubr.bf16.gmra.mxu0 %v3136
      %v3348 = vpop.f32.mrf.mxu0
      %v3349 = vadd.f32 %v3160, %v3348
      %v3350 = vpop.f32.mrf.mxu0
      %v3351 = vpop.f32.mrf.mxu0
      %v3352 = vadd.f32 %v3160, %v3351
      %v3353 = vpop.f32.mrf.mxu0
      %3354 = vmatprep.mubr.bf16.mxu0 0
      %3355 = vmatmul.mubr.bf16.gmra.mxu0 %v3137
      %v3356 = vpop.f32.mrf.mxu0
      %v3357 = vadd.f32 %v3160, %v3356
      %v3358 = vpop.f32.mrf.mxu0
      %v3359 = vpop.f32.mrf.mxu0
      %v3360 = vadd.f32 %v3160, %v3359
      %v3361 = vpop.f32.mrf.mxu0
      %3362 = vmatprep.mubr.bf16.mxu0 0
      %3363 = vmatmul.mubr.bf16.gmra.mxu0 %v3138
      %v3364 = vpop.f32.mrf.mxu0
      %v3365 = vadd.f32 %v3160, %v3364
      %v3366 = vpop.f32.mrf.mxu0
      %v3367 = vpop.f32.mrf.mxu0
      %v3368 = vadd.f32 %v3160, %v3367
      %v3369 = vpop.f32.mrf.mxu0
      %3370 = vdwg.mxu0
      %v3371 = vmax.f32 %v3245, 0.0
      %v3372 = vmax.f32 %v3248, 0.0
      %v3373 = vmax.f32 %v3253, 0.0
      %v3374 = vmax.f32 %v3256, 0.0
      %v3375 = vmax.f32 %v3261, 0.0
      %v3376 = vmax.f32 %v3264, 0.0
      %v3377 = vmax.f32 %v3269, 0.0
      %v3378 = vmax.f32 %v3272, 0.0
      %v3379 = vmax.f32 %v3277, 0.0
      %v3380 = vmax.f32 %v3280, 0.0
      %v3381 = vmax.f32 %v3285, 0.0
      %v3382 = vmax.f32 %v3288, 0.0
      %v3383 = vmax.f32 %v3293, 0.0
      %v3384 = vmax.f32 %v3296, 0.0
      %v3385 = vmax.f32 %v3301, 0.0
      %v3386 = vmax.f32 %v3304, 0.0
      %v3387 = vmax.f32 %v3309, 0.0
      %v3388 = vmax.f32 %v3312, 0.0
      %v3389 = vmax.f32 %v3317, 0.0
      %v3390 = vmax.f32 %v3320, 0.0
      %v3391 = vmax.f32 %v3325, 0.0
      %v3392 = vmax.f32 %v3328, 0.0
      %v3393 = vmax.f32 %v3333, 0.0
      %v3394 = vmax.f32 %v3336, 0.0
      %v3395 = vmax.f32 %v3341, 0.0
      %v3396 = vmax.f32 %v3344, 0.0
      %v3397 = vmax.f32 %v3349, 0.0
      %v3398 = vmax.f32 %v3352, 0.0
      %v3399 = vmax.f32 %v3357, 0.0
      %v3400 = vmax.f32 %v3360, 0.0
      %v3401 = vmax.f32 %v3365, 0.0
      %v3402 = vmax.f32 %v3368, 0.0
      %v3403 = vpack.c.bf16 %v3372, %v3371
      %v3404 = vpack.c.bf16 %v3374, %v3373
      %v3405 = vpack.c.bf16 %v3376, %v3375
      %v3406 = vpack.c.bf16 %v3378, %v3377
      %v3407 = vpack.c.bf16 %v3380, %v3379
      %v3408 = vpack.c.bf16 %v3382, %v3381
      %v3409 = vpack.c.bf16 %v3384, %v3383
      %v3410 = vpack.c.bf16 %v3386, %v3385
      %v3411 = vpack.c.bf16 %v3388, %v3387
      %v3412 = vpack.c.bf16 %v3390, %v3389
      %v3413 = vpack.c.bf16 %v3392, %v3391
      %v3414 = vpack.c.bf16 %v3394, %v3393
      %v3415 = vpack.c.bf16 %v3396, %v3395
      %v3416 = vpack.c.bf16 %v3398, %v3397
      %v3417 = vpack.c.bf16 %v3400, %v3399
      %v3418 = vpack.c.bf16 %v3402, %v3401
      %v3419 = vld [vmem:[%s13] sm:$0xf]
      %v3420 = vld [vmem:[%s13 + $0x4] sm:$0xf]
      %v3421 = vld [vmem:[%s13 + $0x8] sm:$0xf]
      %v3422 = vld [vmem:[%s13 + $0xc] sm:$0xf]
      %v3423 = vld [vmem:[%s13 + $0x10] sm:$0xf]
      %v3424 = vld [vmem:[%s13 + $0x14] sm:$0xf]
      %v3425 = vld [vmem:[%s13 + $0x18] sm:$0xf]
      %v3426 = vld [vmem:[%s13 + $0x1c] sm:$0xf]
      %v3427 = vld [vmem:[%s14] sm:$0x1]
      %v3429 = vlaneseq
      %v3430 = vshrl.u32 %v3429, 7
      %v3431 = vsub.s32 0, %v3430
      %v3432 = vrot.slane %v3427, %v3431
      %v3442 = vunpack.c.l.b16 %v3419
      %v3443 = vunpack.c.l.b16 %v3420
      %v3444 = vunpack.c.l.b16 %v3421
      %v3445 = vunpack.c.l.b16 %v3422
      %v3446 = vunpack.c.l.b16 %v3423
      %v3447 = vunpack.c.l.b16 %v3424
      %v3448 = vunpack.c.l.b16 %v3425
      %v3449 = vunpack.c.l.b16 %v3426
      %v3450 = vpack.c.b16 %v3443, %v3442
      %v3451 = vpack.c.b16 %v3445, %v3444
      %v3452 = vpack.c.b16 %v3447, %v3446
      %v3453 = vpack.c.b16 %v3449, %v3448
      %v3459 = vsel %vm2353, %v3403, 0
      %v3462 = vsel %vm2353, %v3404, 0
      %v3465 = vsel %vm2353, %v3405, 0
      %v3468 = vsel %vm2353, %v3406, 0
      %v3471 = vsel %vm2353, %v3407, 0
      %v3474 = vsel %vm2353, %v3408, 0
      %v3477 = vsel %vm2353, %v3409, 0
      %v3480 = vsel %vm2353, %v3410, 0
      %v3483 = vsel %vm2353, %v3411, 0
      %v3486 = vsel %vm2353, %v3412, 0
      %v3489 = vsel %vm2353, %v3413, 0
      %v3492 = vsel %vm2353, %v3414, 0
      %v3495 = vsel %vm2353, %v3415, 0
      %v3498 = vsel %vm2353, %v3416, 0
      %v3501 = vsel %vm2353, %v3417, 0
      %v3504 = vsel %vm2353, %v3418, 0
      %3506 = vmatprep.subr.bf16.mxu0 0
      %3507 = vmatpush1.bf16.msra.mxu0 0
      %3508 = vmatprep.subr.bf16.mxu0 0
      %3509 = vmatpush1.bf16.msra.mxu0 0
      %3510 = vmatprep.subr.bf16.mxu0 0
      %3511 = vmatpush1.bf16.msra.mxu0 0
      %3512 = vmatprep.subr.bf16.mxu0 0
      %3513 = vmatpush1.bf16.msra.mxu0 0
      %3514 = vmatprep.subr.bf16.mxu0 0
      %3515 = vmatpush1.bf16.msra.mxu0 %v3453
      %3516 = vmatprep.subr.bf16.mxu0 0
      %3517 = vmatpush1.bf16.msra.mxu0 %v3452
      %3518 = vmatprep.subr.bf16.mxu0 0
      %3519 = vmatpush1.bf16.msra.mxu0 %v3451
      %3520 = vmatprep.subr.bf16.mxu0 0
      %3521 = vmatpush1.bf16.msra.mxu0 %v3450
      %3522 = vmatprep.subr.bf16.mxu0 0
      %3523 = vmatpush2.bf16.msra.mxu0 0
      %3524 = vmatprep.subr.bf16.mxu0 0
      %3525 = vmatpush2.bf16.msra.mxu0 0
      %3526 = vmatprep.subr.bf16.mxu0 0
      %3527 = vmatpush2.bf16.msra.mxu0 0
      %3528 = vmatprep.subr.bf16.mxu0 0
      %3529 = vmatpush2.bf16.msra.mxu0 0
      %3530 = vmatprep.subr.bf16.mxu0 0
      %3531 = vmatpush2.bf16.msra.mxu0 0
      %3532 = vmatprep.subr.bf16.mxu0 0
      %3533 = vmatpush2.bf16.msra.mxu0 0
      %3534 = vmatprep.subr.bf16.mxu0 0
      %3535 = vmatpush2.bf16.msra.mxu0 0
      %3536 = vmatprep.subr.bf16.mxu0 0
      %3537 = vmatpush2.bf16.msra.mxu0 0
      %3538 = vmatprep.mubr.bf16.mxu0 0
      %3539 = vmatmul.mubr.bf16.gmra.mxu0 %v3459
      %v3540 = vpop.f32.mrf.mxu0
      %v3541 = vadd.f32 %v3432, %v3540
      %v3542 = vpop.f32.mrf.mxu0
      %v3543 = vpop.f32.mrf.mxu0
      %v3544 = vadd.f32 %v3432, %v3543
      %v3545 = vpop.f32.mrf.mxu0
      %3546 = vmatprep.mubr.bf16.mxu0 0
      %3547 = vmatmul.mubr.bf16.gmra.mxu0 %v3462
      %v3548 = vpop.f32.mrf.mxu0
      %v3549 = vadd.f32 %v3432, %v3548
      %v3550 = vpop.f32.mrf.mxu0
      %v3551 = vpop.f32.mrf.mxu0
      %v3552 = vadd.f32 %v3432, %v3551
      %v3553 = vpop.f32.mrf.mxu0
      %3554 = vmatprep.mubr.bf16.mxu0 0
      %3555 = vmatmul.mubr.bf16.gmra.mxu0 %v3465
      %v3556 = vpop.f32.mrf.mxu0
      %v3557 = vadd.f32 %v3432, %v3556
      %v3558 = vpop.f32.mrf.mxu0
      %v3559 = vpop.f32.mrf.mxu0
      %v3560 = vadd.f32 %v3432, %v3559
      %v3561 = vpop.f32.mrf.mxu0
      %3562 = vmatprep.mubr.bf16.mxu0 0
      %3563 = vmatmul.mubr.bf16.gmra.mxu0 %v3468
      %v3564 = vpop.f32.mrf.mxu0
      %v3565 = vadd.f32 %v3432, %v3564
      %v3566 = vpop.f32.mrf.mxu0
      %v3567 = vpop.f32.mrf.mxu0
      %v3568 = vadd.f32 %v3432, %v3567
      %v3569 = vpop.f32.mrf.mxu0
      %3570 = vmatprep.mubr.bf16.mxu0 0
      %3571 = vmatmul.mubr.bf16.gmra.mxu0 %v3471
      %v3572 = vpop.f32.mrf.mxu0
      %v3573 = vadd.f32 %v3432, %v3572
      %v3574 = vpop.f32.mrf.mxu0
      %v3575 = vpop.f32.mrf.mxu0
      %v3576 = vadd.f32 %v3432, %v3575
      %v3577 = vpop.f32.mrf.mxu0
      %3578 = vmatprep.mubr.bf16.mxu0 0
      %3579 = vmatmul.mubr.bf16.gmra.mxu0 %v3474
      %v3580 = vpop.f32.mrf.mxu0
      %v3581 = vadd.f32 %v3432, %v3580
      %v3582 = vpop.f32.mrf.mxu0
      %v3583 = vpop.f32.mrf.mxu0
      %v3584 = vadd.f32 %v3432, %v3583
      %v3585 = vpop.f32.mrf.mxu0
      %3586 = vmatprep.mubr.bf16.mxu0 0
      %3587 = vmatmul.mubr.bf16.gmra.mxu0 %v3477
      %v3588 = vpop.f32.mrf.mxu0
      %v3589 = vadd.f32 %v3432, %v3588
      %v3590 = vpop.f32.mrf.mxu0
      %v3591 = vpop.f32.mrf.mxu0
      %v3592 = vadd.f32 %v3432, %v3591
      %v3593 = vpop.f32.mrf.mxu0
      %3594 = vmatprep.mubr.bf16.mxu0 0
      %3595 = vmatmul.mubr.bf16.gmra.mxu0 %v3480
      %v3596 = vpop.f32.mrf.mxu0
      %v3597 = vadd.f32 %v3432, %v3596
      %v3598 = vpop.f32.mrf.mxu0
      %v3599 = vpop.f32.mrf.mxu0
      %v3600 = vadd.f32 %v3432, %v3599
      %v3601 = vpop.f32.mrf.mxu0
      %3602 = vmatprep.mubr.bf16.mxu0 0
      %3603 = vmatmul.mubr.bf16.gmra.mxu0 %v3483
      %v3604 = vpop.f32.mrf.mxu0
      %v3605 = vadd.f32 %v3432, %v3604
      %v3606 = vpop.f32.mrf.mxu0
      %v3607 = vpop.f32.mrf.mxu0
      %v3608 = vadd.f32 %v3432, %v3607
      %v3609 = vpop.f32.mrf.mxu0
      %3610 = vmatprep.mubr.bf16.mxu0 0
      %3611 = vmatmul.mubr.bf16.gmra.mxu0 %v3486
      %v3612 = vpop.f32.mrf.mxu0
      %v3613 = vadd.f32 %v3432, %v3612
      %v3614 = vpop.f32.mrf.mxu0
      %v3615 = vpop.f32.mrf.mxu0
      %v3616 = vadd.f32 %v3432, %v3615
      %v3617 = vpop.f32.mrf.mxu0
      %3618 = vmatprep.mubr.bf16.mxu0 0
      %3619 = vmatmul.mubr.bf16.gmra.mxu0 %v3489
      %v3620 = vpop.f32.mrf.mxu0
      %v3621 = vadd.f32 %v3432, %v3620
      %v3622 = vpop.f32.mrf.mxu0
      %v3623 = vpop.f32.mrf.mxu0
      %v3624 = vadd.f32 %v3432, %v3623
      %v3625 = vpop.f32.mrf.mxu0
      %3626 = vmatprep.mubr.bf16.mxu0 0
      %3627 = vmatmul.mubr.bf16.gmra.mxu0 %v3492
      %v3628 = vpop.f32.mrf.mxu0
      %v3629 = vadd.f32 %v3432, %v3628
      %v3630 = vpop.f32.mrf.mxu0
      %v3631 = vpop.f32.mrf.mxu0
      %v3632 = vadd.f32 %v3432, %v3631
      %v3633 = vpop.f32.mrf.mxu0
      %3634 = vmatprep.mubr.bf16.mxu0 0
      %3635 = vmatmul.mubr.bf16.gmra.mxu0 %v3495
      %v3636 = vpop.f32.mrf.mxu0
      %v3637 = vadd.f32 %v3432, %v3636
      %v3638 = vpop.f32.mrf.mxu0
      %v3639 = vpop.f32.mrf.mxu0
      %v3640 = vadd.f32 %v3432, %v3639
      %v3641 = vpop.f32.mrf.mxu0
      %3642 = vmatprep.mubr.bf16.mxu0 0
      %3643 = vmatmul.mubr.bf16.gmra.mxu0 %v3498
      %v3644 = vpop.f32.mrf.mxu0
      %v3645 = vadd.f32 %v3432, %v3644
      %v3646 = vpop.f32.mrf.mxu0
      %v3647 = vpop.f32.mrf.mxu0
      %v3648 = vadd.f32 %v3432, %v3647
      %v3649 = vpop.f32.mrf.mxu0
      %3650 = vmatprep.mubr.bf16.mxu0 0
      %3651 = vmatmul.mubr.bf16.gmra.mxu0 %v3501
      %v3652 = vpop.f32.mrf.mxu0
      %v3653 = vadd.f32 %v3432, %v3652
      %v3654 = vpop.f32.mrf.mxu0
      %v3655 = vpop.f32.mrf.mxu0
      %v3656 = vadd.f32 %v3432, %v3655
      %v3657 = vpop.f32.mrf.mxu0
      %3658 = vmatprep.mubr.bf16.mxu0 0
      %3659 = vmatmul.mubr.bf16.gmra.mxu0 %v3504
      %v3660 = vpop.f32.mrf.mxu0
      %v3661 = vadd.f32 %v3432, %v3660
      %v3662 = vpop.f32.mrf.mxu0
      %v3663 = vpop.f32.mrf.mxu0
      %v3664 = vadd.f32 %v3432, %v3663
      %v3665 = vpop.f32.mrf.mxu0
      %3666 = vdwg.mxu0
      %v3667 = vmax.f32 %v3541, 0.0
      %v3668 = vmax.f32 %v3544, 0.0
      %v3669 = vmax.f32 %v3549, 0.0
      %v3670 = vmax.f32 %v3552, 0.0
      %v3671 = vmax.f32 %v3557, 0.0
      %v3672 = vmax.f32 %v3560, 0.0
      %v3673 = vmax.f32 %v3565, 0.0
      %v3674 = vmax.f32 %v3568, 0.0
      %v3675 = vmax.f32 %v3573, 0.0
      %v3676 = vmax.f32 %v3576, 0.0
      %v3677 = vmax.f32 %v3581, 0.0
      %v3678 = vmax.f32 %v3584, 0.0
      %v3679 = vmax.f32 %v3589, 0.0
      %v3680 = vmax.f32 %v3592, 0.0
      %v3681 = vmax.f32 %v3597, 0.0
      %v3682 = vmax.f32 %v3600, 0.0
      %v3683 = vmax.f32 %v3605, 0.0
      %v3684 = vmax.f32 %v3608, 0.0
      %v3685 = vmax.f32 %v3613, 0.0
      %v3686 = vmax.f32 %v3616, 0.0
      %v3687 = vmax.f32 %v3621, 0.0
      %v3688 = vmax.f32 %v3624, 0.0
      %v3689 = vmax.f32 %v3629, 0.0
      %v3690 = vmax.f32 %v3632, 0.0
      %v3691 = vmax.f32 %v3637, 0.0
      %v3692 = vmax.f32 %v3640, 0.0
      %v3693 = vmax.f32 %v3645, 0.0
      %v3694 = vmax.f32 %v3648, 0.0
      %v3695 = vmax.f32 %v3653, 0.0
      %v3696 = vmax.f32 %v3656, 0.0
      %v3697 = vmax.f32 %v3661, 0.0
      %v3698 = vmax.f32 %v3664, 0.0
      %v3699 = vpack.c.bf16 %v3668, %v3667
      %v3700 = vpack.c.bf16 %v3670, %v3669
      %v3701 = vpack.c.bf16 %v3672, %v3671
      %v3702 = vpack.c.bf16 %v3674, %v3673
      %v3703 = vpack.c.bf16 %v3676, %v3675
      %v3704 = vpack.c.bf16 %v3678, %v3677
      %v3705 = vpack.c.bf16 %v3680, %v3679
      %v3706 = vpack.c.bf16 %v3682, %v3681
      %v3707 = vpack.c.bf16 %v3684, %v3683
      %v3708 = vpack.c.bf16 %v3686, %v3685
      %v3709 = vpack.c.bf16 %v3688, %v3687
      %v3710 = vpack.c.bf16 %v3690, %v3689
      %v3711 = vpack.c.bf16 %v3692, %v3691
      %v3712 = vpack.c.bf16 %v3694, %v3693
      %v3713 = vpack.c.bf16 %v3696, %v3695
      %v3714 = vpack.c.bf16 %v3698, %v3697
      %v3715 = vld [vmem:[%s15] sm:$0xff]
      %v3716 = vld [vmem:[%s15 + $0x8] sm:$0xff]
      %v3717 = vld [vmem:[%s15 + $0x10] sm:$0xff]
      %v3718 = vld [vmem:[%s15 + $0x18] sm:$0xf]
      %v3719 = vld [vmem:[%s15 + $0x1c] sm:$0xff]
      %v3720 = vld [vmem:[%s15 + $0x24] sm:$0xff]
      %v3721 = vld [vmem:[%s15 + $0x2c] sm:$0xff]
      %v3722 = vld [vmem:[%s15 + $0x34] sm:$0xf]
      %v3723 = vld [vmem:[%s15 + $0x38] sm:$0xff]
      %v3724 = vld [vmem:[%s15 + $0x40] sm:$0xff]
      %v3725 = vld [vmem:[%s15 + $0x48] sm:$0xff]
      %v3726 = vld [vmem:[%s15 + $0x50] sm:$0xf]
      %v3727 = vld [vmem:[%s15 + $0x54] sm:$0xff]
      %v3728 = vld [vmem:[%s15 + $0x5c] sm:$0xff]
      %v3729 = vld [vmem:[%s15 + $0x64] sm:$0xff]
      %v3730 = vld [vmem:[%s15 + $0x6c] sm:$0xf]
      %v3731 = vld [vmem:[%s15 + $0x70] sm:$0xff]
      %v3732 = vld [vmem:[%s15 + $0x78] sm:$0xff]
      %v3733 = vld [vmem:[%s15 + $0x80] sm:$0xff]
      %v3734 = vld [vmem:[%s15 + $0x88] sm:$0xf]
      %v3735 = vld [vmem:[%s15 + $0x8c] sm:$0xff]
      %v3736 = vld [vmem:[%s15 + $0x94] sm:$0xff]
      %v3737 = vld [vmem:[%s15 + $0x9c] sm:$0xff]
      %v3738 = vld [vmem:[%s15 + $0xa4] sm:$0xf]
      %v3739 = vld [vmem:[%s15 + $0xa8] sm:$0xff]
      %v3740 = vld [vmem:[%s15 + $0xb0] sm:$0xff]
      %v3741 = vld [vmem:[%s15 + $0xb8] sm:$0xff]
      %v3742 = vld [vmem:[%s15 + $0xc0] sm:$0xf]
      %v3743 = vld [vmem:[%s15 + $0xc4] sm:$0xff]
      %v3744 = vld [vmem:[%s15 + $0xcc] sm:$0xff]
      %v3745 = vld [vmem:[%s15 + $0xd4] sm:$0xff]
      %v3746 = vld [vmem:[%s15 + $0xdc] sm:$0xf]
      %v3747 = vld [vmem:[%s15 + $0xe0] sm:$0xff]
      %v3748 = vld [vmem:[%s15 + $0xe8] sm:$0xff]
      %v3749 = vld [vmem:[%s15 + $0xf0] sm:$0xff]
      %v3750 = vld [vmem:[%s15 + $0xf8] sm:$0xf]
      %v3751 = vld [vmem:[%s15 + $0xfc] sm:$0xff]
      %v3752 = vld [vmem:[%s15 + $0x104] sm:$0xff]
      %v3753 = vld [vmem:[%s15 + $0x10c] sm:$0xff]
      %v3754 = vld [vmem:[%s15 + $0x114] sm:$0xf]
      %v3755 = vld [vmem:[%s15 + $0x118] sm:$0xff]
      %v3756 = vld [vmem:[%s15 + $0x120] sm:$0xff]
      %v3757 = vld [vmem:[%s15 + $0x128] sm:$0xff]
      %v3758 = vld [vmem:[%s15 + $0x130] sm:$0xf]
      %v3759 = vld [vmem:[%s15 + $0x134] sm:$0xff]
      %v3760 = vld [vmem:[%s15 + $0x13c] sm:$0xff]
      %v3761 = vld [vmem:[%s15 + $0x144] sm:$0xff]
      %v3762 = vld [vmem:[%s15 + $0x14c] sm:$0xf]
      %v3763 = vld [vmem:[%s15 + $0x150] sm:$0xff]
      %v3764 = vld [vmem:[%s15 + $0x158] sm:$0xff]
      %v3765 = vld [vmem:[%s15 + $0x160] sm:$0xff]
      %v3766 = vld [vmem:[%s15 + $0x168] sm:$0xf]
      %v3767 = vld [vmem:[%s15 + $0x16c] sm:$0xff]
      %v3768 = vld [vmem:[%s15 + $0x174] sm:$0xff]
      %v3769 = vld [vmem:[%s15 + $0x17c] sm:$0xff]
      %v3770 = vld [vmem:[%s15 + $0x184] sm:$0xf]
      %v3771 = vld [vmem:[%s15 + $0x188] sm:$0xff]
      %v3772 = vld [vmem:[%s15 + $0x190] sm:$0xff]
      %v3773 = vld [vmem:[%s15 + $0x198] sm:$0xff]
      %v3774 = vld [vmem:[%s15 + $0x1a0] sm:$0xf]
      %v3775 = vld [vmem:[%s15 + $0x1a4] sm:$0xff]
      %v3776 = vld [vmem:[%s15 + $0x1ac] sm:$0xff]
      %v3777 = vld [vmem:[%s15 + $0x1b4] sm:$0xff]
      %v3778 = vld [vmem:[%s15 + $0x1bc] sm:$0xf]
      %v3779 = vld [vmem:[%s16] sm:$0x7f]
      %v3781 = vlaneseq
      %v3782 = vshrl.u32 %v3781, 7
      %v3783 = vsub.s32 0, %v3782
      %v3784 = vrot.slane %v3779, %v3783
      %v3785 = vlaneseq
      %v3786 = vshrl.u32 %v3785, 7
      %v3787 = vsub.s32 1, %v3786
      %v3788 = vrot.slane %v3779, %v3787
      %v3789 = vlaneseq
      %v3790 = vshrl.u32 %v3789, 7
      %v3791 = vsub.s32 2, %v3790
      %v3792 = vrot.slane %v3779, %v3791
      %v3793 = vlaneseq
      %v3794 = vshrl.u32 %v3793, 7
      %v3795 = vsub.s32 3, %v3794
      %v3796 = vrot.slane %v3779, %v3795
      %v3797 = vlaneseq
      %v3798 = vshrl.u32 %v3797, 7
      %v3799 = vsub.s32 4, %v3798
      %v3800 = vrot.slane %v3779, %v3799
      %v3801 = vlaneseq
      %v3802 = vshrl.u32 %v3801, 7
      %v3803 = vsub.s32 5, %v3802
      %v3804 = vrot.slane %v3779, %v3803
      %v3805 = vlaneseq
      %v3806 = vshrl.u32 %v3805, 7
      %v3807 = vsub.s32 6, %v3806
      %v3808 = vrot.slane %v3779, %v3807
      %v3880 = vunpack.c.l.b16 %v3715
      %v3881 = vunpack.c.h.b16 %v3715
      %v3882 = vunpack.c.l.b16 %v3716
      %v3883 = vunpack.c.h.b16 %v3716
      %v3884 = vunpack.c.l.b16 %v3717
      %v3885 = vunpack.c.h.b16 %v3717
      %v3886 = vunpack.c.l.b16 %v3718
      %v3887 = vunpack.c.l.b16 %v3719
      %v3888 = vunpack.c.h.b16 %v3719
      %v3889 = vunpack.c.l.b16 %v3720
      %v3890 = vunpack.c.h.b16 %v3720
      %v3891 = vunpack.c.l.b16 %v3721
      %v3892 = vunpack.c.h.b16 %v3721
      %v3893 = vunpack.c.l.b16 %v3722
      %v3894 = vunpack.c.l.b16 %v3723
      %v3895 = vunpack.c.h.b16 %v3723
      %v3896 = vunpack.c.l.b16 %v3724
      %v3897 = vunpack.c.h.b16 %v3724
      %v3898 = vunpack.c.l.b16 %v3725
      %v3899 = vunpack.c.h.b16 %v3725
      %v3900 = vunpack.c.l.b16 %v3726
      %v3901 = vunpack.c.l.b16 %v3727
      %v3902 = vunpack.c.h.b16 %v3727
      %v3903 = vunpack.c.l.b16 %v3728
      %v3904 = vunpack.c.h.b16 %v3728
      %v3905 = vunpack.c.l.b16 %v3729
      %v3906 = vunpack.c.h.b16 %v3729
      %v3907 = vunpack.c.l.b16 %v3730
      %v3908 = vunpack.c.l.b16 %v3731
      %v3909 = vunpack.c.h.b16 %v3731
      %v3910 = vunpack.c.l.b16 %v3732
      %v3911 = vunpack.c.h.b16 %v3732
      %v3912 = vunpack.c.l.b16 %v3733
      %v3913 = vunpack.c.h.b16 %v3733
      %v3914 = vunpack.c.l.b16 %v3734
      %v3915 = vunpack.c.l.b16 %v3735
      %v3916 = vunpack.c.h.b16 %v3735
      %v3917 = vunpack.c.l.b16 %v3736
      %v3918 = vunpack.c.h.b16 %v3736
      %v3919 = vunpack.c.l.b16 %v3737
      %v3920 = vunpack.c.h.b16 %v3737
      %v3921 = vunpack.c.l.b16 %v3738
      %v3922 = vunpack.c.l.b16 %v3739
      %v3923 = vunpack.c.h.b16 %v3739
      %v3924 = vunpack.c.l.b16 %v3740
      %v3925 = vunpack.c.h.b16 %v3740
      %v3926 = vunpack.c.l.b16 %v3741
      %v3927 = vunpack.c.h.b16 %v3741
      %v3928 = vunpack.c.l.b16 %v3742
      %v3929 = vunpack.c.l.b16 %v3743
      %v3930 = vunpack.c.h.b16 %v3743
      %v3931 = vunpack.c.l.b16 %v3744
      %v3932 = vunpack.c.h.b16 %v3744
      %v3933 = vunpack.c.l.b16 %v3745
      %v3934 = vunpack.c.h.b16 %v3745
      %v3935 = vunpack.c.l.b16 %v3746
      %v3936 = vunpack.c.l.b16 %v3747
      %v3937 = vunpack.c.h.b16 %v3747
      %v3938 = vunpack.c.l.b16 %v3748
      %v3939 = vunpack.c.h.b16 %v3748
      %v3940 = vunpack.c.l.b16 %v3749
      %v3941 = vunpack.c.h.b16 %v3749
      %v3942 = vunpack.c.l.b16 %v3750
      %v3943 = vunpack.c.l.b16 %v3751
      %v3944 = vunpack.c.h.b16 %v3751
      %v3945 = vunpack.c.l.b16 %v3752
      %v3946 = vunpack.c.h.b16 %v3752
      %v3947 = vunpack.c.l.b16 %v3753
      %v3948 = vunpack.c.h.b16 %v3753
      %v3949 = vunpack.c.l.b16 %v3754
      %v3950 = vunpack.c.l.b16 %v3755
      %v3951 = vunpack.c.h.b16 %v3755
      %v3952 = vunpack.c.l.b16 %v3756
      %v3953 = vunpack.c.h.b16 %v3756
      %v3954 = vunpack.c.l.b16 %v3757
      %v3955 = vunpack.c.h.b16 %v3757
      %v3956 = vunpack.c.l.b16 %v3758
      %v3957 = vunpack.c.l.b16 %v3759
      %v3958 = vunpack.c.h.b16 %v3759
      %v3959 = vunpack.c.l.b16 %v3760
      %v3960 = vunpack.c.h.b16 %v3760
      %v3961 = vunpack.c.l.b16 %v3761
      %v3962 = vunpack.c.h.b16 %v3761
      %v3963 = vunpack.c.l.b16 %v3762
      %v3964 = vunpack.c.l.b16 %v3763
      %v3965 = vunpack.c.h.b16 %v3763
      %v3966 = vunpack.c.l.b16 %v3764
      %v3967 = vunpack.c.h.b16 %v3764
      %v3968 = vunpack.c.l.b16 %v3765
      %v3969 = vunpack.c.h.b16 %v3765
      %v3970 = vunpack.c.l.b16 %v3766
      %v3971 = vunpack.c.l.b16 %v3767
      %v3972 = vunpack.c.h.b16 %v3767
      %v3973 = vunpack.c.l.b16 %v3768
      %v3974 = vunpack.c.h.b16 %v3768
      %v3975 = vunpack.c.l.b16 %v3769
      %v3976 = vunpack.c.h.b16 %v3769
      %v3977 = vunpack.c.l.b16 %v3770
      %v3978 = vunpack.c.l.b16 %v3771
      %v3979 = vunpack.c.h.b16 %v3771
      %v3980 = vunpack.c.l.b16 %v3772
      %v3981 = vunpack.c.h.b16 %v3772
      %v3982 = vunpack.c.l.b16 %v3773
      %v3983 = vunpack.c.h.b16 %v3773
      %v3984 = vunpack.c.l.b16 %v3774
      %v3985 = vunpack.c.l.b16 %v3775
      %v3986 = vunpack.c.h.b16 %v3775
      %v3987 = vunpack.c.l.b16 %v3776
      %v3988 = vunpack.c.h.b16 %v3776
      %v3989 = vunpack.c.l.b16 %v3777
      %v3990 = vunpack.c.h.b16 %v3777
      %v3991 = vunpack.c.l.b16 %v3778
      %v3992 = vpack.c.b16 %v3887, %v3880
      %v3993 = vpack.c.b16 %v3888, %v3881
      %v3994 = vpack.c.b16 %v3889, %v3882
      %v3995 = vpack.c.b16 %v3890, %v3883
      %v3996 = vpack.c.b16 %v3891, %v3884
      %v3997 = vpack.c.b16 %v3892, %v3885
      %v3998 = vpack.c.b16 %v3893, %v3886
      %v3999 = vpack.c.b16 %v3901, %v3894
      %v4000 = vpack.c.b16 %v3902, %v3895
      %v4001 = vpack.c.b16 %v3903, %v3896
      %v4002 = vpack.c.b16 %v3904, %v3897
      %v4003 = vpack.c.b16 %v3905, %v3898
      %v4004 = vpack.c.b16 %v3906, %v3899
      %v4005 = vpack.c.b16 %v3907, %v3900
      %v4006 = vpack.c.b16 %v3915, %v3908
      %v4007 = vpack.c.b16 %v3916, %v3909
      %v4008 = vpack.c.b16 %v3917, %v3910
      %v4009 = vpack.c.b16 %v3918, %v3911
      %v4010 = vpack.c.b16 %v3919, %v3912
      %v4011 = vpack.c.b16 %v3920, %v3913
      %v4012 = vpack.c.b16 %v3921, %v3914
      %v4013 = vpack.c.b16 %v3929, %v3922
      %v4014 = vpack.c.b16 %v3930, %v3923
      %v4015 = vpack.c.b16 %v3931, %v3924
      %v4016 = vpack.c.b16 %v3932, %v3925
      %v4017 = vpack.c.b16 %v3933, %v3926
      %v4018 = vpack.c.b16 %v3934, %v3927
      %v4019 = vpack.c.b16 %v3935, %v3928
      %v4020 = vpack.c.b16 %v3943, %v3936
      %v4021 = vpack.c.b16 %v3944, %v3937
      %v4022 = vpack.c.b16 %v3945, %v3938
      %v4023 = vpack.c.b16 %v3946, %v3939
      %v4024 = vpack.c.b16 %v3947, %v3940
      %v4025 = vpack.c.b16 %v3948, %v3941
      %v4026 = vpack.c.b16 %v3949, %v3942
      %v4027 = vpack.c.b16 %v3957, %v3950
      %v4028 = vpack.c.b16 %v3958, %v3951
      %v4029 = vpack.c.b16 %v3959, %v3952
      %v4030 = vpack.c.b16 %v3960, %v3953
      %v4031 = vpack.c.b16 %v3961, %v3954
      %v4032 = vpack.c.b16 %v3962, %v3955
      %v4033 = vpack.c.b16 %v3963, %v3956
      %v4034 = vpack.c.b16 %v3971, %v3964
      %v4035 = vpack.c.b16 %v3972, %v3965
      %v4036 = vpack.c.b16 %v3973, %v3966
      %v4037 = vpack.c.b16 %v3974, %v3967
      %v4038 = vpack.c.b16 %v3975, %v3968
      %v4039 = vpack.c.b16 %v3976, %v3969
      %v4040 = vpack.c.b16 %v3977, %v3970
      %v4041 = vpack.c.b16 %v3985, %v3978
      %v4042 = vpack.c.b16 %v3986, %v3979
      %v4043 = vpack.c.b16 %v3987, %v3980
      %v4044 = vpack.c.b16 %v3988, %v3981
      %v4045 = vpack.c.b16 %v3989, %v3982
      %v4046 = vpack.c.b16 %v3990, %v3983
      %v4047 = vpack.c.b16 %v3991, %v3984
      %4104 = vmatprep.subr.bf16.mxu0 %v4042
      %4105 = vmatpush1.bf16.msra.mxu0 %v4041
      %4106 = vmatprep.subr.bf16.mxu0 %v4035
      %4107 = vmatpush1.bf16.msra.mxu0 %v4034
      %4108 = vmatprep.subr.bf16.mxu0 %v4028
      %4109 = vmatpush1.bf16.msra.mxu0 %v4027
      %4110 = vmatprep.subr.bf16.mxu0 %v4021
      %4111 = vmatpush1.bf16.msra.mxu0 %v4020
      %4112 = vmatprep.subr.bf16.mxu0 %v4014
      %4113 = vmatpush1.bf16.msra.mxu0 %v4013
      %4114 = vmatprep.subr.bf16.mxu0 %v4007
      %4115 = vmatpush1.bf16.msra.mxu0 %v4006
      %4116 = vmatprep.subr.bf16.mxu0 %v4000
      %4117 = vmatpush1.bf16.msra.mxu0 %v3999
      %4118 = vmatprep.subr.bf16.mxu0 %v3993
      %4119 = vmatpush1.bf16.msra.mxu0 %v3992
      %4120 = vmatprep.subr.bf16.mxu0 0
      %4121 = vmatpush2.bf16.msra.mxu0 0
      %4122 = vmatprep.subr.bf16.mxu0 0
      %4123 = vmatpush2.bf16.msra.mxu0 0
      %4124 = vmatprep.subr.bf16.mxu0 0
      %4125 = vmatpush2.bf16.msra.mxu0 0
      %4126 = vmatprep.subr.bf16.mxu0 0
      %4127 = vmatpush2.bf16.msra.mxu0 0
      %4128 = vmatprep.subr.bf16.mxu0 0
      %4129 = vmatpush2.bf16.msra.mxu0 0
      %4130 = vmatprep.subr.bf16.mxu0 0
      %4131 = vmatpush2.bf16.msra.mxu0 0
      %4132 = vmatprep.subr.bf16.mxu0 0
      %4133 = vmatpush2.bf16.msra.mxu0 0
      %4134 = vmatprep.subr.bf16.mxu0 0
      %4135 = vmatpush2.bf16.msra.mxu0 0
      %4136 = vmatprep.mubr.bf16.mxu0 0
      %4137 = vmatmul.mubr.bf16.gmra.mxu0 %v3699
      %v4138 = vpop.f32.mrf.mxu0
      %v4139 = vadd.f32 %v3784, %v4138
      %v4140 = vpop.f32.mrf.mxu0
      %v4141 = vadd.f32 %v3788, %v4140
      %v4142 = vpop.f32.mrf.mxu0
      %v4143 = vadd.f32 %v3784, %v4142
      %v4144 = vpop.f32.mrf.mxu0
      %v4145 = vadd.f32 %v3788, %v4144
      %4146 = vmatprep.mubr.bf16.mxu0 0
      %4147 = vmatmul.mubr.bf16.gmra.mxu0 %v3700
      %v4148 = vpop.f32.mrf.mxu0
      %v4149 = vadd.f32 %v3784, %v4148
      %v4150 = vpop.f32.mrf.mxu0
      %v4151 = vadd.f32 %v3788, %v4150
      %v4152 = vpop.f32.mrf.mxu0
      %v4153 = vadd.f32 %v3784, %v4152
      %v4154 = vpop.f32.mrf.mxu0
      %v4155 = vadd.f32 %v3788, %v4154
      %4156 = vmatprep.mubr.bf16.mxu0 0
      %4157 = vmatmul.mubr.bf16.gmra.mxu0 %v3701
      %v4158 = vpop.f32.mrf.mxu0
      %v4159 = vadd.f32 %v3784, %v4158
      %v4160 = vpop.f32.mrf.mxu0
      %v4161 = vadd.f32 %v3788, %v4160
      %v4162 = vpop.f32.mrf.mxu0
      %v4163 = vadd.f32 %v3784, %v4162
      %v4164 = vpop.f32.mrf.mxu0
      %v4165 = vadd.f32 %v3788, %v4164
      %4166 = vmatprep.mubr.bf16.mxu0 0
      %4167 = vmatmul.mubr.bf16.gmra.mxu0 %v3702
      %v4168 = vpop.f32.mrf.mxu0
      %v4169 = vadd.f32 %v3784, %v4168
      %v4170 = vpop.f32.mrf.mxu0
      %v4171 = vadd.f32 %v3788, %v4170
      %v4172 = vpop.f32.mrf.mxu0
      %v4173 = vadd.f32 %v3784, %v4172
      %v4174 = vpop.f32.mrf.mxu0
      %v4175 = vadd.f32 %v3788, %v4174
      %4176 = vmatprep.mubr.bf16.mxu0 0
      %4177 = vmatmul.mubr.bf16.gmra.mxu0 %v3703
      %v4178 = vpop.f32.mrf.mxu0
      %v4179 = vadd.f32 %v3784, %v4178
      %v4180 = vpop.f32.mrf.mxu0
      %v4181 = vadd.f32 %v3788, %v4180
      %v4182 = vpop.f32.mrf.mxu0
      %v4183 = vadd.f32 %v3784, %v4182
      %v4184 = vpop.f32.mrf.mxu0
      %v4185 = vadd.f32 %v3788, %v4184
      %4186 = vmatprep.mubr.bf16.mxu0 0
      %4187 = vmatmul.mubr.bf16.gmra.mxu0 %v3704
      %v4188 = vpop.f32.mrf.mxu0
      %v4189 = vadd.f32 %v3784, %v4188
      %v4190 = vpop.f32.mrf.mxu0
      %v4191 = vadd.f32 %v3788, %v4190
      %v4192 = vpop.f32.mrf.mxu0
      %v4193 = vadd.f32 %v3784, %v4192
      %v4194 = vpop.f32.mrf.mxu0
      %v4195 = vadd.f32 %v3788, %v4194
      %4196 = vmatprep.mubr.bf16.mxu0 0
      %4197 = vmatmul.mubr.bf16.gmra.mxu0 %v3705
      %v4198 = vpop.f32.mrf.mxu0
      %v4199 = vadd.f32 %v3784, %v4198
      %v4200 = vpop.f32.mrf.mxu0
      %v4201 = vadd.f32 %v3788, %v4200
      %v4202 = vpop.f32.mrf.mxu0
      %v4203 = vadd.f32 %v3784, %v4202
      %v4204 = vpop.f32.mrf.mxu0
      %v4205 = vadd.f32 %v3788, %v4204
      %4206 = vmatprep.mubr.bf16.mxu0 0
      %4207 = vmatmul.mubr.bf16.gmra.mxu0 %v3706
      %v4208 = vpop.f32.mrf.mxu0
      %v4209 = vadd.f32 %v3784, %v4208
      %v4210 = vpop.f32.mrf.mxu0
      %v4211 = vadd.f32 %v3788, %v4210
      %v4212 = vpop.f32.mrf.mxu0
      %v4213 = vadd.f32 %v3784, %v4212
      %v4214 = vpop.f32.mrf.mxu0
      %v4215 = vadd.f32 %v3788, %v4214
      %4216 = vmatprep.mubr.bf16.mxu0 0
      %4217 = vmatmul.mubr.bf16.gmra.mxu0 %v3707
      %v4218 = vpop.f32.mrf.mxu0
      %v4219 = vadd.f32 %v3784, %v4218
      %v4220 = vpop.f32.mrf.mxu0
      %v4221 = vadd.f32 %v3788, %v4220
      %v4222 = vpop.f32.mrf.mxu0
      %v4223 = vadd.f32 %v3784, %v4222
      %v4224 = vpop.f32.mrf.mxu0
      %v4225 = vadd.f32 %v3788, %v4224
      %4226 = vmatprep.mubr.bf16.mxu0 0
      %4227 = vmatmul.mubr.bf16.gmra.mxu0 %v3708
      %v4228 = vpop.f32.mrf.mxu0
      %v4229 = vadd.f32 %v3784, %v4228
      %v4230 = vpop.f32.mrf.mxu0
      %v4231 = vadd.f32 %v3788, %v4230
      %v4232 = vpop.f32.mrf.mxu0
      %v4233 = vadd.f32 %v3784, %v4232
      %v4234 = vpop.f32.mrf.mxu0
      %v4235 = vadd.f32 %v3788, %v4234
      %4236 = vmatprep.mubr.bf16.mxu0 0
      %4237 = vmatmul.mubr.bf16.gmra.mxu0 %v3709
      %v4238 = vpop.f32.mrf.mxu0
      %v4239 = vadd.f32 %v3784, %v4238
      %v4240 = vpop.f32.mrf.mxu0
      %v4241 = vadd.f32 %v3788, %v4240
      %v4242 = vpop.f32.mrf.mxu0
      %v4243 = vadd.f32 %v3784, %v4242
      %v4244 = vpop.f32.mrf.mxu0
      %v4245 = vadd.f32 %v3788, %v4244
      %4246 = vmatprep.mubr.bf16.mxu0 0
      %4247 = vmatmul.mubr.bf16.gmra.mxu0 %v3710
      %v4248 = vpop.f32.mrf.mxu0
      %v4249 = vadd.f32 %v3784, %v4248
      %v4250 = vpop.f32.mrf.mxu0
      %v4251 = vadd.f32 %v3788, %v4250
      %v4252 = vpop.f32.mrf.mxu0
      %v4253 = vadd.f32 %v3784, %v4252
      %v4254 = vpop.f32.mrf.mxu0
      %v4255 = vadd.f32 %v3788, %v4254
      %4256 = vmatprep.mubr.bf16.mxu0 0
      %4257 = vmatmul.mubr.bf16.gmra.mxu0 %v3711
      %v4258 = vpop.f32.mrf.mxu0
      %v4259 = vadd.f32 %v3784, %v4258
      %v4260 = vpop.f32.mrf.mxu0
      %v4261 = vadd.f32 %v3788, %v4260
      %v4262 = vpop.f32.mrf.mxu0
      %v4263 = vadd.f32 %v3784, %v4262
      %v4264 = vpop.f32.mrf.mxu0
      %v4265 = vadd.f32 %v3788, %v4264
      %4266 = vmatprep.mubr.bf16.mxu0 0
      %4267 = vmatmul.mubr.bf16.gmra.mxu0 %v3712
      %v4268 = vpop.f32.mrf.mxu0
      %v4269 = vadd.f32 %v3784, %v4268
      %v4270 = vpop.f32.mrf.mxu0
      %v4271 = vadd.f32 %v3788, %v4270
      %v4272 = vpop.f32.mrf.mxu0
      %v4273 = vadd.f32 %v3784, %v4272
      %v4274 = vpop.f32.mrf.mxu0
      %v4275 = vadd.f32 %v3788, %v4274
      %4276 = vmatprep.mubr.bf16.mxu0 0
      %4277 = vmatmul.mubr.bf16.gmra.mxu0 %v3713
      %v4278 = vpop.f32.mrf.mxu0
      %v4279 = vadd.f32 %v3784, %v4278
      %v4280 = vpop.f32.mrf.mxu0
      %v4281 = vadd.f32 %v3788, %v4280
      %v4282 = vpop.f32.mrf.mxu0
      %v4283 = vadd.f32 %v3784, %v4282
      %v4284 = vpop.f32.mrf.mxu0
      %v4285 = vadd.f32 %v3788, %v4284
      %4286 = vmatprep.mubr.bf16.mxu0 0
      %4287 = vmatmul.mubr.bf16.gmra.mxu0 %v3714
      %v4288 = vpop.f32.mrf.mxu0
      %v4289 = vadd.f32 %v3784, %v4288
      %v4290 = vpop.f32.mrf.mxu0
      %v4291 = vadd.f32 %v3788, %v4290
      %v4292 = vpop.f32.mrf.mxu0
      %v4293 = vadd.f32 %v3784, %v4292
      %v4294 = vpop.f32.mrf.mxu0
      %v4295 = vadd.f32 %v3788, %v4294
      %4296 = vdwg.mxu0
      %4297 = vmatprep.subr.bf16.mxu0 %v4044
      %4298 = vmatpush1.bf16.msra.mxu0 %v4043
      %4299 = vmatprep.subr.bf16.mxu0 %v4037
      %4300 = vmatpush1.bf16.msra.mxu0 %v4036
      %4301 = vmatprep.subr.bf16.mxu0 %v4030
      %4302 = vmatpush1.bf16.msra.mxu0 %v4029
      %4303 = vmatprep.subr.bf16.mxu0 %v4023
      %4304 = vmatpush1.bf16.msra.mxu0 %v4022
      %4305 = vmatprep.subr.bf16.mxu0 %v4016
      %4306 = vmatpush1.bf16.msra.mxu0 %v4015
      %4307 = vmatprep.subr.bf16.mxu0 %v4009
      %4308 = vmatpush1.bf16.msra.mxu0 %v4008
      %4309 = vmatprep.subr.bf16.mxu0 %v4002
      %4310 = vmatpush1.bf16.msra.mxu0 %v4001
      %4311 = vmatprep.subr.bf16.mxu0 %v3995
      %4312 = vmatpush1.bf16.msra.mxu0 %v3994
      %4313 = vmatprep.subr.bf16.mxu0 0
      %4314 = vmatpush2.bf16.msra.mxu0 0
      %4315 = vmatprep.subr.bf16.mxu0 0
      %4316 = vmatpush2.bf16.msra.mxu0 0
      %4317 = vmatprep.subr.bf16.mxu0 0
      %4318 = vmatpush2.bf16.msra.mxu0 0
      %4319 = vmatprep.subr.bf16.mxu0 0
      %4320 = vmatpush2.bf16.msra.mxu0 0
      %4321 = vmatprep.subr.bf16.mxu0 0
      %4322 = vmatpush2.bf16.msra.mxu0 0
      %4323 = vmatprep.subr.bf16.mxu0 0
      %4324 = vmatpush2.bf16.msra.mxu0 0
      %4325 = vmatprep.subr.bf16.mxu0 0
      %4326 = vmatpush2.bf16.msra.mxu0 0
      %4327 = vmatprep.subr.bf16.mxu0 0
      %4328 = vmatpush2.bf16.msra.mxu0 0
      %4329 = vmatprep.mubr.bf16.mxu0 0
      %4330 = vmatmul.mubr.bf16.gmra.mxu0 %v3699
      %v4331 = vpop.f32.mrf.mxu0
      %v4332 = vadd.f32 %v3792, %v4331
      %v4333 = vpop.f32.mrf.mxu0
      %v4334 = vadd.f32 %v3796, %v4333
      %v4335 = vpop.f32.mrf.mxu0
      %v4336 = vadd.f32 %v3792, %v4335
      %v4337 = vpop.f32.mrf.mxu0
      %v4338 = vadd.f32 %v3796, %v4337
      %4339 = vmatprep.mubr.bf16.mxu0 0
      %4340 = vmatmul.mubr.bf16.gmra.mxu0 %v3700
      %v4341 = vpop.f32.mrf.mxu0
      %v4342 = vadd.f32 %v3792, %v4341
      %v4343 = vpop.f32.mrf.mxu0
      %v4344 = vadd.f32 %v3796, %v4343
      %v4345 = vpop.f32.mrf.mxu0
      %v4346 = vadd.f32 %v3792, %v4345
      %v4347 = vpop.f32.mrf.mxu0
      %v4348 = vadd.f32 %v3796, %v4347
      %4349 = vmatprep.mubr.bf16.mxu0 0
      %4350 = vmatmul.mubr.bf16.gmra.mxu0 %v3701
      %v4351 = vpop.f32.mrf.mxu0
      %v4352 = vadd.f32 %v3792, %v4351
      %v4353 = vpop.f32.mrf.mxu0
      %v4354 = vadd.f32 %v3796, %v4353
      %v4355 = vpop.f32.mrf.mxu0
      %v4356 = vadd.f32 %v3792, %v4355
      %v4357 = vpop.f32.mrf.mxu0
      %v4358 = vadd.f32 %v3796, %v4357
      %4359 = vmatprep.mubr.bf16.mxu0 0
      %4360 = vmatmul.mubr.bf16.gmra.mxu0 %v3702
      %v4361 = vpop.f32.mrf.mxu0
      %v4362 = vadd.f32 %v3792, %v4361
      %v4363 = vpop.f32.mrf.mxu0
      %v4364 = vadd.f32 %v3796, %v4363
      %v4365 = vpop.f32.mrf.mxu0
      %v4366 = vadd.f32 %v3792, %v4365
      %v4367 = vpop.f32.mrf.mxu0
      %v4368 = vadd.f32 %v3796, %v4367
      %4369 = vmatprep.mubr.bf16.mxu0 0
      %4370 = vmatmul.mubr.bf16.gmra.mxu0 %v3703
      %v4371 = vpop.f32.mrf.mxu0
      %v4372 = vadd.f32 %v3792, %v4371
      %v4373 = vpop.f32.mrf.mxu0
      %v4374 = vadd.f32 %v3796, %v4373
      %v4375 = vpop.f32.mrf.mxu0
      %v4376 = vadd.f32 %v3792, %v4375
      %v4377 = vpop.f32.mrf.mxu0
      %v4378 = vadd.f32 %v3796, %v4377
      %4379 = vmatprep.mubr.bf16.mxu0 0
      %4380 = vmatmul.mubr.bf16.gmra.mxu0 %v3704
      %v4381 = vpop.f32.mrf.mxu0
      %v4382 = vadd.f32 %v3792, %v4381
      %v4383 = vpop.f32.mrf.mxu0
      %v4384 = vadd.f32 %v3796, %v4383
      %v4385 = vpop.f32.mrf.mxu0
      %v4386 = vadd.f32 %v3792, %v4385
      %v4387 = vpop.f32.mrf.mxu0
      %v4388 = vadd.f32 %v3796, %v4387
      %4389 = vmatprep.mubr.bf16.mxu0 0
      %4390 = vmatmul.mubr.bf16.gmra.mxu0 %v3705
      %v4391 = vpop.f32.mrf.mxu0
      %v4392 = vadd.f32 %v3792, %v4391
      %v4393 = vpop.f32.mrf.mxu0
      %v4394 = vadd.f32 %v3796, %v4393
      %v4395 = vpop.f32.mrf.mxu0
      %v4396 = vadd.f32 %v3792, %v4395
      %v4397 = vpop.f32.mrf.mxu0
      %v4398 = vadd.f32 %v3796, %v4397
      %4399 = vmatprep.mubr.bf16.mxu0 0
      %4400 = vmatmul.mubr.bf16.gmra.mxu0 %v3706
      %v4401 = vpop.f32.mrf.mxu0
      %v4402 = vadd.f32 %v3792, %v4401
      %v4403 = vpop.f32.mrf.mxu0
      %v4404 = vadd.f32 %v3796, %v4403
      %v4405 = vpop.f32.mrf.mxu0
      %v4406 = vadd.f32 %v3792, %v4405
      %v4407 = vpop.f32.mrf.mxu0
      %v4408 = vadd.f32 %v3796, %v4407
      %4409 = vmatprep.mubr.bf16.mxu0 0
      %4410 = vmatmul.mubr.bf16.gmra.mxu0 %v3707
      %v4411 = vpop.f32.mrf.mxu0
      %v4412 = vadd.f32 %v3792, %v4411
      %v4413 = vpop.f32.mrf.mxu0
      %v4414 = vadd.f32 %v3796, %v4413
      %v4415 = vpop.f32.mrf.mxu0
      %v4416 = vadd.f32 %v3792, %v4415
      %v4417 = vpop.f32.mrf.mxu0
      %v4418 = vadd.f32 %v3796, %v4417
      %4419 = vmatprep.mubr.bf16.mxu0 0
      %4420 = vmatmul.mubr.bf16.gmra.mxu0 %v3708
      %v4421 = vpop.f32.mrf.mxu0
      %v4422 = vadd.f32 %v3792, %v4421
      %v4423 = vpop.f32.mrf.mxu0
      %v4424 = vadd.f32 %v3796, %v4423
      %v4425 = vpop.f32.mrf.mxu0
      %v4426 = vadd.f32 %v3792, %v4425
      %v4427 = vpop.f32.mrf.mxu0
      %v4428 = vadd.f32 %v3796, %v4427
      %4429 = vmatprep.mubr.bf16.mxu0 0
      %4430 = vmatmul.mubr.bf16.gmra.mxu0 %v3709
      %v4431 = vpop.f32.mrf.mxu0
      %v4432 = vadd.f32 %v3792, %v4431
      %v4433 = vpop.f32.mrf.mxu0
      %v4434 = vadd.f32 %v3796, %v4433
      %v4435 = vpop.f32.mrf.mxu0
      %v4436 = vadd.f32 %v3792, %v4435
      %v4437 = vpop.f32.mrf.mxu0
      %v4438 = vadd.f32 %v3796, %v4437
      %4439 = vmatprep.mubr.bf16.mxu0 0
      %4440 = vmatmul.mubr.bf16.gmra.mxu0 %v3710
      %v4441 = vpop.f32.mrf.mxu0
      %v4442 = vadd.f32 %v3792, %v4441
      %v4443 = vpop.f32.mrf.mxu0
      %v4444 = vadd.f32 %v3796, %v4443
      %v4445 = vpop.f32.mrf.mxu0
      %v4446 = vadd.f32 %v3792, %v4445
      %v4447 = vpop.f32.mrf.mxu0
      %v4448 = vadd.f32 %v3796, %v4447
      %4449 = vmatprep.mubr.bf16.mxu0 0
      %4450 = vmatmul.mubr.bf16.gmra.mxu0 %v3711
      %v4451 = vpop.f32.mrf.mxu0
      %v4452 = vadd.f32 %v3792, %v4451
      %v4453 = vpop.f32.mrf.mxu0
      %v4454 = vadd.f32 %v3796, %v4453
      %v4455 = vpop.f32.mrf.mxu0
      %v4456 = vadd.f32 %v3792, %v4455
      %v4457 = vpop.f32.mrf.mxu0
      %v4458 = vadd.f32 %v3796, %v4457
      %4459 = vmatprep.mubr.bf16.mxu0 0
      %4460 = vmatmul.mubr.bf16.gmra.mxu0 %v3712
      %v4461 = vpop.f32.mrf.mxu0
      %v4462 = vadd.f32 %v3792, %v4461
      %v4463 = vpop.f32.mrf.mxu0
      %v4464 = vadd.f32 %v3796, %v4463
      %v4465 = vpop.f32.mrf.mxu0
      %v4466 = vadd.f32 %v3792, %v4465
      %v4467 = vpop.f32.mrf.mxu0
      %v4468 = vadd.f32 %v3796, %v4467
      %4469 = vmatprep.mubr.bf16.mxu0 0
      %4470 = vmatmul.mubr.bf16.gmra.mxu0 %v3713
      %v4471 = vpop.f32.mrf.mxu0
      %v4472 = vadd.f32 %v3792, %v4471
      %v4473 = vpop.f32.mrf.mxu0
      %v4474 = vadd.f32 %v3796, %v4473
      %v4475 = vpop.f32.mrf.mxu0
      %v4476 = vadd.f32 %v3792, %v4475
      %v4477 = vpop.f32.mrf.mxu0
      %v4478 = vadd.f32 %v3796, %v4477
      %4479 = vmatprep.mubr.bf16.mxu0 0
      %4480 = vmatmul.mubr.bf16.gmra.mxu0 %v3714
      %v4481 = vpop.f32.mrf.mxu0
      %v4482 = vadd.f32 %v3792, %v4481
      %v4483 = vpop.f32.mrf.mxu0
      %v4484 = vadd.f32 %v3796, %v4483
      %v4485 = vpop.f32.mrf.mxu0
      %v4486 = vadd.f32 %v3792, %v4485
      %v4487 = vpop.f32.mrf.mxu0
      %v4488 = vadd.f32 %v3796, %v4487
      %4489 = vdwg.mxu0
      %4490 = vmatprep.subr.bf16.mxu0 %v4046
      %4491 = vmatpush1.bf16.msra.mxu0 %v4045
      %4492 = vmatprep.subr.bf16.mxu0 %v4039
      %4493 = vmatpush1.bf16.msra.mxu0 %v4038
      %4494 = vmatprep.subr.bf16.mxu0 %v4032
      %4495 = vmatpush1.bf16.msra.mxu0 %v4031
      %4496 = vmatprep.subr.bf16.mxu0 %v4025
      %4497 = vmatpush1.bf16.msra.mxu0 %v4024
      %4498 = vmatprep.subr.bf16.mxu0 %v4018
      %4499 = vmatpush1.bf16.msra.mxu0 %v4017
      %4500 = vmatprep.subr.bf16.mxu0 %v4011
      %4501 = vmatpush1.bf16.msra.mxu0 %v4010
      %4502 = vmatprep.subr.bf16.mxu0 %v4004
      %4503 = vmatpush1.bf16.msra.mxu0 %v4003
      %4504 = vmatprep.subr.bf16.mxu0 %v3997
      %4505 = vmatpush1.bf16.msra.mxu0 %v3996
      %4506 = vmatprep.subr.bf16.mxu0 0
      %4507 = vmatpush2.bf16.msra.mxu0 0
      %4508 = vmatprep.subr.bf16.mxu0 0
      %4509 = vmatpush2.bf16.msra.mxu0 0
      %4510 = vmatprep.subr.bf16.mxu0 0
      %4511 = vmatpush2.bf16.msra.mxu0 0
      %4512 = vmatprep.subr.bf16.mxu0 0
      %4513 = vmatpush2.bf16.msra.mxu0 0
      %4514 = vmatprep.subr.bf16.mxu0 0
      %4515 = vmatpush2.bf16.msra.mxu0 0
      %4516 = vmatprep.subr.bf16.mxu0 0
      %4517 = vmatpush2.bf16.msra.mxu0 0
      %4518 = vmatprep.subr.bf16.mxu0 0
      %4519 = vmatpush2.bf16.msra.mxu0 0
      %4520 = vmatprep.subr.bf16.mxu0 0
      %4521 = vmatpush2.bf16.msra.mxu0 0
      %4522 = vmatprep.mubr.bf16.mxu0 0
      %4523 = vmatmul.mubr.bf16.gmra.mxu0 %v3699
      %v4524 = vpop.f32.mrf.mxu0
      %v4525 = vadd.f32 %v3800, %v4524
      %v4526 = vpop.f32.mrf.mxu0
      %v4527 = vadd.f32 %v3804, %v4526
      %v4528 = vpop.f32.mrf.mxu0
      %v4529 = vadd.f32 %v3800, %v4528
      %v4530 = vpop.f32.mrf.mxu0
      %v4531 = vadd.f32 %v3804, %v4530
      %4532 = vmatprep.mubr.bf16.mxu0 0
      %4533 = vmatmul.mubr.bf16.gmra.mxu0 %v3700
      %v4534 = vpop.f32.mrf.mxu0
      %v4535 = vadd.f32 %v3800, %v4534
      %v4536 = vpop.f32.mrf.mxu0
      %v4537 = vadd.f32 %v3804, %v4536
      %v4538 = vpop.f32.mrf.mxu0
      %v4539 = vadd.f32 %v3800, %v4538
      %v4540 = vpop.f32.mrf.mxu0
      %v4541 = vadd.f32 %v3804, %v4540
      %4542 = vmatprep.mubr.bf16.mxu0 0
      %4543 = vmatmul.mubr.bf16.gmra.mxu0 %v3701
      %v4544 = vpop.f32.mrf.mxu0
      %v4545 = vadd.f32 %v3800, %v4544
      %v4546 = vpop.f32.mrf.mxu0
      %v4547 = vadd.f32 %v3804, %v4546
      %v4548 = vpop.f32.mrf.mxu0
      %v4549 = vadd.f32 %v3800, %v4548
      %v4550 = vpop.f32.mrf.mxu0
      %v4551 = vadd.f32 %v3804, %v4550
      %4552 = vmatprep.mubr.bf16.mxu0 0
      %4553 = vmatmul.mubr.bf16.gmra.mxu0 %v3702
      %v4554 = vpop.f32.mrf.mxu0
      %v4555 = vadd.f32 %v3800, %v4554
      %v4556 = vpop.f32.mrf.mxu0
      %v4557 = vadd.f32 %v3804, %v4556
      %v4558 = vpop.f32.mrf.mxu0
      %v4559 = vadd.f32 %v3800, %v4558
      %v4560 = vpop.f32.mrf.mxu0
      %v4561 = vadd.f32 %v3804, %v4560
      %4562 = vmatprep.mubr.bf16.mxu0 0
      %4563 = vmatmul.mubr.bf16.gmra.mxu0 %v3703
      %v4564 = vpop.f32.mrf.mxu0
      %v4565 = vadd.f32 %v3800, %v4564
      %v4566 = vpop.f32.mrf.mxu0
      %v4567 = vadd.f32 %v3804, %v4566
      %v4568 = vpop.f32.mrf.mxu0
      %v4569 = vadd.f32 %v3800, %v4568
      %v4570 = vpop.f32.mrf.mxu0
      %v4571 = vadd.f32 %v3804, %v4570
      %4572 = vmatprep.mubr.bf16.mxu0 0
      %4573 = vmatmul.mubr.bf16.gmra.mxu0 %v3704
      %v4574 = vpop.f32.mrf.mxu0
      %v4575 = vadd.f32 %v3800, %v4574
      %v4576 = vpop.f32.mrf.mxu0
      %v4577 = vadd.f32 %v3804, %v4576
      %v4578 = vpop.f32.mrf.mxu0
      %v4579 = vadd.f32 %v3800, %v4578
      %v4580 = vpop.f32.mrf.mxu0
      %v4581 = vadd.f32 %v3804, %v4580
      %4582 = vmatprep.mubr.bf16.mxu0 0
      %4583 = vmatmul.mubr.bf16.gmra.mxu0 %v3705
      %v4584 = vpop.f32.mrf.mxu0
      %v4585 = vadd.f32 %v3800, %v4584
      %v4586 = vpop.f32.mrf.mxu0
      %v4587 = vadd.f32 %v3804, %v4586
      %v4588 = vpop.f32.mrf.mxu0
      %v4589 = vadd.f32 %v3800, %v4588
      %v4590 = vpop.f32.mrf.mxu0
      %v4591 = vadd.f32 %v3804, %v4590
      %4592 = vmatprep.mubr.bf16.mxu0 0
      %4593 = vmatmul.mubr.bf16.gmra.mxu0 %v3706
      %v4594 = vpop.f32.mrf.mxu0
      %v4595 = vadd.f32 %v3800, %v4594
      %v4596 = vpop.f32.mrf.mxu0
      %v4597 = vadd.f32 %v3804, %v4596
      %v4598 = vpop.f32.mrf.mxu0
      %v4599 = vadd.f32 %v3800, %v4598
      %v4600 = vpop.f32.mrf.mxu0
      %v4601 = vadd.f32 %v3804, %v4600
      %4602 = vmatprep.mubr.bf16.mxu0 0
      %4603 = vmatmul.mubr.bf16.gmra.mxu0 %v3707
      %v4604 = vpop.f32.mrf.mxu0
      %v4605 = vadd.f32 %v3800, %v4604
      %v4606 = vpop.f32.mrf.mxu0
      %v4607 = vadd.f32 %v3804, %v4606
      %v4608 = vpop.f32.mrf.mxu0
      %v4609 = vadd.f32 %v3800, %v4608
      %v4610 = vpop.f32.mrf.mxu0
      %v4611 = vadd.f32 %v3804, %v4610
      %4612 = vmatprep.mubr.bf16.mxu0 0
      %4613 = vmatmul.mubr.bf16.gmra.mxu0 %v3708
      %v4614 = vpop.f32.mrf.mxu0
      %v4615 = vadd.f32 %v3800, %v4614
      %v4616 = vpop.f32.mrf.mxu0
      %v4617 = vadd.f32 %v3804, %v4616
      %v4618 = vpop.f32.mrf.mxu0
      %v4619 = vadd.f32 %v3800, %v4618
      %v4620 = vpop.f32.mrf.mxu0
      %v4621 = vadd.f32 %v3804, %v4620
      %4622 = vmatprep.mubr.bf16.mxu0 0
      %4623 = vmatmul.mubr.bf16.gmra.mxu0 %v3709
      %v4624 = vpop.f32.mrf.mxu0
      %v4625 = vadd.f32 %v3800, %v4624
      %v4626 = vpop.f32.mrf.mxu0
      %v4627 = vadd.f32 %v3804, %v4626
      %v4628 = vpop.f32.mrf.mxu0
      %v4629 = vadd.f32 %v3800, %v4628
      %v4630 = vpop.f32.mrf.mxu0
      %v4631 = vadd.f32 %v3804, %v4630
      %4632 = vmatprep.mubr.bf16.mxu0 0
      %4633 = vmatmul.mubr.bf16.gmra.mxu0 %v3710
      %v4634 = vpop.f32.mrf.mxu0
      %v4635 = vadd.f32 %v3800, %v4634
      %v4636 = vpop.f32.mrf.mxu0
      %v4637 = vadd.f32 %v3804, %v4636
      %v4638 = vpop.f32.mrf.mxu0
      %v4639 = vadd.f32 %v3800, %v4638
      %v4640 = vpop.f32.mrf.mxu0
      %v4641 = vadd.f32 %v3804, %v4640
      %4642 = vmatprep.mubr.bf16.mxu0 0
      %4643 = vmatmul.mubr.bf16.gmra.mxu0 %v3711
      %v4644 = vpop.f32.mrf.mxu0
      %v4645 = vadd.f32 %v3800, %v4644
      %v4646 = vpop.f32.mrf.mxu0
      %v4647 = vadd.f32 %v3804, %v4646
      %v4648 = vpop.f32.mrf.mxu0
      %v4649 = vadd.f32 %v3800, %v4648
      %v4650 = vpop.f32.mrf.mxu0
      %v4651 = vadd.f32 %v3804, %v4650
      %4652 = vmatprep.mubr.bf16.mxu0 0
      %4653 = vmatmul.mubr.bf16.gmra.mxu0 %v3712
      %v4654 = vpop.f32.mrf.mxu0
      %v4655 = vadd.f32 %v3800, %v4654
      %v4656 = vpop.f32.mrf.mxu0
      %v4657 = vadd.f32 %v3804, %v4656
      %v4658 = vpop.f32.mrf.mxu0
      %v4659 = vadd.f32 %v3800, %v4658
      %v4660 = vpop.f32.mrf.mxu0
      %v4661 = vadd.f32 %v3804, %v4660
      %4662 = vmatprep.mubr.bf16.mxu0 0
      %4663 = vmatmul.mubr.bf16.gmra.mxu0 %v3713
      %v4664 = vpop.f32.mrf.mxu0
      %v4665 = vadd.f32 %v3800, %v4664
      %v4666 = vpop.f32.mrf.mxu0
      %v4667 = vadd.f32 %v3804, %v4666
      %v4668 = vpop.f32.mrf.mxu0
      %v4669 = vadd.f32 %v3800, %v4668
      %v4670 = vpop.f32.mrf.mxu0
      %v4671 = vadd.f32 %v3804, %v4670
      %4672 = vmatprep.mubr.bf16.mxu0 0
      %4673 = vmatmul.mubr.bf16.gmra.mxu0 %v3714
      %v4674 = vpop.f32.mrf.mxu0
      %v4675 = vadd.f32 %v3800, %v4674
      %v4676 = vpop.f32.mrf.mxu0
      %v4677 = vadd.f32 %v3804, %v4676
      %v4678 = vpop.f32.mrf.mxu0
      %v4679 = vadd.f32 %v3800, %v4678
      %v4680 = vpop.f32.mrf.mxu0
      %v4681 = vadd.f32 %v3804, %v4680
      %4682 = vdwg.mxu0
      %4683 = vmatprep.subr.bf16.mxu0 0
      %4684 = vmatpush1.bf16.msra.mxu0 %v4047
      %4685 = vmatprep.subr.bf16.mxu0 0
      %4686 = vmatpush1.bf16.msra.mxu0 %v4040
      %4687 = vmatprep.subr.bf16.mxu0 0
      %4688 = vmatpush1.bf16.msra.mxu0 %v4033
      %4689 = vmatprep.subr.bf16.mxu0 0
      %4690 = vmatpush1.bf16.msra.mxu0 %v4026
      %4691 = vmatprep.subr.bf16.mxu0 0
      %4692 = vmatpush1.bf16.msra.mxu0 %v4019
      %4693 = vmatprep.subr.bf16.mxu0 0
      %4694 = vmatpush1.bf16.msra.mxu0 %v4012
      %4695 = vmatprep.subr.bf16.mxu0 0
      %4696 = vmatpush1.bf16.msra.mxu0 %v4005
      %4697 = vmatprep.subr.bf16.mxu0 0
      %4698 = vmatpush1.bf16.msra.mxu0 %v3998
      %4699 = vmatprep.subr.bf16.mxu0 0
      %4700 = vmatpush2.bf16.msra.mxu0 0
      %4701 = vmatprep.subr.bf16.mxu0 0
      %4702 = vmatpush2.bf16.msra.mxu0 0
      %4703 = vmatprep.subr.bf16.mxu0 0
      %4704 = vmatpush2.bf16.msra.mxu0 0
      %4705 = vmatprep.subr.bf16.mxu0 0
      %4706 = vmatpush2.bf16.msra.mxu0 0
      %4707 = vmatprep.subr.bf16.mxu0 0
      %4708 = vmatpush2.bf16.msra.mxu0 0
      %4709 = vmatprep.subr.bf16.mxu0 0
      %4710 = vmatpush2.bf16.msra.mxu0 0
      %4711 = vmatprep.subr.bf16.mxu0 0
      %4712 = vmatpush2.bf16.msra.mxu0 0
      %4713 = vmatprep.subr.bf16.mxu0 0
      %4714 = vmatpush2.bf16.msra.mxu0 0
      %4715 = vmatprep.mubr.bf16.mxu0 0
      %4716 = vmatmul.mubr.bf16.gmra.mxu0 %v3699
      %v4717 = vpop.f32.mrf.mxu0
      %v4718 = vadd.f32 %v3808, %v4717
      %v4719 = vpop.f32.mrf.mxu0
      %v4720 = vpop.f32.mrf.mxu0
      %v4721 = vadd.f32 %v3808, %v4720
      %v4722 = vpop.f32.mrf.mxu0
      %4723 = vmatprep.mubr.bf16.mxu0 0
      %4724 = vmatmul.mubr.bf16.gmra.mxu0 %v3700
      %v4725 = vpop.f32.mrf.mxu0
      %v4726 = vadd.f32 %v3808, %v4725
      %v4727 = vpop.f32.mrf.mxu0
      %v4728 = vpop.f32.mrf.mxu0
      %v4729 = vadd.f32 %v3808, %v4728
      %v4730 = vpop.f32.mrf.mxu0
      %4731 = vmatprep.mubr.bf16.mxu0 0
      %4732 = vmatmul.mubr.bf16.gmra.mxu0 %v3701
      %v4733 = vpop.f32.mrf.mxu0
      %v4734 = vadd.f32 %v3808, %v4733
      %v4735 = vpop.f32.mrf.mxu0
      %v4736 = vpop.f32.mrf.mxu0
      %v4737 = vadd.f32 %v3808, %v4736
      %v4738 = vpop.f32.mrf.mxu0
      %4739 = vmatprep.mubr.bf16.mxu0 0
      %4740 = vmatmul.mubr.bf16.gmra.mxu0 %v3702
      %v4741 = vpop.f32.mrf.mxu0
      %v4742 = vadd.f32 %v3808, %v4741
      %v4743 = vpop.f32.mrf.mxu0
      %v4744 = vpop.f32.mrf.mxu0
      %v4745 = vadd.f32 %v3808, %v4744
      %v4746 = vpop.f32.mrf.mxu0
      %4747 = vmatprep.mubr.bf16.mxu0 0
      %4748 = vmatmul.mubr.bf16.gmra.mxu0 %v3703
      %v4749 = vpop.f32.mrf.mxu0
      %v4750 = vadd.f32 %v3808, %v4749
      %v4751 = vpop.f32.mrf.mxu0
      %v4752 = vpop.f32.mrf.mxu0
      %v4753 = vadd.f32 %v3808, %v4752
      %v4754 = vpop.f32.mrf.mxu0
      %4755 = vmatprep.mubr.bf16.mxu0 0
      %4756 = vmatmul.mubr.bf16.gmra.mxu0 %v3704
      %v4757 = vpop.f32.mrf.mxu0
      %v4758 = vadd.f32 %v3808, %v4757
      %v4759 = vpop.f32.mrf.mxu0
      %v4760 = vpop.f32.mrf.mxu0
      %v4761 = vadd.f32 %v3808, %v4760
      %v4762 = vpop.f32.mrf.mxu0
      %4763 = vmatprep.mubr.bf16.mxu0 0
      %4764 = vmatmul.mubr.bf16.gmra.mxu0 %v3705
      %v4765 = vpop.f32.mrf.mxu0
      %v4766 = vadd.f32 %v3808, %v4765
      %v4767 = vpop.f32.mrf.mxu0
      %v4768 = vpop.f32.mrf.mxu0
      %v4769 = vadd.f32 %v3808, %v4768
      %v4770 = vpop.f32.mrf.mxu0
      %4771 = vmatprep.mubr.bf16.mxu0 0
      %4772 = vmatmul.mubr.bf16.gmra.mxu0 %v3706
      %v4773 = vpop.f32.mrf.mxu0
      %v4774 = vadd.f32 %v3808, %v4773
      %v4775 = vpop.f32.mrf.mxu0
      %v4776 = vpop.f32.mrf.mxu0
      %v4777 = vadd.f32 %v3808, %v4776
      %v4778 = vpop.f32.mrf.mxu0
      %4779 = vmatprep.mubr.bf16.mxu0 0
      %4780 = vmatmul.mubr.bf16.gmra.mxu0 %v3707
      %v4781 = vpop.f32.mrf.mxu0
      %v4782 = vadd.f32 %v3808, %v4781
      %v4783 = vpop.f32.mrf.mxu0
      %v4784 = vpop.f32.mrf.mxu0
      %v4785 = vadd.f32 %v3808, %v4784
      %v4786 = vpop.f32.mrf.mxu0
      %4787 = vmatprep.mubr.bf16.mxu0 0
      %4788 = vmatmul.mubr.bf16.gmra.mxu0 %v3708
      %v4789 = vpop.f32.mrf.mxu0
      %v4790 = vadd.f32 %v3808, %v4789
      %v4791 = vpop.f32.mrf.mxu0
      %v4792 = vpop.f32.mrf.mxu0
      %v4793 = vadd.f32 %v3808, %v4792
      %v4794 = vpop.f32.mrf.mxu0
      %4795 = vmatprep.mubr.bf16.mxu0 0
      %4796 = vmatmul.mubr.bf16.gmra.mxu0 %v3709
      %v4797 = vpop.f32.mrf.mxu0
      %v4798 = vadd.f32 %v3808, %v4797
      %v4799 = vpop.f32.mrf.mxu0
      %v4800 = vpop.f32.mrf.mxu0
      %v4801 = vadd.f32 %v3808, %v4800
      %v4802 = vpop.f32.mrf.mxu0
      %4803 = vmatprep.mubr.bf16.mxu0 0
      %4804 = vmatmul.mubr.bf16.gmra.mxu0 %v3710
      %v4805 = vpop.f32.mrf.mxu0
      %v4806 = vadd.f32 %v3808, %v4805
      %v4807 = vpop.f32.mrf.mxu0
      %v4808 = vpop.f32.mrf.mxu0
      %v4809 = vadd.f32 %v3808, %v4808
      %v4810 = vpop.f32.mrf.mxu0
      %4811 = vmatprep.mubr.bf16.mxu0 0
      %4812 = vmatmul.mubr.bf16.gmra.mxu0 %v3711
      %v4813 = vpop.f32.mrf.mxu0
      %v4814 = vadd.f32 %v3808, %v4813
      %v4815 = vpop.f32.mrf.mxu0
      %v4816 = vpop.f32.mrf.mxu0
      %v4817 = vadd.f32 %v3808, %v4816
      %v4818 = vpop.f32.mrf.mxu0
      %4819 = vmatprep.mubr.bf16.mxu0 0
      %4820 = vmatmul.mubr.bf16.gmra.mxu0 %v3712
      %v4821 = vpop.f32.mrf.mxu0
      %v4822 = vadd.f32 %v3808, %v4821
      %v4823 = vpop.f32.mrf.mxu0
      %v4824 = vpop.f32.mrf.mxu0
      %v4825 = vadd.f32 %v3808, %v4824
      %v4826 = vpop.f32.mrf.mxu0
      %4827 = vmatprep.mubr.bf16.mxu0 0
      %4828 = vmatmul.mubr.bf16.gmra.mxu0 %v3713
      %v4829 = vpop.f32.mrf.mxu0
      %v4830 = vadd.f32 %v3808, %v4829
      %v4831 = vpop.f32.mrf.mxu0
      %v4832 = vpop.f32.mrf.mxu0
      %v4833 = vadd.f32 %v3808, %v4832
      %v4834 = vpop.f32.mrf.mxu0
      %4835 = vmatprep.mubr.bf16.mxu0 0
      %4836 = vmatmul.mubr.bf16.gmra.mxu0 %v3714
      %v4837 = vpop.f32.mrf.mxu0
      %v4838 = vadd.f32 %v3808, %v4837
      %v4839 = vpop.f32.mrf.mxu0
      %v4840 = vpop.f32.mrf.mxu0
      %v4841 = vadd.f32 %v3808, %v4840
      %v4842 = vpop.f32.mrf.mxu0
      %4843 = vdwg.mxu0
      %v4844 = vtanh.pop %v4139
      %v4845 = vtanh.pop %v4141
      %v4846 = vtanh.pop %v4332
      %v4847 = vtanh.pop %v4334
      %v4848 = vtanh.pop %v4525
      %v4849 = vtanh.pop %v4527
      %v4850 = vtanh.pop %v4718
      %v4851 = vtanh.pop %v4143
      %v4852 = vtanh.pop %v4145
      %v4853 = vtanh.pop %v4336
      %v4854 = vtanh.pop %v4338
      %v4855 = vtanh.pop %v4529
      %v4856 = vtanh.pop %v4531
      %v4857 = vtanh.pop %v4721
      %v4858 = vtanh.pop %v4149
      %v4859 = vtanh.pop %v4151
      %v4860 = vtanh.pop %v4342
      %v4861 = vtanh.pop %v4344
      %v4862 = vtanh.pop %v4535
      %v4863 = vtanh.pop %v4537
      %v4864 = vtanh.pop %v4726
      %v4865 = vtanh.pop %v4153
      %v4866 = vtanh.pop %v4155
      %v4867 = vtanh.pop %v4346
      %v4868 = vtanh.pop %v4348
      %v4869 = vtanh.pop %v4539
      %v4870 = vtanh.pop %v4541
      %v4871 = vtanh.pop %v4729
      %v4872 = vtanh.pop %v4159
      %v4873 = vtanh.pop %v4161
      %v4874 = vtanh.pop %v4352
      %v4875 = vtanh.pop %v4354
      %v4876 = vtanh.pop %v4545
      %v4877 = vtanh.pop %v4547
      %v4878 = vtanh.pop %v4734
      %v4879 = vtanh.pop %v4163
      %v4880 = vtanh.pop %v4165
      %v4881 = vtanh.pop %v4356
      %v4882 = vtanh.pop %v4358
      %v4883 = vtanh.pop %v4549
      %v4884 = vtanh.pop %v4551
      %v4885 = vtanh.pop %v4737
      %v4886 = vtanh.pop %v4169
      %v4887 = vtanh.pop %v4171
      %v4888 = vtanh.pop %v4362
      %v4889 = vtanh.pop %v4364
      %v4890 = vtanh.pop %v4555
      %v4891 = vtanh.pop %v4557
      %v4892 = vtanh.pop %v4742
      %v4893 = vtanh.pop %v4173
      %v4894 = vtanh.pop %v4175
      %v4895 = vtanh.pop %v4366
      %v4896 = vtanh.pop %v4368
      %v4897 = vtanh.pop %v4559
      %v4898 = vtanh.pop %v4561
      %v4899 = vtanh.pop %v4745
      %v4900 = vtanh.pop %v4179
      %v4901 = vtanh.pop %v4181
      %v4902 = vtanh.pop %v4372
      %v4903 = vtanh.pop %v4374
      %v4904 = vtanh.pop %v4565
      %v4905 = vtanh.pop %v4567
      %v4906 = vtanh.pop %v4750
      %v4907 = vtanh.pop %v4183
      %v4908 = vtanh.pop %v4185
      %v4909 = vtanh.pop %v4376
      %v4910 = vtanh.pop %v4378
      %v4911 = vtanh.pop %v4569
      %v4912 = vtanh.pop %v4571
      %v4913 = vtanh.pop %v4753
      %v4914 = vtanh.pop %v4189
      %v4915 = vtanh.pop %v4191
      %v4916 = vtanh.pop %v4382
      %v4917 = vtanh.pop %v4384
      %v4918 = vtanh.pop %v4575
      %v4919 = vtanh.pop %v4577
      %v4920 = vtanh.pop %v4758
      %v4921 = vtanh.pop %v4193
      %v4922 = vtanh.pop %v4195
      %v4923 = vtanh.pop %v4386
      %v4924 = vtanh.pop %v4388
      %v4925 = vtanh.pop %v4579
      %v4926 = vtanh.pop %v4581
      %v4927 = vtanh.pop %v4761
      %v4928 = vtanh.pop %v4199
      %v4929 = vtanh.pop %v4201
      %v4930 = vtanh.pop %v4392
      %v4931 = vtanh.pop %v4394
      %v4932 = vtanh.pop %v4585
      %v4933 = vtanh.pop %v4587
      %v4934 = vtanh.pop %v4766
      %v4935 = vtanh.pop %v4203
      %v4936 = vtanh.pop %v4205
      %v4937 = vtanh.pop %v4396
      %v4938 = vtanh.pop %v4398
      %v4939 = vtanh.pop %v4589
      %v4940 = vtanh.pop %v4591
      %v4941 = vtanh.pop %v4769
      %v4942 = vtanh.pop %v4209
      %v4943 = vtanh.pop %v4211
      %v4944 = vtanh.pop %v4402
      %v4945 = vtanh.pop %v4404
      %v4946 = vtanh.pop %v4595
      %v4947 = vtanh.pop %v4597
      %v4948 = vtanh.pop %v4774
      %v4949 = vtanh.pop %v4213
      %v4950 = vtanh.pop %v4215
      %v4951 = vtanh.pop %v4406
      %v4952 = vtanh.pop %v4408
      %v4953 = vtanh.pop %v4599
      %v4954 = vtanh.pop %v4601
      %v4955 = vtanh.pop %v4777
      %v4956 = vtanh.pop %v4219
      %v4957 = vtanh.pop %v4221
      %v4958 = vtanh.pop %v4412
      %v4959 = vtanh.pop %v4414
      %v4960 = vtanh.pop %v4605
      %v4961 = vtanh.pop %v4607
      %v4962 = vtanh.pop %v4782
      %v4963 = vtanh.pop %v4223
      %v4964 = vtanh.pop %v4225
      %v4965 = vtanh.pop %v4416
      %v4966 = vtanh.pop %v4418
      %v4967 = vtanh.pop %v4609
      %v4968 = vtanh.pop %v4611
      %v4969 = vtanh.pop %v4785
      %v4970 = vtanh.pop %v4229
      %v4971 = vtanh.pop %v4231
      %v4972 = vtanh.pop %v4422
      %v4973 = vtanh.pop %v4424
      %v4974 = vtanh.pop %v4615
      %v4975 = vtanh.pop %v4617
      %v4976 = vtanh.pop %v4790
      %v4977 = vtanh.pop %v4233
      %v4978 = vtanh.pop %v4235
      %v4979 = vtanh.pop %v4426
      %v4980 = vtanh.pop %v4428
      %v4981 = vtanh.pop %v4619
      %v4982 = vtanh.pop %v4621
      %v4983 = vtanh.pop %v4793
      %v4984 = vtanh.pop %v4239
      %v4985 = vtanh.pop %v4241
      %v4986 = vtanh.pop %v4432
      %v4987 = vtanh.pop %v4434
      %v4988 = vtanh.pop %v4625
      %v4989 = vtanh.pop %v4627
      %v4990 = vtanh.pop %v4798
      %v4991 = vtanh.pop %v4243
      %v4992 = vtanh.pop %v4245
      %v4993 = vtanh.pop %v4436
      %v4994 = vtanh.pop %v4438
      %v4995 = vtanh.pop %v4629
      %v4996 = vtanh.pop %v4631
      %v4997 = vtanh.pop %v4801
      %v4998 = vtanh.pop %v4249
      %v4999 = vtanh.pop %v4251
      %v5000 = vtanh.pop %v4442
      %v5001 = vtanh.pop %v4444
      %v5002 = vtanh.pop %v4635
      %v5003 = vtanh.pop %v4637
      %v5004 = vtanh.pop %v4806
      %v5005 = vtanh.pop %v4253
      %v5006 = vtanh.pop %v4255
      %v5007 = vtanh.pop %v4446
      %v5008 = vtanh.pop %v4448
      %v5009 = vtanh.pop %v4639
      %v5010 = vtanh.pop %v4641
      %v5011 = vtanh.pop %v4809
      %v5012 = vtanh.pop %v4259
      %v5013 = vtanh.pop %v4261
      %v5014 = vtanh.pop %v4452
      %v5015 = vtanh.pop %v4454
      %v5016 = vtanh.pop %v4645
      %v5017 = vtanh.pop %v4647
      %v5018 = vtanh.pop %v4814
      %v5019 = vtanh.pop %v4263
      %v5020 = vtanh.pop %v4265
      %v5021 = vtanh.pop %v4456
      %v5022 = vtanh.pop %v4458
      %v5023 = vtanh.pop %v4649
      %v5024 = vtanh.pop %v4651
      %v5025 = vtanh.pop %v4817
      %v5026 = vtanh.pop %v4269
      %v5027 = vtanh.pop %v4271
      %v5028 = vtanh.pop %v4462
      %v5029 = vtanh.pop %v4464
      %v5030 = vtanh.pop %v4655
      %v5031 = vtanh.pop %v4657
      %v5032 = vtanh.pop %v4822
      %v5033 = vtanh.pop %v4273
      %v5034 = vtanh.pop %v4275
      %v5035 = vtanh.pop %v4466
      %v5036 = vtanh.pop %v4468
      %v5037 = vtanh.pop %v4659
      %v5038 = vtanh.pop %v4661
      %v5039 = vtanh.pop %v4825
      %v5040 = vtanh.pop %v4279
      %v5041 = vtanh.pop %v4281
      %v5042 = vtanh.pop %v4472
      %v5043 = vtanh.pop %v4474
      %v5044 = vtanh.pop %v4665
      %v5045 = vtanh.pop %v4667
      %v5046 = vtanh.pop %v4830
      %v5047 = vtanh.pop %v4283
      %v5048 = vtanh.pop %v4285
      %v5049 = vtanh.pop %v4476
      %v5050 = vtanh.pop %v4478
      %v5051 = vtanh.pop %v4669
      %v5052 = vtanh.pop %v4671
      %v5053 = vtanh.pop %v4833
      %v5054 = vtanh.pop %v4289
      %v5055 = vtanh.pop %v4291
      %v5056 = vtanh.pop %v4482
      %v5057 = vtanh.pop %v4484
      %v5058 = vtanh.pop %v4675
      %v5059 = vtanh.pop %v4677
      %v5060 = vtanh.pop %v4838
      %v5061 = vtanh.pop %v4293
      %v5062 = vtanh.pop %v4295
      %v5063 = vtanh.pop %v4486
      %v5064 = vtanh.pop %v4488
      %v5065 = vtanh.pop %v4679
      %v5066 = vtanh.pop %v4681
      %v5067 = vtanh.pop %v4841
      %5068 = vst [vmem:[%s555] sm:$0xff] %v4844
      %5069 = vst [vmem:[%s555 + $0x8] sm:$0xff] %v4845
      %5070 = vst [vmem:[%s555 + $0x10] sm:$0xff] %v4846
      %5071 = vst [vmem:[%s555 + $0x18] sm:$0xff] %v4847
      %5072 = vst [vmem:[%s555 + $0x20] sm:$0xff] %v4848
      %5073 = vst [vmem:[%s555 + $0x28] sm:$0xff] %v4849
      %5074 = vst.msk [vmem:[%s555 + $0x30] sm:$0xff] %vm1293, %v4850
      %5075 = vst [vmem:[%s555 + $0x38] sm:$0xff] %v4851
      %5076 = vst [vmem:[%s555 + $0x40] sm:$0xff] %v4852
      %5077 = vst [vmem:[%s555 + $0x48] sm:$0xff] %v4853
      %5078 = vst [vmem:[%s555 + $0x50] sm:$0xff] %v4854
      %5079 = vst [vmem:[%s555 + $0x58] sm:$0xff] %v4855
      %5080 = vst [vmem:[%s555 + $0x60] sm:$0xff] %v4856
      %5081 = vst.msk [vmem:[%s555 + $0x68] sm:$0xff] %vm1293, %v4857
      %5082 = vst [vmem:[%s555 + $0x70] sm:$0xff] %v4858
      %5083 = vst [vmem:[%s555 + $0x78] sm:$0xff] %v4859
      %5084 = vst [vmem:[%s555 + $0x80] sm:$0xff] %v4860
      %5085 = vst [vmem:[%s555 + $0x88] sm:$0xff] %v4861
      %5086 = vst [vmem:[%s555 + $0x90] sm:$0xff] %v4862
      %5087 = vst [vmem:[%s555 + $0x98] sm:$0xff] %v4863
      %5088 = vst.msk [vmem:[%s555 + $0xa0] sm:$0xff] %vm1293, %v4864
      %5089 = vst [vmem:[%s555 + $0xa8] sm:$0xff] %v4865
      %5090 = vst [vmem:[%s555 + $0xb0] sm:$0xff] %v4866
      %5091 = vst [vmem:[%s555 + $0xb8] sm:$0xff] %v4867
      %5092 = vst [vmem:[%s555 + $0xc0] sm:$0xff] %v4868
      %5093 = vst [vmem:[%s555 + $0xc8] sm:$0xff] %v4869
      %5094 = vst [vmem:[%s555 + $0xd0] sm:$0xff] %v4870
      %5095 = vst.msk [vmem:[%s555 + $0xd8] sm:$0xff] %vm1293, %v4871
      %5096 = vst [vmem:[%s555 + $0xe0] sm:$0xff] %v4872
      %5097 = vst [vmem:[%s555 + $0xe8] sm:$0xff] %v4873
      %5098 = vst [vmem:[%s555 + $0xf0] sm:$0xff] %v4874
      %5099 = vst [vmem:[%s555 + $0xf8] sm:$0xff] %v4875
      %5100 = vst [vmem:[%s555 + $0x100] sm:$0xff] %v4876
      %5101 = vst [vmem:[%s555 + $0x108] sm:$0xff] %v4877
      %5102 = vst.msk [vmem:[%s555 + $0x110] sm:$0xff] %vm1293, %v4878
      %5103 = vst [vmem:[%s555 + $0x118] sm:$0xff] %v4879
      %5104 = vst [vmem:[%s555 + $0x120] sm:$0xff] %v4880
      %5105 = vst [vmem:[%s555 + $0x128] sm:$0xff] %v4881
      %5106 = vst [vmem:[%s555 + $0x130] sm:$0xff] %v4882
      %5107 = vst [vmem:[%s555 + $0x138] sm:$0xff] %v4883
      %5108 = vst [vmem:[%s555 + $0x140] sm:$0xff] %v4884
      %5109 = vst.msk [vmem:[%s555 + $0x148] sm:$0xff] %vm1293, %v4885
      %5110 = vst [vmem:[%s555 + $0x150] sm:$0xff] %v4886
      %5111 = vst [vmem:[%s555 + $0x158] sm:$0xff] %v4887
      %5112 = vst [vmem:[%s555 + $0x160] sm:$0xff] %v4888
      %5113 = vst [vmem:[%s555 + $0x168] sm:$0xff] %v4889
      %5114 = vst [vmem:[%s555 + $0x170] sm:$0xff] %v4890
      %5115 = vst [vmem:[%s555 + $0x178] sm:$0xff] %v4891
      %5116 = vst.msk [vmem:[%s555 + $0x180] sm:$0xff] %vm1293, %v4892
      %5117 = vst [vmem:[%s555 + $0x188] sm:$0xff] %v4893
      %5118 = vst [vmem:[%s555 + $0x190] sm:$0xff] %v4894
      %5119 = vst [vmem:[%s555 + $0x198] sm:$0xff] %v4895
      %5120 = vst [vmem:[%s555 + $0x1a0] sm:$0xff] %v4896
      %5121 = vst [vmem:[%s555 + $0x1a8] sm:$0xff] %v4897
      %5122 = vst [vmem:[%s555 + $0x1b0] sm:$0xff] %v4898
      %5123 = vst.msk [vmem:[%s555 + $0x1b8] sm:$0xff] %vm1293, %v4899
      %5124 = vst [vmem:[%s555 + $0x1c0] sm:$0xff] %v4900
      %5125 = vst [vmem:[%s555 + $0x1c8] sm:$0xff] %v4901
      %5126 = vst [vmem:[%s555 + $0x1d0] sm:$0xff] %v4902
      %5127 = vst [vmem:[%s555 + $0x1d8] sm:$0xff] %v4903
      %5128 = vst [vmem:[%s555 + $0x1e0] sm:$0xff] %v4904
      %5129 = vst [vmem:[%s555 + $0x1e8] sm:$0xff] %v4905
      %5130 = vst.msk [vmem:[%s555 + $0x1f0] sm:$0xff] %vm1293, %v4906
      %5131 = vst [vmem:[%s555 + $0x1f8] sm:$0xff] %v4907
      %5132 = vst [vmem:[%s555 + $0x200] sm:$0xff] %v4908
      %5133 = vst [vmem:[%s555 + $0x208] sm:$0xff] %v4909
      %5134 = vst [vmem:[%s555 + $0x210] sm:$0xff] %v4910
      %5135 = vst [vmem:[%s555 + $0x218] sm:$0xff] %v4911
      %5136 = vst [vmem:[%s555 + $0x220] sm:$0xff] %v4912
      %5137 = vst.msk [vmem:[%s555 + $0x228] sm:$0xff] %vm1293, %v4913
      %5138 = vst [vmem:[%s555 + $0x230] sm:$0xff] %v4914
      %5139 = vst [vmem:[%s555 + $0x238] sm:$0xff] %v4915
      %5140 = vst [vmem:[%s555 + $0x240] sm:$0xff] %v4916
      %5141 = vst [vmem:[%s555 + $0x248] sm:$0xff] %v4917
      %5142 = vst [vmem:[%s555 + $0x250] sm:$0xff] %v4918
      %5143 = vst [vmem:[%s555 + $0x258] sm:$0xff] %v4919
      %5144 = vst.msk [vmem:[%s555 + $0x260] sm:$0xff] %vm1293, %v4920
      %5145 = vst [vmem:[%s555 + $0x268] sm:$0xff] %v4921
      %5146 = vst [vmem:[%s555 + $0x270] sm:$0xff] %v4922
      %5147 = vst [vmem:[%s555 + $0x278] sm:$0xff] %v4923
      %5148 = vst [vmem:[%s555 + $0x280] sm:$0xff] %v4924
      %5149 = vst [vmem:[%s555 + $0x288] sm:$0xff] %v4925
      %5150 = vst [vmem:[%s555 + $0x290] sm:$0xff] %v4926
      %5151 = vst.msk [vmem:[%s555 + $0x298] sm:$0xff] %vm1293, %v4927
      %5152 = vst [vmem:[%s555 + $0x2a0] sm:$0xff] %v4928
      %5153 = vst [vmem:[%s555 + $0x2a8] sm:$0xff] %v4929
      %5154 = vst [vmem:[%s555 + $0x2b0] sm:$0xff] %v4930
      %5155 = vst [vmem:[%s555 + $0x2b8] sm:$0xff] %v4931
      %5156 = vst [vmem:[%s555 + $0x2c0] sm:$0xff] %v4932
      %5157 = vst [vmem:[%s555 + $0x2c8] sm:$0xff] %v4933
      %5158 = vst.msk [vmem:[%s555 + $0x2d0] sm:$0xff] %vm1293, %v4934
      %5159 = vst [vmem:[%s555 + $0x2d8] sm:$0xff] %v4935
      %5160 = vst [vmem:[%s555 + $0x2e0] sm:$0xff] %v4936
      %5161 = vst [vmem:[%s555 + $0x2e8] sm:$0xff] %v4937
      %5162 = vst [vmem:[%s555 + $0x2f0] sm:$0xff] %v4938
      %5163 = vst [vmem:[%s555 + $0x2f8] sm:$0xff] %v4939
      %5164 = vst [vmem:[%s555 + $0x300] sm:$0xff] %v4940
      %5165 = vst.msk [vmem:[%s555 + $0x308] sm:$0xff] %vm1293, %v4941
      %5166 = vst [vmem:[%s555 + $0x310] sm:$0xff] %v4942
      %5167 = vst [vmem:[%s555 + $0x318] sm:$0xff] %v4943
      %5168 = vst [vmem:[%s555 + $0x320] sm:$0xff] %v4944
      %5169 = vst [vmem:[%s555 + $0x328] sm:$0xff] %v4945
      %5170 = vst [vmem:[%s555 + $0x330] sm:$0xff] %v4946
      %5171 = vst [vmem:[%s555 + $0x338] sm:$0xff] %v4947
      %5172 = vst.msk [vmem:[%s555 + $0x340] sm:$0xff] %vm1293, %v4948
      %5173 = vst [vmem:[%s555 + $0x348] sm:$0xff] %v4949
      %5174 = vst [vmem:[%s555 + $0x350] sm:$0xff] %v4950
      %5175 = vst [vmem:[%s555 + $0x358] sm:$0xff] %v4951
      %5176 = vst [vmem:[%s555 + $0x360] sm:$0xff] %v4952
      %5177 = vst [vmem:[%s555 + $0x368] sm:$0xff] %v4953
      %5178 = vst [vmem:[%s555 + $0x370] sm:$0xff] %v4954
      %5179 = vst.msk [vmem:[%s555 + $0x378] sm:$0xff] %vm1293, %v4955
      %5180 = vst [vmem:[%s555 + $0x380] sm:$0xff] %v4956
      %5181 = vst [vmem:[%s555 + $0x388] sm:$0xff] %v4957
      %5182 = vst [vmem:[%s555 + $0x390] sm:$0xff] %v4958
      %5183 = vst [vmem:[%s555 + $0x398] sm:$0xff] %v4959
      %5184 = vst [vmem:[%s555 + $0x3a0] sm:$0xff] %v4960
      %5185 = vst [vmem:[%s555 + $0x3a8] sm:$0xff] %v4961
      %5186 = vst.msk [vmem:[%s555 + $0x3b0] sm:$0xff] %vm1293, %v4962
      %5187 = vst [vmem:[%s555 + $0x3b8] sm:$0xff] %v4963
      %5188 = vst [vmem:[%s555 + $0x3c0] sm:$0xff] %v4964
      %5189 = vst [vmem:[%s555 + $0x3c8] sm:$0xff] %v4965
      %5190 = vst [vmem:[%s555 + $0x3d0] sm:$0xff] %v4966
      %5191 = vst [vmem:[%s555 + $0x3d8] sm:$0xff] %v4967
      %5192 = vst [vmem:[%s555 + $0x3e0] sm:$0xff] %v4968
      %5193 = vst.msk [vmem:[%s555 + $0x3e8] sm:$0xff] %vm1293, %v4969
      %5194 = vst [vmem:[%s555 + $0x3f0] sm:$0xff] %v4970
      %5195 = vst [vmem:[%s555 + $0x3f8] sm:$0xff] %v4971
      %5196 = vst [vmem:[%s555 + $0x400] sm:$0xff] %v4972
      %5197 = vst [vmem:[%s555 + $0x408] sm:$0xff] %v4973
      %5198 = vst [vmem:[%s555 + $0x410] sm:$0xff] %v4974
      %5199 = vst [vmem:[%s555 + $0x418] sm:$0xff] %v4975
      %5200 = vst.msk [vmem:[%s555 + $0x420] sm:$0xff] %vm1293, %v4976
      %5201 = vst [vmem:[%s555 + $0x428] sm:$0xff] %v4977
      %5202 = vst [vmem:[%s555 + $0x430] sm:$0xff] %v4978
      %5203 = vst [vmem:[%s555 + $0x438] sm:$0xff] %v4979
      %5204 = vst [vmem:[%s555 + $0x440] sm:$0xff] %v4980
      %5205 = vst [vmem:[%s555 + $0x448] sm:$0xff] %v4981
      %5206 = vst [vmem:[%s555 + $0x450] sm:$0xff] %v4982
      %5207 = vst.msk [vmem:[%s555 + $0x458] sm:$0xff] %vm1293, %v4983
      %5208 = vst [vmem:[%s555 + $0x460] sm:$0xff] %v4984
      %5209 = vst [vmem:[%s555 + $0x468] sm:$0xff] %v4985
      %5210 = vst [vmem:[%s555 + $0x470] sm:$0xff] %v4986
      %5211 = vst [vmem:[%s555 + $0x478] sm:$0xff] %v4987
      %5212 = vst [vmem:[%s555 + $0x480] sm:$0xff] %v4988
      %5213 = vst [vmem:[%s555 + $0x488] sm:$0xff] %v4989
      %5214 = vst.msk [vmem:[%s555 + $0x490] sm:$0xff] %vm1293, %v4990
      %5215 = vst [vmem:[%s555 + $0x498] sm:$0xff] %v4991
      %5216 = vst [vmem:[%s555 + $0x4a0] sm:$0xff] %v4992
      %5217 = vst [vmem:[%s555 + $0x4a8] sm:$0xff] %v4993
      %5218 = vst [vmem:[%s555 + $0x4b0] sm:$0xff] %v4994
      %5219 = vst [vmem:[%s555 + $0x4b8] sm:$0xff] %v4995
      %5220 = vst [vmem:[%s555 + $0x4c0] sm:$0xff] %v4996
      %5221 = vst.msk [vmem:[%s555 + $0x4c8] sm:$0xff] %vm1293, %v4997
      %5222 = vst [vmem:[%s555 + $0x4d0] sm:$0xff] %v4998
      %5223 = vst [vmem:[%s555 + $0x4d8] sm:$0xff] %v4999
      %5224 = vst [vmem:[%s555 + $0x4e0] sm:$0xff] %v5000
      %5225 = vst [vmem:[%s555 + $0x4e8] sm:$0xff] %v5001
      %5226 = vst [vmem:[%s555 + $0x4f0] sm:$0xff] %v5002
      %5227 = vst [vmem:[%s555 + $0x4f8] sm:$0xff] %v5003
      %5228 = vst.msk [vmem:[%s555 + $0x500] sm:$0xff] %vm1293, %v5004
      %5229 = vst [vmem:[%s555 + $0x508] sm:$0xff] %v5005
      %5230 = vst [vmem:[%s555 + $0x510] sm:$0xff] %v5006
      %5231 = vst [vmem:[%s555 + $0x518] sm:$0xff] %v5007
      %5232 = vst [vmem:[%s555 + $0x520] sm:$0xff] %v5008
      %5233 = vst [vmem:[%s555 + $0x528] sm:$0xff] %v5009
      %5234 = vst [vmem:[%s555 + $0x530] sm:$0xff] %v5010
      %5235 = vst.msk [vmem:[%s555 + $0x538] sm:$0xff] %vm1293, %v5011
      %5236 = vst [vmem:[%s555 + $0x540] sm:$0xff] %v5012
      %5237 = vst [vmem:[%s555 + $0x548] sm:$0xff] %v5013
      %5238 = vst [vmem:[%s555 + $0x550] sm:$0xff] %v5014
      %5239 = vst [vmem:[%s555 + $0x558] sm:$0xff] %v5015
      %5240 = vst [vmem:[%s555 + $0x560] sm:$0xff] %v5016
      %5241 = vst [vmem:[%s555 + $0x568] sm:$0xff] %v5017
      %5242 = vst.msk [vmem:[%s555 + $0x570] sm:$0xff] %vm1293, %v5018
      %5243 = vst [vmem:[%s555 + $0x578] sm:$0xff] %v5019
      %5244 = vst [vmem:[%s555 + $0x580] sm:$0xff] %v5020
      %5245 = vst [vmem:[%s555 + $0x588] sm:$0xff] %v5021
      %5246 = vst [vmem:[%s555 + $0x590] sm:$0xff] %v5022
      %5247 = vst [vmem:[%s555 + $0x598] sm:$0xff] %v5023
      %5248 = vst [vmem:[%s555 + $0x5a0] sm:$0xff] %v5024
      %5249 = vst.msk [vmem:[%s555 + $0x5a8] sm:$0xff] %vm1293, %v5025
      %5250 = vst [vmem:[%s555 + $0x5b0] sm:$0xff] %v5026
      %5251 = vst [vmem:[%s555 + $0x5b8] sm:$0xff] %v5027
      %5252 = vst [vmem:[%s555 + $0x5c0] sm:$0xff] %v5028
      %5253 = vst [vmem:[%s555 + $0x5c8] sm:$0xff] %v5029
      %5254 = vst [vmem:[%s555 + $0x5d0] sm:$0xff] %v5030
      %5255 = vst [vmem:[%s555 + $0x5d8] sm:$0xff] %v5031
      %5256 = vst.msk [vmem:[%s555 + $0x5e0] sm:$0xff] %vm1293, %v5032
      %5257 = vst [vmem:[%s555 + $0x5e8] sm:$0xff] %v5033
      %5258 = vst [vmem:[%s555 + $0x5f0] sm:$0xff] %v5034
      %5259 = vst [vmem:[%s555 + $0x5f8] sm:$0xff] %v5035
      %5260 = vst [vmem:[%s555 + $0x600] sm:$0xff] %v5036
      %5261 = vst [vmem:[%s555 + $0x608] sm:$0xff] %v5037
      %5262 = vst [vmem:[%s555 + $0x610] sm:$0xff] %v5038
      %5263 = vst.msk [vmem:[%s555 + $0x618] sm:$0xff] %vm1293, %v5039
      %5264 = vst [vmem:[%s555 + $0x620] sm:$0xff] %v5040
      %5265 = vst [vmem:[%s555 + $0x628] sm:$0xff] %v5041
      %5266 = vst [vmem:[%s555 + $0x630] sm:$0xff] %v5042
      %5267 = vst [vmem:[%s555 + $0x638] sm:$0xff] %v5043
      %5268 = vst [vmem:[%s555 + $0x640] sm:$0xff] %v5044
      %5269 = vst [vmem:[%s555 + $0x648] sm:$0xff] %v5045
      %5270 = vst.msk [vmem:[%s555 + $0x650] sm:$0xff] %vm1293, %v5046
      %5271 = vst [vmem:[%s555 + $0x658] sm:$0xff] %v5047
      %5272 = vst [vmem:[%s555 + $0x660] sm:$0xff] %v5048
      %5273 = vst [vmem:[%s555 + $0x668] sm:$0xff] %v5049
      %5274 = vst [vmem:[%s555 + $0x670] sm:$0xff] %v5050
      %5275 = vst [vmem:[%s555 + $0x678] sm:$0xff] %v5051
      %5276 = vst [vmem:[%s555 + $0x680] sm:$0xff] %v5052
      %5277 = vst.msk [vmem:[%s555 + $0x688] sm:$0xff] %vm1293, %v5053
      %5278 = vst [vmem:[%s555 + $0x690] sm:$0xff] %v5054
      %5279 = vst [vmem:[%s555 + $0x698] sm:$0xff] %v5055
      %5280 = vst [vmem:[%s555 + $0x6a0] sm:$0xff] %v5056
      %5281 = vst [vmem:[%s555 + $0x6a8] sm:$0xff] %v5057
      %5282 = vst [vmem:[%s555 + $0x6b0] sm:$0xff] %v5058
      %5283 = vst [vmem:[%s555 + $0x6b8] sm:$0xff] %v5059
      %5284 = vst.msk [vmem:[%s555 + $0x6c0] sm:$0xff] %vm1293, %v5060
      %5285 = vst [vmem:[%s555 + $0x6c8] sm:$0xff] %v5061
      %5286 = vst [vmem:[%s555 + $0x6d0] sm:$0xff] %v5062
      %5287 = vst [vmem:[%s555 + $0x6d8] sm:$0xff] %v5063
      %5288 = vst [vmem:[%s555 + $0x6e0] sm:$0xff] %v5064
      %5289 = vst [vmem:[%s555 + $0x6e8] sm:$0xff] %v5065
      %5290 = vst [vmem:[%s555 + $0x6f0] sm:$0xff] %v5066
      %5291 = vst.msk [vmem:[%s555 + $0x6f8] sm:$0xff] %vm1293, %v5067
      %s5292 = smul.u32 32, %s28
      %p5293 = scmp.lt.s32.totalorder %s5292, 127
      %s5294 = scalar_select %p5293, %s5292, 127
      %s5295 = smul.addr %s5294, 7
      %s5296 = smul.addr %s5295, 8
      %s5297 = scalar_lea.vmem %s17, %s5296
      // Predicated region
      $region89: #{tpu_custom_call.1} parent=87 // pred_check
        %p5298 = pneg %p408
      $region90: #{tpu_custom_call.1} parent=87 // pred_check_branch
        %5300 = sbr.rel (%p5298) target = $region92
      $region91: #{tpu_custom_call.1} parent=87 // pred_region
        %s5301 = smul.u32 32, %s28
      $region92: #{tpu_custom_call.1} parent=87 // pred_fallthru
        _
    $region88: #{tpu_custom_call.1} parent=5 // pred_fallthru
      _
    %p5302 = scmp.le.s32.totalorder 2, %s23
    // Predicated region
    $region93: #{tpu_custom_call.1} parent=5 // pred_check
      %p5303 = pneg %p5302
    $region94: #{tpu_custom_call.1} parent=5 // pred_check_branch
      %5305 = sbr.rel (%p5303) target = $region96
    $region95: #{tpu_custom_call.1} parent=5 // pred_region
      %s5306 = ssub.s32 %s23, 2
      // Predicated region
      $region97: #{tpu_custom_call.1} parent=95 // pred_check
        %p5307 = pneg %p414
      $region98: #{tpu_custom_call.1} parent=95 // pred_check_branch
        %5309 = sbr.rel (%p5307) target = $region100
      $region99: #{tpu_custom_call.1} parent=95 // pred_region
        %s5310 = smul.u32 32, %s29
        %p5311 = scmp.lt.s32.totalorder %s5310, 127
        %s5312 = scalar_select %p5311, %s5310, 127
        %s5313 = smul.addr %s5312, 7
        %s5314 = smul.addr %s5313, 8
        %s5315 = scalar_lea.vmem %s17, %s5314
      $region100: #{tpu_custom_call.1} parent=95 // pred_fallthru
        _
    $region96: #{tpu_custom_call.1} parent=5 // pred_fallthru
      _
  $region6: #{tpu_custom_call.1} parent=0 // loop_footer
    %s27 = sadd.s32 1, %s23
  $region7: #{tpu_custom_call.1} parent=0 // loop_footer_branch
    %22 = sbr.rel target = $region3
  $region8: #{tpu_custom_call.1} parent=0 // loop_exit
    _

// kernel: tpu_custom_call.1
$region0: #{tpu_custom_call.1}
  #allocation0 [shape = 'u32[]', space=smem, size = 0x4, offset = 0x4, fixed_abs, tag = 'smem constant byte address 0x4 - core index']
  #allocation1 [shape = 'u32[144,128]{1,0:T(1,128)}', space=vmem, size = 0x12000, scoped, tag = 'internal scratch']
  %s0 = inlined_call_operand.vmem [shape: f32[1024,784], index: 0, kind: input, shape index: {}]
  %s1 = inlined_call_operand.vmem [shape: bf16[784,128], index: 1, kind: input, shape index: {}]
  %s2 = inlined_call_operand.vmem [shape: f32[1,128], index: 2, kind: input, shape index: {}]
  %s3 = inlined_call_operand.vmem [shape: bf16[128,64], index: 3, kind: input, shape index: {}]
  %s4 = inlined_call_operand.vmem [shape: f32[1,64], index: 4, kind: input, shape index: {}]
  %s5 = inlined_call_operand.vmem [shape: bf16[64,128], index: 5, kind: input, shape index: {}]
  %s6 = inlined_call_operand.vmem [shape: f32[1,128], index: 6, kind: input, shape index: {}]
  %s7 = inlined_call_operand.vmem [shape: bf16[128,128], index: 7, kind: input, shape index: {}]
  %s8 = inlined_call_operand.vmem [shape: f32[1,128], index: 8, kind: input, shape index: {}]
  %s9 = inlined_call_operand.vmem [shape: bf16[128,128], index: 9, kind: input, shape index: {}]
  %s10 = inlined_call_operand.vmem [shape: f32[1,128], index: 10, kind: input, shape index: {}]
  %s11 = inlined_call_operand.vmem [shape: bf16[128,64], index: 11, kind: input, shape index: {}]
  %s12 = inlined_call_operand.vmem [shape: f32[1,64], index: 12, kind: input, shape index: {}]
  %s13 = inlined_call_operand.vmem [shape: bf16[64,128], index: 13, kind: input, shape index: {}]
  %s14 = inlined_call_operand.vmem [shape: f32[1,128], index: 14, kind: input, shape index: {}]
  %s15 = inlined_call_operand.vmem [shape: bf16[128,784], index: 15, kind: input, shape index: {}]
  %s16 = inlined_call_operand.vmem [shape: f32[1,784], index: 16, kind: input, shape index: {}]
  %s17 = inlined_call_operand.vmem [shape: f32[1024,784], index: 17, kind: output, shape index: {}]
  %s18 = sld [smem:[#allocation0]]
  $region101: #{tpu_custom_call.1} parent=0
    _
  %s20 = ssub.s32 1, %s18
  %s21 = scalar_select 0, %s20, %s18
  loop: start=0, step=1, limit=6
  $region2: #{tpu_custom_call.1} parent=0 // loop_pre_header
    _
  $region3: #{tpu_custom_call.1} parent=0 // loop_header
    %s23 = sphi 0, %s27
    %p24 = scmp.ge.s32.totalorder %s23, 6
    %s33 = sphi 0, %s35
    %s36 = sphi 0, %s33
    %s37 = sphi 0, %s36
    %s53 = sphi 0, %s37
    %s57 = sphi 0, %s57
    %s59 = sphi 0, %s57
    %s60 = sphi 0, %s59
    %s74 = sphi 0, %s60
    %s78 = sphi 0, %s78
    %s80 = sphi 0, %s78
    %s81 = sphi 0, %s80
    %s95 = sphi 0, %s81
    %s99 = sphi 0, %s99
    %s101 = sphi 0, %s99
    %s102 = sphi 0, %s101
    %s116 = sphi 0, %s102
    %s120 = sphi 0, %s120
    %s122 = sphi 0, %s120
    %s123 = sphi 0, %s122
    %s137 = sphi 0, %s123
    %s141 = sphi 0, %s141
    %s143 = sphi 0, %s141
    %s144 = sphi 0, %s143
    %s158 = sphi 0, %s144
    %s162 = sphi 0, %s162
    %s164 = sphi 0, %s162
    %s165 = sphi 0, %s164
    %s179 = sphi 0, %s165
    %s183 = sphi 0, %s183
    %s185 = sphi 0, %s183
    %s186 = sphi 0, %s185
    %s200 = sphi 0, %s186
    %s204 = sphi 0, %s204
    %s206 = sphi 0, %s204
    %s207 = sphi 0, %s206
    %s221 = sphi 0, %s207
    %s225 = sphi 0, %s225
    %s227 = sphi 0, %s225
    %s228 = sphi 0, %s227
    %s242 = sphi 0, %s228
    %s246 = sphi 0, %s246
    %s248 = sphi 0, %s246
    %s249 = sphi 0, %s248
    %s263 = sphi 0, %s249
    %s267 = sphi 0, %s267
    %s269 = sphi 0, %s267
    %s270 = sphi 0, %s269
    %s284 = sphi 0, %s270
    %s288 = sphi 0, %s288
    %s290 = sphi 0, %s288
    %s291 = sphi 0, %s290
    %s305 = sphi 0, %s291
    %s309 = sphi 0, %s309
    %s311 = sphi 0, %s309
    %s312 = sphi 0, %s311
    %s326 = sphi 0, %s312
    %s330 = sphi 0, %s330
    %s332 = sphi 0, %s330
    %s333 = sphi 0, %s332
    %s347 = sphi 0, %s333
    %s351 = sphi 0, %s351
    %s353 = sphi 0, %s351
    %s354 = sphi 0, %s353
    %s368 = sphi 0, %s354
    %s372 = sphi 0, %s372
    %s374 = sphi 0, %s372
    %s375 = sphi 0, %s374
    %s389 = sphi 0, %s375
    %s395 = sphi 0, %s397
    %s398 = sphi 0, %s395
    %s399 = sphi 0, %s398
    %s415 = sphi 0, %s399
  $region4: #{tpu_custom_call.1} parent=0 // loop_header_branch
    %26 = sbr.rel (%p24) target = $region8
  $region5: #{tpu_custom_call.1} parent=0 // loop_body
    %s28 = ssub.s32 %s23, 1
    %s29 = ssub.s32 %s23, 2
    %s30 = sadd.s32 %s23, 1
    %s31 = ssub.s32 %s23, %s30
    %p32 = scmp.eq.s32.totalorder %s31, 0
    %s34 = sadd.s32 %s33, 1
    %s35 = scalar_select %p32, %s33, %s34
    %p38 = pneg %p32
    %p39 = scmp.eq.s32.totalorder %s23, 3
    %p40 = por %p38, %p39
    %p41 = scmp.ne.s32.totalorder %s33, %s36
    %p42 = scmp.eq.s32.totalorder %s23, 0
    %p43 = por %p41, %p42
    %p44 = scmp.ne.s32.totalorder %s33, %s36
    %p45 = scmp.eq.s32.totalorder %s28, 3
    %p46 = por %p44, %p45
    %p47 = scmp.ne.s32.totalorder %s36, %s37
    %p48 = scmp.eq.s32.totalorder %s28, 0
    %p49 = por %p47, %p48
    %p50 = scmp.ne.s32.totalorder %s36, %s37
    %p51 = scmp.eq.s32.totalorder %s29, 3
    %p52 = por %p50, %p51
    %p54 = scmp.ne.s32.totalorder %s37, %s53
    %p55 = scmp.eq.s32.totalorder %s29, 0
    %p56 = por %p54, %p55
    %s58 = sadd.s32 %s57, 1
    %p61 = scmp.eq.s32.totalorder %s23, 3
    %p62 = scmp.ne.s32.totalorder %s57, %s59
    %p63 = scmp.eq.s32.totalorder %s23, 0
    %p64 = por %p62, %p63
    %p65 = scmp.ne.s32.totalorder %s57, %s59
    %p66 = scmp.eq.s32.totalorder %s28, 3
    %p67 = por %p65, %p66
    %p68 = scmp.ne.s32.totalorder %s59, %s60
    %p69 = scmp.eq.s32.totalorder %s28, 0
    %p70 = por %p68, %p69
    %p71 = scmp.ne.s32.totalorder %s59, %s60
    %p72 = scmp.eq.s32.totalorder %s29, 3
    %p73 = por %p71, %p72
    %p75 = scmp.ne.s32.totalorder %s60, %s74
    %p76 = scmp.eq.s32.totalorder %s29, 0
    %p77 = por %p75, %p76
    %s79 = sadd.s32 %s78, 1
    %p82 = scmp.eq.s32.totalorder %s23, 3
    %p83 = scmp.ne.s32.totalorder %s78, %s80
    %p84 = scmp.eq.s32.totalorder %s23, 0
    %p85 = por %p83, %p84
    %p86 = scmp.ne.s32.totalorder %s78, %s80
    %p87 = scmp.eq.s32.totalorder %s28, 3
    %p88 = por %p86, %p87
    %p89 = scmp.ne.s32.totalorder %s80, %s81
    %p90 = scmp.eq.s32.totalorder %s28, 0
    %p91 = por %p89, %p90
    %p92 = scmp.ne.s32.totalorder %s80, %s81
    %p93 = scmp.eq.s32.totalorder %s29, 3
    %p94 = por %p92, %p93
    %p96 = scmp.ne.s32.totalorder %s81, %s95
    %p97 = scmp.eq.s32.totalorder %s29, 0
    %p98 = por %p96, %p97
    %s100 = sadd.s32 %s99, 1
    %p103 = scmp.eq.s32.totalorder %s23, 3
    %p104 = scmp.ne.s32.totalorder %s99, %s101
    %p105 = scmp.eq.s32.totalorder %s23, 0
    %p106 = por %p104, %p105
    %p107 = scmp.ne.s32.totalorder %s99, %s101
    %p108 = scmp.eq.s32.totalorder %s28, 3
    %p109 = por %p107, %p108
    %p110 = scmp.ne.s32.totalorder %s101, %s102
    %p111 = scmp.eq.s32.totalorder %s28, 0
    %p112 = por %p110, %p111
    %p113 = scmp.ne.s32.totalorder %s101, %s102
    %p114 = scmp.eq.s32.totalorder %s29, 3
    %p115 = por %p113, %p114
    %p117 = scmp.ne.s32.totalorder %s102, %s116
    %p118 = scmp.eq.s32.totalorder %s29, 0
    %p119 = por %p117, %p118
    %s121 = sadd.s32 %s120, 1
    %p124 = scmp.eq.s32.totalorder %s23, 3
    %p125 = scmp.ne.s32.totalorder %s120, %s122
    %p126 = scmp.eq.s32.totalorder %s23, 0
    %p127 = por %p125, %p126
    %p128 = scmp.ne.s32.totalorder %s120, %s122
    %p129 = scmp.eq.s32.totalorder %s28, 3
    %p130 = por %p128, %p129
    %p131 = scmp.ne.s32.totalorder %s122, %s123
    %p132 = scmp.eq.s32.totalorder %s28, 0
    %p133 = por %p131, %p132
    %p134 = scmp.ne.s32.totalorder %s122, %s123
    %p135 = scmp.eq.s32.totalorder %s29, 3
    %p136 = por %p134, %p135
    %p138 = scmp.ne.s32.totalorder %s123, %s137
    %p139 = scmp.eq.s32.totalorder %s29, 0
    %p140 = por %p138, %p139
    %s142 = sadd.s32 %s141, 1
    %p145 = scmp.eq.s32.totalorder %s23, 3
    %p146 = scmp.ne.s32.totalorder %s141, %s143
    %p147 = scmp.eq.s32.totalorder %s23, 0
    %p148 = por %p146, %p147
    %p149 = scmp.ne.s32.totalorder %s141, %s143
    %p150 = scmp.eq.s32.totalorder %s28, 3
    %p151 = por %p149, %p150
    %p152 = scmp.ne.s32.totalorder %s143, %s144
    %p153 = scmp.eq.s32.totalorder %s28, 0
    %p154 = por %p152, %p153
    %p155 = scmp.ne.s32.totalorder %s143, %s144
    %p156 = scmp.eq.s32.totalorder %s29, 3
    %p157 = por %p155, %p156
    %p159 = scmp.ne.s32.totalorder %s144, %s158
    %p160 = scmp.eq.s32.totalorder %s29, 0
    %p161 = por %p159, %p160
    %s163 = sadd.s32 %s162, 1
    %p166 = scmp.eq.s32.totalorder %s23, 3
    %p167 = scmp.ne.s32.totalorder %s162, %s164
    %p168 = scmp.eq.s32.totalorder %s23, 0
    %p169 = por %p167, %p168
    %p170 = scmp.ne.s32.totalorder %s162, %s164
    %p171 = scmp.eq.s32.totalorder %s28, 3
    %p172 = por %p170, %p171
    %p173 = scmp.ne.s32.totalorder %s164, %s165
    %p174 = scmp.eq.s32.totalorder %s28, 0
    %p175 = por %p173, %p174
    %p176 = scmp.ne.s32.totalorder %s164, %s165
    %p177 = scmp.eq.s32.totalorder %s29, 3
    %p178 = por %p176, %p177
    %p180 = scmp.ne.s32.totalorder %s165, %s179
    %p181 = scmp.eq.s32.totalorder %s29, 0
    %p182 = por %p180, %p181
    %s184 = sadd.s32 %s183, 1
    %p187 = scmp.eq.s32.totalorder %s23, 3
    %p188 = scmp.ne.s32.totalorder %s183, %s185
    %p189 = scmp.eq.s32.totalorder %s23, 0
    %p190 = por %p188, %p189
    %p191 = scmp.ne.s32.totalorder %s183, %s185
    %p192 = scmp.eq.s32.totalorder %s28, 3
    %p193 = por %p191, %p192
    %p194 = scmp.ne.s32.totalorder %s185, %s186
    %p195 = scmp.eq.s32.totalorder %s28, 0
    %p196 = por %p194, %p195
    %p197 = scmp.ne.s32.totalorder %s185, %s186
    %p198 = scmp.eq.s32.totalorder %s29, 3
    %p199 = por %p197, %p198
    %p201 = scmp.ne.s32.totalorder %s186, %s200
    %p202 = scmp.eq.s32.totalorder %s29, 0
    %p203 = por %p201, %p202
    %s205 = sadd.s32 %s204, 1
    %p208 = scmp.eq.s32.totalorder %s23, 3
    %p209 = scmp.ne.s32.totalorder %s204, %s206
    %p210 = scmp.eq.s32.totalorder %s23, 0
    %p211 = por %p209, %p210
    %p212 = scmp.ne.s32.totalorder %s204, %s206
    %p213 = scmp.eq.s32.totalorder %s28, 3
    %p214 = por %p212, %p213
    %p215 = scmp.ne.s32.totalorder %s206, %s207
    %p216 = scmp.eq.s32.totalorder %s28, 0
    %p217 = por %p215, %p216
    %p218 = scmp.ne.s32.totalorder %s206, %s207
    %p219 = scmp.eq.s32.totalorder %s29, 3
    %p220 = por %p218, %p219
    %p222 = scmp.ne.s32.totalorder %s207, %s221
    %p223 = scmp.eq.s32.totalorder %s29, 0
    %p224 = por %p222, %p223
    %s226 = sadd.s32 %s225, 1
    %p229 = scmp.eq.s32.totalorder %s23, 3
    %p230 = scmp.ne.s32.totalorder %s225, %s227
    %p231 = scmp.eq.s32.totalorder %s23, 0
    %p232 = por %p230, %p231
    %p233 = scmp.ne.s32.totalorder %s225, %s227
    %p234 = scmp.eq.s32.totalorder %s28, 3
    %p235 = por %p233, %p234
    %p236 = scmp.ne.s32.totalorder %s227, %s228
    %p237 = scmp.eq.s32.totalorder %s28, 0
    %p238 = por %p236, %p237
    %p239 = scmp.ne.s32.totalorder %s227, %s228
    %p240 = scmp.eq.s32.totalorder %s29, 3
    %p241 = por %p239, %p240
    %p243 = scmp.ne.s32.totalorder %s228, %s242
    %p244 = scmp.eq.s32.totalorder %s29, 0
    %p245 = por %p243, %p244
    %s247 = sadd.s32 %s246, 1
    %p250 = scmp.eq.s32.totalorder %s23, 3
    %p251 = scmp.ne.s32.totalorder %s246, %s248
    %p252 = scmp.eq.s32.totalorder %s23, 0
    %p253 = por %p251, %p252
    %p254 = scmp.ne.s32.totalorder %s246, %s248
    %p255 = scmp.eq.s32.totalorder %s28, 3
    %p256 = por %p254, %p255
    %p257 = scmp.ne.s32.totalorder %s248, %s249
    %p258 = scmp.eq.s32.totalorder %s28, 0
    %p259 = por %p257, %p258
    %p260 = scmp.ne.s32.totalorder %s248, %s249
    %p261 = scmp.eq.s32.totalorder %s29, 3
    %p262 = por %p260, %p261
    %p264 = scmp.ne.s32.totalorder %s249, %s263
    %p265 = scmp.eq.s32.totalorder %s29, 0
    %p266 = por %p264, %p265
    %s268 = sadd.s32 %s267, 1
    %p271 = scmp.eq.s32.totalorder %s23, 3
    %p272 = scmp.ne.s32.totalorder %s267, %s269
    %p273 = scmp.eq.s32.totalorder %s23, 0
    %p274 = por %p272, %p273
    %p275 = scmp.ne.s32.totalorder %s267, %s269
    %p276 = scmp.eq.s32.totalorder %s28, 3
    %p277 = por %p275, %p276
    %p278 = scmp.ne.s32.totalorder %s269, %s270
    %p279 = scmp.eq.s32.totalorder %s28, 0
    %p280 = por %p278, %p279
    %p281 = scmp.ne.s32.totalorder %s269, %s270
    %p282 = scmp.eq.s32.totalorder %s29, 3
    %p283 = por %p281, %p282
    %p285 = scmp.ne.s32.totalorder %s270, %s284
    %p286 = scmp.eq.s32.totalorder %s29, 0
    %p287 = por %p285, %p286
    %s289 = sadd.s32 %s288, 1
    %p292 = scmp.eq.s32.totalorder %s23, 3
    %p293 = scmp.ne.s32.totalorder %s288, %s290
    %p294 = scmp.eq.s32.totalorder %s23, 0
    %p295 = por %p293, %p294
    %p296 = scmp.ne.s32.totalorder %s288, %s290
    %p297 = scmp.eq.s32.totalorder %s28, 3
    %p298 = por %p296, %p297
    %p299 = scmp.ne.s32.totalorder %s290, %s291
    %p300 = scmp.eq.s32.totalorder %s28, 0
    %p301 = por %p299, %p300
    %p302 = scmp.ne.s32.totalorder %s290, %s291
    %p303 = scmp.eq.s32.totalorder %s29, 3
    %p304 = por %p302, %p303
    %p306 = scmp.ne.s32.totalorder %s291, %s305
    %p307 = scmp.eq.s32.totalorder %s29, 0
    %p308 = por %p306, %p307
    %s310 = sadd.s32 %s309, 1
    %p313 = scmp.eq.s32.totalorder %s23, 3
    %p314 = scmp.ne.s32.totalorder %s309, %s311
    %p315 = scmp.eq.s32.totalorder %s23, 0
    %p316 = por %p314, %p315
    %p317 = scmp.ne.s32.totalorder %s309, %s311
    %p318 = scmp.eq.s32.totalorder %s28, 3
    %p319 = por %p317, %p318
    %p320 = scmp.ne.s32.totalorder %s311, %s312
    %p321 = scmp.eq.s32.totalorder %s28, 0
    %p322 = por %p320, %p321
    %p323 = scmp.ne.s32.totalorder %s311, %s312
    %p324 = scmp.eq.s32.totalorder %s29, 3
    %p325 = por %p323, %p324
    %p327 = scmp.ne.s32.totalorder %s312, %s326
    %p328 = scmp.eq.s32.totalorder %s29, 0
    %p329 = por %p327, %p328
    %s331 = sadd.s32 %s330, 1
    %p334 = scmp.eq.s32.totalorder %s23, 3
    %p335 = scmp.ne.s32.totalorder %s330, %s332
    %p336 = scmp.eq.s32.totalorder %s23, 0
    %p337 = por %p335, %p336
    %p338 = scmp.ne.s32.totalorder %s330, %s332
    %p339 = scmp.eq.s32.totalorder %s28, 3
    %p340 = por %p338, %p339
    %p341 = scmp.ne.s32.totalorder %s332, %s333
    %p342 = scmp.eq.s32.totalorder %s28, 0
    %p343 = por %p341, %p342
    %p344 = scmp.ne.s32.totalorder %s332, %s333
    %p345 = scmp.eq.s32.totalorder %s29, 3
    %p346 = por %p344, %p345
    %p348 = scmp.ne.s32.totalorder %s333, %s347
    %p349 = scmp.eq.s32.totalorder %s29, 0
    %p350 = por %p348, %p349
    %s352 = sadd.s32 %s351, 1
    %p355 = scmp.eq.s32.totalorder %s23, 3
    %p356 = scmp.ne.s32.totalorder %s351, %s353
    %p357 = scmp.eq.s32.totalorder %s23, 0
    %p358 = por %p356, %p357
    %p359 = scmp.ne.s32.totalorder %s351, %s353
    %p360 = scmp.eq.s32.totalorder %s28, 3
    %p361 = por %p359, %p360
    %p362 = scmp.ne.s32.totalorder %s353, %s354
    %p363 = scmp.eq.s32.totalorder %s28, 0
    %p364 = por %p362, %p363
    %p365 = scmp.ne.s32.totalorder %s353, %s354
    %p366 = scmp.eq.s32.totalorder %s29, 3
    %p367 = por %p365, %p366
    %p369 = scmp.ne.s32.totalorder %s354, %s368
    %p370 = scmp.eq.s32.totalorder %s29, 0
    %p371 = por %p369, %p370
    %s373 = sadd.s32 %s372, 1
    %p376 = scmp.eq.s32.totalorder %s23, 3
    %p377 = scmp.ne.s32.totalorder %s372, %s374
    %p378 = scmp.eq.s32.totalorder %s23, 0
    %p379 = por %p377, %p378
    %p380 = scmp.ne.s32.totalorder %s372, %s374
    %p381 = scmp.eq.s32.totalorder %s28, 3
    %p382 = por %p380, %p381
    %p383 = scmp.ne.s32.totalorder %s374, %s375
    %p384 = scmp.eq.s32.totalorder %s28, 0
    %p385 = por %p383, %p384
    %p386 = scmp.ne.s32.totalorder %s374, %s375
    %p387 = scmp.eq.s32.totalorder %s29, 3
    %p388 = por %p386, %p387
    %p390 = scmp.ne.s32.totalorder %s375, %s389
    %p391 = scmp.eq.s32.totalorder %s29, 0
    %p392 = por %p390, %p391
    %s393 = ssub.s32 %s23, %s30
    %p394 = scmp.eq.s32.totalorder %s393, 0
    %s396 = sadd.s32 %s395, 1
    %s397 = scalar_select %p394, %s395, %s396
    %p400 = pneg %p394
    %p401 = scmp.eq.s32.totalorder %s23, 3
    %p402 = por %p400, %p401
    %p403 = scmp.ne.s32.totalorder %s395, %s398
    %p404 = scmp.eq.s32.totalorder %s23, 0
    %p405 = por %p403, %p404
    %p406 = scmp.ne.s32.totalorder %s395, %s398
    %p407 = scmp.eq.s32.totalorder %s28, 3
    %p408 = por %p406, %p407
    %p409 = scmp.ne.s32.totalorder %s398, %s399
    %p410 = scmp.eq.s32.totalorder %s28, 0
    %p411 = por %p409, %p410
    %p412 = scmp.ne.s32.totalorder %s398, %s399
    %p413 = scmp.eq.s32.totalorder %s29, 3
    %p414 = por %p412, %p413
    %p416 = scmp.ne.s32.totalorder %s399, %s415
    %p417 = scmp.eq.s32.totalorder %s29, 0
    %p418 = por %p416, %p417
    %p419 = scmp.le.s32.totalorder 1, %s23
    %p420 = scmp.lt.s32.totalorder %s23, 5
    %p421 = pnand %p419, %p420
    %p422 = pneg %p421
    // Predicated region
    $region9: #{tpu_custom_call.1} parent=5 // pred_check
      _
    $region10: #{tpu_custom_call.1} parent=5 // pred_check_branch
      %424 = sbr.rel (%p421) target = $region12
    $region11: #{tpu_custom_call.1} parent=5 // pred_region
      %s425 = ssub.s32 %s23, 1
      // Predicated region
      $region13: #{tpu_custom_call.1} parent=11 // pred_check
        %p426 = pneg %p70
      $region14: #{tpu_custom_call.1} parent=11 // pred_check_branch
        %428 = sbr.rel (%p426) target = $region16
      $region15: #{tpu_custom_call.1} parent=11 // pred_region
        _
      $region16: #{tpu_custom_call.1} parent=11 // pred_fallthru
        _
      // Predicated region
      $region17: #{tpu_custom_call.1} parent=11 // pred_check
        %p429 = pneg %p91
      $region18: #{tpu_custom_call.1} parent=11 // pred_check_branch
        %431 = sbr.rel (%p429) target = $region20
      $region19: #{tpu_custom_call.1} parent=11 // pred_region
        _
      $region20: #{tpu_custom_call.1} parent=11 // pred_fallthru
        _
      // Predicated region
      $region21: #{tpu_custom_call.1} parent=11 // pred_check
        %p432 = pneg %p112
      $region22: #{tpu_custom_call.1} parent=11 // pred_check_branch
        %434 = sbr.rel (%p432) target = $region24
      $region23: #{tpu_custom_call.1} parent=11 // pred_region
        _
      $region24: #{tpu_custom_call.1} parent=11 // pred_fallthru
        _
      // Predicated region
      $region25: #{tpu_custom_call.1} parent=11 // pred_check
        %p435 = pneg %p133
      $region26: #{tpu_custom_call.1} parent=11 // pred_check_branch
        %437 = sbr.rel (%p435) target = $region28
      $region27: #{tpu_custom_call.1} parent=11 // pred_region
        _
      $region28: #{tpu_custom_call.1} parent=11 // pred_fallthru
        _
      // Predicated region
      $region29: #{tpu_custom_call.1} parent=11 // pred_check
        %p438 = pneg %p154
      $region30: #{tpu_custom_call.1} parent=11 // pred_check_branch
        %440 = sbr.rel (%p438) target = $region32
      $region31: #{tpu_custom_call.1} parent=11 // pred_region
        _
      $region32: #{tpu_custom_call.1} parent=11 // pred_fallthru
        _
      // Predicated region
      $region33: #{tpu_custom_call.1} parent=11 // pred_check
        %p441 = pneg %p175
      $region34: #{tpu_custom_call.1} parent=11 // pred_check_branch
        %443 = sbr.rel (%p441) target = $region36
      $region35: #{tpu_custom_call.1} parent=11 // pred_region
        _
      $region36: #{tpu_custom_call.1} parent=11 // pred_fallthru
        _
      // Predicated region
      $region37: #{tpu_custom_call.1} parent=11 // pred_check
        %p444 = pneg %p196
      $region38: #{tpu_custom_call.1} parent=11 // pred_check_branch
        %446 = sbr.rel (%p444) target = $region40
      $region39: #{tpu_custom_call.1} parent=11 // pred_region
        _
      $region40: #{tpu_custom_call.1} parent=11 // pred_fallthru
        _
      // Predicated region
      $region41: #{tpu_custom_call.1} parent=11 // pred_check
        %p447 = pneg %p217
      $region42: #{tpu_custom_call.1} parent=11 // pred_check_branch
        %449 = sbr.rel (%p447) target = $region44
      $region43: #{tpu_custom_call.1} parent=11 // pred_region
        _
      $region44: #{tpu_custom_call.1} parent=11 // pred_fallthru
        _
      // Predicated region
      $region45: #{tpu_custom_call.1} parent=11 // pred_check
        %p450 = pneg %p238
      $region46: #{tpu_custom_call.1} parent=11 // pred_check_branch
        %452 = sbr.rel (%p450) target = $region48
      $region47: #{tpu_custom_call.1} parent=11 // pred_region
        _
      $region48: #{tpu_custom_call.1} parent=11 // pred_fallthru
        _
      // Predicated region
      $region49: #{tpu_custom_call.1} parent=11 // pred_check
        %p453 = pneg %p259
      $region50: #{tpu_custom_call.1} parent=11 // pred_check_branch
        %455 = sbr.rel (%p453) target = $region52
      $region51: #{tpu_custom_call.1} parent=11 // pred_region
        _
      $region52: #{tpu_custom_call.1} parent=11 // pred_fallthru
        _
      // Predicated region
      $region53: #{tpu_custom_call.1} parent=11 // pred_check
        %p456 = pneg %p280
      $region54: #{tpu_custom_call.1} parent=11 // pred_check_branch
        %458 = sbr.rel (%p456) target = $region56
      $region55: #{tpu_custom_call.1} parent=11 // pred_region
        _
      $region56: #{tpu_custom_call.1} parent=11 // pred_fallthru
        _
      // Predicated region
      $region57: #{tpu_custom_call.1} parent=11 // pred_check
        %p459 = pneg %p301
      $region58: #{tpu_custom_call.1} parent=11 // pred_check_branch
        %461 = sbr.rel (%p459) target = $region60
      $region59: #{tpu_custom_call.1} parent=11 // pred_region
        _
      $region60: #{tpu_custom_call.1} parent=11 // pred_fallthru
        _
      // Predicated region
      $region61: #{tpu_custom_call.1} parent=11 // pred_check
        %p462 = pneg %p322
      $region62: #{tpu_custom_call.1} parent=11 // pred_check_branch
        %464 = sbr.rel (%p462) target = $region64
      $region63: #{tpu_custom_call.1} parent=11 // pred_region
        _
      $region64: #{tpu_custom_call.1} parent=11 // pred_fallthru
        _
      // Predicated region
      $region65: #{tpu_custom_call.1} parent=11 // pred_check
        %p465 = pneg %p343
      $region66: #{tpu_custom_call.1} parent=11 // pred_check_branch
        %467 = sbr.rel (%p465) target = $region68
      $region67: #{tpu_custom_call.1} parent=11 // pred_region
        _
      $region68: #{tpu_custom_call.1} parent=11 // pred_fallthru
        _
      // Predicated region
      $region69: #{tpu_custom_call.1} parent=11 // pred_check
        %p468 = pneg %p364
      $region70: #{tpu_custom_call.1} parent=11 // pred_check_branch
        %470 = sbr.rel (%p468) target = $region72
      $region71: #{tpu_custom_call.1} parent=11 // pred_region
        _
      $region72: #{tpu_custom_call.1} parent=11 // pred_fallthru
        _
      // Predicated region
      $region73: #{tpu_custom_call.1} parent=11 // pred_check
        %p471 = pneg %p385
      $region74: #{tpu_custom_call.1} parent=11 // pred_check_branch
        %473 = sbr.rel (%p471) target = $region76
      $region75: #{tpu_custom_call.1} parent=11 // pred_region
        _
      $region76: #{tpu_custom_call.1} parent=11 // pred_fallthru
        _
    $region12: #{tpu_custom_call.1} parent=5 // pred_fallthru
      _
    %p474 = scmp.lt.s32.totalorder %s23, 4
    // Predicated region
    $region77: #{tpu_custom_call.1} parent=5 // pred_check
      %p475 = pneg %p474
    $region78: #{tpu_custom_call.1} parent=5 // pred_check_branch
      %477 = sbr.rel (%p475) target = $region80
    $region79: #{tpu_custom_call.1} parent=5 // pred_region
      // Predicated region
      $region81: #{tpu_custom_call.1} parent=79 // pred_check
        %p478 = pneg %p43
      $region82: #{tpu_custom_call.1} parent=79 // pred_check_branch
        %480 = sbr.rel (%p478) target = $region84
      $region83: #{tpu_custom_call.1} parent=79 // pred_region
        %s481 = smul.u32 32, %s23
        %p482 = scmp.lt.s32.totalorder %s481, 127
        %s483 = scalar_select %p482, %s481, 127
        %s484 = smul.addr %s483, 7
        %s485 = smul.addr %s484, 8
        %s486 = scalar_lea.vmem %s0, %s485
        %s487 = smul.u32 32, %s23
      $region84: #{tpu_custom_call.1} parent=79 // pred_fallthru
        _
    $region80: #{tpu_custom_call.1} parent=5 // pred_fallthru
      _
    %p488 = scmp.le.s32.totalorder 1, %s23
    %p489 = scmp.lt.s32.totalorder %s23, 5
    %p490 = pnand %p488, %p489
    %p491 = pneg %p490
    // Predicated region
    $region85: #{tpu_custom_call.1} parent=5 // pred_check
      _
    $region86: #{tpu_custom_call.1} parent=5 // pred_check_branch
      %493 = sbr.rel (%p490) target = $region88
    $region87: #{tpu_custom_call.1} parent=5 // pred_region
      %s494 = ssub.s32 %s23, 1
      %s495 = smul.u32 32, %s28
      %p496 = scmp.lt.s32.totalorder %s495, 127
      %s497 = scalar_select %p496, %s495, 127
      %s498 = smul.addr %s497, 7
      %s499 = smul.addr %s498, 8
      %s500 = scalar_lea.vmem %s0, %s499
      %p501 = pneg %p49
      %p502 = pneg %p46
      %p503 = pneg %p70
      %p504 = pneg %p67
      %p505 = pneg %p91
      %p506 = pneg %p88
      %p507 = pneg %p112
      %p508 = pneg %p109
      %p509 = pneg %p133
      %p510 = pneg %p130
      %p511 = pneg %p154
      %p512 = pneg %p151
      %p513 = pneg %p175
      %p514 = pneg %p172
      %p515 = pneg %p196
      %p516 = pneg %p193
      %p517 = pneg %p217
      %p518 = pneg %p214
      %p519 = pneg %p238
      %p520 = pneg %p235
      %p521 = pneg %p259
      %p522 = pneg %p256
      %p523 = pneg %p280
      %p524 = pneg %p277
      %p525 = pneg %p301
      %p526 = pneg %p298
      %p527 = pneg %p322
      %p528 = pneg %p319
      %p529 = pneg %p343
      %p530 = pneg %p340
      %p531 = pneg %p364
      %p532 = pneg %p361
      %p533 = pneg %p385
      %p534 = pneg %p382
      %p535 = pneg %p411
      %p536 = pneg %p408
      %s537 = smul.u32 32, %s28
      %p538 = scmp.lt.s32.totalorder %s537, 127
      %s539 = scalar_select %p538, %s537, 127
      %s540 = smul.addr %s539, 7
      %s541 = smul.addr %s540, 8
      %s542 = scalar_lea.vmem %s17, %s541
      %s543 = smul.u32 32, %s28
      %p544 = scmp.lt.s32.totalorder %s543, 127
      %s545 = scalar_select %p544, %s543, 127
      %s546 = smul.addr %s545, 7
      %s547 = smul.addr %s546, 8
      %s548 = scalar_lea.vmem %s0, %s547
      %s549 = smul.u32 32, %s28
      %s550 = smul.u32 32, %s28
      %p551 = scmp.lt.s32.totalorder %s550, 127
      %s552 = scalar_select %p551, %s550, 127
      %s553 = smul.addr %s552, 7
      %s554 = smul.addr %s553, 8
      %s555 = scalar_lea.vmem %s17, %s554
      %s556 = smul.u32 32, %s28
      %v558 = vld [vmem:[%s548] sm:$0xff]
      %v559 = vld [vmem:[%s548 + $0x8] sm:$0xff]
      %v560 = vld [vmem:[%s548 + $0x10] sm:$0xff]
      %v561 = vld [vmem:[%s548 + $0x18] sm:$0xff]
      %v562 = vld [vmem:[%s548 + $0x20] sm:$0xff]
      %v563 = vld [vmem:[%s548 + $0x28] sm:$0xff]
      %v564 = vld [vmem:[%s548 + $0x30] sm:$0xff]
      %v565 = vld [vmem:[%s548 + $0x38] sm:$0xff]
      %v566 = vld [vmem:[%s548 + $0x40] sm:$0xff]
      %v567 = vld [vmem:[%s548 + $0x48] sm:$0xff]
      %v568 = vld [vmem:[%s548 + $0x50] sm:$0xff]
      %v569 = vld [vmem:[%s548 + $0x58] sm:$0xff]
      %v570 = vld [vmem:[%s548 + $0x60] sm:$0xff]
      %v571 = vld [vmem:[%s548 + $0x68] sm:$0xff]
      %v572 = vld [vmem:[%s548 + $0x70] sm:$0xff]
      %v573 = vld [vmem:[%s548 + $0x78] sm:$0xff]
      %v574 = vld [vmem:[%s548 + $0x80] sm:$0xff]
      %v575 = vld [vmem:[%s548 + $0x88] sm:$0xff]
      %v576 = vld [vmem:[%s548 + $0x90] sm:$0xff]
      %v577 = vld [vmem:[%s548 + $0x98] sm:$0xff]
      %v578 = vld [vmem:[%s548 + $0xa0] sm:$0xff]
      %v579 = vld [vmem:[%s548 + $0xa8] sm:$0xff]
      %v580 = vld [vmem:[%s548 + $0xb0] sm:$0xff]
      %v581 = vld [vmem:[%s548 + $0xb8] sm:$0xff]
      %v582 = vld [vmem:[%s548 + $0xc0] sm:$0xff]
      %v583 = vld [vmem:[%s548 + $0xc8] sm:$0xff]
      %v584 = vld [vmem:[%s548 + $0xd0] sm:$0xff]
      %v585 = vld [vmem:[%s548 + $0xd8] sm:$0xff]
      %v586 = vld [vmem:[%s548 + $0xe0] sm:$0xff]
      %v587 = vld [vmem:[%s548 + $0xe8] sm:$0xff]
      %v588 = vld [vmem:[%s548 + $0xf0] sm:$0xff]
      %v589 = vld [vmem:[%s548 + $0xf8] sm:$0xff]
      %v590 = vld [vmem:[%s548 + $0x100] sm:$0xff]
      %v591 = vld [vmem:[%s548 + $0x108] sm:$0xff]
      %v592 = vld [vmem:[%s548 + $0x110] sm:$0xff]
      %v593 = vld [vmem:[%s548 + $0x118] sm:$0xff]
      %v594 = vld [vmem:[%s548 + $0x120] sm:$0xff]
      %v595 = vld [vmem:[%s548 + $0x128] sm:$0xff]
      %v596 = vld [vmem:[%s548 + $0x130] sm:$0xff]
      %v597 = vld [vmem:[%s548 + $0x138] sm:$0xff]
      %v598 = vld [vmem:[%s548 + $0x140] sm:$0xff]
      %v599 = vld [vmem:[%s548 + $0x148] sm:$0xff]
      %v600 = vld [vmem:[%s548 + $0x150] sm:$0xff]
      %v601 = vld [vmem:[%s548 + $0x158] sm:$0xff]
      %v602 = vld [vmem:[%s548 + $0x160] sm:$0xff]
      %v603 = vld [vmem:[%s548 + $0x168] sm:$0xff]
      %v604 = vld [vmem:[%s548 + $0x170] sm:$0xff]
      %v605 = vld [vmem:[%s548 + $0x178] sm:$0xff]
      %v606 = vld [vmem:[%s548 + $0x180] sm:$0xff]
      %v607 = vld [vmem:[%s548 + $0x188] sm:$0xff]
      %v608 = vld [vmem:[%s548 + $0x190] sm:$0xff]
      %v609 = vld [vmem:[%s548 + $0x198] sm:$0xff]
      %v610 = vld [vmem:[%s548 + $0x1a0] sm:$0xff]
      %v611 = vld [vmem:[%s548 + $0x1a8] sm:$0xff]
      %v612 = vld [vmem:[%s548 + $0x1b0] sm:$0xff]
      %v613 = vld [vmem:[%s548 + $0x1b8] sm:$0xff]
      %v614 = vld [vmem:[%s548 + $0x1c0] sm:$0xff]
      %v615 = vld [vmem:[%s548 + $0x1c8] sm:$0xff]
      %v616 = vld [vmem:[%s548 + $0x1d0] sm:$0xff]
      %v617 = vld [vmem:[%s548 + $0x1d8] sm:$0xff]
      %v618 = vld [vmem:[%s548 + $0x1e0] sm:$0xff]
      %v619 = vld [vmem:[%s548 + $0x1e8] sm:$0xff]
      %v620 = vld [vmem:[%s548 + $0x1f0] sm:$0xff]
      %v621 = vld [vmem:[%s548 + $0x1f8] sm:$0xff]
      %v622 = vld [vmem:[%s548 + $0x200] sm:$0xff]
      %v623 = vld [vmem:[%s548 + $0x208] sm:$0xff]
      %v624 = vld [vmem:[%s548 + $0x210] sm:$0xff]
      %v625 = vld [vmem:[%s548 + $0x218] sm:$0xff]
      %v626 = vld [vmem:[%s548 + $0x220] sm:$0xff]
      %v627 = vld [vmem:[%s548 + $0x228] sm:$0xff]
      %v628 = vld [vmem:[%s548 + $0x230] sm:$0xff]
      %v629 = vld [vmem:[%s548 + $0x238] sm:$0xff]
      %v630 = vld [vmem:[%s548 + $0x240] sm:$0xff]
      %v631 = vld [vmem:[%s548 + $0x248] sm:$0xff]
      %v632 = vld [vmem:[%s548 + $0x250] sm:$0xff]
      %v633 = vld [vmem:[%s548 + $0x258] sm:$0xff]
      %v634 = vld [vmem:[%s548 + $0x260] sm:$0xff]
      %v635 = vld [vmem:[%s548 + $0x268] sm:$0xff]
      %v636 = vld [vmem:[%s548 + $0x270] sm:$0xff]
      %v637 = vld [vmem:[%s548 + $0x278] sm:$0xff]
      %v638 = vld [vmem:[%s548 + $0x280] sm:$0xff]
      %v639 = vld [vmem:[%s548 + $0x288] sm:$0xff]
      %v640 = vld [vmem:[%s548 + $0x290] sm:$0xff]
      %v641 = vld [vmem:[%s548 + $0x298] sm:$0xff]
      %v642 = vld [vmem:[%s548 + $0x2a0] sm:$0xff]
      %v643 = vld [vmem:[%s548 + $0x2a8] sm:$0xff]
      %v644 = vld [vmem:[%s548 + $0x2b0] sm:$0xff]
      %v645 = vld [vmem:[%s548 + $0x2b8] sm:$0xff]
      %v646 = vld [vmem:[%s548 + $0x2c0] sm:$0xff]
      %v647 = vld [vmem:[%s548 + $0x2c8] sm:$0xff]
      %v648 = vld [vmem:[%s548 + $0x2d0] sm:$0xff]
      %v649 = vld [vmem:[%s548 + $0x2d8] sm:$0xff]
      %v650 = vld [vmem:[%s548 + $0x2e0] sm:$0xff]
      %v651 = vld [vmem:[%s548 + $0x2e8] sm:$0xff]
      %v652 = vld [vmem:[%s548 + $0x2f0] sm:$0xff]
      %v653 = vld [vmem:[%s548 + $0x2f8] sm:$0xff]
      %v654 = vld [vmem:[%s548 + $0x300] sm:$0xff]
      %v655 = vld [vmem:[%s548 + $0x308] sm:$0xff]
      %v656 = vld [vmem:[%s548 + $0x310] sm:$0xff]
      %v657 = vld [vmem:[%s548 + $0x318] sm:$0xff]
      %v658 = vld [vmem:[%s548 + $0x320] sm:$0xff]
      %v659 = vld [vmem:[%s548 + $0x328] sm:$0xff]
      %v660 = vld [vmem:[%s548 + $0x330] sm:$0xff]
      %v661 = vld [vmem:[%s548 + $0x338] sm:$0xff]
      %v662 = vld [vmem:[%s548 + $0x340] sm:$0xff]
      %v663 = vld [vmem:[%s548 + $0x348] sm:$0xff]
      %v664 = vld [vmem:[%s548 + $0x350] sm:$0xff]
      %v665 = vld [vmem:[%s548 + $0x358] sm:$0xff]
      %v666 = vld [vmem:[%s548 + $0x360] sm:$0xff]
      %v667 = vld [vmem:[%s548 + $0x368] sm:$0xff]
      %v668 = vld [vmem:[%s548 + $0x370] sm:$0xff]
      %v669 = vld [vmem:[%s548 + $0x378] sm:$0xff]
      %v670 = vld [vmem:[%s548 + $0x380] sm:$0xff]
      %v671 = vld [vmem:[%s548 + $0x388] sm:$0xff]
      %v672 = vld [vmem:[%s548 + $0x390] sm:$0xff]
      %v673 = vld [vmem:[%s548 + $0x398] sm:$0xff]
      %v674 = vld [vmem:[%s548 + $0x3a0] sm:$0xff]
      %v675 = vld [vmem:[%s548 + $0x3a8] sm:$0xff]
      %v676 = vld [vmem:[%s548 + $0x3b0] sm:$0xff]
      %v677 = vld [vmem:[%s548 + $0x3b8] sm:$0xff]
      %v678 = vld [vmem:[%s548 + $0x3c0] sm:$0xff]
      %v679 = vld [vmem:[%s548 + $0x3c8] sm:$0xff]
      %v680 = vld [vmem:[%s548 + $0x3d0] sm:$0xff]
      %v681 = vld [vmem:[%s548 + $0x3d8] sm:$0xff]
      %v682 = vld [vmem:[%s548 + $0x3e0] sm:$0xff]
      %v683 = vld [vmem:[%s548 + $0x3e8] sm:$0xff]
      %v684 = vld [vmem:[%s548 + $0x3f0] sm:$0xff]
      %v685 = vld [vmem:[%s548 + $0x3f8] sm:$0xff]
      %v686 = vld [vmem:[%s548 + $0x400] sm:$0xff]
      %v687 = vld [vmem:[%s548 + $0x408] sm:$0xff]
      %v688 = vld [vmem:[%s548 + $0x410] sm:$0xff]
      %v689 = vld [vmem:[%s548 + $0x418] sm:$0xff]
      %v690 = vld [vmem:[%s548 + $0x420] sm:$0xff]
      %v691 = vld [vmem:[%s548 + $0x428] sm:$0xff]
      %v692 = vld [vmem:[%s548 + $0x430] sm:$0xff]
      %v693 = vld [vmem:[%s548 + $0x438] sm:$0xff]
      %v694 = vld [vmem:[%s548 + $0x440] sm:$0xff]
      %v695 = vld [vmem:[%s548 + $0x448] sm:$0xff]
      %v696 = vld [vmem:[%s548 + $0x450] sm:$0xff]
      %v697 = vld [vmem:[%s548 + $0x458] sm:$0xff]
      %v698 = vld [vmem:[%s548 + $0x460] sm:$0xff]
      %v699 = vld [vmem:[%s548 + $0x468] sm:$0xff]
      %v700 = vld [vmem:[%s548 + $0x470] sm:$0xff]
      %v701 = vld [vmem:[%s548 + $0x478] sm:$0xff]
      %v702 = vld [vmem:[%s548 + $0x480] sm:$0xff]
      %v703 = vld [vmem:[%s548 + $0x488] sm:$0xff]
      %v704 = vld [vmem:[%s548 + $0x490] sm:$0xff]
      %v705 = vld [vmem:[%s548 + $0x498] sm:$0xff]
      %v706 = vld [vmem:[%s548 + $0x4a0] sm:$0xff]
      %v707 = vld [vmem:[%s548 + $0x4a8] sm:$0xff]
      %v708 = vld [vmem:[%s548 + $0x4b0] sm:$0xff]
      %v709 = vld [vmem:[%s548 + $0x4b8] sm:$0xff]
      %v710 = vld [vmem:[%s548 + $0x4c0] sm:$0xff]
      %v711 = vld [vmem:[%s548 + $0x4c8] sm:$0xff]
      %v712 = vld [vmem:[%s548 + $0x4d0] sm:$0xff]
      %v713 = vld [vmem:[%s548 + $0x4d8] sm:$0xff]
      %v714 = vld [vmem:[%s548 + $0x4e0] sm:$0xff]
      %v715 = vld [vmem:[%s548 + $0x4e8] sm:$0xff]
      %v716 = vld [vmem:[%s548 + $0x4f0] sm:$0xff]
      %v717 = vld [vmem:[%s548 + $0x4f8] sm:$0xff]
      %v718 = vld [vmem:[%s548 + $0x500] sm:$0xff]
      %v719 = vld [vmem:[%s548 + $0x508] sm:$0xff]
      %v720 = vld [vmem:[%s548 + $0x510] sm:$0xff]
      %v721 = vld [vmem:[%s548 + $0x518] sm:$0xff]
      %v722 = vld [vmem:[%s548 + $0x520] sm:$0xff]
      %v723 = vld [vmem:[%s548 + $0x528] sm:$0xff]
      %v724 = vld [vmem:[%s548 + $0x530] sm:$0xff]
      %v725 = vld [vmem:[%s548 + $0x538] sm:$0xff]
      %v726 = vld [vmem:[%s548 + $0x540] sm:$0xff]
      %v727 = vld [vmem:[%s548 + $0x548] sm:$0xff]
      %v728 = vld [vmem:[%s548 + $0x550] sm:$0xff]
      %v729 = vld [vmem:[%s548 + $0x558] sm:$0xff]
      %v730 = vld [vmem:[%s548 + $0x560] sm:$0xff]
      %v731 = vld [vmem:[%s548 + $0x568] sm:$0xff]
      %v732 = vld [vmem:[%s548 + $0x570] sm:$0xff]
      %v733 = vld [vmem:[%s548 + $0x578] sm:$0xff]
      %v734 = vld [vmem:[%s548 + $0x580] sm:$0xff]
      %v735 = vld [vmem:[%s548 + $0x588] sm:$0xff]
      %v736 = vld [vmem:[%s548 + $0x590] sm:$0xff]
      %v737 = vld [vmem:[%s548 + $0x598] sm:$0xff]
      %v738 = vld [vmem:[%s548 + $0x5a0] sm:$0xff]
      %v739 = vld [vmem:[%s548 + $0x5a8] sm:$0xff]
      %v740 = vld [vmem:[%s548 + $0x5b0] sm:$0xff]
      %v741 = vld [vmem:[%s548 + $0x5b8] sm:$0xff]
      %v742 = vld [vmem:[%s548 + $0x5c0] sm:$0xff]
      %v743 = vld [vmem:[%s548 + $0x5c8] sm:$0xff]
      %v744 = vld [vmem:[%s548 + $0x5d0] sm:$0xff]
      %v745 = vld [vmem:[%s548 + $0x5d8] sm:$0xff]
      %v746 = vld [vmem:[%s548 + $0x5e0] sm:$0xff]
      %v747 = vld [vmem:[%s548 + $0x5e8] sm:$0xff]
      %v748 = vld [vmem:[%s548 + $0x5f0] sm:$0xff]
      %v749 = vld [vmem:[%s548 + $0x5f8] sm:$0xff]
      %v750 = vld [vmem:[%s548 + $0x600] sm:$0xff]
      %v751 = vld [vmem:[%s548 + $0x608] sm:$0xff]
      %v752 = vld [vmem:[%s548 + $0x610] sm:$0xff]
      %v753 = vld [vmem:[%s548 + $0x618] sm:$0xff]
      %v754 = vld [vmem:[%s548 + $0x620] sm:$0xff]
      %v755 = vld [vmem:[%s548 + $0x628] sm:$0xff]
      %v756 = vld [vmem:[%s548 + $0x630] sm:$0xff]
      %v757 = vld [vmem:[%s548 + $0x638] sm:$0xff]
      %v758 = vld [vmem:[%s548 + $0x640] sm:$0xff]
      %v759 = vld [vmem:[%s548 + $0x648] sm:$0xff]
      %v760 = vld [vmem:[%s548 + $0x650] sm:$0xff]
      %v761 = vld [vmem:[%s548 + $0x658] sm:$0xff]
      %v762 = vld [vmem:[%s548 + $0x660] sm:$0xff]
      %v763 = vld [vmem:[%s548 + $0x668] sm:$0xff]
      %v764 = vld [vmem:[%s548 + $0x670] sm:$0xff]
      %v765 = vld [vmem:[%s548 + $0x678] sm:$0xff]
      %v766 = vld [vmem:[%s548 + $0x680] sm:$0xff]
      %v767 = vld [vmem:[%s548 + $0x688] sm:$0xff]
      %v768 = vld [vmem:[%s548 + $0x690] sm:$0xff]
      %v769 = vld [vmem:[%s548 + $0x698] sm:$0xff]
      %v770 = vld [vmem:[%s548 + $0x6a0] sm:$0xff]
      %v771 = vld [vmem:[%s548 + $0x6a8] sm:$0xff]
      %v772 = vld [vmem:[%s548 + $0x6b0] sm:$0xff]
      %v773 = vld [vmem:[%s548 + $0x6b8] sm:$0xff]
      %v774 = vld [vmem:[%s548 + $0x6c0] sm:$0xff]
      %v775 = vld [vmem:[%s548 + $0x6c8] sm:$0xff]
      %v776 = vld [vmem:[%s548 + $0x6d0] sm:$0xff]
      %v777 = vld [vmem:[%s548 + $0x6d8] sm:$0xff]
      %v778 = vld [vmem:[%s548 + $0x6e0] sm:$0xff]
      %v779 = vld [vmem:[%s548 + $0x6e8] sm:$0xff]
      %v780 = vld [vmem:[%s548 + $0x6f0] sm:$0xff]
      %v781 = vld [vmem:[%s548 + $0x6f8] sm:$0xff]
      %v782 = vpack.c.bf16 %v565, %v558
      %v783 = vpack.c.bf16 %v566, %v559
      %v784 = vpack.c.bf16 %v567, %v560
      %v785 = vpack.c.bf16 %v568, %v561
      %v786 = vpack.c.bf16 %v569, %v562
      %v787 = vpack.c.bf16 %v570, %v563
      %v788 = vpack.c.bf16 %v571, %v564
      %v789 = vpack.c.bf16 %v579, %v572
      %v790 = vpack.c.bf16 %v580, %v573
      %v791 = vpack.c.bf16 %v581, %v574
      %v792 = vpack.c.bf16 %v582, %v575
      %v793 = vpack.c.bf16 %v583, %v576
      %v794 = vpack.c.bf16 %v584, %v577
      %v795 = vpack.c.bf16 %v585, %v578
      %v796 = vpack.c.bf16 %v593, %v586
      %v797 = vpack.c.bf16 %v594, %v587
      %v798 = vpack.c.bf16 %v595, %v588
      %v799 = vpack.c.bf16 %v596, %v589
      %v800 = vpack.c.bf16 %v597, %v590
      %v801 = vpack.c.bf16 %v598, %v591
      %v802 = vpack.c.bf16 %v599, %v592
      %v803 = vpack.c.bf16 %v607, %v600
      %v804 = vpack.c.bf16 %v608, %v601
      %v805 = vpack.c.bf16 %v609, %v602
      %v806 = vpack.c.bf16 %v610, %v603
      %v807 = vpack.c.bf16 %v611, %v604
      %v808 = vpack.c.bf16 %v612, %v605
      %v809 = vpack.c.bf16 %v613, %v606
      %v810 = vpack.c.bf16 %v621, %v614
      %v811 = vpack.c.bf16 %v622, %v615
      %v812 = vpack.c.bf16 %v623, %v616
      %v813 = vpack.c.bf16 %v624, %v617
      %v814 = vpack.c.bf16 %v625, %v618
      %v815 = vpack.c.bf16 %v626, %v619
      %v816 = vpack.c.bf16 %v627, %v620
      %v817 = vpack.c.bf16 %v635, %v628
      %v818 = vpack.c.bf16 %v636, %v629
      %v819 = vpack.c.bf16 %v637, %v630
      %v820 = vpack.c.bf16 %v638, %v631
      %v821 = vpack.c.bf16 %v639, %v632
      %v822 = vpack.c.bf16 %v640, %v633
      %v823 = vpack.c.bf16 %v641, %v634
      %v824 = vpack.c.bf16 %v649, %v642
      %v825 = vpack.c.bf16 %v650, %v643
      %v826 = vpack.c.bf16 %v651, %v644
      %v827 = vpack.c.bf16 %v652, %v645
      %v828 = vpack.c.bf16 %v653, %v646
      %v829 = vpack.c.bf16 %v654, %v647
      %v830 = vpack.c.bf16 %v655, %v648
      %v831 = vpack.c.bf16 %v663, %v656
      %v832 = vpack.c.bf16 %v664, %v657
      %v833 = vpack.c.bf16 %v665, %v658
      %v834 = vpack.c.bf16 %v666, %v659
      %v835 = vpack.c.bf16 %v667, %v660
      %v836 = vpack.c.bf16 %v668, %v661
      %v837 = vpack.c.bf16 %v669, %v662
      %v838 = vpack.c.bf16 %v677, %v670
      %v839 = vpack.c.bf16 %v678, %v671
      %v840 = vpack.c.bf16 %v679, %v672
      %v841 = vpack.c.bf16 %v680, %v673
      %v842 = vpack.c.bf16 %v681, %v674
      %v843 = vpack.c.bf16 %v682, %v675
      %v844 = vpack.c.bf16 %v683, %v676
      %v845 = vpack.c.bf16 %v691, %v684
      %v846 = vpack.c.bf16 %v692, %v685
      %v847 = vpack.c.bf16 %v693, %v686
      %v848 = vpack.c.bf16 %v694, %v687
      %v849 = vpack.c.bf16 %v695, %v688
      %v850 = vpack.c.bf16 %v696, %v689
      %v851 = vpack.c.bf16 %v697, %v690
      %v852 = vpack.c.bf16 %v705, %v698
      %v853 = vpack.c.bf16 %v706, %v699
      %v854 = vpack.c.bf16 %v707, %v700
      %v855 = vpack.c.bf16 %v708, %v701
      %v856 = vpack.c.bf16 %v709, %v702
      %v857 = vpack.c.bf16 %v710, %v703
      %v858 = vpack.c.bf16 %v711, %v704
      %v859 = vpack.c.bf16 %v719, %v712
      %v860 = vpack.c.bf16 %v720, %v713
      %v861 = vpack.c.bf16 %v721, %v714
      %v862 = vpack.c.bf16 %v722, %v715
      %v863 = vpack.c.bf16 %v723, %v716
      %v864 = vpack.c.bf16 %v724, %v717
      %v865 = vpack.c.bf16 %v725, %v718
      %v866 = vpack.c.bf16 %v733, %v726
      %v867 = vpack.c.bf16 %v734, %v727
      %v868 = vpack.c.bf16 %v735, %v728
      %v869 = vpack.c.bf16 %v736, %v729
      %v870 = vpack.c.bf16 %v737, %v730
      %v871 = vpack.c.bf16 %v738, %v731
      %v872 = vpack.c.bf16 %v739, %v732
      %v873 = vpack.c.bf16 %v747, %v740
      %v874 = vpack.c.bf16 %v748, %v741
      %v875 = vpack.c.bf16 %v749, %v742
      %v876 = vpack.c.bf16 %v750, %v743
      %v877 = vpack.c.bf16 %v751, %v744
      %v878 = vpack.c.bf16 %v752, %v745
      %v879 = vpack.c.bf16 %v753, %v746
      %v880 = vpack.c.bf16 %v761, %v754
      %v881 = vpack.c.bf16 %v762, %v755
      %v882 = vpack.c.bf16 %v763, %v756
      %v883 = vpack.c.bf16 %v764, %v757
      %v884 = vpack.c.bf16 %v765, %v758
      %v885 = vpack.c.bf16 %v766, %v759
      %v886 = vpack.c.bf16 %v767, %v760
      %v887 = vpack.c.bf16 %v775, %v768
      %v888 = vpack.c.bf16 %v776, %v769
      %v889 = vpack.c.bf16 %v777, %v770
      %v890 = vpack.c.bf16 %v778, %v771
      %v891 = vpack.c.bf16 %v779, %v772
      %v892 = vpack.c.bf16 %v780, %v773
      %v893 = vpack.c.bf16 %v781, %v774
      %v894 = vld [vmem:[%s1] sm:$0xf]
      %v895 = vld [vmem:[%s1 + $0x4] sm:$0xf]
      %v896 = vld [vmem:[%s1 + $0x8] sm:$0xf]
      %v897 = vld [vmem:[%s1 + $0xc] sm:$0xf]
      %v898 = vld [vmem:[%s1 + $0x10] sm:$0xf]
      %v899 = vld [vmem:[%s1 + $0x14] sm:$0xf]
      %v900 = vld [vmem:[%s1 + $0x18] sm:$0xf]
      %v901 = vld [vmem:[%s1 + $0x1c] sm:$0xf]
      %v902 = vld [vmem:[%s1 + $0x20] sm:$0xf]
      %v903 = vld [vmem:[%s1 + $0x24] sm:$0xf]
      %v904 = vld [vmem:[%s1 + $0x28] sm:$0xf]
      %v905 = vld [vmem:[%s1 + $0x2c] sm:$0xf]
      %v906 = vld [vmem:[%s1 + $0x30] sm:$0xf]
      %v907 = vld [vmem:[%s1 + $0x34] sm:$0xf]
      %v908 = vld [vmem:[%s1 + $0x38] sm:$0xf]
      %v909 = vld [vmem:[%s1 + $0x3c] sm:$0xf]
      %v910 = vld [vmem:[%s1 + $0x40] sm:$0xf]
      %v911 = vld [vmem:[%s1 + $0x44] sm:$0xf]
      %v912 = vld [vmem:[%s1 + $0x48] sm:$0xf]
      %v913 = vld [vmem:[%s1 + $0x4c] sm:$0xf]
      %v914 = vld [vmem:[%s1 + $0x50] sm:$0xf]
      %v915 = vld [vmem:[%s1 + $0x54] sm:$0xf]
      %v916 = vld [vmem:[%s1 + $0x58] sm:$0xf]
      %v917 = vld [vmem:[%s1 + $0x5c] sm:$0xf]
      %v918 = vld [vmem:[%s1 + $0x60] sm:$0xf]
      %v919 = vld [vmem:[%s1 + $0x64] sm:$0xf]
      %v920 = vld [vmem:[%s1 + $0x68] sm:$0xf]
      %v921 = vld [vmem:[%s1 + $0x6c] sm:$0xf]
      %v922 = vld [vmem:[%s1 + $0x70] sm:$0xf]
      %v923 = vld [vmem:[%s1 + $0x74] sm:$0xf]
      %v924 = vld [vmem:[%s1 + $0x78] sm:$0xf]
      %v925 = vld [vmem:[%s1 + $0x7c] sm:$0xf]
      %v926 = vld [vmem:[%s1 + $0x80] sm:$0xf]
      %v927 = vld [vmem:[%s1 + $0x84] sm:$0xf]
      %v928 = vld [vmem:[%s1 + $0x88] sm:$0xf]
      %v929 = vld [vmem:[%s1 + $0x8c] sm:$0xf]
      %v930 = vld [vmem:[%s1 + $0x90] sm:$0xf]
      %v931 = vld [vmem:[%s1 + $0x94] sm:$0xf]
      %v932 = vld [vmem:[%s1 + $0x98] sm:$0xf]
      %v933 = vld [vmem:[%s1 + $0x9c] sm:$0xf]
      %v934 = vld [vmem:[%s1 + $0xa0] sm:$0xf]
      %v935 = vld [vmem:[%s1 + $0xa4] sm:$0xf]
      %v936 = vld [vmem:[%s1 + $0xa8] sm:$0xf]
      %v937 = vld [vmem:[%s1 + $0xac] sm:$0xf]
      %v938 = vld [vmem:[%s1 + $0xb0] sm:$0xf]
      %v939 = vld [vmem:[%s1 + $0xb4] sm:$0xf]
      %v940 = vld [vmem:[%s1 + $0xb8] sm:$0xf]
      %v941 = vld [vmem:[%s1 + $0xbc] sm:$0xf]
      %v942 = vld [vmem:[%s1 + $0xc0] sm:$0xf]
      %v943 = vld [vmem:[%s1 + $0xc4] sm:$0xf]
      %v944 = vld [vmem:[%s1 + $0xc8] sm:$0xf]
      %v945 = vld [vmem:[%s1 + $0xcc] sm:$0xf]
      %v946 = vld [vmem:[%s1 + $0xd0] sm:$0xf]
      %v947 = vld [vmem:[%s1 + $0xd4] sm:$0xf]
      %v948 = vld [vmem:[%s1 + $0xd8] sm:$0xf]
      %v949 = vld [vmem:[%s1 + $0xdc] sm:$0xf]
      %v950 = vld [vmem:[%s1 + $0xe0] sm:$0xf]
      %v951 = vld [vmem:[%s1 + $0xe4] sm:$0xf]
      %v952 = vld [vmem:[%s1 + $0xe8] sm:$0xf]
      %v953 = vld [vmem:[%s1 + $0xec] sm:$0xf]
      %v954 = vld [vmem:[%s1 + $0xf0] sm:$0xf]
      %v955 = vld [vmem:[%s1 + $0xf4] sm:$0xf]
      %v956 = vld [vmem:[%s1 + $0xf8] sm:$0xf]
      %v957 = vld [vmem:[%s1 + $0xfc] sm:$0xf]
      %v958 = vld [vmem:[%s1 + $0x100] sm:$0xf]
      %v959 = vld [vmem:[%s1 + $0x104] sm:$0xf]
      %v960 = vld [vmem:[%s1 + $0x108] sm:$0xf]
      %v961 = vld [vmem:[%s1 + $0x10c] sm:$0xf]
      %v962 = vld [vmem:[%s1 + $0x110] sm:$0xf]
      %v963 = vld [vmem:[%s1 + $0x114] sm:$0xf]
      %v964 = vld [vmem:[%s1 + $0x118] sm:$0xf]
      %v965 = vld [vmem:[%s1 + $0x11c] sm:$0xf]
      %v966 = vld [vmem:[%s1 + $0x120] sm:$0xf]
      %v967 = vld [vmem:[%s1 + $0x124] sm:$0xf]
      %v968 = vld [vmem:[%s1 + $0x128] sm:$0xf]
      %v969 = vld [vmem:[%s1 + $0x12c] sm:$0xf]
      %v970 = vld [vmem:[%s1 + $0x130] sm:$0xf]
      %v971 = vld [vmem:[%s1 + $0x134] sm:$0xf]
      %v972 = vld [vmem:[%s1 + $0x138] sm:$0xf]
      %v973 = vld [vmem:[%s1 + $0x13c] sm:$0xf]
      %v974 = vld [vmem:[%s1 + $0x140] sm:$0xf]
      %v975 = vld [vmem:[%s1 + $0x144] sm:$0xf]
      %v976 = vld [vmem:[%s1 + $0x148] sm:$0xf]
      %v977 = vld [vmem:[%s1 + $0x14c] sm:$0xf]
      %v978 = vld [vmem:[%s1 + $0x150] sm:$0xf]
      %v979 = vld [vmem:[%s1 + $0x154] sm:$0xf]
      %v980 = vld [vmem:[%s1 + $0x158] sm:$0xf]
      %v981 = vld [vmem:[%s1 + $0x15c] sm:$0xf]
      %v982 = vld [vmem:[%s1 + $0x160] sm:$0xf]
      %v983 = vld [vmem:[%s1 + $0x164] sm:$0xf]
      %v984 = vld [vmem:[%s1 + $0x168] sm:$0xf]
      %v985 = vld [vmem:[%s1 + $0x16c] sm:$0xf]
      %v986 = vld [vmem:[%s1 + $0x170] sm:$0xf]
      %v987 = vld [vmem:[%s1 + $0x174] sm:$0xf]
      %v988 = vld [vmem:[%s1 + $0x178] sm:$0xf]
      %v989 = vld [vmem:[%s1 + $0x17c] sm:$0xf]
      %v990 = vld [vmem:[%s1 + $0x180] sm:$0xf]
      %v991 = vld [vmem:[%s1 + $0x184] sm:$0xf]
      %v992 = vld [vmem:[%s2] sm:$0x1]
      %v994 = vlaneseq
      %v995 = vshrl.u32 %v994, 7
      %v996 = vsub.s32 0, %v995
      %v997 = vrot.slane %v992, %v996
      %v1097 = vunpack.c.l.b16 %v894
      %v1098 = vunpack.c.l.b16 %v895
      %v1099 = vunpack.c.l.b16 %v896
      %v1100 = vunpack.c.l.b16 %v897
      %v1101 = vunpack.c.l.b16 %v898
      %v1102 = vunpack.c.l.b16 %v899
      %v1103 = vunpack.c.l.b16 %v900
      %v1104 = vunpack.c.l.b16 %v901
      %v1105 = vunpack.c.l.b16 %v902
      %v1106 = vunpack.c.l.b16 %v903
      %v1107 = vunpack.c.l.b16 %v904
      %v1108 = vunpack.c.l.b16 %v905
      %v1109 = vunpack.c.l.b16 %v906
      %v1110 = vunpack.c.l.b16 %v907
      %v1111 = vunpack.c.l.b16 %v908
      %v1112 = vunpack.c.l.b16 %v909
      %v1113 = vunpack.c.l.b16 %v910
      %v1114 = vunpack.c.l.b16 %v911
      %v1115 = vunpack.c.l.b16 %v912
      %v1116 = vunpack.c.l.b16 %v913
      %v1117 = vunpack.c.l.b16 %v914
      %v1118 = vunpack.c.l.b16 %v915
      %v1119 = vunpack.c.l.b16 %v916
      %v1120 = vunpack.c.l.b16 %v917
      %v1121 = vunpack.c.l.b16 %v918
      %v1122 = vunpack.c.l.b16 %v919
      %v1123 = vunpack.c.l.b16 %v920
      %v1124 = vunpack.c.l.b16 %v921
      %v1125 = vunpack.c.l.b16 %v922
      %v1126 = vunpack.c.l.b16 %v923
      %v1127 = vunpack.c.l.b16 %v924
      %v1128 = vunpack.c.l.b16 %v925
      %v1129 = vunpack.c.l.b16 %v926
      %v1130 = vunpack.c.l.b16 %v927
      %v1131 = vunpack.c.l.b16 %v928
      %v1132 = vunpack.c.l.b16 %v929
      %v1133 = vunpack.c.l.b16 %v930
      %v1134 = vunpack.c.l.b16 %v931
      %v1135 = vunpack.c.l.b16 %v932
      %v1136 = vunpack.c.l.b16 %v933
      %v1137 = vunpack.c.l.b16 %v934
      %v1138 = vunpack.c.l.b16 %v935
      %v1139 = vunpack.c.l.b16 %v936
      %v1140 = vunpack.c.l.b16 %v937
      %v1141 = vunpack.c.l.b16 %v938
      %v1142 = vunpack.c.l.b16 %v939
      %v1143 = vunpack.c.l.b16 %v940
      %v1144 = vunpack.c.l.b16 %v941
      %v1145 = vunpack.c.l.b16 %v942
      %v1146 = vunpack.c.l.b16 %v943
      %v1147 = vunpack.c.l.b16 %v944
      %v1148 = vunpack.c.l.b16 %v945
      %v1149 = vunpack.c.l.b16 %v946
      %v1150 = vunpack.c.l.b16 %v947
      %v1151 = vunpack.c.l.b16 %v948
      %v1152 = vunpack.c.l.b16 %v949
      %v1153 = vunpack.c.l.b16 %v950
      %v1154 = vunpack.c.l.b16 %v951
      %v1155 = vunpack.c.l.b16 %v952
      %v1156 = vunpack.c.l.b16 %v953
      %v1157 = vunpack.c.l.b16 %v954
      %v1158 = vunpack.c.l.b16 %v955
      %v1159 = vunpack.c.l.b16 %v956
      %v1160 = vunpack.c.l.b16 %v957
      %v1161 = vunpack.c.l.b16 %v958
      %v1162 = vunpack.c.l.b16 %v959
      %v1163 = vunpack.c.l.b16 %v960
      %v1164 = vunpack.c.l.b16 %v961
      %v1165 = vunpack.c.l.b16 %v962
      %v1166 = vunpack.c.l.b16 %v963
      %v1167 = vunpack.c.l.b16 %v964
      %v1168 = vunpack.c.l.b16 %v965
      %v1169 = vunpack.c.l.b16 %v966
      %v1170 = vunpack.c.l.b16 %v967
      %v1171 = vunpack.c.l.b16 %v968
      %v1172 = vunpack.c.l.b16 %v969
      %v1173 = vunpack.c.l.b16 %v970
      %v1174 = vunpack.c.l.b16 %v971
      %v1175 = vunpack.c.l.b16 %v972
      %v1176 = vunpack.c.l.b16 %v973
      %v1177 = vunpack.c.l.b16 %v974
      %v1178 = vunpack.c.l.b16 %v975
      %v1179 = vunpack.c.l.b16 %v976
      %v1180 = vunpack.c.l.b16 %v977
      %v1181 = vunpack.c.l.b16 %v978
      %v1182 = vunpack.c.l.b16 %v979
      %v1183 = vunpack.c.l.b16 %v980
      %v1184 = vunpack.c.l.b16 %v981
      %v1185 = vunpack.c.l.b16 %v982
      %v1186 = vunpack.c.l.b16 %v983
      %v1187 = vunpack.c.l.b16 %v984
      %v1188 = vunpack.c.l.b16 %v985
      %v1189 = vunpack.c.l.b16 %v986
      %v1190 = vunpack.c.l.b16 %v987
      %v1191 = vunpack.c.l.b16 %v988
      %v1192 = vunpack.c.l.b16 %v989
      %v1193 = vunpack.c.l.b16 %v990
      %v1194 = vunpack.c.l.b16 %v991
      %v1195 = vpack.c.b16 %v1098, %v1097
      %v1196 = vpack.c.b16 %v1100, %v1099
      %v1197 = vpack.c.b16 %v1102, %v1101
      %v1198 = vpack.c.b16 %v1104, %v1103
      %v1199 = vpack.c.b16 %v1106, %v1105
      %v1200 = vpack.c.b16 %v1108, %v1107
      %v1201 = vpack.c.b16 %v1110, %v1109
      %v1202 = vpack.c.b16 %v1112, %v1111
      %v1203 = vpack.c.b16 %v1114, %v1113
      %v1204 = vpack.c.b16 %v1116, %v1115
      %v1205 = vpack.c.b16 %v1118, %v1117
      %v1206 = vpack.c.b16 %v1120, %v1119
      %v1207 = vpack.c.b16 %v1122, %v1121
      %v1208 = vpack.c.b16 %v1124, %v1123
      %v1209 = vpack.c.b16 %v1126, %v1125
      %v1210 = vpack.c.b16 %v1128, %v1127
      %v1211 = vpack.c.b16 %v1130, %v1129
      %v1212 = vpack.c.b16 %v1132, %v1131
      %v1213 = vpack.c.b16 %v1134, %v1133
      %v1214 = vpack.c.b16 %v1136, %v1135
      %v1215 = vpack.c.b16 %v1138, %v1137
      %v1216 = vpack.c.b16 %v1140, %v1139
      %v1217 = vpack.c.b16 %v1142, %v1141
      %v1218 = vpack.c.b16 %v1144, %v1143
      %v1219 = vpack.c.b16 %v1146, %v1145
      %v1220 = vpack.c.b16 %v1148, %v1147
      %v1221 = vpack.c.b16 %v1150, %v1149
      %v1222 = vpack.c.b16 %v1152, %v1151
      %v1223 = vpack.c.b16 %v1154, %v1153
      %v1224 = vpack.c.b16 %v1156, %v1155
      %v1225 = vpack.c.b16 %v1158, %v1157
      %v1226 = vpack.c.b16 %v1160, %v1159
      %v1227 = vpack.c.b16 %v1162, %v1161
      %v1228 = vpack.c.b16 %v1164, %v1163
      %v1229 = vpack.c.b16 %v1166, %v1165
      %v1230 = vpack.c.b16 %v1168, %v1167
      %v1231 = vpack.c.b16 %v1170, %v1169
      %v1232 = vpack.c.b16 %v1172, %v1171
      %v1233 = vpack.c.b16 %v1174, %v1173
      %v1234 = vpack.c.b16 %v1176, %v1175
      %v1235 = vpack.c.b16 %v1178, %v1177
      %v1236 = vpack.c.b16 %v1180, %v1179
      %v1237 = vpack.c.b16 %v1182, %v1181
      %v1238 = vpack.c.b16 %v1184, %v1183
      %v1239 = vpack.c.b16 %v1186, %v1185
      %v1240 = vpack.c.b16 %v1188, %v1187
      %v1241 = vpack.c.b16 %v1190, %v1189
      %v1242 = vpack.c.b16 %v1192, %v1191
      %v1243 = vpack.c.b16 %v1194, %v1193
      %vm1293 = vcmask 130048
      %v1295 = vsel %vm1293, %v788, 0
      %v1298 = vsel %vm1293, %v795, 0
      %v1301 = vsel %vm1293, %v802, 0
      %v1304 = vsel %vm1293, %v809, 0
      %v1307 = vsel %vm1293, %v816, 0
      %v1310 = vsel %vm1293, %v823, 0
      %v1313 = vsel %vm1293, %v830, 0
      %v1316 = vsel %vm1293, %v837, 0
      %v1319 = vsel %vm1293, %v844, 0
      %v1322 = vsel %vm1293, %v851, 0
      %v1325 = vsel %vm1293, %v858, 0
      %v1328 = vsel %vm1293, %v865, 0
      %v1331 = vsel %vm1293, %v872, 0
      %v1334 = vsel %vm1293, %v879, 0
      %v1337 = vsel %vm1293, %v886, 0
      %v1340 = vsel %vm1293, %v893, 0
      %1342 = vmatprep.subr.bf16.mxu0 0
      %1343 = vmatpush1.bf16.msra.mxu0 %v1202
      %1344 = vmatprep.subr.bf16.mxu0 0
      %1345 = vmatpush1.bf16.msra.mxu0 %v1201
      %1346 = vmatprep.subr.bf16.mxu0 0
      %1347 = vmatpush1.bf16.msra.mxu0 %v1200
      %1348 = vmatprep.subr.bf16.mxu0 0
      %1349 = vmatpush1.bf16.msra.mxu0 %v1199
      %1350 = vmatprep.subr.bf16.mxu0 0
      %1351 = vmatpush1.bf16.msra.mxu0 %v1198
      %1352 = vmatprep.subr.bf16.mxu0 0
      %1353 = vmatpush1.bf16.msra.mxu0 %v1197
      %1354 = vmatprep.subr.bf16.mxu0 0
      %1355 = vmatpush1.bf16.msra.mxu0 %v1196
      %1356 = vmatprep.subr.bf16.mxu0 0
      %1357 = vmatpush1.bf16.msra.mxu0 %v1195
      %1358 = vmatprep.subr.bf16.mxu0 0
      %1359 = vmatpush2.bf16.msra.mxu0 %v1210
      %1360 = vmatprep.subr.bf16.mxu0 0
      %1361 = vmatpush2.bf16.msra.mxu0 %v1209
      %1362 = vmatprep.subr.bf16.mxu0 0
      %1363 = vmatpush2.bf16.msra.mxu0 %v1208
      %1364 = vmatprep.subr.bf16.mxu0 0
      %1365 = vmatpush2.bf16.msra.mxu0 %v1207
      %1366 = vmatprep.subr.bf16.mxu0 0
      %1367 = vmatpush2.bf16.msra.mxu0 %v1206
      %1368 = vmatprep.subr.bf16.mxu0 0
      %1369 = vmatpush2.bf16.msra.mxu0 %v1205
      %1370 = vmatprep.subr.bf16.mxu0 0
      %1371 = vmatpush2.bf16.msra.mxu0 %v1204
      %1372 = vmatprep.subr.bf16.mxu0 0
      %1373 = vmatpush2.bf16.msra.mxu0 %v1203
      %1374 = vmatprep.mubr.bf16.mxu0 %v783
      %1375 = vmatmul.mubr.bf16.gmra.mxu0 %v782
      %v1376 = vpop.f32.mrf.mxu0
      %v1377 = vadd.f32 %v997, %v1376
      %v1378 = vpop.f32.mrf.mxu0
      %v1379 = vpop.f32.mrf.mxu0
      %v1380 = vadd.f32 %v997, %v1379
      %v1381 = vpop.f32.mrf.mxu0
      %1382 = vmatprep.mubr.bf16.mxu0 %v790
      %1383 = vmatmul.mubr.bf16.gmra.mxu0 %v789
      %v1384 = vpop.f32.mrf.mxu0
      %v1385 = vadd.f32 %v997, %v1384
      %v1386 = vpop.f32.mrf.mxu0
      %v1387 = vpop.f32.mrf.mxu0
      %v1388 = vadd.f32 %v997, %v1387
      %v1389 = vpop.f32.mrf.mxu0
      %1390 = vmatprep.mubr.bf16.mxu0 %v797
      %1391 = vmatmul.mubr.bf16.gmra.mxu0 %v796
      %v1392 = vpop.f32.mrf.mxu0
      %v1393 = vadd.f32 %v997, %v1392
      %v1394 = vpop.f32.mrf.mxu0
      %v1395 = vpop.f32.mrf.mxu0
      %v1396 = vadd.f32 %v997, %v1395
      %v1397 = vpop.f32.mrf.mxu0
      %1398 = vmatprep.mubr.bf16.mxu0 %v804
      %1399 = vmatmul.mubr.bf16.gmra.mxu0 %v803
      %v1400 = vpop.f32.mrf.mxu0
      %v1401 = vadd.f32 %v997, %v1400
      %v1402 = vpop.f32.mrf.mxu0
      %v1403 = vpop.f32.mrf.mxu0
      %v1404 = vadd.f32 %v997, %v1403
      %v1405 = vpop.f32.mrf.mxu0
      %1406 = vmatprep.mubr.bf16.mxu0 %v811
      %1407 = vmatmul.mubr.bf16.gmra.mxu0 %v810
      %v1408 = vpop.f32.mrf.mxu0
      %v1409 = vadd.f32 %v997, %v1408
      %v1410 = vpop.f32.mrf.mxu0
      %v1411 = vpop.f32.mrf.mxu0
      %v1412 = vadd.f32 %v997, %v1411
      %v1413 = vpop.f32.mrf.mxu0
      %1414 = vmatprep.mubr.bf16.mxu0 %v818
      %1415 = vmatmul.mubr.bf16.gmra.mxu0 %v817
      %v1416 = vpop.f32.mrf.mxu0
      %v1417 = vadd.f32 %v997, %v1416
      %v1418 = vpop.f32.mrf.mxu0
      %v1419 = vpop.f32.mrf.mxu0
      %v1420 = vadd.f32 %v997, %v1419
      %v1421 = vpop.f32.mrf.mxu0
      %1422 = vmatprep.mubr.bf16.mxu0 %v825
      %1423 = vmatmul.mubr.bf16.gmra.mxu0 %v824
      %v1424 = vpop.f32.mrf.mxu0
      %v1425 = vadd.f32 %v997, %v1424
      %v1426 = vpop.f32.mrf.mxu0
      %v1427 = vpop.f32.mrf.mxu0
      %v1428 = vadd.f32 %v997, %v1427
      %v1429 = vpop.f32.mrf.mxu0
      %1430 = vmatprep.mubr.bf16.mxu0 %v832
      %1431 = vmatmul.mubr.bf16.gmra.mxu0 %v831
      %v1432 = vpop.f32.mrf.mxu0
      %v1433 = vadd.f32 %v997, %v1432
      %v1434 = vpop.f32.mrf.mxu0
      %v1435 = vpop.f32.mrf.mxu0
      %v1436 = vadd.f32 %v997, %v1435
      %v1437 = vpop.f32.mrf.mxu0
      %1438 = vmatprep.mubr.bf16.mxu0 %v839
      %1439 = vmatmul.mubr.bf16.gmra.mxu0 %v838
      %v1440 = vpop.f32.mrf.mxu0
      %v1441 = vadd.f32 %v997, %v1440
      %v1442 = vpop.f32.mrf.mxu0
      %v1443 = vpop.f32.mrf.mxu0
      %v1444 = vadd.f32 %v997, %v1443
      %v1445 = vpop.f32.mrf.mxu0
      %1446 = vmatprep.mubr.bf16.mxu0 %v846
      %1447 = vmatmul.mubr.bf16.gmra.mxu0 %v845
      %v1448 = vpop.f32.mrf.mxu0
      %v1449 = vadd.f32 %v997, %v1448
      %v1450 = vpop.f32.mrf.mxu0
      %v1451 = vpop.f32.mrf.mxu0
      %v1452 = vadd.f32 %v997, %v1451
      %v1453 = vpop.f32.mrf.mxu0
      %1454 = vmatprep.mubr.bf16.mxu0 %v853
      %1455 = vmatmul.mubr.bf16.gmra.mxu0 %v852
      %v1456 = vpop.f32.mrf.mxu0
      %v1457 = vadd.f32 %v997, %v1456
      %v1458 = vpop.f32.mrf.mxu0
      %v1459 = vpop.f32.mrf.mxu0
      %v1460 = vadd.f32 %v997, %v1459
      %v1461 = vpop.f32.mrf.mxu0
      %1462 = vmatprep.mubr.bf16.mxu0 %v860
      %1463 = vmatmul.mubr.bf16.gmra.mxu0 %v859
      %v1464 = vpop.f32.mrf.mxu0
      %v1465 = vadd.f32 %v997, %v1464
      %v1466 = vpop.f32.mrf.mxu0
      %v1467 = vpop.f32.mrf.mxu0
      %v1468 = vadd.f32 %v997, %v1467
      %v1469 = vpop.f32.mrf.mxu0
      %1470 = vmatprep.mubr.bf16.mxu0 %v867
      %1471 = vmatmul.mubr.bf16.gmra.mxu0 %v866
      %v1472 = vpop.f32.mrf.mxu0
      %v1473 = vadd.f32 %v997, %v1472
      %v1474 = vpop.f32.mrf.mxu0
      %v1475 = vpop.f32.mrf.mxu0
      %v1476 = vadd.f32 %v997, %v1475
      %v1477 = vpop.f32.mrf.mxu0
      %1478 = vmatprep.mubr.bf16.mxu0 %v874
      %1479 = vmatmul.mubr.bf16.gmra.mxu0 %v873
      %v1480 = vpop.f32.mrf.mxu0
      %v1481 = vadd.f32 %v997, %v1480
      %v1482 = vpop.f32.mrf.mxu0
      %v1483 = vpop.f32.mrf.mxu0
      %v1484 = vadd.f32 %v997, %v1483
      %v1485 = vpop.f32.mrf.mxu0
      %1486 = vmatprep.mubr.bf16.mxu0 %v881
      %1487 = vmatmul.mubr.bf16.gmra.mxu0 %v880
      %v1488 = vpop.f32.mrf.mxu0
      %v1489 = vadd.f32 %v997, %v1488
      %v1490 = vpop.f32.mrf.mxu0
      %v1491 = vpop.f32.mrf.mxu0
      %v1492 = vadd.f32 %v997, %v1491
      %v1493 = vpop.f32.mrf.mxu0
      %1494 = vmatprep.mubr.bf16.mxu0 %v888
      %1495 = vmatmul.mubr.bf16.gmra.mxu0 %v887
      %v1496 = vpop.f32.mrf.mxu0
      %v1497 = vadd.f32 %v997, %v1496
      %v1498 = vpop.f32.mrf.mxu0
      %v1499 = vpop.f32.mrf.mxu0
      %v1500 = vadd.f32 %v997, %v1499
      %v1501 = vpop.f32.mrf.mxu0
      %1502 = vdwg.mxu0
      %1503 = vmatprep.subr.bf16.mxu0 0
      %1504 = vmatpush1.bf16.msra.mxu0 %v1218
      %1505 = vmatprep.subr.bf16.mxu0 0
      %1506 = vmatpush1.bf16.msra.mxu0 %v1217
      %1507 = vmatprep.subr.bf16.mxu0 0
      %1508 = vmatpush1.bf16.msra.mxu0 %v1216
      %1509 = vmatprep.subr.bf16.mxu0 0
      %1510 = vmatpush1.bf16.msra.mxu0 %v1215
      %1511 = vmatprep.subr.bf16.mxu0 0
      %1512 = vmatpush1.bf16.msra.mxu0 %v1214
      %1513 = vmatprep.subr.bf16.mxu0 0
      %1514 = vmatpush1.bf16.msra.mxu0 %v1213
      %1515 = vmatprep.subr.bf16.mxu0 0
      %1516 = vmatpush1.bf16.msra.mxu0 %v1212
      %1517 = vmatprep.subr.bf16.mxu0 0
      %1518 = vmatpush1.bf16.msra.mxu0 %v1211
      %1519 = vmatprep.subr.bf16.mxu0 0
      %1520 = vmatpush2.bf16.msra.mxu0 %v1226
      %1521 = vmatprep.subr.bf16.mxu0 0
      %1522 = vmatpush2.bf16.msra.mxu0 %v1225
      %1523 = vmatprep.subr.bf16.mxu0 0
      %1524 = vmatpush2.bf16.msra.mxu0 %v1224
      %1525 = vmatprep.subr.bf16.mxu0 0
      %1526 = vmatpush2.bf16.msra.mxu0 %v1223
      %1527 = vmatprep.subr.bf16.mxu0 0
      %1528 = vmatpush2.bf16.msra.mxu0 %v1222
      %1529 = vmatprep.subr.bf16.mxu0 0
      %1530 = vmatpush2.bf16.msra.mxu0 %v1221
      %1531 = vmatprep.subr.bf16.mxu0 0
      %1532 = vmatpush2.bf16.msra.mxu0 %v1220
      %1533 = vmatprep.subr.bf16.mxu0 0
      %1534 = vmatpush2.bf16.msra.mxu0 %v1219
      %1535 = vmatprep.mubr.bf16.mxu0 %v785
      %1536 = vmatmul.mubr.bf16.gmra.mxu0 %v784
      %v1537 = vpop.f32.mrf.mxu0
      %v1538 = vadd.f32 %v1377, %v1537
      %v1539 = vpop.f32.mrf.mxu0
      %v1540 = vpop.f32.mrf.mxu0
      %v1541 = vadd.f32 %v1380, %v1540
      %v1542 = vpop.f32.mrf.mxu0
      %1543 = vmatprep.mubr.bf16.mxu0 %v792
      %1544 = vmatmul.mubr.bf16.gmra.mxu0 %v791
      %v1545 = vpop.f32.mrf.mxu0
      %v1546 = vadd.f32 %v1385, %v1545
      %v1547 = vpop.f32.mrf.mxu0
      %v1548 = vpop.f32.mrf.mxu0
      %v1549 = vadd.f32 %v1388, %v1548
      %v1550 = vpop.f32.mrf.mxu0
      %1551 = vmatprep.mubr.bf16.mxu0 %v799
      %1552 = vmatmul.mubr.bf16.gmra.mxu0 %v798
      %v1553 = vpop.f32.mrf.mxu0
      %v1554 = vadd.f32 %v1393, %v1553
      %v1555 = vpop.f32.mrf.mxu0
      %v1556 = vpop.f32.mrf.mxu0
      %v1557 = vadd.f32 %v1396, %v1556
      %v1558 = vpop.f32.mrf.mxu0
      %1559 = vmatprep.mubr.bf16.mxu0 %v806
      %1560 = vmatmul.mubr.bf16.gmra.mxu0 %v805
      %v1561 = vpop.f32.mrf.mxu0
      %v1562 = vadd.f32 %v1401, %v1561
      %v1563 = vpop.f32.mrf.mxu0
      %v1564 = vpop.f32.mrf.mxu0
      %v1565 = vadd.f32 %v1404, %v1564
      %v1566 = vpop.f32.mrf.mxu0
      %1567 = vmatprep.mubr.bf16.mxu0 %v813
      %1568 = vmatmul.mubr.bf16.gmra.mxu0 %v812
      %v1569 = vpop.f32.mrf.mxu0
      %v1570 = vadd.f32 %v1409, %v1569
      %v1571 = vpop.f32.mrf.mxu0
      %v1572 = vpop.f32.mrf.mxu0
      %v1573 = vadd.f32 %v1412, %v1572
      %v1574 = vpop.f32.mrf.mxu0
      %1575 = vmatprep.mubr.bf16.mxu0 %v820
      %1576 = vmatmul.mubr.bf16.gmra.mxu0 %v819
      %v1577 = vpop.f32.mrf.mxu0
      %v1578 = vadd.f32 %v1417, %v1577
      %v1579 = vpop.f32.mrf.mxu0
      %v1580 = vpop.f32.mrf.mxu0
      %v1581 = vadd.f32 %v1420, %v1580
      %v1582 = vpop.f32.mrf.mxu0
      %1583 = vmatprep.mubr.bf16.mxu0 %v827
      %1584 = vmatmul.mubr.bf16.gmra.mxu0 %v826
      %v1585 = vpop.f32.mrf.mxu0
      %v1586 = vadd.f32 %v1425, %v1585
      %v1587 = vpop.f32.mrf.mxu0
      %v1588 = vpop.f32.mrf.mxu0
      %v1589 = vadd.f32 %v1428, %v1588
      %v1590 = vpop.f32.mrf.mxu0
      %1591 = vmatprep.mubr.bf16.mxu0 %v834
      %1592 = vmatmul.mubr.bf16.gmra.mxu0 %v833
      %v1593 = vpop.f32.mrf.mxu0
      %v1594 = vadd.f32 %v1433, %v1593
      %v1595 = vpop.f32.mrf.mxu0
      %v1596 = vpop.f32.mrf.mxu0
      %v1597 = vadd.f32 %v1436, %v1596
      %v1598 = vpop.f32.mrf.mxu0
      %1599 = vmatprep.mubr.bf16.mxu0 %v841
      %1600 = vmatmul.mubr.bf16.gmra.mxu0 %v840
      %v1601 = vpop.f32.mrf.mxu0
      %v1602 = vadd.f32 %v1441, %v1601
      %v1603 = vpop.f32.mrf.mxu0
      %v1604 = vpop.f32.mrf.mxu0
      %v1605 = vadd.f32 %v1444, %v1604
      %v1606 = vpop.f32.mrf.mxu0
      %1607 = vmatprep.mubr.bf16.mxu0 %v848
      %1608 = vmatmul.mubr.bf16.gmra.mxu0 %v847
      %v1609 = vpop.f32.mrf.mxu0
      %v1610 = vadd.f32 %v1449, %v1609
      %v1611 = vpop.f32.mrf.mxu0
      %v1612 = vpop.f32.mrf.mxu0
      %v1613 = vadd.f32 %v1452, %v1612
      %v1614 = vpop.f32.mrf.mxu0
      %1615 = vmatprep.mubr.bf16.mxu0 %v855
      %1616 = vmatmul.mubr.bf16.gmra.mxu0 %v854
      %v1617 = vpop.f32.mrf.mxu0
      %v1618 = vadd.f32 %v1457, %v1617
      %v1619 = vpop.f32.mrf.mxu0
      %v1620 = vpop.f32.mrf.mxu0
      %v1621 = vadd.f32 %v1460, %v1620
      %v1622 = vpop.f32.mrf.mxu0
      %1623 = vmatprep.mubr.bf16.mxu0 %v862
      %1624 = vmatmul.mubr.bf16.gmra.mxu0 %v861
      %v1625 = vpop.f32.mrf.mxu0
      %v1626 = vadd.f32 %v1465, %v1625
      %v1627 = vpop.f32.mrf.mxu0
      %v1628 = vpop.f32.mrf.mxu0
      %v1629 = vadd.f32 %v1468, %v1628
      %v1630 = vpop.f32.mrf.mxu0
      %1631 = vmatprep.mubr.bf16.mxu0 %v869
      %1632 = vmatmul.mubr.bf16.gmra.mxu0 %v868
      %v1633 = vpop.f32.mrf.mxu0
      %v1634 = vadd.f32 %v1473, %v1633
      %v1635 = vpop.f32.mrf.mxu0
      %v1636 = vpop.f32.mrf.mxu0
      %v1637 = vadd.f32 %v1476, %v1636
      %v1638 = vpop.f32.mrf.mxu0
      %1639 = vmatprep.mubr.bf16.mxu0 %v876
      %1640 = vmatmul.mubr.bf16.gmra.mxu0 %v875
      %v1641 = vpop.f32.mrf.mxu0
      %v1642 = vadd.f32 %v1481, %v1641
      %v1643 = vpop.f32.mrf.mxu0
      %v1644 = vpop.f32.mrf.mxu0
      %v1645 = vadd.f32 %v1484, %v1644
      %v1646 = vpop.f32.mrf.mxu0
      %1647 = vmatprep.mubr.bf16.mxu0 %v883
      %1648 = vmatmul.mubr.bf16.gmra.mxu0 %v882
      %v1649 = vpop.f32.mrf.mxu0
      %v1650 = vadd.f32 %v1489, %v1649
      %v1651 = vpop.f32.mrf.mxu0
      %v1652 = vpop.f32.mrf.mxu0
      %v1653 = vadd.f32 %v1492, %v1652
      %v1654 = vpop.f32.mrf.mxu0
      %1655 = vmatprep.mubr.bf16.mxu0 %v890
      %1656 = vmatmul.mubr.bf16.gmra.mxu0 %v889
      %v1657 = vpop.f32.mrf.mxu0
      %v1658 = vadd.f32 %v1497, %v1657
      %v1659 = vpop.f32.mrf.mxu0
      %v1660 = vpop.f32.mrf.mxu0
      %v1661 = vadd.f32 %v1500, %v1660
      %v1662 = vpop.f32.mrf.mxu0
      %1663 = vdwg.mxu0
      %1664 = vmatprep.subr.bf16.mxu0 0
      %1665 = vmatpush1.bf16.msra.mxu0 %v1234
      %1666 = vmatprep.subr.bf16.mxu0 0
      %1667 = vmatpush1.bf16.msra.mxu0 %v1233
      %1668 = vmatprep.subr.bf16.mxu0 0
      %1669 = vmatpush1.bf16.msra.mxu0 %v1232
      %1670 = vmatprep.subr.bf16.mxu0 0
      %1671 = vmatpush1.bf16.msra.mxu0 %v1231
      %1672 = vmatprep.subr.bf16.mxu0 0
      %1673 = vmatpush1.bf16.msra.mxu0 %v1230
      %1674 = vmatprep.subr.bf16.mxu0 0
      %1675 = vmatpush1.bf16.msra.mxu0 %v1229
      %1676 = vmatprep.subr.bf16.mxu0 0
      %1677 = vmatpush1.bf16.msra.mxu0 %v1228
      %1678 = vmatprep.subr.bf16.mxu0 0
      %1679 = vmatpush1.bf16.msra.mxu0 %v1227
      %1680 = vmatprep.subr.bf16.mxu0 0
      %1681 = vmatpush2.bf16.msra.mxu0 %v1242
      %1682 = vmatprep.subr.bf16.mxu0 0
      %1683 = vmatpush2.bf16.msra.mxu0 %v1241
      %1684 = vmatprep.subr.bf16.mxu0 0
      %1685 = vmatpush2.bf16.msra.mxu0 %v1240
      %1686 = vmatprep.subr.bf16.mxu0 0
      %1687 = vmatpush2.bf16.msra.mxu0 %v1239
      %1688 = vmatprep.subr.bf16.mxu0 0
      %1689 = vmatpush2.bf16.msra.mxu0 %v1238
      %1690 = vmatprep.subr.bf16.mxu0 0
      %1691 = vmatpush2.bf16.msra.mxu0 %v1237
      %1692 = vmatprep.subr.bf16.mxu0 0
      %1693 = vmatpush2.bf16.msra.mxu0 %v1236
      %1694 = vmatprep.subr.bf16.mxu0 0
      %1695 = vmatpush2.bf16.msra.mxu0 %v1235
      %1696 = vmatprep.mubr.bf16.mxu0 %v787
      %1697 = vmatmul.mubr.bf16.gmra.mxu0 %v786
      %v1698 = vpop.f32.mrf.mxu0
      %v1699 = vadd.f32 %v1538, %v1698
      %v1700 = vpop.f32.mrf.mxu0
      %v1701 = vpop.f32.mrf.mxu0
      %v1702 = vadd.f32 %v1541, %v1701
      %v1703 = vpop.f32.mrf.mxu0
      %1704 = vmatprep.mubr.bf16.mxu0 %v794
      %1705 = vmatmul.mubr.bf16.gmra.mxu0 %v793
      %v1706 = vpop.f32.mrf.mxu0
      %v1707 = vadd.f32 %v1546, %v1706
      %v1708 = vpop.f32.mrf.mxu0
      %v1709 = vpop.f32.mrf.mxu0
      %v1710 = vadd.f32 %v1549, %v1709
      %v1711 = vpop.f32.mrf.mxu0
      %1712 = vmatprep.mubr.bf16.mxu0 %v801
      %1713 = vmatmul.mubr.bf16.gmra.mxu0 %v800
      %v1714 = vpop.f32.mrf.mxu0
      %v1715 = vadd.f32 %v1554, %v1714
      %v1716 = vpop.f32.mrf.mxu0
      %v1717 = vpop.f32.mrf.mxu0
      %v1718 = vadd.f32 %v1557, %v1717
      %v1719 = vpop.f32.mrf.mxu0
      %1720 = vmatprep.mubr.bf16.mxu0 %v808
      %1721 = vmatmul.mubr.bf16.gmra.mxu0 %v807
      %v1722 = vpop.f32.mrf.mxu0
      %v1723 = vadd.f32 %v1562, %v1722
      %v1724 = vpop.f32.mrf.mxu0
      %v1725 = vpop.f32.mrf.mxu0
      %v1726 = vadd.f32 %v1565, %v1725
      %v1727 = vpop.f32.mrf.mxu0
      %1728 = vmatprep.mubr.bf16.mxu0 %v815
      %1729 = vmatmul.mubr.bf16.gmra.mxu0 %v814
      %v1730 = vpop.f32.mrf.mxu0
      %v1731 = vadd.f32 %v1570, %v1730
      %v1732 = vpop.f32.mrf.mxu0
      %v1733 = vpop.f32.mrf.mxu0
      %v1734 = vadd.f32 %v1573, %v1733
      %v1735 = vpop.f32.mrf.mxu0
      %1736 = vmatprep.mubr.bf16.mxu0 %v822
      %1737 = vmatmul.mubr.bf16.gmra.mxu0 %v821
      %v1738 = vpop.f32.mrf.mxu0
      %v1739 = vadd.f32 %v1578, %v1738
      %v1740 = vpop.f32.mrf.mxu0
      %v1741 = vpop.f32.mrf.mxu0
      %v1742 = vadd.f32 %v1581, %v1741
      %v1743 = vpop.f32.mrf.mxu0
      %1744 = vmatprep.mubr.bf16.mxu0 %v829
      %1745 = vmatmul.mubr.bf16.gmra.mxu0 %v828
      %v1746 = vpop.f32.mrf.mxu0
      %v1747 = vadd.f32 %v1586, %v1746
      %v1748 = vpop.f32.mrf.mxu0
      %v1749 = vpop.f32.mrf.mxu0
      %v1750 = vadd.f32 %v1589, %v1749
      %v1751 = vpop.f32.mrf.mxu0
      %1752 = vmatprep.mubr.bf16.mxu0 %v836
      %1753 = vmatmul.mubr.bf16.gmra.mxu0 %v835
      %v1754 = vpop.f32.mrf.mxu0
      %v1755 = vadd.f32 %v1594, %v1754
      %v1756 = vpop.f32.mrf.mxu0
      %v1757 = vpop.f32.mrf.mxu0
      %v1758 = vadd.f32 %v1597, %v1757
      %v1759 = vpop.f32.mrf.mxu0
      %1760 = vmatprep.mubr.bf16.mxu0 %v843
      %1761 = vmatmul.mubr.bf16.gmra.mxu0 %v842
      %v1762 = vpop.f32.mrf.mxu0
      %v1763 = vadd.f32 %v1602, %v1762
      %v1764 = vpop.f32.mrf.mxu0
      %v1765 = vpop.f32.mrf.mxu0
      %v1766 = vadd.f32 %v1605, %v1765
      %v1767 = vpop.f32.mrf.mxu0
      %1768 = vmatprep.mubr.bf16.mxu0 %v850
      %1769 = vmatmul.mubr.bf16.gmra.mxu0 %v849
      %v1770 = vpop.f32.mrf.mxu0
      %v1771 = vadd.f32 %v1610, %v1770
      %v1772 = vpop.f32.mrf.mxu0
      %v1773 = vpop.f32.mrf.mxu0
      %v1774 = vadd.f32 %v1613, %v1773
      %v1775 = vpop.f32.mrf.mxu0
      %1776 = vmatprep.mubr.bf16.mxu0 %v857
      %1777 = vmatmul.mubr.bf16.gmra.mxu0 %v856
      %v1778 = vpop.f32.mrf.mxu0
      %v1779 = vadd.f32 %v1618, %v1778
      %v1780 = vpop.f32.mrf.mxu0
      %v1781 = vpop.f32.mrf.mxu0
      %v1782 = vadd.f32 %v1621, %v1781
      %v1783 = vpop.f32.mrf.mxu0
      %1784 = vmatprep.mubr.bf16.mxu0 %v864
      %1785 = vmatmul.mubr.bf16.gmra.mxu0 %v863
      %v1786 = vpop.f32.mrf.mxu0
      %v1787 = vadd.f32 %v1626, %v1786
      %v1788 = vpop.f32.mrf.mxu0
      %v1789 = vpop.f32.mrf.mxu0
      %v1790 = vadd.f32 %v1629, %v1789
      %v1791 = vpop.f32.mrf.mxu0
      %1792 = vmatprep.mubr.bf16.mxu0 %v871
      %1793 = vmatmul.mubr.bf16.gmra.mxu0 %v870
      %v1794 = vpop.f32.mrf.mxu0
      %v1795 = vadd.f32 %v1634, %v1794
      %v1796 = vpop.f32.mrf.mxu0
      %v1797 = vpop.f32.mrf.mxu0
      %v1798 = vadd.f32 %v1637, %v1797
      %v1799 = vpop.f32.mrf.mxu0
      %1800 = vmatprep.mubr.bf16.mxu0 %v878
      %1801 = vmatmul.mubr.bf16.gmra.mxu0 %v877
      %v1802 = vpop.f32.mrf.mxu0
      %v1803 = vadd.f32 %v1642, %v1802
      %v1804 = vpop.f32.mrf.mxu0
      %v1805 = vpop.f32.mrf.mxu0
      %v1806 = vadd.f32 %v1645, %v1805
      %v1807 = vpop.f32.mrf.mxu0
      %1808 = vmatprep.mubr.bf16.mxu0 %v885
      %1809 = vmatmul.mubr.bf16.gmra.mxu0 %v884
      %v1810 = vpop.f32.mrf.mxu0
      %v1811 = vadd.f32 %v1650, %v1810
      %v1812 = vpop.f32.mrf.mxu0
      %v1813 = vpop.f32.mrf.mxu0
      %v1814 = vadd.f32 %v1653, %v1813
      %v1815 = vpop.f32.mrf.mxu0
      %1816 = vmatprep.mubr.bf16.mxu0 %v892
      %1817 = vmatmul.mubr.bf16.gmra.mxu0 %v891
      %v1818 = vpop.f32.mrf.mxu0
      %v1819 = vadd.f32 %v1658, %v1818
      %v1820 = vpop.f32.mrf.mxu0
      %v1821 = vpop.f32.mrf.mxu0
      %v1822 = vadd.f32 %v1661, %v1821
      %v1823 = vpop.f32.mrf.mxu0
      %1824 = vdwg.mxu0
      %1825 = vmatprep.subr.bf16.mxu0 0
      %1826 = vmatpush1.bf16.msra.mxu0 0
      %1827 = vmatprep.subr.bf16.mxu0 0
      %1828 = vmatpush1.bf16.msra.mxu0 0
      %1829 = vmatprep.subr.bf16.mxu0 0
      %1830 = vmatpush1.bf16.msra.mxu0 0
      %1831 = vmatprep.subr.bf16.mxu0 0
      %1832 = vmatpush1.bf16.msra.mxu0 0
      %1833 = vmatprep.subr.bf16.mxu0 0
      %1834 = vmatpush1.bf16.msra.mxu0 0
      %1835 = vmatprep.subr.bf16.mxu0 0
      %1836 = vmatpush1.bf16.msra.mxu0 0
      %1837 = vmatprep.subr.bf16.mxu0 0
      %1838 = vmatpush1.bf16.msra.mxu0 0
      %1839 = vmatprep.subr.bf16.mxu0 0
      %1840 = vmatpush1.bf16.msra.mxu0 %v1243
      %1841 = vmatprep.subr.bf16.mxu0 0
      %1842 = vmatpush2.bf16.msra.mxu0 0
      %1843 = vmatprep.subr.bf16.mxu0 0
      %1844 = vmatpush2.bf16.msra.mxu0 0
      %1845 = vmatprep.subr.bf16.mxu0 0
      %1846 = vmatpush2.bf16.msra.mxu0 0
      %1847 = vmatprep.subr.bf16.mxu0 0
      %1848 = vmatpush2.bf16.msra.mxu0 0
      %1849 = vmatprep.subr.bf16.mxu0 0
      %1850 = vmatpush2.bf16.msra.mxu0 0
      %1851 = vmatprep.subr.bf16.mxu0 0
      %1852 = vmatpush2.bf16.msra.mxu0 0
      %1853 = vmatprep.subr.bf16.mxu0 0
      %1854 = vmatpush2.bf16.msra.mxu0 0
      %1855 = vmatprep.subr.bf16.mxu0 0
      %1856 = vmatpush2.bf16.msra.mxu0 0
      %1857 = vmatprep.mubr.bf16.mxu0 0
      %1858 = vmatmul.mubr.bf16.gmra.mxu0 %v1295
      %v1859 = vpop.f32.mrf.mxu0
      %v1860 = vadd.f32 %v1699, %v1859
      %v1861 = vpop.f32.mrf.mxu0
      %v1862 = vpop.f32.mrf.mxu0
      %v1863 = vadd.f32 %v1702, %v1862
      %v1864 = vpop.f32.mrf.mxu0
      %1865 = vmatprep.mubr.bf16.mxu0 0
      %1866 = vmatmul.mubr.bf16.gmra.mxu0 %v1298
      %v1867 = vpop.f32.mrf.mxu0
      %v1868 = vadd.f32 %v1707, %v1867
      %v1869 = vpop.f32.mrf.mxu0
      %v1870 = vpop.f32.mrf.mxu0
      %v1871 = vadd.f32 %v1710, %v1870
      %v1872 = vpop.f32.mrf.mxu0
      %1873 = vmatprep.mubr.bf16.mxu0 0
      %1874 = vmatmul.mubr.bf16.gmra.mxu0 %v1301
      %v1875 = vpop.f32.mrf.mxu0
      %v1876 = vadd.f32 %v1715, %v1875
      %v1877 = vpop.f32.mrf.mxu0
      %v1878 = vpop.f32.mrf.mxu0
      %v1879 = vadd.f32 %v1718, %v1878
      %v1880 = vpop.f32.mrf.mxu0
      %1881 = vmatprep.mubr.bf16.mxu0 0
      %1882 = vmatmul.mubr.bf16.gmra.mxu0 %v1304
      %v1883 = vpop.f32.mrf.mxu0
      %v1884 = vadd.f32 %v1723, %v1883
      %v1885 = vpop.f32.mrf.mxu0
      %v1886 = vpop.f32.mrf.mxu0
      %v1887 = vadd.f32 %v1726, %v1886
      %v1888 = vpop.f32.mrf.mxu0
      %1889 = vmatprep.mubr.bf16.mxu0 0
      %1890 = vmatmul.mubr.bf16.gmra.mxu0 %v1307
      %v1891 = vpop.f32.mrf.mxu0
      %v1892 = vadd.f32 %v1731, %v1891
      %v1893 = vpop.f32.mrf.mxu0
      %v1894 = vpop.f32.mrf.mxu0
      %v1895 = vadd.f32 %v1734, %v1894
      %v1896 = vpop.f32.mrf.mxu0
      %1897 = vmatprep.mubr.bf16.mxu0 0
      %1898 = vmatmul.mubr.bf16.gmra.mxu0 %v1310
      %v1899 = vpop.f32.mrf.mxu0
      %v1900 = vadd.f32 %v1739, %v1899
      %v1901 = vpop.f32.mrf.mxu0
      %v1902 = vpop.f32.mrf.mxu0
      %v1903 = vadd.f32 %v1742, %v1902
      %v1904 = vpop.f32.mrf.mxu0
      %1905 = vmatprep.mubr.bf16.mxu0 0
      %1906 = vmatmul.mubr.bf16.gmra.mxu0 %v1313
      %v1907 = vpop.f32.mrf.mxu0
      %v1908 = vadd.f32 %v1747, %v1907
      %v1909 = vpop.f32.mrf.mxu0
      %v1910 = vpop.f32.mrf.mxu0
      %v1911 = vadd.f32 %v1750, %v1910
      %v1912 = vpop.f32.mrf.mxu0
      %1913 = vmatprep.mubr.bf16.mxu0 0
      %1914 = vmatmul.mubr.bf16.gmra.mxu0 %v1316
      %v1915 = vpop.f32.mrf.mxu0
      %v1916 = vadd.f32 %v1755, %v1915
      %v1917 = vpop.f32.mrf.mxu0
      %v1918 = vpop.f32.mrf.mxu0
      %v1919 = vadd.f32 %v1758, %v1918
      %v1920 = vpop.f32.mrf.mxu0
      %1921 = vmatprep.mubr.bf16.mxu0 0
      %1922 = vmatmul.mubr.bf16.gmra.mxu0 %v1319
      %v1923 = vpop.f32.mrf.mxu0
      %v1924 = vadd.f32 %v1763, %v1923
      %v1925 = vpop.f32.mrf.mxu0
      %v1926 = vpop.f32.mrf.mxu0
      %v1927 = vadd.f32 %v1766, %v1926
      %v1928 = vpop.f32.mrf.mxu0
      %1929 = vmatprep.mubr.bf16.mxu0 0
      %1930 = vmatmul.mubr.bf16.gmra.mxu0 %v1322
      %v1931 = vpop.f32.mrf.mxu0
      %v1932 = vadd.f32 %v1771, %v1931
      %v1933 = vpop.f32.mrf.mxu0
      %v1934 = vpop.f32.mrf.mxu0
      %v1935 = vadd.f32 %v1774, %v1934
      %v1936 = vpop.f32.mrf.mxu0
      %1937 = vmatprep.mubr.bf16.mxu0 0
      %1938 = vmatmul.mubr.bf16.gmra.mxu0 %v1325
      %v1939 = vpop.f32.mrf.mxu0
      %v1940 = vadd.f32 %v1779, %v1939
      %v1941 = vpop.f32.mrf.mxu0
      %v1942 = vpop.f32.mrf.mxu0
      %v1943 = vadd.f32 %v1782, %v1942
      %v1944 = vpop.f32.mrf.mxu0
      %1945 = vmatprep.mubr.bf16.mxu0 0
      %1946 = vmatmul.mubr.bf16.gmra.mxu0 %v1328
      %v1947 = vpop.f32.mrf.mxu0
      %v1948 = vadd.f32 %v1787, %v1947
      %v1949 = vpop.f32.mrf.mxu0
      %v1950 = vpop.f32.mrf.mxu0
      %v1951 = vadd.f32 %v1790, %v1950
      %v1952 = vpop.f32.mrf.mxu0
      %1953 = vmatprep.mubr.bf16.mxu0 0
      %1954 = vmatmul.mubr.bf16.gmra.mxu0 %v1331
      %v1955 = vpop.f32.mrf.mxu0
      %v1956 = vadd.f32 %v1795, %v1955
      %v1957 = vpop.f32.mrf.mxu0
      %v1958 = vpop.f32.mrf.mxu0
      %v1959 = vadd.f32 %v1798, %v1958
      %v1960 = vpop.f32.mrf.mxu0
      %1961 = vmatprep.mubr.bf16.mxu0 0
      %1962 = vmatmul.mubr.bf16.gmra.mxu0 %v1334
      %v1963 = vpop.f32.mrf.mxu0
      %v1964 = vadd.f32 %v1803, %v1963
      %v1965 = vpop.f32.mrf.mxu0
      %v1966 = vpop.f32.mrf.mxu0
      %v1967 = vadd.f32 %v1806, %v1966
      %v1968 = vpop.f32.mrf.mxu0
      %1969 = vmatprep.mubr.bf16.mxu0 0
      %1970 = vmatmul.mubr.bf16.gmra.mxu0 %v1337
      %v1971 = vpop.f32.mrf.mxu0
      %v1972 = vadd.f32 %v1811, %v1971
      %v1973 = vpop.f32.mrf.mxu0
      %v1974 = vpop.f32.mrf.mxu0
      %v1975 = vadd.f32 %v1814, %v1974
      %v1976 = vpop.f32.mrf.mxu0
      %1977 = vmatprep.mubr.bf16.mxu0 0
      %1978 = vmatmul.mubr.bf16.gmra.mxu0 %v1340
      %v1979 = vpop.f32.mrf.mxu0
      %v1980 = vadd.f32 %v1819, %v1979
      %v1981 = vpop.f32.mrf.mxu0
      %v1982 = vpop.f32.mrf.mxu0
      %v1983 = vadd.f32 %v1822, %v1982
      %v1984 = vpop.f32.mrf.mxu0
      %1985 = vdwg.mxu0
      %v1986 = vmax.f32 %v1860, 0.0
      %v1987 = vmax.f32 %v1863, 0.0
      %v1988 = vmax.f32 %v1868, 0.0
      %v1989 = vmax.f32 %v1871, 0.0
      %v1990 = vmax.f32 %v1876, 0.0
      %v1991 = vmax.f32 %v1879, 0.0
      %v1992 = vmax.f32 %v1884, 0.0
      %v1993 = vmax.f32 %v1887, 0.0
      %v1994 = vmax.f32 %v1892, 0.0
      %v1995 = vmax.f32 %v1895, 0.0
      %v1996 = vmax.f32 %v1900, 0.0
      %v1997 = vmax.f32 %v1903, 0.0
      %v1998 = vmax.f32 %v1908, 0.0
      %v1999 = vmax.f32 %v1911, 0.0
      %v2000 = vmax.f32 %v1916, 0.0
      %v2001 = vmax.f32 %v1919, 0.0
      %v2002 = vmax.f32 %v1924, 0.0
      %v2003 = vmax.f32 %v1927, 0.0
      %v2004 = vmax.f32 %v1932, 0.0
      %v2005 = vmax.f32 %v1935, 0.0
      %v2006 = vmax.f32 %v1940, 0.0
      %v2007 = vmax.f32 %v1943, 0.0
      %v2008 = vmax.f32 %v1948, 0.0
      %v2009 = vmax.f32 %v1951, 0.0
      %v2010 = vmax.f32 %v1956, 0.0
      %v2011 = vmax.f32 %v1959, 0.0
      %v2012 = vmax.f32 %v1964, 0.0
      %v2013 = vmax.f32 %v1967, 0.0
      %v2014 = vmax.f32 %v1972, 0.0
      %v2015 = vmax.f32 %v1975, 0.0
      %v2016 = vmax.f32 %v1980, 0.0
      %v2017 = vmax.f32 %v1983, 0.0
      %v2018 = vpack.c.bf16 %v1987, %v1986
      %v2019 = vpack.c.bf16 %v1989, %v1988
      %v2020 = vpack.c.bf16 %v1991, %v1990
      %v2021 = vpack.c.bf16 %v1993, %v1992
      %v2022 = vpack.c.bf16 %v1995, %v1994
      %v2023 = vpack.c.bf16 %v1997, %v1996
      %v2024 = vpack.c.bf16 %v1999, %v1998
      %v2025 = vpack.c.bf16 %v2001, %v2000
      %v2026 = vpack.c.bf16 %v2003, %v2002
      %v2027 = vpack.c.bf16 %v2005, %v2004
      %v2028 = vpack.c.bf16 %v2007, %v2006
      %v2029 = vpack.c.bf16 %v2009, %v2008
      %v2030 = vpack.c.bf16 %v2011, %v2010
      %v2031 = vpack.c.bf16 %v2013, %v2012
      %v2032 = vpack.c.bf16 %v2015, %v2014
      %v2033 = vpack.c.bf16 %v2017, %v2016
      %v2034 = vld [vmem:[%s3] sm:$0xf]
      %v2035 = vld [vmem:[%s3 + $0x4] sm:$0xf]
      %v2036 = vld [vmem:[%s3 + $0x8] sm:$0xf]
      %v2037 = vld [vmem:[%s3 + $0xc] sm:$0xf]
      %v2038 = vld [vmem:[%s3 + $0x10] sm:$0xf]
      %v2039 = vld [vmem:[%s3 + $0x14] sm:$0xf]
      %v2040 = vld [vmem:[%s3 + $0x18] sm:$0xf]
      %v2041 = vld [vmem:[%s3 + $0x1c] sm:$0xf]
      %v2042 = vld [vmem:[%s3 + $0x20] sm:$0xf]
      %v2043 = vld [vmem:[%s3 + $0x24] sm:$0xf]
      %v2044 = vld [vmem:[%s3 + $0x28] sm:$0xf]
      %v2045 = vld [vmem:[%s3 + $0x2c] sm:$0xf]
      %v2046 = vld [vmem:[%s3 + $0x30] sm:$0xf]
      %v2047 = vld [vmem:[%s3 + $0x34] sm:$0xf]
      %v2048 = vld [vmem:[%s3 + $0x38] sm:$0xf]
      %v2049 = vld [vmem:[%s3 + $0x3c] sm:$0xf]
      %v2050 = vld [vmem:[%s4] sm:$0x1]
      %v2052 = vlaneseq
      %v2053 = vshrl.u32 %v2052, 7
      %v2054 = vsub.s32 0, %v2053
      %v2055 = vrot.slane %v2050, %v2054
      %v2073 = vunpack.c.l.b16 %v2034
      %v2074 = vunpack.c.l.b16 %v2035
      %v2075 = vunpack.c.l.b16 %v2036
      %v2076 = vunpack.c.l.b16 %v2037
      %v2077 = vunpack.c.l.b16 %v2038
      %v2078 = vunpack.c.l.b16 %v2039
      %v2079 = vunpack.c.l.b16 %v2040
      %v2080 = vunpack.c.l.b16 %v2041
      %v2081 = vunpack.c.l.b16 %v2042
      %v2082 = vunpack.c.l.b16 %v2043
      %v2083 = vunpack.c.l.b16 %v2044
      %v2084 = vunpack.c.l.b16 %v2045
      %v2085 = vunpack.c.l.b16 %v2046
      %v2086 = vunpack.c.l.b16 %v2047
      %v2087 = vunpack.c.l.b16 %v2048
      %v2088 = vunpack.c.l.b16 %v2049
      %v2089 = vpack.c.b16 %v2074, %v2073
      %v2090 = vpack.c.b16 %v2076, %v2075
      %v2091 = vpack.c.b16 %v2078, %v2077
      %v2092 = vpack.c.b16 %v2080, %v2079
      %v2093 = vpack.c.b16 %v2082, %v2081
      %v2094 = vpack.c.b16 %v2084, %v2083
      %v2095 = vpack.c.b16 %v2086, %v2085
      %v2096 = vpack.c.b16 %v2088, %v2087
      %2105 = vmatprep.subr.bf16.mxu0 0
      %2106 = vmatpush1.bf16.msra.mxu0 %v2096
      %2107 = vmatprep.subr.bf16.mxu0 0
      %2108 = vmatpush1.bf16.msra.mxu0 %v2095
      %2109 = vmatprep.subr.bf16.mxu0 0
      %2110 = vmatpush1.bf16.msra.mxu0 %v2094
      %2111 = vmatprep.subr.bf16.mxu0 0
      %2112 = vmatpush1.bf16.msra.mxu0 %v2093
      %2113 = vmatprep.subr.bf16.mxu0 0
      %2114 = vmatpush1.bf16.msra.mxu0 %v2092
      %2115 = vmatprep.subr.bf16.mxu0 0
      %2116 = vmatpush1.bf16.msra.mxu0 %v2091
      %2117 = vmatprep.subr.bf16.mxu0 0
      %2118 = vmatpush1.bf16.msra.mxu0 %v2090
      %2119 = vmatprep.subr.bf16.mxu0 0
      %2120 = vmatpush1.bf16.msra.mxu0 %v2089
      %2121 = vmatprep.subr.bf16.mxu0 0
      %2122 = vmatpush2.bf16.msra.mxu0 0
      %2123 = vmatprep.subr.bf16.mxu0 0
      %2124 = vmatpush2.bf16.msra.mxu0 0
      %2125 = vmatprep.subr.bf16.mxu0 0
      %2126 = vmatpush2.bf16.msra.mxu0 0
      %2127 = vmatprep.subr.bf16.mxu0 0
      %2128 = vmatpush2.bf16.msra.mxu0 0
      %2129 = vmatprep.subr.bf16.mxu0 0
      %2130 = vmatpush2.bf16.msra.mxu0 0
      %2131 = vmatprep.subr.bf16.mxu0 0
      %2132 = vmatpush2.bf16.msra.mxu0 0
      %2133 = vmatprep.subr.bf16.mxu0 0
      %2134 = vmatpush2.bf16.msra.mxu0 0
      %2135 = vmatprep.subr.bf16.mxu0 0
      %2136 = vmatpush2.bf16.msra.mxu0 0
      %2137 = vmatprep.mubr.bf16.mxu0 0
      %2138 = vmatmul.mubr.bf16.gmra.mxu0 %v2018
      %v2139 = vpop.f32.mrf.mxu0
      %v2140 = vadd.f32 %v2055, %v2139
      %v2141 = vpop.f32.mrf.mxu0
      %v2142 = vpop.f32.mrf.mxu0
      %v2143 = vadd.f32 %v2055, %v2142
      %v2144 = vpop.f32.mrf.mxu0
      %2145 = vmatprep.mubr.bf16.mxu0 0
      %2146 = vmatmul.mubr.bf16.gmra.mxu0 %v2019
      %v2147 = vpop.f32.mrf.mxu0
      %v2148 = vadd.f32 %v2055, %v2147
      %v2149 = vpop.f32.mrf.mxu0
      %v2150 = vpop.f32.mrf.mxu0
      %v2151 = vadd.f32 %v2055, %v2150
      %v2152 = vpop.f32.mrf.mxu0
      %2153 = vmatprep.mubr.bf16.mxu0 0
      %2154 = vmatmul.mubr.bf16.gmra.mxu0 %v2020
      %v2155 = vpop.f32.mrf.mxu0
      %v2156 = vadd.f32 %v2055, %v2155
      %v2157 = vpop.f32.mrf.mxu0
      %v2158 = vpop.f32.mrf.mxu0
      %v2159 = vadd.f32 %v2055, %v2158
      %v2160 = vpop.f32.mrf.mxu0
      %2161 = vmatprep.mubr.bf16.mxu0 0
      %2162 = vmatmul.mubr.bf16.gmra.mxu0 %v2021
      %v2163 = vpop.f32.mrf.mxu0
      %v2164 = vadd.f32 %v2055, %v2163
      %v2165 = vpop.f32.mrf.mxu0
      %v2166 = vpop.f32.mrf.mxu0
      %v2167 = vadd.f32 %v2055, %v2166
      %v2168 = vpop.f32.mrf.mxu0
      %2169 = vmatprep.mubr.bf16.mxu0 0
      %2170 = vmatmul.mubr.bf16.gmra.mxu0 %v2022
      %v2171 = vpop.f32.mrf.mxu0
      %v2172 = vadd.f32 %v2055, %v2171
      %v2173 = vpop.f32.mrf.mxu0
      %v2174 = vpop.f32.mrf.mxu0
      %v2175 = vadd.f32 %v2055, %v2174
      %v2176 = vpop.f32.mrf.mxu0
      %2177 = vmatprep.mubr.bf16.mxu0 0
      %2178 = vmatmul.mubr.bf16.gmra.mxu0 %v2023
      %v2179 = vpop.f32.mrf.mxu0
      %v2180 = vadd.f32 %v2055, %v2179
      %v2181 = vpop.f32.mrf.mxu0
      %v2182 = vpop.f32.mrf.mxu0
      %v2183 = vadd.f32 %v2055, %v2182
      %v2184 = vpop.f32.mrf.mxu0
      %2185 = vmatprep.mubr.bf16.mxu0 0
      %2186 = vmatmul.mubr.bf16.gmra.mxu0 %v2024
      %v2187 = vpop.f32.mrf.mxu0
      %v2188 = vadd.f32 %v2055, %v2187
      %v2189 = vpop.f32.mrf.mxu0
      %v2190 = vpop.f32.mrf.mxu0
      %v2191 = vadd.f32 %v2055, %v2190
      %v2192 = vpop.f32.mrf.mxu0
      %2193 = vmatprep.mubr.bf16.mxu0 0
      %2194 = vmatmul.mubr.bf16.gmra.mxu0 %v2025
      %v2195 = vpop.f32.mrf.mxu0
      %v2196 = vadd.f32 %v2055, %v2195
      %v2197 = vpop.f32.mrf.mxu0
      %v2198 = vpop.f32.mrf.mxu0
      %v2199 = vadd.f32 %v2055, %v2198
      %v2200 = vpop.f32.mrf.mxu0
      %2201 = vmatprep.mubr.bf16.mxu0 0
      %2202 = vmatmul.mubr.bf16.gmra.mxu0 %v2026
      %v2203 = vpop.f32.mrf.mxu0
      %v2204 = vadd.f32 %v2055, %v2203
      %v2205 = vpop.f32.mrf.mxu0
      %v2206 = vpop.f32.mrf.mxu0
      %v2207 = vadd.f32 %v2055, %v2206
      %v2208 = vpop.f32.mrf.mxu0
      %2209 = vmatprep.mubr.bf16.mxu0 0
      %2210 = vmatmul.mubr.bf16.gmra.mxu0 %v2027
      %v2211 = vpop.f32.mrf.mxu0
      %v2212 = vadd.f32 %v2055, %v2211
      %v2213 = vpop.f32.mrf.mxu0
      %v2214 = vpop.f32.mrf.mxu0
      %v2215 = vadd.f32 %v2055, %v2214
      %v2216 = vpop.f32.mrf.mxu0
      %2217 = vmatprep.mubr.bf16.mxu0 0
      %2218 = vmatmul.mubr.bf16.gmra.mxu0 %v2028
      %v2219 = vpop.f32.mrf.mxu0
      %v2220 = vadd.f32 %v2055, %v2219
      %v2221 = vpop.f32.mrf.mxu0
      %v2222 = vpop.f32.mrf.mxu0
      %v2223 = vadd.f32 %v2055, %v2222
      %v2224 = vpop.f32.mrf.mxu0
      %2225 = vmatprep.mubr.bf16.mxu0 0
      %2226 = vmatmul.mubr.bf16.gmra.mxu0 %v2029
      %v2227 = vpop.f32.mrf.mxu0
      %v2228 = vadd.f32 %v2055, %v2227
      %v2229 = vpop.f32.mrf.mxu0
      %v2230 = vpop.f32.mrf.mxu0
      %v2231 = vadd.f32 %v2055, %v2230
      %v2232 = vpop.f32.mrf.mxu0
      %2233 = vmatprep.mubr.bf16.mxu0 0
      %2234 = vmatmul.mubr.bf16.gmra.mxu0 %v2030
      %v2235 = vpop.f32.mrf.mxu0
      %v2236 = vadd.f32 %v2055, %v2235
      %v2237 = vpop.f32.mrf.mxu0
      %v2238 = vpop.f32.mrf.mxu0
      %v2239 = vadd.f32 %v2055, %v2238
      %v2240 = vpop.f32.mrf.mxu0
      %2241 = vmatprep.mubr.bf16.mxu0 0
      %2242 = vmatmul.mubr.bf16.gmra.mxu0 %v2031
      %v2243 = vpop.f32.mrf.mxu0
      %v2244 = vadd.f32 %v2055, %v2243
      %v2245 = vpop.f32.mrf.mxu0
      %v2246 = vpop.f32.mrf.mxu0
      %v2247 = vadd.f32 %v2055, %v2246
      %v2248 = vpop.f32.mrf.mxu0
      %2249 = vmatprep.mubr.bf16.mxu0 0
      %2250 = vmatmul.mubr.bf16.gmra.mxu0 %v2032
      %v2251 = vpop.f32.mrf.mxu0
      %v2252 = vadd.f32 %v2055, %v2251
      %v2253 = vpop.f32.mrf.mxu0
      %v2254 = vpop.f32.mrf.mxu0
      %v2255 = vadd.f32 %v2055, %v2254
      %v2256 = vpop.f32.mrf.mxu0
      %2257 = vmatprep.mubr.bf16.mxu0 0
      %2258 = vmatmul.mubr.bf16.gmra.mxu0 %v2033
      %v2259 = vpop.f32.mrf.mxu0
      %v2260 = vadd.f32 %v2055, %v2259
      %v2261 = vpop.f32.mrf.mxu0
      %v2262 = vpop.f32.mrf.mxu0
      %v2263 = vadd.f32 %v2055, %v2262
      %v2264 = vpop.f32.mrf.mxu0
      %2265 = vdwg.mxu0
      %v2266 = vmax.f32 %v2140, 0.0
      %v2267 = vmax.f32 %v2143, 0.0
      %v2268 = vmax.f32 %v2148, 0.0
      %v2269 = vmax.f32 %v2151, 0.0
      %v2270 = vmax.f32 %v2156, 0.0
      %v2271 = vmax.f32 %v2159, 0.0
      %v2272 = vmax.f32 %v2164, 0.0
      %v2273 = vmax.f32 %v2167, 0.0
      %v2274 = vmax.f32 %v2172, 0.0
      %v2275 = vmax.f32 %v2175, 0.0
      %v2276 = vmax.f32 %v2180, 0.0
      %v2277 = vmax.f32 %v2183, 0.0
      %v2278 = vmax.f32 %v2188, 0.0
      %v2279 = vmax.f32 %v2191, 0.0
      %v2280 = vmax.f32 %v2196, 0.0
      %v2281 = vmax.f32 %v2199, 0.0
      %v2282 = vmax.f32 %v2204, 0.0
      %v2283 = vmax.f32 %v2207, 0.0
      %v2284 = vmax.f32 %v2212, 0.0
      %v2285 = vmax.f32 %v2215, 0.0
      %v2286 = vmax.f32 %v2220, 0.0
      %v2287 = vmax.f32 %v2223, 0.0
      %v2288 = vmax.f32 %v2228, 0.0
      %v2289 = vmax.f32 %v2231, 0.0
      %v2290 = vmax.f32 %v2236, 0.0
      %v2291 = vmax.f32 %v2239, 0.0
      %v2292 = vmax.f32 %v2244, 0.0
      %v2293 = vmax.f32 %v2247, 0.0
      %v2294 = vmax.f32 %v2252, 0.0
      %v2295 = vmax.f32 %v2255, 0.0
      %v2296 = vmax.f32 %v2260, 0.0
      %v2297 = vmax.f32 %v2263, 0.0
      %v2298 = vpack.c.bf16 %v2267, %v2266
      %v2299 = vpack.c.bf16 %v2269, %v2268
      %v2300 = vpack.c.bf16 %v2271, %v2270
      %v2301 = vpack.c.bf16 %v2273, %v2272
      %v2302 = vpack.c.bf16 %v2275, %v2274
      %v2303 = vpack.c.bf16 %v2277, %v2276
      %v2304 = vpack.c.bf16 %v2279, %v2278
      %v2305 = vpack.c.bf16 %v2281, %v2280
      %v2306 = vpack.c.bf16 %v2283, %v2282
      %v2307 = vpack.c.bf16 %v2285, %v2284
      %v2308 = vpack.c.bf16 %v2287, %v2286
      %v2309 = vpack.c.bf16 %v2289, %v2288
      %v2310 = vpack.c.bf16 %v2291, %v2290
      %v2311 = vpack.c.bf16 %v2293, %v2292
      %v2312 = vpack.c.bf16 %v2295, %v2294
      %v2313 = vpack.c.bf16 %v2297, %v2296
      %v2314 = vld [vmem:[%s5] sm:$0xf]
      %v2315 = vld [vmem:[%s5 + $0x4] sm:$0xf]
      %v2316 = vld [vmem:[%s5 + $0x8] sm:$0xf]
      %v2317 = vld [vmem:[%s5 + $0xc] sm:$0xf]
      %v2318 = vld [vmem:[%s5 + $0x10] sm:$0xf]
      %v2319 = vld [vmem:[%s5 + $0x14] sm:$0xf]
      %v2320 = vld [vmem:[%s5 + $0x18] sm:$0xf]
      %v2321 = vld [vmem:[%s5 + $0x1c] sm:$0xf]
      %v2322 = vld [vmem:[%s6] sm:$0x1]
      %v2324 = vlaneseq
      %v2325 = vshrl.u32 %v2324, 7
      %v2326 = vsub.s32 0, %v2325
      %v2327 = vrot.slane %v2322, %v2326
      %v2337 = vunpack.c.l.b16 %v2314
      %v2338 = vunpack.c.l.b16 %v2315
      %v2339 = vunpack.c.l.b16 %v2316
      %v2340 = vunpack.c.l.b16 %v2317
      %v2341 = vunpack.c.l.b16 %v2318
      %v2342 = vunpack.c.l.b16 %v2319
      %v2343 = vunpack.c.l.b16 %v2320
      %v2344 = vunpack.c.l.b16 %v2321
      %v2345 = vpack.c.b16 %v2338, %v2337
      %v2346 = vpack.c.b16 %v2340, %v2339
      %v2347 = vpack.c.b16 %v2342, %v2341
      %v2348 = vpack.c.b16 %v2344, %v2343
      %vm2353 = vcmask 523264
      %v2355 = vsel %vm2353, %v2298, 0
      %v2358 = vsel %vm2353, %v2299, 0
      %v2361 = vsel %vm2353, %v2300, 0
      %v2364 = vsel %vm2353, %v2301, 0
      %v2367 = vsel %vm2353, %v2302, 0
      %v2370 = vsel %vm2353, %v2303, 0
      %v2373 = vsel %vm2353, %v2304, 0
      %v2376 = vsel %vm2353, %v2305, 0
      %v2379 = vsel %vm2353, %v2306, 0
      %v2382 = vsel %vm2353, %v2307, 0
      %v2385 = vsel %vm2353, %v2308, 0
      %v2388 = vsel %vm2353, %v2309, 0
      %v2391 = vsel %vm2353, %v2310, 0
      %v2394 = vsel %vm2353, %v2311, 0
      %v2397 = vsel %vm2353, %v2312, 0
      %v2400 = vsel %vm2353, %v2313, 0
      %2402 = vmatprep.subr.bf16.mxu0 0
      %2403 = vmatpush1.bf16.msra.mxu0 0
      %2404 = vmatprep.subr.bf16.mxu0 0
      %2405 = vmatpush1.bf16.msra.mxu0 0
      %2406 = vmatprep.subr.bf16.mxu0 0
      %2407 = vmatpush1.bf16.msra.mxu0 0
      %2408 = vmatprep.subr.bf16.mxu0 0
      %2409 = vmatpush1.bf16.msra.mxu0 0
      %2410 = vmatprep.subr.bf16.mxu0 0
      %2411 = vmatpush1.bf16.msra.mxu0 %v2348
      %2412 = vmatprep.subr.bf16.mxu0 0
      %2413 = vmatpush1.bf16.msra.mxu0 %v2347
      %2414 = vmatprep.subr.bf16.mxu0 0
      %2415 = vmatpush1.bf16.msra.mxu0 %v2346
      %2416 = vmatprep.subr.bf16.mxu0 0
      %2417 = vmatpush1.bf16.msra.mxu0 %v2345
      %2418 = vmatprep.subr.bf16.mxu0 0
      %2419 = vmatpush2.bf16.msra.mxu0 0
      %2420 = vmatprep.subr.bf16.mxu0 0
      %2421 = vmatpush2.bf16.msra.mxu0 0
      %2422 = vmatprep.subr.bf16.mxu0 0
      %2423 = vmatpush2.bf16.msra.mxu0 0
      %2424 = vmatprep.subr.bf16.mxu0 0
      %2425 = vmatpush2.bf16.msra.mxu0 0
      %2426 = vmatprep.subr.bf16.mxu0 0
      %2427 = vmatpush2.bf16.msra.mxu0 0
      %2428 = vmatprep.subr.bf16.mxu0 0
      %2429 = vmatpush2.bf16.msra.mxu0 0
      %2430 = vmatprep.subr.bf16.mxu0 0
      %2431 = vmatpush2.bf16.msra.mxu0 0
      %2432 = vmatprep.subr.bf16.mxu0 0
      %2433 = vmatpush2.bf16.msra.mxu0 0
      %2434 = vmatprep.mubr.bf16.mxu0 0
      %2435 = vmatmul.mubr.bf16.gmra.mxu0 %v2355
      %v2436 = vpop.f32.mrf.mxu0
      %v2437 = vadd.f32 %v2327, %v2436
      %v2438 = vpop.f32.mrf.mxu0
      %v2439 = vpop.f32.mrf.mxu0
      %v2440 = vadd.f32 %v2327, %v2439
      %v2441 = vpop.f32.mrf.mxu0
      %2442 = vmatprep.mubr.bf16.mxu0 0
      %2443 = vmatmul.mubr.bf16.gmra.mxu0 %v2358
      %v2444 = vpop.f32.mrf.mxu0
      %v2445 = vadd.f32 %v2327, %v2444
      %v2446 = vpop.f32.mrf.mxu0
      %v2447 = vpop.f32.mrf.mxu0
      %v2448 = vadd.f32 %v2327, %v2447
      %v2449 = vpop.f32.mrf.mxu0
      %2450 = vmatprep.mubr.bf16.mxu0 0
      %2451 = vmatmul.mubr.bf16.gmra.mxu0 %v2361
      %v2452 = vpop.f32.mrf.mxu0
      %v2453 = vadd.f32 %v2327, %v2452
      %v2454 = vpop.f32.mrf.mxu0
      %v2455 = vpop.f32.mrf.mxu0
      %v2456 = vadd.f32 %v2327, %v2455
      %v2457 = vpop.f32.mrf.mxu0
      %2458 = vmatprep.mubr.bf16.mxu0 0
      %2459 = vmatmul.mubr.bf16.gmra.mxu0 %v2364
      %v2460 = vpop.f32.mrf.mxu0
      %v2461 = vadd.f32 %v2327, %v2460
      %v2462 = vpop.f32.mrf.mxu0
      %v2463 = vpop.f32.mrf.mxu0
      %v2464 = vadd.f32 %v2327, %v2463
      %v2465 = vpop.f32.mrf.mxu0
      %2466 = vmatprep.mubr.bf16.mxu0 0
      %2467 = vmatmul.mubr.bf16.gmra.mxu0 %v2367
      %v2468 = vpop.f32.mrf.mxu0
      %v2469 = vadd.f32 %v2327, %v2468
      %v2470 = vpop.f32.mrf.mxu0
      %v2471 = vpop.f32.mrf.mxu0
      %v2472 = vadd.f32 %v2327, %v2471
      %v2473 = vpop.f32.mrf.mxu0
      %2474 = vmatprep.mubr.bf16.mxu0 0
      %2475 = vmatmul.mubr.bf16.gmra.mxu0 %v2370
      %v2476 = vpop.f32.mrf.mxu0
      %v2477 = vadd.f32 %v2327, %v2476
      %v2478 = vpop.f32.mrf.mxu0
      %v2479 = vpop.f32.mrf.mxu0
      %v2480 = vadd.f32 %v2327, %v2479
      %v2481 = vpop.f32.mrf.mxu0
      %2482 = vmatprep.mubr.bf16.mxu0 0
      %2483 = vmatmul.mubr.bf16.gmra.mxu0 %v2373
      %v2484 = vpop.f32.mrf.mxu0
      %v2485 = vadd.f32 %v2327, %v2484
      %v2486 = vpop.f32.mrf.mxu0
      %v2487 = vpop.f32.mrf.mxu0
      %v2488 = vadd.f32 %v2327, %v2487
      %v2489 = vpop.f32.mrf.mxu0
      %2490 = vmatprep.mubr.bf16.mxu0 0
      %2491 = vmatmul.mubr.bf16.gmra.mxu0 %v2376
      %v2492 = vpop.f32.mrf.mxu0
      %v2493 = vadd.f32 %v2327, %v2492
      %v2494 = vpop.f32.mrf.mxu0
      %v2495 = vpop.f32.mrf.mxu0
      %v2496 = vadd.f32 %v2327, %v2495
      %v2497 = vpop.f32.mrf.mxu0
      %2498 = vmatprep.mubr.bf16.mxu0 0
      %2499 = vmatmul.mubr.bf16.gmra.mxu0 %v2379
      %v2500 = vpop.f32.mrf.mxu0
      %v2501 = vadd.f32 %v2327, %v2500
      %v2502 = vpop.f32.mrf.mxu0
      %v2503 = vpop.f32.mrf.mxu0
      %v2504 = vadd.f32 %v2327, %v2503
      %v2505 = vpop.f32.mrf.mxu0
      %2506 = vmatprep.mubr.bf16.mxu0 0
      %2507 = vmatmul.mubr.bf16.gmra.mxu0 %v2382
      %v2508 = vpop.f32.mrf.mxu0
      %v2509 = vadd.f32 %v2327, %v2508
      %v2510 = vpop.f32.mrf.mxu0
      %v2511 = vpop.f32.mrf.mxu0
      %v2512 = vadd.f32 %v2327, %v2511
      %v2513 = vpop.f32.mrf.mxu0
      %2514 = vmatprep.mubr.bf16.mxu0 0
      %2515 = vmatmul.mubr.bf16.gmra.mxu0 %v2385
      %v2516 = vpop.f32.mrf.mxu0
      %v2517 = vadd.f32 %v2327, %v2516
      %v2518 = vpop.f32.mrf.mxu0
      %v2519 = vpop.f32.mrf.mxu0
      %v2520 = vadd.f32 %v2327, %v2519
      %v2521 = vpop.f32.mrf.mxu0
      %2522 = vmatprep.mubr.bf16.mxu0 0
      %2523 = vmatmul.mubr.bf16.gmra.mxu0 %v2388
      %v2524 = vpop.f32.mrf.mxu0
      %v2525 = vadd.f32 %v2327, %v2524
      %v2526 = vpop.f32.mrf.mxu0
      %v2527 = vpop.f32.mrf.mxu0
      %v2528 = vadd.f32 %v2327, %v2527
      %v2529 = vpop.f32.mrf.mxu0
      %2530 = vmatprep.mubr.bf16.mxu0 0
      %2531 = vmatmul.mubr.bf16.gmra.mxu0 %v2391
      %v2532 = vpop.f32.mrf.mxu0
      %v2533 = vadd.f32 %v2327, %v2532
      %v2534 = vpop.f32.mrf.mxu0
      %v2535 = vpop.f32.mrf.mxu0
      %v2536 = vadd.f32 %v2327, %v2535
      %v2537 = vpop.f32.mrf.mxu0
      %2538 = vmatprep.mubr.bf16.mxu0 0
      %2539 = vmatmul.mubr.bf16.gmra.mxu0 %v2394
      %v2540 = vpop.f32.mrf.mxu0
      %v2541 = vadd.f32 %v2327, %v2540
      %v2542 = vpop.f32.mrf.mxu0
      %v2543 = vpop.f32.mrf.mxu0
      %v2544 = vadd.f32 %v2327, %v2543
      %v2545 = vpop.f32.mrf.mxu0
      %2546 = vmatprep.mubr.bf16.mxu0 0
      %2547 = vmatmul.mubr.bf16.gmra.mxu0 %v2397
      %v2548 = vpop.f32.mrf.mxu0
      %v2549 = vadd.f32 %v2327, %v2548
      %v2550 = vpop.f32.mrf.mxu0
      %v2551 = vpop.f32.mrf.mxu0
      %v2552 = vadd.f32 %v2327, %v2551
      %v2553 = vpop.f32.mrf.mxu0
      %2554 = vmatprep.mubr.bf16.mxu0 0
      %2555 = vmatmul.mubr.bf16.gmra.mxu0 %v2400
      %v2556 = vpop.f32.mrf.mxu0
      %v2557 = vadd.f32 %v2327, %v2556
      %v2558 = vpop.f32.mrf.mxu0
      %v2559 = vpop.f32.mrf.mxu0
      %v2560 = vadd.f32 %v2327, %v2559
      %v2561 = vpop.f32.mrf.mxu0
      %2562 = vdwg.mxu0
      %v2563 = vmax.f32 %v2437, 0.0
      %v2564 = vmax.f32 %v2440, 0.0
      %v2565 = vmax.f32 %v2445, 0.0
      %v2566 = vmax.f32 %v2448, 0.0
      %v2567 = vmax.f32 %v2453, 0.0
      %v2568 = vmax.f32 %v2456, 0.0
      %v2569 = vmax.f32 %v2461, 0.0
      %v2570 = vmax.f32 %v2464, 0.0
      %v2571 = vmax.f32 %v2469, 0.0
      %v2572 = vmax.f32 %v2472, 0.0
      %v2573 = vmax.f32 %v2477, 0.0
      %v2574 = vmax.f32 %v2480, 0.0
      %v2575 = vmax.f32 %v2485, 0.0
      %v2576 = vmax.f32 %v2488, 0.0
      %v2577 = vmax.f32 %v2493, 0.0
      %v2578 = vmax.f32 %v2496, 0.0
      %v2579 = vmax.f32 %v2501, 0.0
      %v2580 = vmax.f32 %v2504, 0.0
      %v2581 = vmax.f32 %v2509, 0.0
      %v2582 = vmax.f32 %v2512, 0.0
      %v2583 = vmax.f32 %v2517, 0.0
      %v2584 = vmax.f32 %v2520, 0.0
      %v2585 = vmax.f32 %v2525, 0.0
      %v2586 = vmax.f32 %v2528, 0.0
      %v2587 = vmax.f32 %v2533, 0.0
      %v2588 = vmax.f32 %v2536, 0.0
      %v2589 = vmax.f32 %v2541, 0.0
      %v2590 = vmax.f32 %v2544, 0.0
      %v2591 = vmax.f32 %v2549, 0.0
      %v2592 = vmax.f32 %v2552, 0.0
      %v2593 = vmax.f32 %v2557, 0.0
      %v2594 = vmax.f32 %v2560, 0.0
      %v2595 = vpack.c.bf16 %v2564, %v2563
      %v2596 = vpack.c.bf16 %v2566, %v2565
      %v2597 = vpack.c.bf16 %v2568, %v2567
      %v2598 = vpack.c.bf16 %v2570, %v2569
      %v2599 = vpack.c.bf16 %v2572, %v2571
      %v2600 = vpack.c.bf16 %v2574, %v2573
      %v2601 = vpack.c.bf16 %v2576, %v2575
      %v2602 = vpack.c.bf16 %v2578, %v2577
      %v2603 = vpack.c.bf16 %v2580, %v2579
      %v2604 = vpack.c.bf16 %v2582, %v2581
      %v2605 = vpack.c.bf16 %v2584, %v2583
      %v2606 = vpack.c.bf16 %v2586, %v2585
      %v2607 = vpack.c.bf16 %v2588, %v2587
      %v2608 = vpack.c.bf16 %v2590, %v2589
      %v2609 = vpack.c.bf16 %v2592, %v2591
      %v2610 = vpack.c.bf16 %v2594, %v2593
      %v2611 = vld [vmem:[%s7] sm:$0xf]
      %v2612 = vld [vmem:[%s7 + $0x4] sm:$0xf]
      %v2613 = vld [vmem:[%s7 + $0x8] sm:$0xf]
      %v2614 = vld [vmem:[%s7 + $0xc] sm:$0xf]
      %v2615 = vld [vmem:[%s7 + $0x10] sm:$0xf]
      %v2616 = vld [vmem:[%s7 + $0x14] sm:$0xf]
      %v2617 = vld [vmem:[%s7 + $0x18] sm:$0xf]
      %v2618 = vld [vmem:[%s7 + $0x1c] sm:$0xf]
      %v2619 = vld [vmem:[%s7 + $0x20] sm:$0xf]
      %v2620 = vld [vmem:[%s7 + $0x24] sm:$0xf]
      %v2621 = vld [vmem:[%s7 + $0x28] sm:$0xf]
      %v2622 = vld [vmem:[%s7 + $0x2c] sm:$0xf]
      %v2623 = vld [vmem:[%s7 + $0x30] sm:$0xf]
      %v2624 = vld [vmem:[%s7 + $0x34] sm:$0xf]
      %v2625 = vld [vmem:[%s7 + $0x38] sm:$0xf]
      %v2626 = vld [vmem:[%s7 + $0x3c] sm:$0xf]
      %v2627 = vld [vmem:[%s8] sm:$0x1]
      %v2629 = vlaneseq
      %v2630 = vshrl.u32 %v2629, 7
      %v2631 = vsub.s32 0, %v2630
      %v2632 = vrot.slane %v2627, %v2631
      %v2650 = vunpack.c.l.b16 %v2611
      %v2651 = vunpack.c.l.b16 %v2612
      %v2652 = vunpack.c.l.b16 %v2613
      %v2653 = vunpack.c.l.b16 %v2614
      %v2654 = vunpack.c.l.b16 %v2615
      %v2655 = vunpack.c.l.b16 %v2616
      %v2656 = vunpack.c.l.b16 %v2617
      %v2657 = vunpack.c.l.b16 %v2618
      %v2658 = vunpack.c.l.b16 %v2619
      %v2659 = vunpack.c.l.b16 %v2620
      %v2660 = vunpack.c.l.b16 %v2621
      %v2661 = vunpack.c.l.b16 %v2622
      %v2662 = vunpack.c.l.b16 %v2623
      %v2663 = vunpack.c.l.b16 %v2624
      %v2664 = vunpack.c.l.b16 %v2625
      %v2665 = vunpack.c.l.b16 %v2626
      %v2666 = vpack.c.b16 %v2651, %v2650
      %v2667 = vpack.c.b16 %v2653, %v2652
      %v2668 = vpack.c.b16 %v2655, %v2654
      %v2669 = vpack.c.b16 %v2657, %v2656
      %v2670 = vpack.c.b16 %v2659, %v2658
      %v2671 = vpack.c.b16 %v2661, %v2660
      %v2672 = vpack.c.b16 %v2663, %v2662
      %v2673 = vpack.c.b16 %v2665, %v2664
      %2682 = vmatprep.subr.bf16.mxu0 0
      %2683 = vmatpush1.bf16.msra.mxu0 %v2673
      %2684 = vmatprep.subr.bf16.mxu0 0
      %2685 = vmatpush1.bf16.msra.mxu0 %v2672
      %2686 = vmatprep.subr.bf16.mxu0 0
      %2687 = vmatpush1.bf16.msra.mxu0 %v2671
      %2688 = vmatprep.subr.bf16.mxu0 0
      %2689 = vmatpush1.bf16.msra.mxu0 %v2670
      %2690 = vmatprep.subr.bf16.mxu0 0
      %2691 = vmatpush1.bf16.msra.mxu0 %v2669
      %2692 = vmatprep.subr.bf16.mxu0 0
      %2693 = vmatpush1.bf16.msra.mxu0 %v2668
      %2694 = vmatprep.subr.bf16.mxu0 0
      %2695 = vmatpush1.bf16.msra.mxu0 %v2667
      %2696 = vmatprep.subr.bf16.mxu0 0
      %2697 = vmatpush1.bf16.msra.mxu0 %v2666
      %2698 = vmatprep.subr.bf16.mxu0 0
      %2699 = vmatpush2.bf16.msra.mxu0 0
      %2700 = vmatprep.subr.bf16.mxu0 0
      %2701 = vmatpush2.bf16.msra.mxu0 0
      %2702 = vmatprep.subr.bf16.mxu0 0
      %2703 = vmatpush2.bf16.msra.mxu0 0
      %2704 = vmatprep.subr.bf16.mxu0 0
      %2705 = vmatpush2.bf16.msra.mxu0 0
      %2706 = vmatprep.subr.bf16.mxu0 0
      %2707 = vmatpush2.bf16.msra.mxu0 0
      %2708 = vmatprep.subr.bf16.mxu0 0
      %2709 = vmatpush2.bf16.msra.mxu0 0
      %2710 = vmatprep.subr.bf16.mxu0 0
      %2711 = vmatpush2.bf16.msra.mxu0 0
      %2712 = vmatprep.subr.bf16.mxu0 0
      %2713 = vmatpush2.bf16.msra.mxu0 0
      %2714 = vmatprep.mubr.bf16.mxu0 0
      %2715 = vmatmul.mubr.bf16.gmra.mxu0 %v2595
      %v2716 = vpop.f32.mrf.mxu0
      %v2717 = vadd.f32 %v2632, %v2716
      %v2718 = vpop.f32.mrf.mxu0
      %v2719 = vpop.f32.mrf.mxu0
      %v2720 = vadd.f32 %v2632, %v2719
      %v2721 = vpop.f32.mrf.mxu0
      %2722 = vmatprep.mubr.bf16.mxu0 0
      %2723 = vmatmul.mubr.bf16.gmra.mxu0 %v2596
      %v2724 = vpop.f32.mrf.mxu0
      %v2725 = vadd.f32 %v2632, %v2724
      %v2726 = vpop.f32.mrf.mxu0
      %v2727 = vpop.f32.mrf.mxu0
      %v2728 = vadd.f32 %v2632, %v2727
      %v2729 = vpop.f32.mrf.mxu0
      %2730 = vmatprep.mubr.bf16.mxu0 0
      %2731 = vmatmul.mubr.bf16.gmra.mxu0 %v2597
      %v2732 = vpop.f32.mrf.mxu0
      %v2733 = vadd.f32 %v2632, %v2732
      %v2734 = vpop.f32.mrf.mxu0
      %v2735 = vpop.f32.mrf.mxu0
      %v2736 = vadd.f32 %v2632, %v2735
      %v2737 = vpop.f32.mrf.mxu0
      %2738 = vmatprep.mubr.bf16.mxu0 0
      %2739 = vmatmul.mubr.bf16.gmra.mxu0 %v2598
      %v2740 = vpop.f32.mrf.mxu0
      %v2741 = vadd.f32 %v2632, %v2740
      %v2742 = vpop.f32.mrf.mxu0
      %v2743 = vpop.f32.mrf.mxu0
      %v2744 = vadd.f32 %v2632, %v2743
      %v2745 = vpop.f32.mrf.mxu0
      %2746 = vmatprep.mubr.bf16.mxu0 0
      %2747 = vmatmul.mubr.bf16.gmra.mxu0 %v2599
      %v2748 = vpop.f32.mrf.mxu0
      %v2749 = vadd.f32 %v2632, %v2748
      %v2750 = vpop.f32.mrf.mxu0
      %v2751 = vpop.f32.mrf.mxu0
      %v2752 = vadd.f32 %v2632, %v2751
      %v2753 = vpop.f32.mrf.mxu0
      %2754 = vmatprep.mubr.bf16.mxu0 0
      %2755 = vmatmul.mubr.bf16.gmra.mxu0 %v2600
      %v2756 = vpop.f32.mrf.mxu0
      %v2757 = vadd.f32 %v2632, %v2756
      %v2758 = vpop.f32.mrf.mxu0
      %v2759 = vpop.f32.mrf.mxu0
      %v2760 = vadd.f32 %v2632, %v2759
      %v2761 = vpop.f32.mrf.mxu0
      %2762 = vmatprep.mubr.bf16.mxu0 0
      %2763 = vmatmul.mubr.bf16.gmra.mxu0 %v2601
      %v2764 = vpop.f32.mrf.mxu0
      %v2765 = vadd.f32 %v2632, %v2764
      %v2766 = vpop.f32.mrf.mxu0
      %v2767 = vpop.f32.mrf.mxu0
      %v2768 = vadd.f32 %v2632, %v2767
      %v2769 = vpop.f32.mrf.mxu0
      %2770 = vmatprep.mubr.bf16.mxu0 0
      %2771 = vmatmul.mubr.bf16.gmra.mxu0 %v2602
      %v2772 = vpop.f32.mrf.mxu0
      %v2773 = vadd.f32 %v2632, %v2772
      %v2774 = vpop.f32.mrf.mxu0
      %v2775 = vpop.f32.mrf.mxu0
      %v2776 = vadd.f32 %v2632, %v2775
      %v2777 = vpop.f32.mrf.mxu0
      %2778 = vmatprep.mubr.bf16.mxu0 0
      %2779 = vmatmul.mubr.bf16.gmra.mxu0 %v2603
      %v2780 = vpop.f32.mrf.mxu0
      %v2781 = vadd.f32 %v2632, %v2780
      %v2782 = vpop.f32.mrf.mxu0
      %v2783 = vpop.f32.mrf.mxu0
      %v2784 = vadd.f32 %v2632, %v2783
      %v2785 = vpop.f32.mrf.mxu0
      %2786 = vmatprep.mubr.bf16.mxu0 0
      %2787 = vmatmul.mubr.bf16.gmra.mxu0 %v2604
      %v2788 = vpop.f32.mrf.mxu0
      %v2789 = vadd.f32 %v2632, %v2788
      %v2790 = vpop.f32.mrf.mxu0
      %v2791 = vpop.f32.mrf.mxu0
      %v2792 = vadd.f32 %v2632, %v2791
      %v2793 = vpop.f32.mrf.mxu0
      %2794 = vmatprep.mubr.bf16.mxu0 0
      %2795 = vmatmul.mubr.bf16.gmra.mxu0 %v2605
      %v2796 = vpop.f32.mrf.mxu0
      %v2797 = vadd.f32 %v2632, %v2796
      %v2798 = vpop.f32.mrf.mxu0
      %v2799 = vpop.f32.mrf.mxu0
      %v2800 = vadd.f32 %v2632, %v2799
      %v2801 = vpop.f32.mrf.mxu0
      %2802 = vmatprep.mubr.bf16.mxu0 0
      %2803 = vmatmul.mubr.bf16.gmra.mxu0 %v2606
      %v2804 = vpop.f32.mrf.mxu0
      %v2805 = vadd.f32 %v2632, %v2804
      %v2806 = vpop.f32.mrf.mxu0
      %v2807 = vpop.f32.mrf.mxu0
      %v2808 = vadd.f32 %v2632, %v2807
      %v2809 = vpop.f32.mrf.mxu0
      %2810 = vmatprep.mubr.bf16.mxu0 0
      %2811 = vmatmul.mubr.bf16.gmra.mxu0 %v2607
      %v2812 = vpop.f32.mrf.mxu0
      %v2813 = vadd.f32 %v2632, %v2812
      %v2814 = vpop.f32.mrf.mxu0
      %v2815 = vpop.f32.mrf.mxu0
      %v2816 = vadd.f32 %v2632, %v2815
      %v2817 = vpop.f32.mrf.mxu0
      %2818 = vmatprep.mubr.bf16.mxu0 0
      %2819 = vmatmul.mubr.bf16.gmra.mxu0 %v2608
      %v2820 = vpop.f32.mrf.mxu0
      %v2821 = vadd.f32 %v2632, %v2820
      %v2822 = vpop.f32.mrf.mxu0
      %v2823 = vpop.f32.mrf.mxu0
      %v2824 = vadd.f32 %v2632, %v2823
      %v2825 = vpop.f32.mrf.mxu0
      %2826 = vmatprep.mubr.bf16.mxu0 0
      %2827 = vmatmul.mubr.bf16.gmra.mxu0 %v2609
      %v2828 = vpop.f32.mrf.mxu0
      %v2829 = vadd.f32 %v2632, %v2828
      %v2830 = vpop.f32.mrf.mxu0
      %v2831 = vpop.f32.mrf.mxu0
      %v2832 = vadd.f32 %v2632, %v2831
      %v2833 = vpop.f32.mrf.mxu0
      %2834 = vmatprep.mubr.bf16.mxu0 0
      %2835 = vmatmul.mubr.bf16.gmra.mxu0 %v2610
      %v2836 = vpop.f32.mrf.mxu0
      %v2837 = vadd.f32 %v2632, %v2836
      %v2838 = vpop.f32.mrf.mxu0
      %v2839 = vpop.f32.mrf.mxu0
      %v2840 = vadd.f32 %v2632, %v2839
      %v2841 = vpop.f32.mrf.mxu0
      %2842 = vdwg.mxu0
      %v2843 = vpack.c.bf16 %v2720, %v2717
      %v2844 = vpack.c.bf16 %v2728, %v2725
      %v2845 = vpack.c.bf16 %v2736, %v2733
      %v2846 = vpack.c.bf16 %v2744, %v2741
      %v2847 = vpack.c.bf16 %v2752, %v2749
      %v2848 = vpack.c.bf16 %v2760, %v2757
      %v2849 = vpack.c.bf16 %v2768, %v2765
      %v2850 = vpack.c.bf16 %v2776, %v2773
      %v2851 = vpack.c.bf16 %v2784, %v2781
      %v2852 = vpack.c.bf16 %v2792, %v2789
      %v2853 = vpack.c.bf16 %v2800, %v2797
      %v2854 = vpack.c.bf16 %v2808, %v2805
      %v2855 = vpack.c.bf16 %v2816, %v2813
      %v2856 = vpack.c.bf16 %v2824, %v2821
      %v2857 = vpack.c.bf16 %v2832, %v2829
      %v2858 = vpack.c.bf16 %v2840, %v2837
      %v2859 = vld [vmem:[%s9] sm:$0xf]
      %v2860 = vld [vmem:[%s9 + $0x4] sm:$0xf]
      %v2861 = vld [vmem:[%s9 + $0x8] sm:$0xf]
      %v2862 = vld [vmem:[%s9 + $0xc] sm:$0xf]
      %v2863 = vld [vmem:[%s9 + $0x10] sm:$0xf]
      %v2864 = vld [vmem:[%s9 + $0x14] sm:$0xf]
      %v2865 = vld [vmem:[%s9 + $0x18] sm:$0xf]
      %v2866 = vld [vmem:[%s9 + $0x1c] sm:$0xf]
      %v2867 = vld [vmem:[%s9 + $0x20] sm:$0xf]
      %v2868 = vld [vmem:[%s9 + $0x24] sm:$0xf]
      %v2869 = vld [vmem:[%s9 + $0x28] sm:$0xf]
      %v2870 = vld [vmem:[%s9 + $0x2c] sm:$0xf]
      %v2871 = vld [vmem:[%s9 + $0x30] sm:$0xf]
      %v2872 = vld [vmem:[%s9 + $0x34] sm:$0xf]
      %v2873 = vld [vmem:[%s9 + $0x38] sm:$0xf]
      %v2874 = vld [vmem:[%s9 + $0x3c] sm:$0xf]
      %v2875 = vld [vmem:[%s10] sm:$0x1]
      %v2877 = vlaneseq
      %v2878 = vshrl.u32 %v2877, 7
      %v2879 = vsub.s32 0, %v2878
      %v2880 = vrot.slane %v2875, %v2879
      %v2898 = vunpack.c.l.b16 %v2859
      %v2899 = vunpack.c.l.b16 %v2860
      %v2900 = vunpack.c.l.b16 %v2861
      %v2901 = vunpack.c.l.b16 %v2862
      %v2902 = vunpack.c.l.b16 %v2863
      %v2903 = vunpack.c.l.b16 %v2864
      %v2904 = vunpack.c.l.b16 %v2865
      %v2905 = vunpack.c.l.b16 %v2866
      %v2906 = vunpack.c.l.b16 %v2867
      %v2907 = vunpack.c.l.b16 %v2868
      %v2908 = vunpack.c.l.b16 %v2869
      %v2909 = vunpack.c.l.b16 %v2870
      %v2910 = vunpack.c.l.b16 %v2871
      %v2911 = vunpack.c.l.b16 %v2872
      %v2912 = vunpack.c.l.b16 %v2873
      %v2913 = vunpack.c.l.b16 %v2874
      %v2914 = vpack.c.b16 %v2899, %v2898
      %v2915 = vpack.c.b16 %v2901, %v2900
      %v2916 = vpack.c.b16 %v2903, %v2902
      %v2917 = vpack.c.b16 %v2905, %v2904
      %v2918 = vpack.c.b16 %v2907, %v2906
      %v2919 = vpack.c.b16 %v2909, %v2908
      %v2920 = vpack.c.b16 %v2911, %v2910
      %v2921 = vpack.c.b16 %v2913, %v2912
      %2930 = vmatprep.subr.bf16.mxu0 0
      %2931 = vmatpush1.bf16.msra.mxu0 %v2921
      %2932 = vmatprep.subr.bf16.mxu0 0
      %2933 = vmatpush1.bf16.msra.mxu0 %v2920
      %2934 = vmatprep.subr.bf16.mxu0 0
      %2935 = vmatpush1.bf16.msra.mxu0 %v2919
      %2936 = vmatprep.subr.bf16.mxu0 0
      %2937 = vmatpush1.bf16.msra.mxu0 %v2918
      %2938 = vmatprep.subr.bf16.mxu0 0
      %2939 = vmatpush1.bf16.msra.mxu0 %v2917
      %2940 = vmatprep.subr.bf16.mxu0 0
      %2941 = vmatpush1.bf16.msra.mxu0 %v2916
      %2942 = vmatprep.subr.bf16.mxu0 0
      %2943 = vmatpush1.bf16.msra.mxu0 %v2915
      %2944 = vmatprep.subr.bf16.mxu0 0
      %2945 = vmatpush1.bf16.msra.mxu0 %v2914
      %2946 = vmatprep.subr.bf16.mxu0 0
      %2947 = vmatpush2.bf16.msra.mxu0 0
      %2948 = vmatprep.subr.bf16.mxu0 0
      %2949 = vmatpush2.bf16.msra.mxu0 0
      %2950 = vmatprep.subr.bf16.mxu0 0
      %2951 = vmatpush2.bf16.msra.mxu0 0
      %2952 = vmatprep.subr.bf16.mxu0 0
      %2953 = vmatpush2.bf16.msra.mxu0 0
      %2954 = vmatprep.subr.bf16.mxu0 0
      %2955 = vmatpush2.bf16.msra.mxu0 0
      %2956 = vmatprep.subr.bf16.mxu0 0
      %2957 = vmatpush2.bf16.msra.mxu0 0
      %2958 = vmatprep.subr.bf16.mxu0 0
      %2959 = vmatpush2.bf16.msra.mxu0 0
      %2960 = vmatprep.subr.bf16.mxu0 0
      %2961 = vmatpush2.bf16.msra.mxu0 0
      %2962 = vmatprep.mubr.bf16.mxu0 0
      %2963 = vmatmul.mubr.bf16.gmra.mxu0 %v2843
      %v2964 = vpop.f32.mrf.mxu0
      %v2965 = vadd.f32 %v2880, %v2964
      %v2966 = vpop.f32.mrf.mxu0
      %v2967 = vpop.f32.mrf.mxu0
      %v2968 = vadd.f32 %v2880, %v2967
      %v2969 = vpop.f32.mrf.mxu0
      %2970 = vmatprep.mubr.bf16.mxu0 0
      %2971 = vmatmul.mubr.bf16.gmra.mxu0 %v2844
      %v2972 = vpop.f32.mrf.mxu0
      %v2973 = vadd.f32 %v2880, %v2972
      %v2974 = vpop.f32.mrf.mxu0
      %v2975 = vpop.f32.mrf.mxu0
      %v2976 = vadd.f32 %v2880, %v2975
      %v2977 = vpop.f32.mrf.mxu0
      %2978 = vmatprep.mubr.bf16.mxu0 0
      %2979 = vmatmul.mubr.bf16.gmra.mxu0 %v2845
      %v2980 = vpop.f32.mrf.mxu0
      %v2981 = vadd.f32 %v2880, %v2980
      %v2982 = vpop.f32.mrf.mxu0
      %v2983 = vpop.f32.mrf.mxu0
      %v2984 = vadd.f32 %v2880, %v2983
      %v2985 = vpop.f32.mrf.mxu0
      %2986 = vmatprep.mubr.bf16.mxu0 0
      %2987 = vmatmul.mubr.bf16.gmra.mxu0 %v2846
      %v2988 = vpop.f32.mrf.mxu0
      %v2989 = vadd.f32 %v2880, %v2988
      %v2990 = vpop.f32.mrf.mxu0
      %v2991 = vpop.f32.mrf.mxu0
      %v2992 = vadd.f32 %v2880, %v2991
      %v2993 = vpop.f32.mrf.mxu0
      %2994 = vmatprep.mubr.bf16.mxu0 0
      %2995 = vmatmul.mubr.bf16.gmra.mxu0 %v2847
      %v2996 = vpop.f32.mrf.mxu0
      %v2997 = vadd.f32 %v2880, %v2996
      %v2998 = vpop.f32.mrf.mxu0
      %v2999 = vpop.f32.mrf.mxu0
      %v3000 = vadd.f32 %v2880, %v2999
      %v3001 = vpop.f32.mrf.mxu0
      %3002 = vmatprep.mubr.bf16.mxu0 0
      %3003 = vmatmul.mubr.bf16.gmra.mxu0 %v2848
      %v3004 = vpop.f32.mrf.mxu0
      %v3005 = vadd.f32 %v2880, %v3004
      %v3006 = vpop.f32.mrf.mxu0
      %v3007 = vpop.f32.mrf.mxu0
      %v3008 = vadd.f32 %v2880, %v3007
      %v3009 = vpop.f32.mrf.mxu0
      %3010 = vmatprep.mubr.bf16.mxu0 0
      %3011 = vmatmul.mubr.bf16.gmra.mxu0 %v2849
      %v3012 = vpop.f32.mrf.mxu0
      %v3013 = vadd.f32 %v2880, %v3012
      %v3014 = vpop.f32.mrf.mxu0
      %v3015 = vpop.f32.mrf.mxu0
      %v3016 = vadd.f32 %v2880, %v3015
      %v3017 = vpop.f32.mrf.mxu0
      %3018 = vmatprep.mubr.bf16.mxu0 0
      %3019 = vmatmul.mubr.bf16.gmra.mxu0 %v2850
      %v3020 = vpop.f32.mrf.mxu0
      %v3021 = vadd.f32 %v2880, %v3020
      %v3022 = vpop.f32.mrf.mxu0
      %v3023 = vpop.f32.mrf.mxu0
      %v3024 = vadd.f32 %v2880, %v3023
      %v3025 = vpop.f32.mrf.mxu0
      %3026 = vmatprep.mubr.bf16.mxu0 0
      %3027 = vmatmul.mubr.bf16.gmra.mxu0 %v2851
      %v3028 = vpop.f32.mrf.mxu0
      %v3029 = vadd.f32 %v2880, %v3028
      %v3030 = vpop.f32.mrf.mxu0
      %v3031 = vpop.f32.mrf.mxu0
      %v3032 = vadd.f32 %v2880, %v3031
      %v3033 = vpop.f32.mrf.mxu0
      %3034 = vmatprep.mubr.bf16.mxu0 0
      %3035 = vmatmul.mubr.bf16.gmra.mxu0 %v2852
      %v3036 = vpop.f32.mrf.mxu0
      %v3037 = vadd.f32 %v2880, %v3036
      %v3038 = vpop.f32.mrf.mxu0
      %v3039 = vpop.f32.mrf.mxu0
      %v3040 = vadd.f32 %v2880, %v3039
      %v3041 = vpop.f32.mrf.mxu0
      %3042 = vmatprep.mubr.bf16.mxu0 0
      %3043 = vmatmul.mubr.bf16.gmra.mxu0 %v2853
      %v3044 = vpop.f32.mrf.mxu0
      %v3045 = vadd.f32 %v2880, %v3044
      %v3046 = vpop.f32.mrf.mxu0
      %v3047 = vpop.f32.mrf.mxu0
      %v3048 = vadd.f32 %v2880, %v3047
      %v3049 = vpop.f32.mrf.mxu0
      %3050 = vmatprep.mubr.bf16.mxu0 0
      %3051 = vmatmul.mubr.bf16.gmra.mxu0 %v2854
      %v3052 = vpop.f32.mrf.mxu0
      %v3053 = vadd.f32 %v2880, %v3052
      %v3054 = vpop.f32.mrf.mxu0
      %v3055 = vpop.f32.mrf.mxu0
      %v3056 = vadd.f32 %v2880, %v3055
      %v3057 = vpop.f32.mrf.mxu0
      %3058 = vmatprep.mubr.bf16.mxu0 0
      %3059 = vmatmul.mubr.bf16.gmra.mxu0 %v2855
      %v3060 = vpop.f32.mrf.mxu0
      %v3061 = vadd.f32 %v2880, %v3060
      %v3062 = vpop.f32.mrf.mxu0
      %v3063 = vpop.f32.mrf.mxu0
      %v3064 = vadd.f32 %v2880, %v3063
      %v3065 = vpop.f32.mrf.mxu0
      %3066 = vmatprep.mubr.bf16.mxu0 0
      %3067 = vmatmul.mubr.bf16.gmra.mxu0 %v2856
      %v3068 = vpop.f32.mrf.mxu0
      %v3069 = vadd.f32 %v2880, %v3068
      %v3070 = vpop.f32.mrf.mxu0
      %v3071 = vpop.f32.mrf.mxu0
      %v3072 = vadd.f32 %v2880, %v3071
      %v3073 = vpop.f32.mrf.mxu0
      %3074 = vmatprep.mubr.bf16.mxu0 0
      %3075 = vmatmul.mubr.bf16.gmra.mxu0 %v2857
      %v3076 = vpop.f32.mrf.mxu0
      %v3077 = vadd.f32 %v2880, %v3076
      %v3078 = vpop.f32.mrf.mxu0
      %v3079 = vpop.f32.mrf.mxu0
      %v3080 = vadd.f32 %v2880, %v3079
      %v3081 = vpop.f32.mrf.mxu0
      %3082 = vmatprep.mubr.bf16.mxu0 0
      %3083 = vmatmul.mubr.bf16.gmra.mxu0 %v2858
      %v3084 = vpop.f32.mrf.mxu0
      %v3085 = vadd.f32 %v2880, %v3084
      %v3086 = vpop.f32.mrf.mxu0
      %v3087 = vpop.f32.mrf.mxu0
      %v3088 = vadd.f32 %v2880, %v3087
      %v3089 = vpop.f32.mrf.mxu0
      %3090 = vdwg.mxu0
      %v3091 = vmax.f32 %v2965, 0.0
      %v3092 = vmax.f32 %v2968, 0.0
      %v3093 = vmax.f32 %v2973, 0.0
      %v3094 = vmax.f32 %v2976, 0.0
      %v3095 = vmax.f32 %v2981, 0.0
      %v3096 = vmax.f32 %v2984, 0.0
      %v3097 = vmax.f32 %v2989, 0.0
      %v3098 = vmax.f32 %v2992, 0.0
      %v3099 = vmax.f32 %v2997, 0.0
      %v3100 = vmax.f32 %v3000, 0.0
      %v3101 = vmax.f32 %v3005, 0.0
      %v3102 = vmax.f32 %v3008, 0.0
      %v3103 = vmax.f32 %v3013, 0.0
      %v3104 = vmax.f32 %v3016, 0.0
      %v3105 = vmax.f32 %v3021, 0.0
      %v3106 = vmax.f32 %v3024, 0.0
      %v3107 = vmax.f32 %v3029, 0.0
      %v3108 = vmax.f32 %v3032, 0.0
      %v3109 = vmax.f32 %v3037, 0.0
      %v3110 = vmax.f32 %v3040, 0.0
      %v3111 = vmax.f32 %v3045, 0.0
      %v3112 = vmax.f32 %v3048, 0.0
      %v3113 = vmax.f32 %v3053, 0.0
      %v3114 = vmax.f32 %v3056, 0.0
      %v3115 = vmax.f32 %v3061, 0.0
      %v3116 = vmax.f32 %v3064, 0.0
      %v3117 = vmax.f32 %v3069, 0.0
      %v3118 = vmax.f32 %v3072, 0.0
      %v3119 = vmax.f32 %v3077, 0.0
      %v3120 = vmax.f32 %v3080, 0.0
      %v3121 = vmax.f32 %v3085, 0.0
      %v3122 = vmax.f32 %v3088, 0.0
      %v3123 = vpack.c.bf16 %v3092, %v3091
      %v3124 = vpack.c.bf16 %v3094, %v3093
      %v3125 = vpack.c.bf16 %v3096, %v3095
      %v3126 = vpack.c.bf16 %v3098, %v3097
      %v3127 = vpack.c.bf16 %v3100, %v3099
      %v3128 = vpack.c.bf16 %v3102, %v3101
      %v3129 = vpack.c.bf16 %v3104, %v3103
      %v3130 = vpack.c.bf16 %v3106, %v3105
      %v3131 = vpack.c.bf16 %v3108, %v3107
      %v3132 = vpack.c.bf16 %v3110, %v3109
      %v3133 = vpack.c.bf16 %v3112, %v3111
      %v3134 = vpack.c.bf16 %v3114, %v3113
      %v3135 = vpack.c.bf16 %v3116, %v3115
      %v3136 = vpack.c.bf16 %v3118, %v3117
      %v3137 = vpack.c.bf16 %v3120, %v3119
      %v3138 = vpack.c.bf16 %v3122, %v3121
      %v3139 = vld [vmem:[%s11] sm:$0xf]
      %v3140 = vld [vmem:[%s11 + $0x4] sm:$0xf]
      %v3141 = vld [vmem:[%s11 + $0x8] sm:$0xf]
      %v3142 = vld [vmem:[%s11 + $0xc] sm:$0xf]
      %v3143 = vld [vmem:[%s11 + $0x10] sm:$0xf]
      %v3144 = vld [vmem:[%s11 + $0x14] sm:$0xf]
      %v3145 = vld [vmem:[%s11 + $0x18] sm:$0xf]
      %v3146 = vld [vmem:[%s11 + $0x1c] sm:$0xf]
      %v3147 = vld [vmem:[%s11 + $0x20] sm:$0xf]
      %v3148 = vld [vmem:[%s11 + $0x24] sm:$0xf]
      %v3149 = vld [vmem:[%s11 + $0x28] sm:$0xf]
      %v3150 = vld [vmem:[%s11 + $0x2c] sm:$0xf]
      %v3151 = vld [vmem:[%s11 + $0x30] sm:$0xf]
      %v3152 = vld [vmem:[%s11 + $0x34] sm:$0xf]
      %v3153 = vld [vmem:[%s11 + $0x38] sm:$0xf]
      %v3154 = vld [vmem:[%s11 + $0x3c] sm:$0xf]
      %v3155 = vld [vmem:[%s12] sm:$0x1]
      %v3157 = vlaneseq
      %v3158 = vshrl.u32 %v3157, 7
      %v3159 = vsub.s32 0, %v3158
      %v3160 = vrot.slane %v3155, %v3159
      %v3178 = vunpack.c.l.b16 %v3139
      %v3179 = vunpack.c.l.b16 %v3140
      %v3180 = vunpack.c.l.b16 %v3141
      %v3181 = vunpack.c.l.b16 %v3142
      %v3182 = vunpack.c.l.b16 %v3143
      %v3183 = vunpack.c.l.b16 %v3144
      %v3184 = vunpack.c.l.b16 %v3145
      %v3185 = vunpack.c.l.b16 %v3146
      %v3186 = vunpack.c.l.b16 %v3147
      %v3187 = vunpack.c.l.b16 %v3148
      %v3188 = vunpack.c.l.b16 %v3149
      %v3189 = vunpack.c.l.b16 %v3150
      %v3190 = vunpack.c.l.b16 %v3151
      %v3191 = vunpack.c.l.b16 %v3152
      %v3192 = vunpack.c.l.b16 %v3153
      %v3193 = vunpack.c.l.b16 %v3154
      %v3194 = vpack.c.b16 %v3179, %v3178
      %v3195 = vpack.c.b16 %v3181, %v3180
      %v3196 = vpack.c.b16 %v3183, %v3182
      %v3197 = vpack.c.b16 %v3185, %v3184
      %v3198 = vpack.c.b16 %v3187, %v3186
      %v3199 = vpack.c.b16 %v3189, %v3188
      %v3200 = vpack.c.b16 %v3191, %v3190
      %v3201 = vpack.c.b16 %v3193, %v3192
      %3210 = vmatprep.subr.bf16.mxu0 0
      %3211 = vmatpush1.bf16.msra.mxu0 %v3201
      %3212 = vmatprep.subr.bf16.mxu0 0
      %3213 = vmatpush1.bf16.msra.mxu0 %v3200
      %3214 = vmatprep.subr.bf16.mxu0 0
      %3215 = vmatpush1.bf16.msra.mxu0 %v3199
      %3216 = vmatprep.subr.bf16.mxu0 0
      %3217 = vmatpush1.bf16.msra.mxu0 %v3198
      %3218 = vmatprep.subr.bf16.mxu0 0
      %3219 = vmatpush1.bf16.msra.mxu0 %v3197
      %3220 = vmatprep.subr.bf16.mxu0 0
      %3221 = vmatpush1.bf16.msra.mxu0 %v3196
      %3222 = vmatprep.subr.bf16.mxu0 0
      %3223 = vmatpush1.bf16.msra.mxu0 %v3195
      %3224 = vmatprep.subr.bf16.mxu0 0
      %3225 = vmatpush1.bf16.msra.mxu0 %v3194
      %3226 = vmatprep.subr.bf16.mxu0 0
      %3227 = vmatpush2.bf16.msra.mxu0 0
      %3228 = vmatprep.subr.bf16.mxu0 0
      %3229 = vmatpush2.bf16.msra.mxu0 0
      %3230 = vmatprep.subr.bf16.mxu0 0
      %3231 = vmatpush2.bf16.msra.mxu0 0
      %3232 = vmatprep.subr.bf16.mxu0 0
      %3233 = vmatpush2.bf16.msra.mxu0 0
      %3234 = vmatprep.subr.bf16.mxu0 0
      %3235 = vmatpush2.bf16.msra.mxu0 0
      %3236 = vmatprep.subr.bf16.mxu0 0
      %3237 = vmatpush2.bf16.msra.mxu0 0
      %3238 = vmatprep.subr.bf16.mxu0 0
      %3239 = vmatpush2.bf16.msra.mxu0 0
      %3240 = vmatprep.subr.bf16.mxu0 0
      %3241 = vmatpush2.bf16.msra.mxu0 0
      %3242 = vmatprep.mubr.bf16.mxu0 0
      %3243 = vmatmul.mubr.bf16.gmra.mxu0 %v3123
      %v3244 = vpop.f32.mrf.mxu0
      %v3245 = vadd.f32 %v3160, %v3244
      %v3246 = vpop.f32.mrf.mxu0
      %v3247 = vpop.f32.mrf.mxu0
      %v3248 = vadd.f32 %v3160, %v3247
      %v3249 = vpop.f32.mrf.mxu0
      %3250 = vmatprep.mubr.bf16.mxu0 0
      %3251 = vmatmul.mubr.bf16.gmra.mxu0 %v3124
      %v3252 = vpop.f32.mrf.mxu0
      %v3253 = vadd.f32 %v3160, %v3252
      %v3254 = vpop.f32.mrf.mxu0
      %v3255 = vpop.f32.mrf.mxu0
      %v3256 = vadd.f32 %v3160, %v3255
      %v3257 = vpop.f32.mrf.mxu0
      %3258 = vmatprep.mubr.bf16.mxu0 0
      %3259 = vmatmul.mubr.bf16.gmra.mxu0 %v3125
      %v3260 = vpop.f32.mrf.mxu0
      %v3261 = vadd.f32 %v3160, %v3260
      %v3262 = vpop.f32.mrf.mxu0
      %v3263 = vpop.f32.mrf.mxu0
      %v3264 = vadd.f32 %v3160, %v3263
      %v3265 = vpop.f32.mrf.mxu0
      %3266 = vmatprep.mubr.bf16.mxu0 0
      %3267 = vmatmul.mubr.bf16.gmra.mxu0 %v3126
      %v3268 = vpop.f32.mrf.mxu0
      %v3269 = vadd.f32 %v3160, %v3268
      %v3270 = vpop.f32.mrf.mxu0
      %v3271 = vpop.f32.mrf.mxu0
      %v3272 = vadd.f32 %v3160, %v3271
      %v3273 = vpop.f32.mrf.mxu0
      %3274 = vmatprep.mubr.bf16.mxu0 0
      %3275 = vmatmul.mubr.bf16.gmra.mxu0 %v3127
      %v3276 = vpop.f32.mrf.mxu0
      %v3277 = vadd.f32 %v3160, %v3276
      %v3278 = vpop.f32.mrf.mxu0
      %v3279 = vpop.f32.mrf.mxu0
      %v3280 = vadd.f32 %v3160, %v3279
      %v3281 = vpop.f32.mrf.mxu0
      %3282 = vmatprep.mubr.bf16.mxu0 0
      %3283 = vmatmul.mubr.bf16.gmra.mxu0 %v3128
      %v3284 = vpop.f32.mrf.mxu0
      %v3285 = vadd.f32 %v3160, %v3284
      %v3286 = vpop.f32.mrf.mxu0
      %v3287 = vpop.f32.mrf.mxu0
      %v3288 = vadd.f32 %v3160, %v3287
      %v3289 = vpop.f32.mrf.mxu0
      %3290 = vmatprep.mubr.bf16.mxu0 0
      %3291 = vmatmul.mubr.bf16.gmra.mxu0 %v3129
      %v3292 = vpop.f32.mrf.mxu0
      %v3293 = vadd.f32 %v3160, %v3292
      %v3294 = vpop.f32.mrf.mxu0
      %v3295 = vpop.f32.mrf.mxu0
      %v3296 = vadd.f32 %v3160, %v3295
      %v3297 = vpop.f32.mrf.mxu0
      %3298 = vmatprep.mubr.bf16.mxu0 0
      %3299 = vmatmul.mubr.bf16.gmra.mxu0 %v3130
      %v3300 = vpop.f32.mrf.mxu0
      %v3301 = vadd.f32 %v3160, %v3300
      %v3302 = vpop.f32.mrf.mxu0
      %v3303 = vpop.f32.mrf.mxu0
      %v3304 = vadd.f32 %v3160, %v3303
      %v3305 = vpop.f32.mrf.mxu0
      %3306 = vmatprep.mubr.bf16.mxu0 0
      %3307 = vmatmul.mubr.bf16.gmra.mxu0 %v3131
      %v3308 = vpop.f32.mrf.mxu0
      %v3309 = vadd.f32 %v3160, %v3308
      %v3310 = vpop.f32.mrf.mxu0
      %v3311 = vpop.f32.mrf.mxu0
      %v3312 = vadd.f32 %v3160, %v3311
      %v3313 = vpop.f32.mrf.mxu0
      %3314 = vmatprep.mubr.bf16.mxu0 0
      %3315 = vmatmul.mubr.bf16.gmra.mxu0 %v3132
      %v3316 = vpop.f32.mrf.mxu0
      %v3317 = vadd.f32 %v3160, %v3316
      %v3318 = vpop.f32.mrf.mxu0
      %v3319 = vpop.f32.mrf.mxu0
      %v3320 = vadd.f32 %v3160, %v3319
      %v3321 = vpop.f32.mrf.mxu0
      %3322 = vmatprep.mubr.bf16.mxu0 0
      %3323 = vmatmul.mubr.bf16.gmra.mxu0 %v3133
      %v3324 = vpop.f32.mrf.mxu0
      %v3325 = vadd.f32 %v3160, %v3324
      %v3326 = vpop.f32.mrf.mxu0
      %v3327 = vpop.f32.mrf.mxu0
      %v3328 = vadd.f32 %v3160, %v3327
      %v3329 = vpop.f32.mrf.mxu0
      %3330 = vmatprep.mubr.bf16.mxu0 0
      %3331 = vmatmul.mubr.bf16.gmra.mxu0 %v3134
      %v3332 = vpop.f32.mrf.mxu0
      %v3333 = vadd.f32 %v3160, %v3332
      %v3334 = vpop.f32.mrf.mxu0
      %v3335 = vpop.f32.mrf.mxu0
      %v3336 = vadd.f32 %v3160, %v3335
      %v3337 = vpop.f32.mrf.mxu0
      %3338 = vmatprep.mubr.bf16.mxu0 0
      %3339 = vmatmul.mubr.bf16.gmra.mxu0 %v3135
      %v3340 = vpop.f32.mrf.mxu0
      %v3341 = vadd.f32 %v3160, %v3340
      %v3342 = vpop.f32.mrf.mxu0
      %v3343 = vpop.f32.mrf.mxu0
      %v3344 = vadd.f32 %v3160, %v3343
      %v3345 = vpop.f32.mrf.mxu0
      %3346 = vmatprep.mubr.bf16.mxu0 0
      %3347 = vmatmul.mubr.bf16.gmra.mxu0 %v3136
      %v3348 = vpop.f32.mrf.mxu0
      %v3349 = vadd.f32 %v3160, %v3348
      %v3350 = vpop.f32.mrf.mxu0
      %v3351 = vpop.f32.mrf.mxu0
      %v3352 = vadd.f32 %v3160, %v3351
      %v3353 = vpop.f32.mrf.mxu0
      %3354 = vmatprep.mubr.bf16.mxu0 0
      %3355 = vmatmul.mubr.bf16.gmra.mxu0 %v3137
      %v3356 = vpop.f32.mrf.mxu0
      %v3357 = vadd.f32 %v3160, %v3356
      %v3358 = vpop.f32.mrf.mxu0
      %v3359 = vpop.f32.mrf.mxu0
      %v3360 = vadd.f32 %v3160, %v3359
      %v3361 = vpop.f32.mrf.mxu0
      %3362 = vmatprep.mubr.bf16.mxu0 0
      %3363 = vmatmul.mubr.bf16.gmra.mxu0 %v3138
      %v3364 = vpop.f32.mrf.mxu0
      %v3365 = vadd.f32 %v3160, %v3364
      %v3366 = vpop.f32.mrf.mxu0
      %v3367 = vpop.f32.mrf.mxu0
      %v3368 = vadd.f32 %v3160, %v3367
      %v3369 = vpop.f32.mrf.mxu0
      %3370 = vdwg.mxu0
      %v3371 = vmax.f32 %v3245, 0.0
      %v3372 = vmax.f32 %v3248, 0.0
      %v3373 = vmax.f32 %v3253, 0.0
      %v3374 = vmax.f32 %v3256, 0.0
      %v3375 = vmax.f32 %v3261, 0.0
      %v3376 = vmax.f32 %v3264, 0.0
      %v3377 = vmax.f32 %v3269, 0.0
      %v3378 = vmax.f32 %v3272, 0.0
      %v3379 = vmax.f32 %v3277, 0.0
      %v3380 = vmax.f32 %v3280, 0.0
      %v3381 = vmax.f32 %v3285, 0.0
      %v3382 = vmax.f32 %v3288, 0.0
      %v3383 = vmax.f32 %v3293, 0.0
      %v3384 = vmax.f32 %v3296, 0.0
      %v3385 = vmax.f32 %v3301, 0.0
      %v3386 = vmax.f32 %v3304, 0.0
      %v3387 = vmax.f32 %v3309, 0.0
      %v3388 = vmax.f32 %v3312, 0.0
      %v3389 = vmax.f32 %v3317, 0.0
      %v3390 = vmax.f32 %v3320, 0.0
      %v3391 = vmax.f32 %v3325, 0.0
      %v3392 = vmax.f32 %v3328, 0.0
      %v3393 = vmax.f32 %v3333, 0.0
      %v3394 = vmax.f32 %v3336, 0.0
      %v3395 = vmax.f32 %v3341, 0.0
      %v3396 = vmax.f32 %v3344, 0.0
      %v3397 = vmax.f32 %v3349, 0.0
      %v3398 = vmax.f32 %v3352, 0.0
      %v3399 = vmax.f32 %v3357, 0.0
      %v3400 = vmax.f32 %v3360, 0.0
      %v3401 = vmax.f32 %v3365, 0.0
      %v3402 = vmax.f32 %v3368, 0.0
      %v3403 = vpack.c.bf16 %v3372, %v3371
      %v3404 = vpack.c.bf16 %v3374, %v3373
      %v3405 = vpack.c.bf16 %v3376, %v3375
      %v3406 = vpack.c.bf16 %v3378, %v3377
      %v3407 = vpack.c.bf16 %v3380, %v3379
      %v3408 = vpack.c.bf16 %v3382, %v3381
      %v3409 = vpack.c.bf16 %v3384, %v3383
      %v3410 = vpack.c.bf16 %v3386, %v3385
      %v3411 = vpack.c.bf16 %v3388, %v3387
      %v3412 = vpack.c.bf16 %v3390, %v3389
      %v3413 = vpack.c.bf16 %v3392, %v3391
      %v3414 = vpack.c.bf16 %v3394, %v3393
      %v3415 = vpack.c.bf16 %v3396, %v3395
      %v3416 = vpack.c.bf16 %v3398, %v3397
      %v3417 = vpack.c.bf16 %v3400, %v3399
      %v3418 = vpack.c.bf16 %v3402, %v3401
      %v3419 = vld [vmem:[%s13] sm:$0xf]
      %v3420 = vld [vmem:[%s13 + $0x4] sm:$0xf]
      %v3421 = vld [vmem:[%s13 + $0x8] sm:$0xf]
      %v3422 = vld [vmem:[%s13 + $0xc] sm:$0xf]
      %v3423 = vld [vmem:[%s13 + $0x10] sm:$0xf]
      %v3424 = vld [vmem:[%s13 + $0x14] sm:$0xf]
      %v3425 = vld [vmem:[%s13 + $0x18] sm:$0xf]
      %v3426 = vld [vmem:[%s13 + $0x1c] sm:$0xf]
      %v3427 = vld [vmem:[%s14] sm:$0x1]
      %v3429 = vlaneseq
      %v3430 = vshrl.u32 %v3429, 7
      %v3431 = vsub.s32 0, %v3430
      %v3432 = vrot.slane %v3427, %v3431
      %v3442 = vunpack.c.l.b16 %v3419
      %v3443 = vunpack.c.l.b16 %v3420
      %v3444 = vunpack.c.l.b16 %v3421
      %v3445 = vunpack.c.l.b16 %v3422
      %v3446 = vunpack.c.l.b16 %v3423
      %v3447 = vunpack.c.l.b16 %v3424
      %v3448 = vunpack.c.l.b16 %v3425
      %v3449 = vunpack.c.l.b16 %v3426
      %v3450 = vpack.c.b16 %v3443, %v3442
      %v3451 = vpack.c.b16 %v3445, %v3444
      %v3452 = vpack.c.b16 %v3447, %v3446
      %v3453 = vpack.c.b16 %v3449, %v3448
      %v3459 = vsel %vm2353, %v3403, 0
      %v3462 = vsel %vm2353, %v3404, 0
      %v3465 = vsel %vm2353, %v3405, 0
      %v3468 = vsel %vm2353, %v3406, 0
      %v3471 = vsel %vm2353, %v3407, 0
      %v3474 = vsel %vm2353, %v3408, 0
      %v3477 = vsel %vm2353, %v3409, 0
      %v3480 = vsel %vm2353, %v3410, 0
      %v3483 = vsel %vm2353, %v3411, 0
      %v3486 = vsel %vm2353, %v3412, 0
      %v3489 = vsel %vm2353, %v3413, 0
      %v3492 = vsel %vm2353, %v3414, 0
      %v3495 = vsel %vm2353, %v3415, 0
      %v3498 = vsel %vm2353, %v3416, 0
      %v3501 = vsel %vm2353, %v3417, 0
      %v3504 = vsel %vm2353, %v3418, 0
      %3506 = vmatprep.subr.bf16.mxu0 0
      %3507 = vmatpush1.bf16.msra.mxu0 0
      %3508 = vmatprep.subr.bf16.mxu0 0
      %3509 = vmatpush1.bf16.msra.mxu0 0
      %3510 = vmatprep.subr.bf16.mxu0 0
      %3511 = vmatpush1.bf16.msra.mxu0 0
      %3512 = vmatprep.subr.bf16.mxu0 0
      %3513 = vmatpush1.bf16.msra.mxu0 0
      %3514 = vmatprep.subr.bf16.mxu0 0
      %3515 = vmatpush1.bf16.msra.mxu0 %v3453
      %3516 = vmatprep.subr.bf16.mxu0 0
      %3517 = vmatpush1.bf16.msra.mxu0 %v3452
      %3518 = vmatprep.subr.bf16.mxu0 0
      %3519 = vmatpush1.bf16.msra.mxu0 %v3451
      %3520 = vmatprep.subr.bf16.mxu0 0
      %3521 = vmatpush1.bf16.msra.mxu0 %v3450
      %3522 = vmatprep.subr.bf16.mxu0 0
      %3523 = vmatpush2.bf16.msra.mxu0 0
      %3524 = vmatprep.subr.bf16.mxu0 0
      %3525 = vmatpush2.bf16.msra.mxu0 0
      %3526 = vmatprep.subr.bf16.mxu0 0
      %3527 = vmatpush2.bf16.msra.mxu0 0
      %3528 = vmatprep.subr.bf16.mxu0 0
      %3529 = vmatpush2.bf16.msra.mxu0 0
      %3530 = vmatprep.subr.bf16.mxu0 0
      %3531 = vmatpush2.bf16.msra.mxu0 0
      %3532 = vmatprep.subr.bf16.mxu0 0
      %3533 = vmatpush2.bf16.msra.mxu0 0
      %3534 = vmatprep.subr.bf16.mxu0 0
      %3535 = vmatpush2.bf16.msra.mxu0 0
      %3536 = vmatprep.subr.bf16.mxu0 0
      %3537 = vmatpush2.bf16.msra.mxu0 0
      %3538 = vmatprep.mubr.bf16.mxu0 0
      %3539 = vmatmul.mubr.bf16.gmra.mxu0 %v3459
      %v3540 = vpop.f32.mrf.mxu0
      %v3541 = vadd.f32 %v3432, %v3540
      %v3542 = vpop.f32.mrf.mxu0
      %v3543 = vpop.f32.mrf.mxu0
      %v3544 = vadd.f32 %v3432, %v3543
      %v3545 = vpop.f32.mrf.mxu0
      %3546 = vmatprep.mubr.bf16.mxu0 0
      %3547 = vmatmul.mubr.bf16.gmra.mxu0 %v3462
      %v3548 = vpop.f32.mrf.mxu0
      %v3549 = vadd.f32 %v3432, %v3548
      %v3550 = vpop.f32.mrf.mxu0
      %v3551 = vpop.f32.mrf.mxu0
      %v3552 = vadd.f32 %v3432, %v3551
      %v3553 = vpop.f32.mrf.mxu0
      %3554 = vmatprep.mubr.bf16.mxu0 0
      %3555 = vmatmul.mubr.bf16.gmra.mxu0 %v3465
      %v3556 = vpop.f32.mrf.mxu0
      %v3557 = vadd.f32 %v3432, %v3556
      %v3558 = vpop.f32.mrf.mxu0
      %v3559 = vpop.f32.mrf.mxu0
      %v3560 = vadd.f32 %v3432, %v3559
      %v3561 = vpop.f32.mrf.mxu0
      %3562 = vmatprep.mubr.bf16.mxu0 0
      %3563 = vmatmul.mubr.bf16.gmra.mxu0 %v3468
      %v3564 = vpop.f32.mrf.mxu0
      %v3565 = vadd.f32 %v3432, %v3564
      %v3566 = vpop.f32.mrf.mxu0
      %v3567 = vpop.f32.mrf.mxu0
      %v3568 = vadd.f32 %v3432, %v3567
      %v3569 = vpop.f32.mrf.mxu0
      %3570 = vmatprep.mubr.bf16.mxu0 0
      %3571 = vmatmul.mubr.bf16.gmra.mxu0 %v3471
      %v3572 = vpop.f32.mrf.mxu0
      %v3573 = vadd.f32 %v3432, %v3572
      %v3574 = vpop.f32.mrf.mxu0
      %v3575 = vpop.f32.mrf.mxu0
      %v3576 = vadd.f32 %v3432, %v3575
      %v3577 = vpop.f32.mrf.mxu0
      %3578 = vmatprep.mubr.bf16.mxu0 0
      %3579 = vmatmul.mubr.bf16.gmra.mxu0 %v3474
      %v3580 = vpop.f32.mrf.mxu0
      %v3581 = vadd.f32 %v3432, %v3580
      %v3582 = vpop.f32.mrf.mxu0
      %v3583 = vpop.f32.mrf.mxu0
      %v3584 = vadd.f32 %v3432, %v3583
      %v3585 = vpop.f32.mrf.mxu0
      %3586 = vmatprep.mubr.bf16.mxu0 0
      %3587 = vmatmul.mubr.bf16.gmra.mxu0 %v3477
      %v3588 = vpop.f32.mrf.mxu0
      %v3589 = vadd.f32 %v3432, %v3588
      %v3590 = vpop.f32.mrf.mxu0
      %v3591 = vpop.f32.mrf.mxu0
      %v3592 = vadd.f32 %v3432, %v3591
      %v3593 = vpop.f32.mrf.mxu0
      %3594 = vmatprep.mubr.bf16.mxu0 0
      %3595 = vmatmul.mubr.bf16.gmra.mxu0 %v3480
      %v3596 = vpop.f32.mrf.mxu0
      %v3597 = vadd.f32 %v3432, %v3596
      %v3598 = vpop.f32.mrf.mxu0
      %v3599 = vpop.f32.mrf.mxu0
      %v3600 = vadd.f32 %v3432, %v3599
      %v3601 = vpop.f32.mrf.mxu0
      %3602 = vmatprep.mubr.bf16.mxu0 0
      %3603 = vmatmul.mubr.bf16.gmra.mxu0 %v3483
      %v3604 = vpop.f32.mrf.mxu0
      %v3605 = vadd.f32 %v3432, %v3604
      %v3606 = vpop.f32.mrf.mxu0
      %v3607 = vpop.f32.mrf.mxu0
      %v3608 = vadd.f32 %v3432, %v3607
      %v3609 = vpop.f32.mrf.mxu0
      %3610 = vmatprep.mubr.bf16.mxu0 0
      %3611 = vmatmul.mubr.bf16.gmra.mxu0 %v3486
      %v3612 = vpop.f32.mrf.mxu0
      %v3613 = vadd.f32 %v3432, %v3612
      %v3614 = vpop.f32.mrf.mxu0
      %v3615 = vpop.f32.mrf.mxu0
      %v3616 = vadd.f32 %v3432, %v3615
      %v3617 = vpop.f32.mrf.mxu0
      %3618 = vmatprep.mubr.bf16.mxu0 0
      %3619 = vmatmul.mubr.bf16.gmra.mxu0 %v3489
      %v3620 = vpop.f32.mrf.mxu0
      %v3621 = vadd.f32 %v3432, %v3620
      %v3622 = vpop.f32.mrf.mxu0
      %v3623 = vpop.f32.mrf.mxu0
      %v3624 = vadd.f32 %v3432, %v3623
      %v3625 = vpop.f32.mrf.mxu0
      %3626 = vmatprep.mubr.bf16.mxu0 0
      %3627 = vmatmul.mubr.bf16.gmra.mxu0 %v3492
      %v3628 = vpop.f32.mrf.mxu0
      %v3629 = vadd.f32 %v3432, %v3628
      %v3630 = vpop.f32.mrf.mxu0
      %v3631 = vpop.f32.mrf.mxu0
      %v3632 = vadd.f32 %v3432, %v3631
      %v3633 = vpop.f32.mrf.mxu0
      %3634 = vmatprep.mubr.bf16.mxu0 0
      %3635 = vmatmul.mubr.bf16.gmra.mxu0 %v3495
      %v3636 = vpop.f32.mrf.mxu0
      %v3637 = vadd.f32 %v3432, %v3636
      %v3638 = vpop.f32.mrf.mxu0
      %v3639 = vpop.f32.mrf.mxu0
      %v3640 = vadd.f32 %v3432, %v3639
      %v3641 = vpop.f32.mrf.mxu0
      %3642 = vmatprep.mubr.bf16.mxu0 0
      %3643 = vmatmul.mubr.bf16.gmra.mxu0 %v3498
      %v3644 = vpop.f32.mrf.mxu0
      %v3645 = vadd.f32 %v3432, %v3644
      %v3646 = vpop.f32.mrf.mxu0
      %v3647 = vpop.f32.mrf.mxu0
      %v3648 = vadd.f32 %v3432, %v3647
      %v3649 = vpop.f32.mrf.mxu0
      %3650 = vmatprep.mubr.bf16.mxu0 0
      %3651 = vmatmul.mubr.bf16.gmra.mxu0 %v3501
      %v3652 = vpop.f32.mrf.mxu0
      %v3653 = vadd.f32 %v3432, %v3652
      %v3654 = vpop.f32.mrf.mxu0
      %v3655 = vpop.f32.mrf.mxu0
      %v3656 = vadd.f32 %v3432, %v3655
      %v3657 = vpop.f32.mrf.mxu0
      %3658 = vmatprep.mubr.bf16.mxu0 0
      %3659 = vmatmul.mubr.bf16.gmra.mxu0 %v3504
      %v3660 = vpop.f32.mrf.mxu0
      %v3661 = vadd.f32 %v3432, %v3660
      %v3662 = vpop.f32.mrf.mxu0
      %v3663 = vpop.f32.mrf.mxu0
      %v3664 = vadd.f32 %v3432, %v3663
      %v3665 = vpop.f32.mrf.mxu0
      %3666 = vdwg.mxu0
      %v3667 = vmax.f32 %v3541, 0.0
      %v3668 = vmax.f32 %v3544, 0.0
      %v3669 = vmax.f32 %v3549, 0.0
      %v3670 = vmax.f32 %v3552, 0.0
      %v3671 = vmax.f32 %v3557, 0.0
      %v3672 = vmax.f32 %v3560, 0.0
      %v3673 = vmax.f32 %v3565, 0.0
      %v3674 = vmax.f32 %v3568, 0.0
      %v3675 = vmax.f32 %v3573, 0.0
      %v3676 = vmax.f32 %v3576, 0.0
      %v3677 = vmax.f32 %v3581, 0.0
      %v3678 = vmax.f32 %v3584, 0.0
      %v3679 = vmax.f32 %v3589, 0.0
      %v3680 = vmax.f32 %v3592, 0.0
      %v3681 = vmax.f32 %v3597, 0.0
      %v3682 = vmax.f32 %v3600, 0.0
      %v3683 = vmax.f32 %v3605, 0.0
      %v3684 = vmax.f32 %v3608, 0.0
      %v3685 = vmax.f32 %v3613, 0.0
      %v3686 = vmax.f32 %v3616, 0.0
      %v3687 = vmax.f32 %v3621, 0.0
      %v3688 = vmax.f32 %v3624, 0.0
      %v3689 = vmax.f32 %v3629, 0.0
      %v3690 = vmax.f32 %v3632, 0.0
      %v3691 = vmax.f32 %v3637, 0.0
      %v3692 = vmax.f32 %v3640, 0.0
      %v3693 = vmax.f32 %v3645, 0.0
      %v3694 = vmax.f32 %v3648, 0.0
      %v3695 = vmax.f32 %v3653, 0.0
      %v3696 = vmax.f32 %v3656, 0.0
      %v3697 = vmax.f32 %v3661, 0.0
      %v3698 = vmax.f32 %v3664, 0.0
      %v3699 = vpack.c.bf16 %v3668, %v3667
      %v3700 = vpack.c.bf16 %v3670, %v3669
      %v3701 = vpack.c.bf16 %v3672, %v3671
      %v3702 = vpack.c.bf16 %v3674, %v3673
      %v3703 = vpack.c.bf16 %v3676, %v3675
      %v3704 = vpack.c.bf16 %v3678, %v3677
      %v3705 = vpack.c.bf16 %v3680, %v3679
      %v3706 = vpack.c.bf16 %v3682, %v3681
      %v3707 = vpack.c.bf16 %v3684, %v3683
      %v3708 = vpack.c.bf16 %v3686, %v3685
      %v3709 = vpack.c.bf16 %v3688, %v3687
      %v3710 = vpack.c.bf16 %v3690, %v3689
      %v3711 = vpack.c.bf16 %v3692, %v3691
      %v3712 = vpack.c.bf16 %v3694, %v3693
      %v3713 = vpack.c.bf16 %v3696, %v3695
      %v3714 = vpack.c.bf16 %v3698, %v3697
      %v3715 = vld [vmem:[%s15] sm:$0xff]
      %v3716 = vld [vmem:[%s15 + $0x8] sm:$0xff]
      %v3717 = vld [vmem:[%s15 + $0x10] sm:$0xff]
      %v3718 = vld [vmem:[%s15 + $0x18] sm:$0xf]
      %v3719 = vld [vmem:[%s15 + $0x1c] sm:$0xff]
      %v3720 = vld [vmem:[%s15 + $0x24] sm:$0xff]
      %v3721 = vld [vmem:[%s15 + $0x2c] sm:$0xff]
      %v3722 = vld [vmem:[%s15 + $0x34] sm:$0xf]
      %v3723 = vld [vmem:[%s15 + $0x38] sm:$0xff]
      %v3724 = vld [vmem:[%s15 + $0x40] sm:$0xff]
      %v3725 = vld [vmem:[%s15 + $0x48] sm:$0xff]
      %v3726 = vld [vmem:[%s15 + $0x50] sm:$0xf]
      %v3727 = vld [vmem:[%s15 + $0x54] sm:$0xff]
      %v3728 = vld [vmem:[%s15 + $0x5c] sm:$0xff]
      %v3729 = vld [vmem:[%s15 + $0x64] sm:$0xff]
      %v3730 = vld [vmem:[%s15 + $0x6c] sm:$0xf]
      %v3731 = vld [vmem:[%s15 + $0x70] sm:$0xff]
      %v3732 = vld [vmem:[%s15 + $0x78] sm:$0xff]
      %v3733 = vld [vmem:[%s15 + $0x80] sm:$0xff]
      %v3734 = vld [vmem:[%s15 + $0x88] sm:$0xf]
      %v3735 = vld [vmem:[%s15 + $0x8c] sm:$0xff]
      %v3736 = vld [vmem:[%s15 + $0x94] sm:$0xff]
      %v3737 = vld [vmem:[%s15 + $0x9c] sm:$0xff]
      %v3738 = vld [vmem:[%s15 + $0xa4] sm:$0xf]
      %v3739 = vld [vmem:[%s15 + $0xa8] sm:$0xff]
      %v3740 = vld [vmem:[%s15 + $0xb0] sm:$0xff]
      %v3741 = vld [vmem:[%s15 + $0xb8] sm:$0xff]
      %v3742 = vld [vmem:[%s15 + $0xc0] sm:$0xf]
      %v3743 = vld [vmem:[%s15 + $0xc4] sm:$0xff]
      %v3744 = vld [vmem:[%s15 + $0xcc] sm:$0xff]
      %v3745 = vld [vmem:[%s15 + $0xd4] sm:$0xff]
      %v3746 = vld [vmem:[%s15 + $0xdc] sm:$0xf]
      %v3747 = vld [vmem:[%s15 + $0xe0] sm:$0xff]
      %v3748 = vld [vmem:[%s15 + $0xe8] sm:$0xff]
      %v3749 = vld [vmem:[%s15 + $0xf0] sm:$0xff]
      %v3750 = vld [vmem:[%s15 + $0xf8] sm:$0xf]
      %v3751 = vld [vmem:[%s15 + $0xfc] sm:$0xff]
      %v3752 = vld [vmem:[%s15 + $0x104] sm:$0xff]
      %v3753 = vld [vmem:[%s15 + $0x10c] sm:$0xff]
      %v3754 = vld [vmem:[%s15 + $0x114] sm:$0xf]
      %v3755 = vld [vmem:[%s15 + $0x118] sm:$0xff]
      %v3756 = vld [vmem:[%s15 + $0x120] sm:$0xff]
      %v3757 = vld [vmem:[%s15 + $0x128] sm:$0xff]
      %v3758 = vld [vmem:[%s15 + $0x130] sm:$0xf]
      %v3759 = vld [vmem:[%s15 + $0x134] sm:$0xff]
      %v3760 = vld [vmem:[%s15 + $0x13c] sm:$0xff]
      %v3761 = vld [vmem:[%s15 + $0x144] sm:$0xff]
      %v3762 = vld [vmem:[%s15 + $0x14c] sm:$0xf]
      %v3763 = vld [vmem:[%s15 + $0x150] sm:$0xff]
      %v3764 = vld [vmem:[%s15 + $0x158] sm:$0xff]
      %v3765 = vld [vmem:[%s15 + $0x160] sm:$0xff]
      %v3766 = vld [vmem:[%s15 + $0x168] sm:$0xf]
      %v3767 = vld [vmem:[%s15 + $0x16c] sm:$0xff]
      %v3768 = vld [vmem:[%s15 + $0x174] sm:$0xff]
      %v3769 = vld [vmem:[%s15 + $0x17c] sm:$0xff]
      %v3770 = vld [vmem:[%s15 + $0x184] sm:$0xf]
      %v3771 = vld [vmem:[%s15 + $0x188] sm:$0xff]
      %v3772 = vld [vmem:[%s15 + $0x190] sm:$0xff]
      %v3773 = vld [vmem:[%s15 + $0x198] sm:$0xff]
      %v3774 = vld [vmem:[%s15 + $0x1a0] sm:$0xf]
      %v3775 = vld [vmem:[%s15 + $0x1a4] sm:$0xff]
      %v3776 = vld [vmem:[%s15 + $0x1ac] sm:$0xff]
      %v3777 = vld [vmem:[%s15 + $0x1b4] sm:$0xff]
      %v3778 = vld [vmem:[%s15 + $0x1bc] sm:$0xf]
      %v3779 = vld [vmem:[%s16] sm:$0x7f]
      %v3781 = vlaneseq
      %v3782 = vshrl.u32 %v3781, 7
      %v3783 = vsub.s32 0, %v3782
      %v3784 = vrot.slane %v3779, %v3783
      %v3785 = vlaneseq
      %v3786 = vshrl.u32 %v3785, 7
      %v3787 = vsub.s32 1, %v3786
      %v3788 = vrot.slane %v3779, %v3787
      %v3789 = vlaneseq
      %v3790 = vshrl.u32 %v3789, 7
      %v3791 = vsub.s32 2, %v3790
      %v3792 = vrot.slane %v3779, %v3791
      %v3793 = vlaneseq
      %v3794 = vshrl.u32 %v3793, 7
      %v3795 = vsub.s32 3, %v3794
      %v3796 = vrot.slane %v3779, %v3795
      %v3797 = vlaneseq
      %v3798 = vshrl.u32 %v3797, 7
      %v3799 = vsub.s32 4, %v3798
      %v3800 = vrot.slane %v3779, %v3799
      %v3801 = vlaneseq
      %v3802 = vshrl.u32 %v3801, 7
      %v3803 = vsub.s32 5, %v3802
      %v3804 = vrot.slane %v3779, %v3803
      %v3805 = vlaneseq
      %v3806 = vshrl.u32 %v3805, 7
      %v3807 = vsub.s32 6, %v3806
      %v3808 = vrot.slane %v3779, %v3807
      %v3880 = vunpack.c.l.b16 %v3715
      %v3881 = vunpack.c.h.b16 %v3715
      %v3882 = vunpack.c.l.b16 %v3716
      %v3883 = vunpack.c.h.b16 %v3716
      %v3884 = vunpack.c.l.b16 %v3717
      %v3885 = vunpack.c.h.b16 %v3717
      %v3886 = vunpack.c.l.b16 %v3718
      %v3887 = vunpack.c.l.b16 %v3719
      %v3888 = vunpack.c.h.b16 %v3719
      %v3889 = vunpack.c.l.b16 %v3720
      %v3890 = vunpack.c.h.b16 %v3720
      %v3891 = vunpack.c.l.b16 %v3721
      %v3892 = vunpack.c.h.b16 %v3721
      %v3893 = vunpack.c.l.b16 %v3722
      %v3894 = vunpack.c.l.b16 %v3723
      %v3895 = vunpack.c.h.b16 %v3723
      %v3896 = vunpack.c.l.b16 %v3724
      %v3897 = vunpack.c.h.b16 %v3724
      %v3898 = vunpack.c.l.b16 %v3725
      %v3899 = vunpack.c.h.b16 %v3725
      %v3900 = vunpack.c.l.b16 %v3726
      %v3901 = vunpack.c.l.b16 %v3727
      %v3902 = vunpack.c.h.b16 %v3727
      %v3903 = vunpack.c.l.b16 %v3728
      %v3904 = vunpack.c.h.b16 %v3728
      %v3905 = vunpack.c.l.b16 %v3729
      %v3906 = vunpack.c.h.b16 %v3729
      %v3907 = vunpack.c.l.b16 %v3730
      %v3908 = vunpack.c.l.b16 %v3731
      %v3909 = vunpack.c.h.b16 %v3731
      %v3910 = vunpack.c.l.b16 %v3732
      %v3911 = vunpack.c.h.b16 %v3732
      %v3912 = vunpack.c.l.b16 %v3733
      %v3913 = vunpack.c.h.b16 %v3733
      %v3914 = vunpack.c.l.b16 %v3734
      %v3915 = vunpack.c.l.b16 %v3735
      %v3916 = vunpack.c.h.b16 %v3735
      %v3917 = vunpack.c.l.b16 %v3736
      %v3918 = vunpack.c.h.b16 %v3736
      %v3919 = vunpack.c.l.b16 %v3737
      %v3920 = vunpack.c.h.b16 %v3737
      %v3921 = vunpack.c.l.b16 %v3738
      %v3922 = vunpack.c.l.b16 %v3739
      %v3923 = vunpack.c.h.b16 %v3739
      %v3924 = vunpack.c.l.b16 %v3740
      %v3925 = vunpack.c.h.b16 %v3740
      %v3926 = vunpack.c.l.b16 %v3741
      %v3927 = vunpack.c.h.b16 %v3741
      %v3928 = vunpack.c.l.b16 %v3742
      %v3929 = vunpack.c.l.b16 %v3743
      %v3930 = vunpack.c.h.b16 %v3743
      %v3931 = vunpack.c.l.b16 %v3744
      %v3932 = vunpack.c.h.b16 %v3744
      %v3933 = vunpack.c.l.b16 %v3745
      %v3934 = vunpack.c.h.b16 %v3745
      %v3935 = vunpack.c.l.b16 %v3746
      %v3936 = vunpack.c.l.b16 %v3747
      %v3937 = vunpack.c.h.b16 %v3747
      %v3938 = vunpack.c.l.b16 %v3748
      %v3939 = vunpack.c.h.b16 %v3748
      %v3940 = vunpack.c.l.b16 %v3749
      %v3941 = vunpack.c.h.b16 %v3749
      %v3942 = vunpack.c.l.b16 %v3750
      %v3943 = vunpack.c.l.b16 %v3751
      %v3944 = vunpack.c.h.b16 %v3751
      %v3945 = vunpack.c.l.b16 %v3752
      %v3946 = vunpack.c.h.b16 %v3752
      %v3947 = vunpack.c.l.b16 %v3753
      %v3948 = vunpack.c.h.b16 %v3753
      %v3949 = vunpack.c.l.b16 %v3754
      %v3950 = vunpack.c.l.b16 %v3755
      %v3951 = vunpack.c.h.b16 %v3755
      %v3952 = vunpack.c.l.b16 %v3756
      %v3953 = vunpack.c.h.b16 %v3756
      %v3954 = vunpack.c.l.b16 %v3757
      %v3955 = vunpack.c.h.b16 %v3757
      %v3956 = vunpack.c.l.b16 %v3758
      %v3957 = vunpack.c.l.b16 %v3759
      %v3958 = vunpack.c.h.b16 %v3759
      %v3959 = vunpack.c.l.b16 %v3760
      %v3960 = vunpack.c.h.b16 %v3760
      %v3961 = vunpack.c.l.b16 %v3761
      %v3962 = vunpack.c.h.b16 %v3761
      %v3963 = vunpack.c.l.b16 %v3762
      %v3964 = vunpack.c.l.b16 %v3763
      %v3965 = vunpack.c.h.b16 %v3763
      %v3966 = vunpack.c.l.b16 %v3764
      %v3967 = vunpack.c.h.b16 %v3764
      %v3968 = vunpack.c.l.b16 %v3765
      %v3969 = vunpack.c.h.b16 %v3765
      %v3970 = vunpack.c.l.b16 %v3766
      %v3971 = vunpack.c.l.b16 %v3767
      %v3972 = vunpack.c.h.b16 %v3767
      %v3973 = vunpack.c.l.b16 %v3768
      %v3974 = vunpack.c.h.b16 %v3768
      %v3975 = vunpack.c.l.b16 %v3769
      %v3976 = vunpack.c.h.b16 %v3769
      %v3977 = vunpack.c.l.b16 %v3770
      %v3978 = vunpack.c.l.b16 %v3771
      %v3979 = vunpack.c.h.b16 %v3771
      %v3980 = vunpack.c.l.b16 %v3772
      %v3981 = vunpack.c.h.b16 %v3772
      %v3982 = vunpack.c.l.b16 %v3773
      %v3983 = vunpack.c.h.b16 %v3773
      %v3984 = vunpack.c.l.b16 %v3774
      %v3985 = vunpack.c.l.b16 %v3775
      %v3986 = vunpack.c.h.b16 %v3775
      %v3987 = vunpack.c.l.b16 %v3776
      %v3988 = vunpack.c.h.b16 %v3776
      %v3989 = vunpack.c.l.b16 %v3777
      %v3990 = vunpack.c.h.b16 %v3777
      %v3991 = vunpack.c.l.b16 %v3778
      %v3992 = vpack.c.b16 %v3887, %v3880
      %v3993 = vpack.c.b16 %v3888, %v3881
      %v3994 = vpack.c.b16 %v3889, %v3882
      %v3995 = vpack.c.b16 %v3890, %v3883
      %v3996 = vpack.c.b16 %v3891, %v3884
      %v3997 = vpack.c.b16 %v3892, %v3885
      %v3998 = vpack.c.b16 %v3893, %v3886
      %v3999 = vpack.c.b16 %v3901, %v3894
      %v4000 = vpack.c.b16 %v3902, %v3895
      %v4001 = vpack.c.b16 %v3903, %v3896
      %v4002 = vpack.c.b16 %v3904, %v3897
      %v4003 = vpack.c.b16 %v3905, %v3898
      %v4004 = vpack.c.b16 %v3906, %v3899
      %v4005 = vpack.c.b16 %v3907, %v3900
      %v4006 = vpack.c.b16 %v3915, %v3908
      %v4007 = vpack.c.b16 %v3916, %v3909
      %v4008 = vpack.c.b16 %v3917, %v3910
      %v4009 = vpack.c.b16 %v3918, %v3911
      %v4010 = vpack.c.b16 %v3919, %v3912
      %v4011 = vpack.c.b16 %v3920, %v3913
      %v4012 = vpack.c.b16 %v3921, %v3914
      %v4013 = vpack.c.b16 %v3929, %v3922
      %v4014 = vpack.c.b16 %v3930, %v3923
      %v4015 = vpack.c.b16 %v3931, %v3924
      %v4016 = vpack.c.b16 %v3932, %v3925
      %v4017 = vpack.c.b16 %v3933, %v3926
      %v4018 = vpack.c.b16 %v3934, %v3927
      %v4019 = vpack.c.b16 %v3935, %v3928
      %v4020 = vpack.c.b16 %v3943, %v3936
      %v4021 = vpack.c.b16 %v3944, %v3937
      %v4022 = vpack.c.b16 %v3945, %v3938
      %v4023 = vpack.c.b16 %v3946, %v3939
      %v4024 = vpack.c.b16 %v3947, %v3940
      %v4025 = vpack.c.b16 %v3948, %v3941
      %v4026 = vpack.c.b16 %v3949, %v3942
      %v4027 = vpack.c.b16 %v3957, %v3950
      %v4028 = vpack.c.b16 %v3958, %v3951
      %v4029 = vpack.c.b16 %v3959, %v3952
      %v4030 = vpack.c.b16 %v3960, %v3953
      %v4031 = vpack.c.b16 %v3961, %v3954
      %v4032 = vpack.c.b16 %v3962, %v3955
      %v4033 = vpack.c.b16 %v3963, %v3956
      %v4034 = vpack.c.b16 %v3971, %v3964
      %v4035 = vpack.c.b16 %v3972, %v3965
      %v4036 = vpack.c.b16 %v3973, %v3966
      %v4037 = vpack.c.b16 %v3974, %v3967
      %v4038 = vpack.c.b16 %v3975, %v3968
      %v4039 = vpack.c.b16 %v3976, %v3969
      %v4040 = vpack.c.b16 %v3977, %v3970
      %v4041 = vpack.c.b16 %v3985, %v3978
      %v4042 = vpack.c.b16 %v3986, %v3979
      %v4043 = vpack.c.b16 %v3987, %v3980
      %v4044 = vpack.c.b16 %v3988, %v3981
      %v4045 = vpack.c.b16 %v3989, %v3982
      %v4046 = vpack.c.b16 %v3990, %v3983
      %v4047 = vpack.c.b16 %v3991, %v3984
      %4104 = vmatprep.subr.bf16.mxu0 %v4042
      %4105 = vmatpush1.bf16.msra.mxu0 %v4041
      %4106 = vmatprep.subr.bf16.mxu0 %v4035
      %4107 = vmatpush1.bf16.msra.mxu0 %v4034
      %4108 = vmatprep.subr.bf16.mxu0 %v4028
      %4109 = vmatpush1.bf16.msra.mxu0 %v4027
      %4110 = vmatprep.subr.bf16.mxu0 %v4021
      %4111 = vmatpush1.bf16.msra.mxu0 %v4020
      %4112 = vmatprep.subr.bf16.mxu0 %v4014
      %4113 = vmatpush1.bf16.msra.mxu0 %v4013
      %4114 = vmatprep.subr.bf16.mxu0 %v4007
      %4115 = vmatpush1.bf16.msra.mxu0 %v4006
      %4116 = vmatprep.subr.bf16.mxu0 %v4000
      %4117 = vmatpush1.bf16.msra.mxu0 %v3999
      %4118 = vmatprep.subr.bf16.mxu0 %v3993
      %4119 = vmatpush1.bf16.msra.mxu0 %v3992
      %4120 = vmatprep.subr.bf16.mxu0 0
      %4121 = vmatpush2.bf16.msra.mxu0 0
      %4122 = vmatprep.subr.bf16.mxu0 0
      %4123 = vmatpush2.bf16.msra.mxu0 0
      %4124 = vmatprep.subr.bf16.mxu0 0
      %4125 = vmatpush2.bf16.msra.mxu0 0
      %4126 = vmatprep.subr.bf16.mxu0 0
      %4127 = vmatpush2.bf16.msra.mxu0 0
      %4128 = vmatprep.subr.bf16.mxu0 0
      %4129 = vmatpush2.bf16.msra.mxu0 0
      %4130 = vmatprep.subr.bf16.mxu0 0
      %4131 = vmatpush2.bf16.msra.mxu0 0
      %4132 = vmatprep.subr.bf16.mxu0 0
      %4133 = vmatpush2.bf16.msra.mxu0 0
      %4134 = vmatprep.subr.bf16.mxu0 0
      %4135 = vmatpush2.bf16.msra.mxu0 0
      %4136 = vmatprep.mubr.bf16.mxu0 0
      %4137 = vmatmul.mubr.bf16.gmra.mxu0 %v3699
      %v4138 = vpop.f32.mrf.mxu0
      %v4139 = vadd.f32 %v3784, %v4138
      %v4140 = vpop.f32.mrf.mxu0
      %v4141 = vadd.f32 %v3788, %v4140
      %v4142 = vpop.f32.mrf.mxu0
      %v4143 = vadd.f32 %v3784, %v4142
      %v4144 = vpop.f32.mrf.mxu0
      %v4145 = vadd.f32 %v3788, %v4144
      %4146 = vmatprep.mubr.bf16.mxu0 0
      %4147 = vmatmul.mubr.bf16.gmra.mxu0 %v3700
      %v4148 = vpop.f32.mrf.mxu0
      %v4149 = vadd.f32 %v3784, %v4148
      %v4150 = vpop.f32.mrf.mxu0
      %v4151 = vadd.f32 %v3788, %v4150
      %v4152 = vpop.f32.mrf.mxu0
      %v4153 = vadd.f32 %v3784, %v4152
      %v4154 = vpop.f32.mrf.mxu0
      %v4155 = vadd.f32 %v3788, %v4154
      %4156 = vmatprep.mubr.bf16.mxu0 0
      %4157 = vmatmul.mubr.bf16.gmra.mxu0 %v3701
      %v4158 = vpop.f32.mrf.mxu0
      %v4159 = vadd.f32 %v3784, %v4158
      %v4160 = vpop.f32.mrf.mxu0
      %v4161 = vadd.f32 %v3788, %v4160
      %v4162 = vpop.f32.mrf.mxu0
      %v4163 = vadd.f32 %v3784, %v4162
      %v4164 = vpop.f32.mrf.mxu0
      %v4165 = vadd.f32 %v3788, %v4164
      %4166 = vmatprep.mubr.bf16.mxu0 0
      %4167 = vmatmul.mubr.bf16.gmra.mxu0 %v3702
      %v4168 = vpop.f32.mrf.mxu0
      %v4169 = vadd.f32 %v3784, %v4168
      %v4170 = vpop.f32.mrf.mxu0
      %v4171 = vadd.f32 %v3788, %v4170
      %v4172 = vpop.f32.mrf.mxu0
      %v4173 = vadd.f32 %v3784, %v4172
      %v4174 = vpop.f32.mrf.mxu0
      %v4175 = vadd.f32 %v3788, %v4174
      %4176 = vmatprep.mubr.bf16.mxu0 0
      %4177 = vmatmul.mubr.bf16.gmra.mxu0 %v3703
      %v4178 = vpop.f32.mrf.mxu0
      %v4179 = vadd.f32 %v3784, %v4178
      %v4180 = vpop.f32.mrf.mxu0
      %v4181 = vadd.f32 %v3788, %v4180
      %v4182 = vpop.f32.mrf.mxu0
      %v4183 = vadd.f32 %v3784, %v4182
      %v4184 = vpop.f32.mrf.mxu0
      %v4185 = vadd.f32 %v3788, %v4184
      %4186 = vmatprep.mubr.bf16.mxu0 0
      %4187 = vmatmul.mubr.bf16.gmra.mxu0 %v3704
      %v4188 = vpop.f32.mrf.mxu0
      %v4189 = vadd.f32 %v3784, %v4188
      %v4190 = vpop.f32.mrf.mxu0
      %v4191 = vadd.f32 %v3788, %v4190
      %v4192 = vpop.f32.mrf.mxu0
      %v4193 = vadd.f32 %v3784, %v4192
      %v4194 = vpop.f32.mrf.mxu0
      %v4195 = vadd.f32 %v3788, %v4194
      %4196 = vmatprep.mubr.bf16.mxu0 0
      %4197 = vmatmul.mubr.bf16.gmra.mxu0 %v3705
      %v4198 = vpop.f32.mrf.mxu0
      %v4199 = vadd.f32 %v3784, %v4198
      %v4200 = vpop.f32.mrf.mxu0
      %v4201 = vadd.f32 %v3788, %v4200
      %v4202 = vpop.f32.mrf.mxu0
      %v4203 = vadd.f32 %v3784, %v4202
      %v4204 = vpop.f32.mrf.mxu0
      %v4205 = vadd.f32 %v3788, %v4204
      %4206 = vmatprep.mubr.bf16.mxu0 0
      %4207 = vmatmul.mubr.bf16.gmra.mxu0 %v3706
      %v4208 = vpop.f32.mrf.mxu0
      %v4209 = vadd.f32 %v3784, %v4208
      %v4210 = vpop.f32.mrf.mxu0
      %v4211 = vadd.f32 %v3788, %v4210
      %v4212 = vpop.f32.mrf.mxu0
      %v4213 = vadd.f32 %v3784, %v4212
      %v4214 = vpop.f32.mrf.mxu0
      %v4215 = vadd.f32 %v3788, %v4214
      %4216 = vmatprep.mubr.bf16.mxu0 0
      %4217 = vmatmul.mubr.bf16.gmra.mxu0 %v3707
      %v4218 = vpop.f32.mrf.mxu0
      %v4219 = vadd.f32 %v3784, %v4218
      %v4220 = vpop.f32.mrf.mxu0
      %v4221 = vadd.f32 %v3788, %v4220
      %v4222 = vpop.f32.mrf.mxu0
      %v4223 = vadd.f32 %v3784, %v4222
      %v4224 = vpop.f32.mrf.mxu0
      %v4225 = vadd.f32 %v3788, %v4224
      %4226 = vmatprep.mubr.bf16.mxu0 0
      %4227 = vmatmul.mubr.bf16.gmra.mxu0 %v3708
      %v4228 = vpop.f32.mrf.mxu0
      %v4229 = vadd.f32 %v3784, %v4228
      %v4230 = vpop.f32.mrf.mxu0
      %v4231 = vadd.f32 %v3788, %v4230
      %v4232 = vpop.f32.mrf.mxu0
      %v4233 = vadd.f32 %v3784, %v4232
      %v4234 = vpop.f32.mrf.mxu0
      %v4235 = vadd.f32 %v3788, %v4234
      %4236 = vmatprep.mubr.bf16.mxu0 0
      %4237 = vmatmul.mubr.bf16.gmra.mxu0 %v3709
      %v4238 = vpop.f32.mrf.mxu0
      %v4239 = vadd.f32 %v3784, %v4238
      %v4240 = vpop.f32.mrf.mxu0
      %v4241 = vadd.f32 %v3788, %v4240
      %v4242 = vpop.f32.mrf.mxu0
      %v4243 = vadd.f32 %v3784, %v4242
      %v4244 = vpop.f32.mrf.mxu0
      %v4245 = vadd.f32 %v3788, %v4244
      %4246 = vmatprep.mubr.bf16.mxu0 0
      %4247 = vmatmul.mubr.bf16.gmra.mxu0 %v3710
      %v4248 = vpop.f32.mrf.mxu0
      %v4249 = vadd.f32 %v3784, %v4248
      %v4250 = vpop.f32.mrf.mxu0
      %v4251 = vadd.f32 %v3788, %v4250
      %v4252 = vpop.f32.mrf.mxu0
      %v4253 = vadd.f32 %v3784, %v4252
      %v4254 = vpop.f32.mrf.mxu0
      %v4255 = vadd.f32 %v3788, %v4254
      %4256 = vmatprep.mubr.bf16.mxu0 0
      %4257 = vmatmul.mubr.bf16.gmra.mxu0 %v3711
      %v4258 = vpop.f32.mrf.mxu0
      %v4259 = vadd.f32 %v3784, %v4258
      %v4260 = vpop.f32.mrf.mxu0
      %v4261 = vadd.f32 %v3788, %v4260
      %v4262 = vpop.f32.mrf.mxu0
      %v4263 = vadd.f32 %v3784, %v4262
      %v4264 = vpop.f32.mrf.mxu0
      %v4265 = vadd.f32 %v3788, %v4264
      %4266 = vmatprep.mubr.bf16.mxu0 0
      %4267 = vmatmul.mubr.bf16.gmra.mxu0 %v3712
      %v4268 = vpop.f32.mrf.mxu0
      %v4269 = vadd.f32 %v3784, %v4268
      %v4270 = vpop.f32.mrf.mxu0
      %v4271 = vadd.f32 %v3788, %v4270
      %v4272 = vpop.f32.mrf.mxu0
      %v4273 = vadd.f32 %v3784, %v4272
      %v4274 = vpop.f32.mrf.mxu0
      %v4275 = vadd.f32 %v3788, %v4274
      %4276 = vmatprep.mubr.bf16.mxu0 0
      %4277 = vmatmul.mubr.bf16.gmra.mxu0 %v3713
      %v4278 = vpop.f32.mrf.mxu0
      %v4279 = vadd.f32 %v3784, %v4278
      %v4280 = vpop.f32.mrf.mxu0
      %v4281 = vadd.f32 %v3788, %v4280
      %v4282 = vpop.f32.mrf.mxu0
      %v4283 = vadd.f32 %v3784, %v4282
      %v4284 = vpop.f32.mrf.mxu0
      %v4285 = vadd.f32 %v3788, %v4284
      %4286 = vmatprep.mubr.bf16.mxu0 0
      %4287 = vmatmul.mubr.bf16.gmra.mxu0 %v3714
      %v4288 = vpop.f32.mrf.mxu0
      %v4289 = vadd.f32 %v3784, %v4288
      %v4290 = vpop.f32.mrf.mxu0
      %v4291 = vadd.f32 %v3788, %v4290
      %v4292 = vpop.f32.mrf.mxu0
      %v4293 = vadd.f32 %v3784, %v4292
      %v4294 = vpop.f32.mrf.mxu0
      %v4295 = vadd.f32 %v3788, %v4294
      %4296 = vdwg.mxu0
      %4297 = vmatprep.subr.bf16.mxu0 %v4044
      %4298 = vmatpush1.bf16.msra.mxu0 %v4043
      %4299 = vmatprep.subr.bf16.mxu0 %v4037
      %4300 = vmatpush1.bf16.msra.mxu0 %v4036
      %4301 = vmatprep.subr.bf16.mxu0 %v4030
      %4302 = vmatpush1.bf16.msra.mxu0 %v4029
      %4303 = vmatprep.subr.bf16.mxu0 %v4023
      %4304 = vmatpush1.bf16.msra.mxu0 %v4022
      %4305 = vmatprep.subr.bf16.mxu0 %v4016
      %4306 = vmatpush1.bf16.msra.mxu0 %v4015
      %4307 = vmatprep.subr.bf16.mxu0 %v4009
      %4308 = vmatpush1.bf16.msra.mxu0 %v4008
      %4309 = vmatprep.subr.bf16.mxu0 %v4002
      %4310 = vmatpush1.bf16.msra.mxu0 %v4001
      %4311 = vmatprep.subr.bf16.mxu0 %v3995
      %4312 = vmatpush1.bf16.msra.mxu0 %v3994
      %4313 = vmatprep.subr.bf16.mxu0 0
      %4314 = vmatpush2.bf16.msra.mxu0 0
      %4315 = vmatprep.subr.bf16.mxu0 0
      %4316 = vmatpush2.bf16.msra.mxu0 0
      %4317 = vmatprep.subr.bf16.mxu0 0
      %4318 = vmatpush2.bf16.msra.mxu0 0
      %4319 = vmatprep.subr.bf16.mxu0 0
      %4320 = vmatpush2.bf16.msra.mxu0 0
      %4321 = vmatprep.subr.bf16.mxu0 0
      %4322 = vmatpush2.bf16.msra.mxu0 0
      %4323 = vmatprep.subr.bf16.mxu0 0
      %4324 = vmatpush2.bf16.msra.mxu0 0
      %4325 = vmatprep.subr.bf16.mxu0 0
      %4326 = vmatpush2.bf16.msra.mxu0 0
      %4327 = vmatprep.subr.bf16.mxu0 0
      %4328 = vmatpush2.bf16.msra.mxu0 0
      %4329 = vmatprep.mubr.bf16.mxu0 0
      %4330 = vmatmul.mubr.bf16.gmra.mxu0 %v3699
      %v4331 = vpop.f32.mrf.mxu0
      %v4332 = vadd.f32 %v3792, %v4331
      %v4333 = vpop.f32.mrf.mxu0
      %v4334 = vadd.f32 %v3796, %v4333
      %v4335 = vpop.f32.mrf.mxu0
      %v4336 = vadd.f32 %v3792, %v4335
      %v4337 = vpop.f32.mrf.mxu0
      %v4338 = vadd.f32 %v3796, %v4337
      %4339 = vmatprep.mubr.bf16.mxu0 0
      %4340 = vmatmul.mubr.bf16.gmra.mxu0 %v3700
      %v4341 = vpop.f32.mrf.mxu0
      %v4342 = vadd.f32 %v3792, %v4341
      %v4343 = vpop.f32.mrf.mxu0
      %v4344 = vadd.f32 %v3796, %v4343
      %v4345 = vpop.f32.mrf.mxu0
      %v4346 = vadd.f32 %v3792, %v4345
      %v4347 = vpop.f32.mrf.mxu0
      %v4348 = vadd.f32 %v3796, %v4347
      %4349 = vmatprep.mubr.bf16.mxu0 0
      %4350 = vmatmul.mubr.bf16.gmra.mxu0 %v3701
      %v4351 = vpop.f32.mrf.mxu0
      %v4352 = vadd.f32 %v3792, %v4351
      %v4353 = vpop.f32.mrf.mxu0
      %v4354 = vadd.f32 %v3796, %v4353
      %v4355 = vpop.f32.mrf.mxu0
      %v4356 = vadd.f32 %v3792, %v4355
      %v4357 = vpop.f32.mrf.mxu0
      %v4358 = vadd.f32 %v3796, %v4357
      %4359 = vmatprep.mubr.bf16.mxu0 0
      %4360 = vmatmul.mubr.bf16.gmra.mxu0 %v3702
      %v4361 = vpop.f32.mrf.mxu0
      %v4362 = vadd.f32 %v3792, %v4361
      %v4363 = vpop.f32.mrf.mxu0
      %v4364 = vadd.f32 %v3796, %v4363
      %v4365 = vpop.f32.mrf.mxu0
      %v4366 = vadd.f32 %v3792, %v4365
      %v4367 = vpop.f32.mrf.mxu0
      %v4368 = vadd.f32 %v3796, %v4367
      %4369 = vmatprep.mubr.bf16.mxu0 0
      %4370 = vmatmul.mubr.bf16.gmra.mxu0 %v3703
      %v4371 = vpop.f32.mrf.mxu0
      %v4372 = vadd.f32 %v3792, %v4371
      %v4373 = vpop.f32.mrf.mxu0
      %v4374 = vadd.f32 %v3796, %v4373
      %v4375 = vpop.f32.mrf.mxu0
      %v4376 = vadd.f32 %v3792, %v4375
      %v4377 = vpop.f32.mrf.mxu0
      %v4378 = vadd.f32 %v3796, %v4377
      %4379 = vmatprep.mubr.bf16.mxu0 0
      %4380 = vmatmul.mubr.bf16.gmra.mxu0 %v3704
      %v4381 = vpop.f32.mrf.mxu0
      %v4382 = vadd.f32 %v3792, %v4381
      %v4383 = vpop.f32.mrf.mxu0
      %v4384 = vadd.f32 %v3796, %v4383
      %v4385 = vpop.f32.mrf.mxu0
      %v4386 = vadd.f32 %v3792, %v4385
      %v4387 = vpop.f32.mrf.mxu0
      %v4388 = vadd.f32 %v3796, %v4387
      %4389 = vmatprep.mubr.bf16.mxu0 0
      %4390 = vmatmul.mubr.bf16.gmra.mxu0 %v3705
      %v4391 = vpop.f32.mrf.mxu0
      %v4392 = vadd.f32 %v3792, %v4391
      %v4393 = vpop.f32.mrf.mxu0
      %v4394 = vadd.f32 %v3796, %v4393
      %v4395 = vpop.f32.mrf.mxu0
      %v4396 = vadd.f32 %v3792, %v4395
      %v4397 = vpop.f32.mrf.mxu0
      %v4398 = vadd.f32 %v3796, %v4397
      %4399 = vmatprep.mubr.bf16.mxu0 0
      %4400 = vmatmul.mubr.bf16.gmra.mxu0 %v3706
      %v4401 = vpop.f32.mrf.mxu0
      %v4402 = vadd.f32 %v3792, %v4401
      %v4403 = vpop.f32.mrf.mxu0
      %v4404 = vadd.f32 %v3796, %v4403
      %v4405 = vpop.f32.mrf.mxu0
      %v4406 = vadd.f32 %v3792, %v4405
      %v4407 = vpop.f32.mrf.mxu0
      %v4408 = vadd.f32 %v3796, %v4407
      %4409 = vmatprep.mubr.bf16.mxu0 0
      %4410 = vmatmul.mubr.bf16.gmra.mxu0 %v3707
      %v4411 = vpop.f32.mrf.mxu0
      %v4412 = vadd.f32 %v3792, %v4411
      %v4413 = vpop.f32.mrf.mxu0
      %v4414 = vadd.f32 %v3796, %v4413
      %v4415 = vpop.f32.mrf.mxu0
      %v4416 = vadd.f32 %v3792, %v4415
      %v4417 = vpop.f32.mrf.mxu0
      %v4418 = vadd.f32 %v3796, %v4417
      %4419 = vmatprep.mubr.bf16.mxu0 0
      %4420 = vmatmul.mubr.bf16.gmra.mxu0 %v3708
      %v4421 = vpop.f32.mrf.mxu0
      %v4422 = vadd.f32 %v3792, %v4421
      %v4423 = vpop.f32.mrf.mxu0
      %v4424 = vadd.f32 %v3796, %v4423
      %v4425 = vpop.f32.mrf.mxu0
      %v4426 = vadd.f32 %v3792, %v4425
      %v4427 = vpop.f32.mrf.mxu0
      %v4428 = vadd.f32 %v3796, %v4427
      %4429 = vmatprep.mubr.bf16.mxu0 0
      %4430 = vmatmul.mubr.bf16.gmra.mxu0 %v3709
      %v4431 = vpop.f32.mrf.mxu0
      %v4432 = vadd.f32 %v3792, %v4431
      %v4433 = vpop.f32.mrf.mxu0
      %v4434 = vadd.f32 %v3796, %v4433
      %v4435 = vpop.f32.mrf.mxu0
      %v4436 = vadd.f32 %v3792, %v4435
      %v4437 = vpop.f32.mrf.mxu0
      %v4438 = vadd.f32 %v3796, %v4437
      %4439 = vmatprep.mubr.bf16.mxu0 0
      %4440 = vmatmul.mubr.bf16.gmra.mxu0 %v3710
      %v4441 = vpop.f32.mrf.mxu0
      %v4442 = vadd.f32 %v3792, %v4441
      %v4443 = vpop.f32.mrf.mxu0
      %v4444 = vadd.f32 %v3796, %v4443
      %v4445 = vpop.f32.mrf.mxu0
      %v4446 = vadd.f32 %v3792, %v4445
      %v4447 = vpop.f32.mrf.mxu0
      %v4448 = vadd.f32 %v3796, %v4447
      %4449 = vmatprep.mubr.bf16.mxu0 0
      %4450 = vmatmul.mubr.bf16.gmra.mxu0 %v3711
      %v4451 = vpop.f32.mrf.mxu0
      %v4452 = vadd.f32 %v3792, %v4451
      %v4453 = vpop.f32.mrf.mxu0
      %v4454 = vadd.f32 %v3796, %v4453
      %v4455 = vpop.f32.mrf.mxu0
      %v4456 = vadd.f32 %v3792, %v4455
      %v4457 = vpop.f32.mrf.mxu0
      %v4458 = vadd.f32 %v3796, %v4457
      %4459 = vmatprep.mubr.bf16.mxu0 0
      %4460 = vmatmul.mubr.bf16.gmra.mxu0 %v3712
      %v4461 = vpop.f32.mrf.mxu0
      %v4462 = vadd.f32 %v3792, %v4461
      %v4463 = vpop.f32.mrf.mxu0
      %v4464 = vadd.f32 %v3796, %v4463
      %v4465 = vpop.f32.mrf.mxu0
      %v4466 = vadd.f32 %v3792, %v4465
      %v4467 = vpop.f32.mrf.mxu0
      %v4468 = vadd.f32 %v3796, %v4467
      %4469 = vmatprep.mubr.bf16.mxu0 0
      %4470 = vmatmul.mubr.bf16.gmra.mxu0 %v3713
      %v4471 = vpop.f32.mrf.mxu0
      %v4472 = vadd.f32 %v3792, %v4471
      %v4473 = vpop.f32.mrf.mxu0
      %v4474 = vadd.f32 %v3796, %v4473
      %v4475 = vpop.f32.mrf.mxu0
      %v4476 = vadd.f32 %v3792, %v4475
      %v4477 = vpop.f32.mrf.mxu0
      %v4478 = vadd.f32 %v3796, %v4477
      %4479 = vmatprep.mubr.bf16.mxu0 0
      %4480 = vmatmul.mubr.bf16.gmra.mxu0 %v3714
      %v4481 = vpop.f32.mrf.mxu0
      %v4482 = vadd.f32 %v3792, %v4481
      %v4483 = vpop.f32.mrf.mxu0
      %v4484 = vadd.f32 %v3796, %v4483
      %v4485 = vpop.f32.mrf.mxu0
      %v4486 = vadd.f32 %v3792, %v4485
      %v4487 = vpop.f32.mrf.mxu0
      %v4488 = vadd.f32 %v3796, %v4487
      %4489 = vdwg.mxu0
      %4490 = vmatprep.subr.bf16.mxu0 %v4046
      %4491 = vmatpush1.bf16.msra.mxu0 %v4045
      %4492 = vmatprep.subr.bf16.mxu0 %v4039
      %4493 = vmatpush1.bf16.msra.mxu0 %v4038
      %4494 = vmatprep.subr.bf16.mxu0 %v4032
      %4495 = vmatpush1.bf16.msra.mxu0 %v4031
      %4496 = vmatprep.subr.bf16.mxu0 %v4025
      %4497 = vmatpush1.bf16.msra.mxu0 %v4024
      %4498 = vmatprep.subr.bf16.mxu0 %v4018
      %4499 = vmatpush1.bf16.msra.mxu0 %v4017
      %4500 = vmatprep.subr.bf16.mxu0 %v4011
      %4501 = vmatpush1.bf16.msra.mxu0 %v4010
      %4502 = vmatprep.subr.bf16.mxu0 %v4004
      %4503 = vmatpush1.bf16.msra.mxu0 %v4003
      %4504 = vmatprep.subr.bf16.mxu0 %v3997
      %4505 = vmatpush1.bf16.msra.mxu0 %v3996
      %4506 = vmatprep.subr.bf16.mxu0 0
      %4507 = vmatpush2.bf16.msra.mxu0 0
      %4508 = vmatprep.subr.bf16.mxu0 0
      %4509 = vmatpush2.bf16.msra.mxu0 0
      %4510 = vmatprep.subr.bf16.mxu0 0
      %4511 = vmatpush2.bf16.msra.mxu0 0
      %4512 = vmatprep.subr.bf16.mxu0 0
      %4513 = vmatpush2.bf16.msra.mxu0 0
      %4514 = vmatprep.subr.bf16.mxu0 0
      %4515 = vmatpush2.bf16.msra.mxu0 0
      %4516 = vmatprep.subr.bf16.mxu0 0
      %4517 = vmatpush2.bf16.msra.mxu0 0
      %4518 = vmatprep.subr.bf16.mxu0 0
      %4519 = vmatpush2.bf16.msra.mxu0 0
      %4520 = vmatprep.subr.bf16.mxu0 0
      %4521 = vmatpush2.bf16.msra.mxu0 0
      %4522 = vmatprep.mubr.bf16.mxu0 0
      %4523 = vmatmul.mubr.bf16.gmra.mxu0 %v3699
      %v4524 = vpop.f32.mrf.mxu0
      %v4525 = vadd.f32 %v3800, %v4524
      %v4526 = vpop.f32.mrf.mxu0
      %v4527 = vadd.f32 %v3804, %v4526
      %v4528 = vpop.f32.mrf.mxu0
      %v4529 = vadd.f32 %v3800, %v4528
      %v4530 = vpop.f32.mrf.mxu0
      %v4531 = vadd.f32 %v3804, %v4530
      %4532 = vmatprep.mubr.bf16.mxu0 0
      %4533 = vmatmul.mubr.bf16.gmra.mxu0 %v3700
      %v4534 = vpop.f32.mrf.mxu0
      %v4535 = vadd.f32 %v3800, %v4534
      %v4536 = vpop.f32.mrf.mxu0
      %v4537 = vadd.f32 %v3804, %v4536
      %v4538 = vpop.f32.mrf.mxu0
      %v4539 = vadd.f32 %v3800, %v4538
      %v4540 = vpop.f32.mrf.mxu0
      %v4541 = vadd.f32 %v3804, %v4540
      %4542 = vmatprep.mubr.bf16.mxu0 0
      %4543 = vmatmul.mubr.bf16.gmra.mxu0 %v3701
      %v4544 = vpop.f32.mrf.mxu0
      %v4545 = vadd.f32 %v3800, %v4544
      %v4546 = vpop.f32.mrf.mxu0
      %v4547 = vadd.f32 %v3804, %v4546
      %v4548 = vpop.f32.mrf.mxu0
      %v4549 = vadd.f32 %v3800, %v4548
      %v4550 = vpop.f32.mrf.mxu0
      %v4551 = vadd.f32 %v3804, %v4550
      %4552 = vmatprep.mubr.bf16.mxu0 0
      %4553 = vmatmul.mubr.bf16.gmra.mxu0 %v3702
      %v4554 = vpop.f32.mrf.mxu0
      %v4555 = vadd.f32 %v3800, %v4554
      %v4556 = vpop.f32.mrf.mxu0
      %v4557 = vadd.f32 %v3804, %v4556
      %v4558 = vpop.f32.mrf.mxu0
      %v4559 = vadd.f32 %v3800, %v4558
      %v4560 = vpop.f32.mrf.mxu0
      %v4561 = vadd.f32 %v3804, %v4560
      %4562 = vmatprep.mubr.bf16.mxu0 0
      %4563 = vmatmul.mubr.bf16.gmra.mxu0 %v3703
      %v4564 = vpop.f32.mrf.mxu0
      %v4565 = vadd.f32 %v3800, %v4564
      %v4566 = vpop.f32.mrf.mxu0
      %v4567 = vadd.f32 %v3804, %v4566
      %v4568 = vpop.f32.mrf.mxu0
      %v4569 = vadd.f32 %v3800, %v4568
      %v4570 = vpop.f32.mrf.mxu0
      %v4571 = vadd.f32 %v3804, %v4570
      %4572 = vmatprep.mubr.bf16.mxu0 0
      %4573 = vmatmul.mubr.bf16.gmra.mxu0 %v3704
      %v4574 = vpop.f32.mrf.mxu0
      %v4575 = vadd.f32 %v3800, %v4574
      %v4576 = vpop.f32.mrf.mxu0
      %v4577 = vadd.f32 %v3804, %v4576
      %v4578 = vpop.f32.mrf.mxu0
      %v4579 = vadd.f32 %v3800, %v4578
      %v4580 = vpop.f32.mrf.mxu0
      %v4581 = vadd.f32 %v3804, %v4580
      %4582 = vmatprep.mubr.bf16.mxu0 0
      %4583 = vmatmul.mubr.bf16.gmra.mxu0 %v3705
      %v4584 = vpop.f32.mrf.mxu0
      %v4585 = vadd.f32 %v3800, %v4584
      %v4586 = vpop.f32.mrf.mxu0
      %v4587 = vadd.f32 %v3804, %v4586
      %v4588 = vpop.f32.mrf.mxu0
      %v4589 = vadd.f32 %v3800, %v4588
      %v4590 = vpop.f32.mrf.mxu0
      %v4591 = vadd.f32 %v3804, %v4590
      %4592 = vmatprep.mubr.bf16.mxu0 0
      %4593 = vmatmul.mubr.bf16.gmra.mxu0 %v3706
      %v4594 = vpop.f32.mrf.mxu0
      %v4595 = vadd.f32 %v3800, %v4594
      %v4596 = vpop.f32.mrf.mxu0
      %v4597 = vadd.f32 %v3804, %v4596
      %v4598 = vpop.f32.mrf.mxu0
      %v4599 = vadd.f32 %v3800, %v4598
      %v4600 = vpop.f32.mrf.mxu0
      %v4601 = vadd.f32 %v3804, %v4600
      %4602 = vmatprep.mubr.bf16.mxu0 0
      %4603 = vmatmul.mubr.bf16.gmra.mxu0 %v3707
      %v4604 = vpop.f32.mrf.mxu0
      %v4605 = vadd.f32 %v3800, %v4604
      %v4606 = vpop.f32.mrf.mxu0
      %v4607 = vadd.f32 %v3804, %v4606
      %v4608 = vpop.f32.mrf.mxu0
      %v4609 = vadd.f32 %v3800, %v4608
      %v4610 = vpop.f32.mrf.mxu0
      %v4611 = vadd.f32 %v3804, %v4610
      %4612 = vmatprep.mubr.bf16.mxu0 0
      %4613 = vmatmul.mubr.bf16.gmra.mxu0 %v3708
      %v4614 = vpop.f32.mrf.mxu0
      %v4615 = vadd.f32 %v3800, %v4614
      %v4616 = vpop.f32.mrf.mxu0
      %v4617 = vadd.f32 %v3804, %v4616
      %v4618 = vpop.f32.mrf.mxu0
      %v4619 = vadd.f32 %v3800, %v4618
      %v4620 = vpop.f32.mrf.mxu0
      %v4621 = vadd.f32 %v3804, %v4620
      %4622 = vmatprep.mubr.bf16.mxu0 0
      %4623 = vmatmul.mubr.bf16.gmra.mxu0 %v3709
      %v4624 = vpop.f32.mrf.mxu0
      %v4625 = vadd.f32 %v3800, %v4624
      %v4626 = vpop.f32.mrf.mxu0
      %v4627 = vadd.f32 %v3804, %v4626
      %v4628 = vpop.f32.mrf.mxu0
      %v4629 = vadd.f32 %v3800, %v4628
      %v4630 = vpop.f32.mrf.mxu0
      %v4631 = vadd.f32 %v3804, %v4630
      %4632 = vmatprep.mubr.bf16.mxu0 0
      %4633 = vmatmul.mubr.bf16.gmra.mxu0 %v3710
      %v4634 = vpop.f32.mrf.mxu0
      %v4635 = vadd.f32 %v3800, %v4634
      %v4636 = vpop.f32.mrf.mxu0
      %v4637 = vadd.f32 %v3804, %v4636
      %v4638 = vpop.f32.mrf.mxu0
      %v4639 = vadd.f32 %v3800, %v4638
      %v4640 = vpop.f32.mrf.mxu0
      %v4641 = vadd.f32 %v3804, %v4640
      %4642 = vmatprep.mubr.bf16.mxu0 0
      %4643 = vmatmul.mubr.bf16.gmra.mxu0 %v3711
      %v4644 = vpop.f32.mrf.mxu0
      %v4645 = vadd.f32 %v3800, %v4644
      %v4646 = vpop.f32.mrf.mxu0
      %v4647 = vadd.f32 %v3804, %v4646
      %v4648 = vpop.f32.mrf.mxu0
      %v4649 = vadd.f32 %v3800, %v4648
      %v4650 = vpop.f32.mrf.mxu0
      %v4651 = vadd.f32 %v3804, %v4650
      %4652 = vmatprep.mubr.bf16.mxu0 0
      %4653 = vmatmul.mubr.bf16.gmra.mxu0 %v3712
      %v4654 = vpop.f32.mrf.mxu0
      %v4655 = vadd.f32 %v3800, %v4654
      %v4656 = vpop.f32.mrf.mxu0
      %v4657 = vadd.f32 %v3804, %v4656
      %v4658 = vpop.f32.mrf.mxu0
      %v4659 = vadd.f32 %v3800, %v4658
      %v4660 = vpop.f32.mrf.mxu0
      %v4661 = vadd.f32 %v3804, %v4660
      %4662 = vmatprep.mubr.bf16.mxu0 0
      %4663 = vmatmul.mubr.bf16.gmra.mxu0 %v3713
      %v4664 = vpop.f32.mrf.mxu0
      %v4665 = vadd.f32 %v3800, %v4664
      %v4666 = vpop.f32.mrf.mxu0
      %v4667 = vadd.f32 %v3804, %v4666
      %v4668 = vpop.f32.mrf.mxu0
      %v4669 = vadd.f32 %v3800, %v4668
      %v4670 = vpop.f32.mrf.mxu0
      %v4671 = vadd.f32 %v3804, %v4670
      %4672 = vmatprep.mubr.bf16.mxu0 0
      %4673 = vmatmul.mubr.bf16.gmra.mxu0 %v3714
      %v4674 = vpop.f32.mrf.mxu0
      %v4675 = vadd.f32 %v3800, %v4674
      %v4676 = vpop.f32.mrf.mxu0
      %v4677 = vadd.f32 %v3804, %v4676
      %v4678 = vpop.f32.mrf.mxu0
      %v4679 = vadd.f32 %v3800, %v4678
      %v4680 = vpop.f32.mrf.mxu0
      %v4681 = vadd.f32 %v3804, %v4680
      %4682 = vdwg.mxu0
      %4683 = vmatprep.subr.bf16.mxu0 0
      %4684 = vmatpush1.bf16.msra.mxu0 %v4047
      %4685 = vmatprep.subr.bf16.mxu0 0
      %4686 = vmatpush1.bf16.msra.mxu0 %v4040
      %4687 = vmatprep.subr.bf16.mxu0 0
      %4688 = vmatpush1.bf16.msra.mxu0 %v4033
      %4689 = vmatprep.subr.bf16.mxu0 0
      %4690 = vmatpush1.bf16.msra.mxu0 %v4026
      %4691 = vmatprep.subr.bf16.mxu0 0
      %4692 = vmatpush1.bf16.msra.mxu0 %v4019
      %4693 = vmatprep.subr.bf16.mxu0 0
      %4694 = vmatpush1.bf16.msra.mxu0 %v4012
      %4695 = vmatprep.subr.bf16.mxu0 0
      %4696 = vmatpush1.bf16.msra.mxu0 %v4005
      %4697 = vmatprep.subr.bf16.mxu0 0
      %4698 = vmatpush1.bf16.msra.mxu0 %v3998
      %4699 = vmatprep.subr.bf16.mxu0 0
      %4700 = vmatpush2.bf16.msra.mxu0 0
      %4701 = vmatprep.subr.bf16.mxu0 0
      %4702 = vmatpush2.bf16.msra.mxu0 0
      %4703 = vmatprep.subr.bf16.mxu0 0
      %4704 = vmatpush2.bf16.msra.mxu0 0
      %4705 = vmatprep.subr.bf16.mxu0 0
      %4706 = vmatpush2.bf16.msra.mxu0 0
      %4707 = vmatprep.subr.bf16.mxu0 0
      %4708 = vmatpush2.bf16.msra.mxu0 0
      %4709 = vmatprep.subr.bf16.mxu0 0
      %4710 = vmatpush2.bf16.msra.mxu0 0
      %4711 = vmatprep.subr.bf16.mxu0 0
      %4712 = vmatpush2.bf16.msra.mxu0 0
      %4713 = vmatprep.subr.bf16.mxu0 0
      %4714 = vmatpush2.bf16.msra.mxu0 0
      %4715 = vmatprep.mubr.bf16.mxu0 0
      %4716 = vmatmul.mubr.bf16.gmra.mxu0 %v3699
      %v4717 = vpop.f32.mrf.mxu0
      %v4718 = vadd.f32 %v3808, %v4717
      %v4719 = vpop.f32.mrf.mxu0
      %v4720 = vpop.f32.mrf.mxu0
      %v4721 = vadd.f32 %v3808, %v4720
      %v4722 = vpop.f32.mrf.mxu0
      %4723 = vmatprep.mubr.bf16.mxu0 0
      %4724 = vmatmul.mubr.bf16.gmra.mxu0 %v3700
      %v4725 = vpop.f32.mrf.mxu0
      %v4726 = vadd.f32 %v3808, %v4725
      %v4727 = vpop.f32.mrf.mxu0
      %v4728 = vpop.f32.mrf.mxu0
      %v4729 = vadd.f32 %v3808, %v4728
      %v4730 = vpop.f32.mrf.mxu0
      %4731 = vmatprep.mubr.bf16.mxu0 0
      %4732 = vmatmul.mubr.bf16.gmra.mxu0 %v3701
      %v4733 = vpop.f32.mrf.mxu0
      %v4734 = vadd.f32 %v3808, %v4733
      %v4735 = vpop.f32.mrf.mxu0
      %v4736 = vpop.f32.mrf.mxu0
      %v4737 = vadd.f32 %v3808, %v4736
      %v4738 = vpop.f32.mrf.mxu0
      %4739 = vmatprep.mubr.bf16.mxu0 0
      %4740 = vmatmul.mubr.bf16.gmra.mxu0 %v3702
      %v4741 = vpop.f32.mrf.mxu0
      %v4742 = vadd.f32 %v3808, %v4741
      %v4743 = vpop.f32.mrf.mxu0
      %v4744 = vpop.f32.mrf.mxu0
      %v4745 = vadd.f32 %v3808, %v4744
      %v4746 = vpop.f32.mrf.mxu0
      %4747 = vmatprep.mubr.bf16.mxu0 0
      %4748 = vmatmul.mubr.bf16.gmra.mxu0 %v3703
      %v4749 = vpop.f32.mrf.mxu0
      %v4750 = vadd.f32 %v3808, %v4749
      %v4751 = vpop.f32.mrf.mxu0
      %v4752 = vpop.f32.mrf.mxu0
      %v4753 = vadd.f32 %v3808, %v4752
      %v4754 = vpop.f32.mrf.mxu0
      %4755 = vmatprep.mubr.bf16.mxu0 0
      %4756 = vmatmul.mubr.bf16.gmra.mxu0 %v3704
      %v4757 = vpop.f32.mrf.mxu0
      %v4758 = vadd.f32 %v3808, %v4757
      %v4759 = vpop.f32.mrf.mxu0
      %v4760 = vpop.f32.mrf.mxu0
      %v4761 = vadd.f32 %v3808, %v4760
      %v4762 = vpop.f32.mrf.mxu0
      %4763 = vmatprep.mubr.bf16.mxu0 0
      %4764 = vmatmul.mubr.bf16.gmra.mxu0 %v3705
      %v4765 = vpop.f32.mrf.mxu0
      %v4766 = vadd.f32 %v3808, %v4765
      %v4767 = vpop.f32.mrf.mxu0
      %v4768 = vpop.f32.mrf.mxu0
      %v4769 = vadd.f32 %v3808, %v4768
      %v4770 = vpop.f32.mrf.mxu0
      %4771 = vmatprep.mubr.bf16.mxu0 0
      %4772 = vmatmul.mubr.bf16.gmra.mxu0 %v3706
      %v4773 = vpop.f32.mrf.mxu0
      %v4774 = vadd.f32 %v3808, %v4773
      %v4775 = vpop.f32.mrf.mxu0
      %v4776 = vpop.f32.mrf.mxu0
      %v4777 = vadd.f32 %v3808, %v4776
      %v4778 = vpop.f32.mrf.mxu0
      %4779 = vmatprep.mubr.bf16.mxu0 0
      %4780 = vmatmul.mubr.bf16.gmra.mxu0 %v3707
      %v4781 = vpop.f32.mrf.mxu0
      %v4782 = vadd.f32 %v3808, %v4781
      %v4783 = vpop.f32.mrf.mxu0
      %v4784 = vpop.f32.mrf.mxu0
      %v4785 = vadd.f32 %v3808, %v4784
      %v4786 = vpop.f32.mrf.mxu0
      %4787 = vmatprep.mubr.bf16.mxu0 0
      %4788 = vmatmul.mubr.bf16.gmra.mxu0 %v3708
      %v4789 = vpop.f32.mrf.mxu0
      %v4790 = vadd.f32 %v3808, %v4789
      %v4791 = vpop.f32.mrf.mxu0
      %v4792 = vpop.f32.mrf.mxu0
      %v4793 = vadd.f32 %v3808, %v4792
      %v4794 = vpop.f32.mrf.mxu0
      %4795 = vmatprep.mubr.bf16.mxu0 0
      %4796 = vmatmul.mubr.bf16.gmra.mxu0 %v3709
      %v4797 = vpop.f32.mrf.mxu0
      %v4798 = vadd.f32 %v3808, %v4797
      %v4799 = vpop.f32.mrf.mxu0
      %v4800 = vpop.f32.mrf.mxu0
      %v4801 = vadd.f32 %v3808, %v4800
      %v4802 = vpop.f32.mrf.mxu0
      %4803 = vmatprep.mubr.bf16.mxu0 0
      %4804 = vmatmul.mubr.bf16.gmra.mxu0 %v3710
      %v4805 = vpop.f32.mrf.mxu0
      %v4806 = vadd.f32 %v3808, %v4805
      %v4807 = vpop.f32.mrf.mxu0
      %v4808 = vpop.f32.mrf.mxu0
      %v4809 = vadd.f32 %v3808, %v4808
      %v4810 = vpop.f32.mrf.mxu0
      %4811 = vmatprep.mubr.bf16.mxu0 0
      %4812 = vmatmul.mubr.bf16.gmra.mxu0 %v3711
      %v4813 = vpop.f32.mrf.mxu0
      %v4814 = vadd.f32 %v3808, %v4813
      %v4815 = vpop.f32.mrf.mxu0
      %v4816 = vpop.f32.mrf.mxu0
      %v4817 = vadd.f32 %v3808, %v4816
      %v4818 = vpop.f32.mrf.mxu0
      %4819 = vmatprep.mubr.bf16.mxu0 0
      %4820 = vmatmul.mubr.bf16.gmra.mxu0 %v3712
      %v4821 = vpop.f32.mrf.mxu0
      %v4822 = vadd.f32 %v3808, %v4821
      %v4823 = vpop.f32.mrf.mxu0
      %v4824 = vpop.f32.mrf.mxu0
      %v4825 = vadd.f32 %v3808, %v4824
      %v4826 = vpop.f32.mrf.mxu0
      %4827 = vmatprep.mubr.bf16.mxu0 0
      %4828 = vmatmul.mubr.bf16.gmra.mxu0 %v3713
      %v4829 = vpop.f32.mrf.mxu0
      %v4830 = vadd.f32 %v3808, %v4829
      %v4831 = vpop.f32.mrf.mxu0
      %v4832 = vpop.f32.mrf.mxu0
      %v4833 = vadd.f32 %v3808, %v4832
      %v4834 = vpop.f32.mrf.mxu0
      %4835 = vmatprep.mubr.bf16.mxu0 0
      %4836 = vmatmul.mubr.bf16.gmra.mxu0 %v3714
      %v4837 = vpop.f32.mrf.mxu0
      %v4838 = vadd.f32 %v3808, %v4837
      %v4839 = vpop.f32.mrf.mxu0
      %v4840 = vpop.f32.mrf.mxu0
      %v4841 = vadd.f32 %v3808, %v4840
      %v4842 = vpop.f32.mrf.mxu0
      %4843 = vdwg.mxu0
      %v4844 = vtanh.pop %v4139
      %v4845 = vtanh.pop %v4141
      %v4846 = vtanh.pop %v4332
      %v4847 = vtanh.pop %v4334
      %v4848 = vtanh.pop %v4525
      %v4849 = vtanh.pop %v4527
      %v4850 = vtanh.pop %v4718
      %v4851 = vtanh.pop %v4143
      %v4852 = vtanh.pop %v4145
      %v4853 = vtanh.pop %v4336
      %v4854 = vtanh.pop %v4338
      %v4855 = vtanh.pop %v4529
      %v4856 = vtanh.pop %v4531
      %v4857 = vtanh.pop %v4721
      %v4858 = vtanh.pop %v4149
      %v4859 = vtanh.pop %v4151
      %v4860 = vtanh.pop %v4342
      %v4861 = vtanh.pop %v4344
      %v4862 = vtanh.pop %v4535
      %v4863 = vtanh.pop %v4537
      %v4864 = vtanh.pop %v4726
      %v4865 = vtanh.pop %v4153
      %v4866 = vtanh.pop %v4155
      %v4867 = vtanh.pop %v4346
      %v4868 = vtanh.pop %v4348
      %v4869 = vtanh.pop %v4539
      %v4870 = vtanh.pop %v4541
      %v4871 = vtanh.pop %v4729
      %v4872 = vtanh.pop %v4159
      %v4873 = vtanh.pop %v4161
      %v4874 = vtanh.pop %v4352
      %v4875 = vtanh.pop %v4354
      %v4876 = vtanh.pop %v4545
      %v4877 = vtanh.pop %v4547
      %v4878 = vtanh.pop %v4734
      %v4879 = vtanh.pop %v4163
      %v4880 = vtanh.pop %v4165
      %v4881 = vtanh.pop %v4356
      %v4882 = vtanh.pop %v4358
      %v4883 = vtanh.pop %v4549
      %v4884 = vtanh.pop %v4551
      %v4885 = vtanh.pop %v4737
      %v4886 = vtanh.pop %v4169
      %v4887 = vtanh.pop %v4171
      %v4888 = vtanh.pop %v4362
      %v4889 = vtanh.pop %v4364
      %v4890 = vtanh.pop %v4555
      %v4891 = vtanh.pop %v4557
      %v4892 = vtanh.pop %v4742
      %v4893 = vtanh.pop %v4173
      %v4894 = vtanh.pop %v4175
      %v4895 = vtanh.pop %v4366
      %v4896 = vtanh.pop %v4368
      %v4897 = vtanh.pop %v4559
      %v4898 = vtanh.pop %v4561
      %v4899 = vtanh.pop %v4745
      %v4900 = vtanh.pop %v4179
      %v4901 = vtanh.pop %v4181
      %v4902 = vtanh.pop %v4372
      %v4903 = vtanh.pop %v4374
      %v4904 = vtanh.pop %v4565
      %v4905 = vtanh.pop %v4567
      %v4906 = vtanh.pop %v4750
      %v4907 = vtanh.pop %v4183
      %v4908 = vtanh.pop %v4185
      %v4909 = vtanh.pop %v4376
      %v4910 = vtanh.pop %v4378
      %v4911 = vtanh.pop %v4569
      %v4912 = vtanh.pop %v4571
      %v4913 = vtanh.pop %v4753
      %v4914 = vtanh.pop %v4189
      %v4915 = vtanh.pop %v4191
      %v4916 = vtanh.pop %v4382
      %v4917 = vtanh.pop %v4384
      %v4918 = vtanh.pop %v4575
      %v4919 = vtanh.pop %v4577
      %v4920 = vtanh.pop %v4758
      %v4921 = vtanh.pop %v4193
      %v4922 = vtanh.pop %v4195
      %v4923 = vtanh.pop %v4386
      %v4924 = vtanh.pop %v4388
      %v4925 = vtanh.pop %v4579
      %v4926 = vtanh.pop %v4581
      %v4927 = vtanh.pop %v4761
      %v4928 = vtanh.pop %v4199
      %v4929 = vtanh.pop %v4201
      %v4930 = vtanh.pop %v4392
      %v4931 = vtanh.pop %v4394
      %v4932 = vtanh.pop %v4585
      %v4933 = vtanh.pop %v4587
      %v4934 = vtanh.pop %v4766
      %v4935 = vtanh.pop %v4203
      %v4936 = vtanh.pop %v4205
      %v4937 = vtanh.pop %v4396
      %v4938 = vtanh.pop %v4398
      %v4939 = vtanh.pop %v4589
      %v4940 = vtanh.pop %v4591
      %v4941 = vtanh.pop %v4769
      %v4942 = vtanh.pop %v4209
      %v4943 = vtanh.pop %v4211
      %v4944 = vtanh.pop %v4402
      %v4945 = vtanh.pop %v4404
      %v4946 = vtanh.pop %v4595
      %v4947 = vtanh.pop %v4597
      %v4948 = vtanh.pop %v4774
      %v4949 = vtanh.pop %v4213
      %v4950 = vtanh.pop %v4215
      %v4951 = vtanh.pop %v4406
      %v4952 = vtanh.pop %v4408
      %v4953 = vtanh.pop %v4599
      %v4954 = vtanh.pop %v4601
      %v4955 = vtanh.pop %v4777
      %v4956 = vtanh.pop %v4219
      %v4957 = vtanh.pop %v4221
      %v4958 = vtanh.pop %v4412
      %v4959 = vtanh.pop %v4414
      %v4960 = vtanh.pop %v4605
      %v4961 = vtanh.pop %v4607
      %v4962 = vtanh.pop %v4782
      %v4963 = vtanh.pop %v4223
      %v4964 = vtanh.pop %v4225
      %v4965 = vtanh.pop %v4416
      %v4966 = vtanh.pop %v4418
      %v4967 = vtanh.pop %v4609
      %v4968 = vtanh.pop %v4611
      %v4969 = vtanh.pop %v4785
      %v4970 = vtanh.pop %v4229
      %v4971 = vtanh.pop %v4231
      %v4972 = vtanh.pop %v4422
      %v4973 = vtanh.pop %v4424
      %v4974 = vtanh.pop %v4615
      %v4975 = vtanh.pop %v4617
      %v4976 = vtanh.pop %v4790
      %v4977 = vtanh.pop %v4233
      %v4978 = vtanh.pop %v4235
      %v4979 = vtanh.pop %v4426
      %v4980 = vtanh.pop %v4428
      %v4981 = vtanh.pop %v4619
      %v4982 = vtanh.pop %v4621
      %v4983 = vtanh.pop %v4793
      %v4984 = vtanh.pop %v4239
      %v4985 = vtanh.pop %v4241
      %v4986 = vtanh.pop %v4432
      %v4987 = vtanh.pop %v4434
      %v4988 = vtanh.pop %v4625
      %v4989 = vtanh.pop %v4627
      %v4990 = vtanh.pop %v4798
      %v4991 = vtanh.pop %v4243
      %v4992 = vtanh.pop %v4245
      %v4993 = vtanh.pop %v4436
      %v4994 = vtanh.pop %v4438
      %v4995 = vtanh.pop %v4629
      %v4996 = vtanh.pop %v4631
      %v4997 = vtanh.pop %v4801
      %v4998 = vtanh.pop %v4249
      %v4999 = vtanh.pop %v4251
      %v5000 = vtanh.pop %v4442
      %v5001 = vtanh.pop %v4444
      %v5002 = vtanh.pop %v4635
      %v5003 = vtanh.pop %v4637
      %v5004 = vtanh.pop %v4806
      %v5005 = vtanh.pop %v4253
      %v5006 = vtanh.pop %v4255
      %v5007 = vtanh.pop %v4446
      %v5008 = vtanh.pop %v4448
      %v5009 = vtanh.pop %v4639
      %v5010 = vtanh.pop %v4641
      %v5011 = vtanh.pop %v4809
      %v5012 = vtanh.pop %v4259
      %v5013 = vtanh.pop %v4261
      %v5014 = vtanh.pop %v4452
      %v5015 = vtanh.pop %v4454
      %v5016 = vtanh.pop %v4645
      %v5017 = vtanh.pop %v4647
      %v5018 = vtanh.pop %v4814
      %v5019 = vtanh.pop %v4263
      %v5020 = vtanh.pop %v4265
      %v5021 = vtanh.pop %v4456
      %v5022 = vtanh.pop %v4458
      %v5023 = vtanh.pop %v4649
      %v5024 = vtanh.pop %v4651
      %v5025 = vtanh.pop %v4817
      %v5026 = vtanh.pop %v4269
      %v5027 = vtanh.pop %v4271
      %v5028 = vtanh.pop %v4462
      %v5029 = vtanh.pop %v4464
      %v5030 = vtanh.pop %v4655
      %v5031 = vtanh.pop %v4657
      %v5032 = vtanh.pop %v4822
      %v5033 = vtanh.pop %v4273
      %v5034 = vtanh.pop %v4275
      %v5035 = vtanh.pop %v4466
      %v5036 = vtanh.pop %v4468
      %v5037 = vtanh.pop %v4659
      %v5038 = vtanh.pop %v4661
      %v5039 = vtanh.pop %v4825
      %v5040 = vtanh.pop %v4279
      %v5041 = vtanh.pop %v4281
      %v5042 = vtanh.pop %v4472
      %v5043 = vtanh.pop %v4474
      %v5044 = vtanh.pop %v4665
      %v5045 = vtanh.pop %v4667
      %v5046 = vtanh.pop %v4830
      %v5047 = vtanh.pop %v4283
      %v5048 = vtanh.pop %v4285
      %v5049 = vtanh.pop %v4476
      %v5050 = vtanh.pop %v4478
      %v5051 = vtanh.pop %v4669
      %v5052 = vtanh.pop %v4671
      %v5053 = vtanh.pop %v4833
      %v5054 = vtanh.pop %v4289
      %v5055 = vtanh.pop %v4291
      %v5056 = vtanh.pop %v4482
      %v5057 = vtanh.pop %v4484
      %v5058 = vtanh.pop %v4675
      %v5059 = vtanh.pop %v4677
      %v5060 = vtanh.pop %v4838
      %v5061 = vtanh.pop %v4293
      %v5062 = vtanh.pop %v4295
      %v5063 = vtanh.pop %v4486
      %v5064 = vtanh.pop %v4488
      %v5065 = vtanh.pop %v4679
      %v5066 = vtanh.pop %v4681
      %v5067 = vtanh.pop %v4841
      %5068 = vst [vmem:[%s555] sm:$0xff] %v4844
      %5069 = vst [vmem:[%s555 + $0x8] sm:$0xff] %v4845
      %5070 = vst [vmem:[%s555 + $0x10] sm:$0xff] %v4846
      %5071 = vst [vmem:[%s555 + $0x18] sm:$0xff] %v4847
      %5072 = vst [vmem:[%s555 + $0x20] sm:$0xff] %v4848
      %5073 = vst [vmem:[%s555 + $0x28] sm:$0xff] %v4849
      %5074 = vst.msk [vmem:[%s555 + $0x30] sm:$0xff] %vm1293, %v4850
      %5075 = vst [vmem:[%s555 + $0x38] sm:$0xff] %v4851
      %5076 = vst [vmem:[%s555 + $0x40] sm:$0xff] %v4852
      %5077 = vst [vmem:[%s555 + $0x48] sm:$0xff] %v4853
      %5078 = vst [vmem:[%s555 + $0x50] sm:$0xff] %v4854
      %5079 = vst [vmem:[%s555 + $0x58] sm:$0xff] %v4855
      %5080 = vst [vmem:[%s555 + $0x60] sm:$0xff] %v4856
      %5081 = vst.msk [vmem:[%s555 + $0x68] sm:$0xff] %vm1293, %v4857
      %5082 = vst [vmem:[%s555 + $0x70] sm:$0xff] %v4858
      %5083 = vst [vmem:[%s555 + $0x78] sm:$0xff] %v4859
      %5084 = vst [vmem:[%s555 + $0x80] sm:$0xff] %v4860
      %5085 = vst [vmem:[%s555 + $0x88] sm:$0xff] %v4861
      %5086 = vst [vmem:[%s555 + $0x90] sm:$0xff] %v4862
      %5087 = vst [vmem:[%s555 + $0x98] sm:$0xff] %v4863
      %5088 = vst.msk [vmem:[%s555 + $0xa0] sm:$0xff] %vm1293, %v4864
      %5089 = vst [vmem:[%s555 + $0xa8] sm:$0xff] %v4865
      %5090 = vst [vmem:[%s555 + $0xb0] sm:$0xff] %v4866
      %5091 = vst [vmem:[%s555 + $0xb8] sm:$0xff] %v4867
      %5092 = vst [vmem:[%s555 + $0xc0] sm:$0xff] %v4868
      %5093 = vst [vmem:[%s555 + $0xc8] sm:$0xff] %v4869
      %5094 = vst [vmem:[%s555 + $0xd0] sm:$0xff] %v4870
      %5095 = vst.msk [vmem:[%s555 + $0xd8] sm:$0xff] %vm1293, %v4871
      %5096 = vst [vmem:[%s555 + $0xe0] sm:$0xff] %v4872
      %5097 = vst [vmem:[%s555 + $0xe8] sm:$0xff] %v4873
      %5098 = vst [vmem:[%s555 + $0xf0] sm:$0xff] %v4874
      %5099 = vst [vmem:[%s555 + $0xf8] sm:$0xff] %v4875
      %5100 = vst [vmem:[%s555 + $0x100] sm:$0xff] %v4876
      %5101 = vst [vmem:[%s555 + $0x108] sm:$0xff] %v4877
      %5102 = vst.msk [vmem:[%s555 + $0x110] sm:$0xff] %vm1293, %v4878
      %5103 = vst [vmem:[%s555 + $0x118] sm:$0xff] %v4879
      %5104 = vst [vmem:[%s555 + $0x120] sm:$0xff] %v4880
      %5105 = vst [vmem:[%s555 + $0x128] sm:$0xff] %v4881
      %5106 = vst [vmem:[%s555 + $0x130] sm:$0xff] %v4882
      %5107 = vst [vmem:[%s555 + $0x138] sm:$0xff] %v4883
      %5108 = vst [vmem:[%s555 + $0x140] sm:$0xff] %v4884
      %5109 = vst.msk [vmem:[%s555 + $0x148] sm:$0xff] %vm1293, %v4885
      %5110 = vst [vmem:[%s555 + $0x150] sm:$0xff] %v4886
      %5111 = vst [vmem:[%s555 + $0x158] sm:$0xff] %v4887
      %5112 = vst [vmem:[%s555 + $0x160] sm:$0xff] %v4888
      %5113 = vst [vmem:[%s555 + $0x168] sm:$0xff] %v4889
      %5114 = vst [vmem:[%s555 + $0x170] sm:$0xff] %v4890
      %5115 = vst [vmem:[%s555 + $0x178] sm:$0xff] %v4891
      %5116 = vst.msk [vmem:[%s555 + $0x180] sm:$0xff] %vm1293, %v4892
      %5117 = vst [vmem:[%s555 + $0x188] sm:$0xff] %v4893
      %5118 = vst [vmem:[%s555 + $0x190] sm:$0xff] %v4894
      %5119 = vst [vmem:[%s555 + $0x198] sm:$0xff] %v4895
      %5120 = vst [vmem:[%s555 + $0x1a0] sm:$0xff] %v4896
      %5121 = vst [vmem:[%s555 + $0x1a8] sm:$0xff] %v4897
      %5122 = vst [vmem:[%s555 + $0x1b0] sm:$0xff] %v4898
      %5123 = vst.msk [vmem:[%s555 + $0x1b8] sm:$0xff] %vm1293, %v4899
      %5124 = vst [vmem:[%s555 + $0x1c0] sm:$0xff] %v4900
      %5125 = vst [vmem:[%s555 + $0x1c8] sm:$0xff] %v4901
      %5126 = vst [vmem:[%s555 + $0x1d0] sm:$0xff] %v4902
      %5127 = vst [vmem:[%s555 + $0x1d8] sm:$0xff] %v4903
      %5128 = vst [vmem:[%s555 + $0x1e0] sm:$0xff] %v4904
      %5129 = vst [vmem:[%s555 + $0x1e8] sm:$0xff] %v4905
      %5130 = vst.msk [vmem:[%s555 + $0x1f0] sm:$0xff] %vm1293, %v4906
      %5131 = vst [vmem:[%s555 + $0x1f8] sm:$0xff] %v4907
      %5132 = vst [vmem:[%s555 + $0x200] sm:$0xff] %v4908
      %5133 = vst [vmem:[%s555 + $0x208] sm:$0xff] %v4909
      %5134 = vst [vmem:[%s555 + $0x210] sm:$0xff] %v4910
      %5135 = vst [vmem:[%s555 + $0x218] sm:$0xff] %v4911
      %5136 = vst [vmem:[%s555 + $0x220] sm:$0xff] %v4912
      %5137 = vst.msk [vmem:[%s555 + $0x228] sm:$0xff] %vm1293, %v4913
      %5138 = vst [vmem:[%s555 + $0x230] sm:$0xff] %v4914
      %5139 = vst [vmem:[%s555 + $0x238] sm:$0xff] %v4915
      %5140 = vst [vmem:[%s555 + $0x240] sm:$0xff] %v4916
      %5141 = vst [vmem:[%s555 + $0x248] sm:$0xff] %v4917
      %5142 = vst [vmem:[%s555 + $0x250] sm:$0xff] %v4918
      %5143 = vst [vmem:[%s555 + $0x258] sm:$0xff] %v4919
      %5144 = vst.msk [vmem:[%s555 + $0x260] sm:$0xff] %vm1293, %v4920
      %5145 = vst [vmem:[%s555 + $0x268] sm:$0xff] %v4921
      %5146 = vst [vmem:[%s555 + $0x270] sm:$0xff] %v4922
      %5147 = vst [vmem:[%s555 + $0x278] sm:$0xff] %v4923
      %5148 = vst [vmem:[%s555 + $0x280] sm:$0xff] %v4924
      %5149 = vst [vmem:[%s555 + $0x288] sm:$0xff] %v4925
      %5150 = vst [vmem:[%s555 + $0x290] sm:$0xff] %v4926
      %5151 = vst.msk [vmem:[%s555 + $0x298] sm:$0xff] %vm1293, %v4927
      %5152 = vst [vmem:[%s555 + $0x2a0] sm:$0xff] %v4928
      %5153 = vst [vmem:[%s555 + $0x2a8] sm:$0xff] %v4929
      %5154 = vst [vmem:[%s555 + $0x2b0] sm:$0xff] %v4930
      %5155 = vst [vmem:[%s555 + $0x2b8] sm:$0xff] %v4931
      %5156 = vst [vmem:[%s555 + $0x2c0] sm:$0xff] %v4932
      %5157 = vst [vmem:[%s555 + $0x2c8] sm:$0xff] %v4933
      %5158 = vst.msk [vmem:[%s555 + $0x2d0] sm:$0xff] %vm1293, %v4934
      %5159 = vst [vmem:[%s555 + $0x2d8] sm:$0xff] %v4935
      %5160 = vst [vmem:[%s555 + $0x2e0] sm:$0xff] %v4936
      %5161 = vst [vmem:[%s555 + $0x2e8] sm:$0xff] %v4937
      %5162 = vst [vmem:[%s555 + $0x2f0] sm:$0xff] %v4938
      %5163 = vst [vmem:[%s555 + $0x2f8] sm:$0xff] %v4939
      %5164 = vst [vmem:[%s555 + $0x300] sm:$0xff] %v4940
      %5165 = vst.msk [vmem:[%s555 + $0x308] sm:$0xff] %vm1293, %v4941
      %5166 = vst [vmem:[%s555 + $0x310] sm:$0xff] %v4942
      %5167 = vst [vmem:[%s555 + $0x318] sm:$0xff] %v4943
      %5168 = vst [vmem:[%s555 + $0x320] sm:$0xff] %v4944
      %5169 = vst [vmem:[%s555 + $0x328] sm:$0xff] %v4945
      %5170 = vst [vmem:[%s555 + $0x330] sm:$0xff] %v4946
      %5171 = vst [vmem:[%s555 + $0x338] sm:$0xff] %v4947
      %5172 = vst.msk [vmem:[%s555 + $0x340] sm:$0xff] %vm1293, %v4948
      %5173 = vst [vmem:[%s555 + $0x348] sm:$0xff] %v4949
      %5174 = vst [vmem:[%s555 + $0x350] sm:$0xff] %v4950
      %5175 = vst [vmem:[%s555 + $0x358] sm:$0xff] %v4951
      %5176 = vst [vmem:[%s555 + $0x360] sm:$0xff] %v4952
      %5177 = vst [vmem:[%s555 + $0x368] sm:$0xff] %v4953
      %5178 = vst [vmem:[%s555 + $0x370] sm:$0xff] %v4954
      %5179 = vst.msk [vmem:[%s555 + $0x378] sm:$0xff] %vm1293, %v4955
      %5180 = vst [vmem:[%s555 + $0x380] sm:$0xff] %v4956
      %5181 = vst [vmem:[%s555 + $0x388] sm:$0xff] %v4957
      %5182 = vst [vmem:[%s555 + $0x390] sm:$0xff] %v4958
      %5183 = vst [vmem:[%s555 + $0x398] sm:$0xff] %v4959
      %5184 = vst [vmem:[%s555 + $0x3a0] sm:$0xff] %v4960
      %5185 = vst [vmem:[%s555 + $0x3a8] sm:$0xff] %v4961
      %5186 = vst.msk [vmem:[%s555 + $0x3b0] sm:$0xff] %vm1293, %v4962
      %5187 = vst [vmem:[%s555 + $0x3b8] sm:$0xff] %v4963
      %5188 = vst [vmem:[%s555 + $0x3c0] sm:$0xff] %v4964
      %5189 = vst [vmem:[%s555 + $0x3c8] sm:$0xff] %v4965
      %5190 = vst [vmem:[%s555 + $0x3d0] sm:$0xff] %v4966
      %5191 = vst [vmem:[%s555 + $0x3d8] sm:$0xff] %v4967
      %5192 = vst [vmem:[%s555 + $0x3e0] sm:$0xff] %v4968
      %5193 = vst.msk [vmem:[%s555 + $0x3e8] sm:$0xff] %vm1293, %v4969
      %5194 = vst [vmem:[%s555 + $0x3f0] sm:$0xff] %v4970
      %5195 = vst [vmem:[%s555 + $0x3f8] sm:$0xff] %v4971
      %5196 = vst [vmem:[%s555 + $0x400] sm:$0xff] %v4972
      %5197 = vst [vmem:[%s555 + $0x408] sm:$0xff] %v4973
      %5198 = vst [vmem:[%s555 + $0x410] sm:$0xff] %v4974
      %5199 = vst [vmem:[%s555 + $0x418] sm:$0xff] %v4975
      %5200 = vst.msk [vmem:[%s555 + $0x420] sm:$0xff] %vm1293, %v4976
      %5201 = vst [vmem:[%s555 + $0x428] sm:$0xff] %v4977
      %5202 = vst [vmem:[%s555 + $0x430] sm:$0xff] %v4978
      %5203 = vst [vmem:[%s555 + $0x438] sm:$0xff] %v4979
      %5204 = vst [vmem:[%s555 + $0x440] sm:$0xff] %v4980
      %5205 = vst [vmem:[%s555 + $0x448] sm:$0xff] %v4981
      %5206 = vst [vmem:[%s555 + $0x450] sm:$0xff] %v4982
      %5207 = vst.msk [vmem:[%s555 + $0x458] sm:$0xff] %vm1293, %v4983
      %5208 = vst [vmem:[%s555 + $0x460] sm:$0xff] %v4984
      %5209 = vst [vmem:[%s555 + $0x468] sm:$0xff] %v4985
      %5210 = vst [vmem:[%s555 + $0x470] sm:$0xff] %v4986
      %5211 = vst [vmem:[%s555 + $0x478] sm:$0xff] %v4987
      %5212 = vst [vmem:[%s555 + $0x480] sm:$0xff] %v4988
      %5213 = vst [vmem:[%s555 + $0x488] sm:$0xff] %v4989
      %5214 = vst.msk [vmem:[%s555 + $0x490] sm:$0xff] %vm1293, %v4990
      %5215 = vst [vmem:[%s555 + $0x498] sm:$0xff] %v4991
      %5216 = vst [vmem:[%s555 + $0x4a0] sm:$0xff] %v4992
      %5217 = vst [vmem:[%s555 + $0x4a8] sm:$0xff] %v4993
      %5218 = vst [vmem:[%s555 + $0x4b0] sm:$0xff] %v4994
      %5219 = vst [vmem:[%s555 + $0x4b8] sm:$0xff] %v4995
      %5220 = vst [vmem:[%s555 + $0x4c0] sm:$0xff] %v4996
      %5221 = vst.msk [vmem:[%s555 + $0x4c8] sm:$0xff] %vm1293, %v4997
      %5222 = vst [vmem:[%s555 + $0x4d0] sm:$0xff] %v4998
      %5223 = vst [vmem:[%s555 + $0x4d8] sm:$0xff] %v4999
      %5224 = vst [vmem:[%s555 + $0x4e0] sm:$0xff] %v5000
      %5225 = vst [vmem:[%s555 + $0x4e8] sm:$0xff] %v5001
      %5226 = vst [vmem:[%s555 + $0x4f0] sm:$0xff] %v5002
      %5227 = vst [vmem:[%s555 + $0x4f8] sm:$0xff] %v5003
      %5228 = vst.msk [vmem:[%s555 + $0x500] sm:$0xff] %vm1293, %v5004
      %5229 = vst [vmem:[%s555 + $0x508] sm:$0xff] %v5005
      %5230 = vst [vmem:[%s555 + $0x510] sm:$0xff] %v5006
      %5231 = vst [vmem:[%s555 + $0x518] sm:$0xff] %v5007
      %5232 = vst [vmem:[%s555 + $0x520] sm:$0xff] %v5008
      %5233 = vst [vmem:[%s555 + $0x528] sm:$0xff] %v5009
      %5234 = vst [vmem:[%s555 + $0x530] sm:$0xff] %v5010
      %5235 = vst.msk [vmem:[%s555 + $0x538] sm:$0xff] %vm1293, %v5011
      %5236 = vst [vmem:[%s555 + $0x540] sm:$0xff] %v5012
      %5237 = vst [vmem:[%s555 + $0x548] sm:$0xff] %v5013
      %5238 = vst [vmem:[%s555 + $0x550] sm:$0xff] %v5014
      %5239 = vst [vmem:[%s555 + $0x558] sm:$0xff] %v5015
      %5240 = vst [vmem:[%s555 + $0x560] sm:$0xff] %v5016
      %5241 = vst [vmem:[%s555 + $0x568] sm:$0xff] %v5017
      %5242 = vst.msk [vmem:[%s555 + $0x570] sm:$0xff] %vm1293, %v5018
      %5243 = vst [vmem:[%s555 + $0x578] sm:$0xff] %v5019
      %5244 = vst [vmem:[%s555 + $0x580] sm:$0xff] %v5020
      %5245 = vst [vmem:[%s555 + $0x588] sm:$0xff] %v5021
      %5246 = vst [vmem:[%s555 + $0x590] sm:$0xff] %v5022
      %5247 = vst [vmem:[%s555 + $0x598] sm:$0xff] %v5023
      %5248 = vst [vmem:[%s555 + $0x5a0] sm:$0xff] %v5024
      %5249 = vst.msk [vmem:[%s555 + $0x5a8] sm:$0xff] %vm1293, %v5025
      %5250 = vst [vmem:[%s555 + $0x5b0] sm:$0xff] %v5026
      %5251 = vst [vmem:[%s555 + $0x5b8] sm:$0xff] %v5027
      %5252 = vst [vmem:[%s555 + $0x5c0] sm:$0xff] %v5028
      %5253 = vst [vmem:[%s555 + $0x5c8] sm:$0xff] %v5029
      %5254 = vst [vmem:[%s555 + $0x5d0] sm:$0xff] %v5030
      %5255 = vst [vmem:[%s555 + $0x5d8] sm:$0xff] %v5031
      %5256 = vst.msk [vmem:[%s555 + $0x5e0] sm:$0xff] %vm1293, %v5032
      %5257 = vst [vmem:[%s555 + $0x5e8] sm:$0xff] %v5033
      %5258 = vst [vmem:[%s555 + $0x5f0] sm:$0xff] %v5034
      %5259 = vst [vmem:[%s555 + $0x5f8] sm:$0xff] %v5035
      %5260 = vst [vmem:[%s555 + $0x600] sm:$0xff] %v5036
      %5261 = vst [vmem:[%s555 + $0x608] sm:$0xff] %v5037
      %5262 = vst [vmem:[%s555 + $0x610] sm:$0xff] %v5038
      %5263 = vst.msk [vmem:[%s555 + $0x618] sm:$0xff] %vm1293, %v5039
      %5264 = vst [vmem:[%s555 + $0x620] sm:$0xff] %v5040
      %5265 = vst [vmem:[%s555 + $0x628] sm:$0xff] %v5041
      %5266 = vst [vmem:[%s555 + $0x630] sm:$0xff] %v5042
      %5267 = vst [vmem:[%s555 + $0x638] sm:$0xff] %v5043
      %5268 = vst [vmem:[%s555 + $0x640] sm:$0xff] %v5044
      %5269 = vst [vmem:[%s555 + $0x648] sm:$0xff] %v5045
      %5270 = vst.msk [vmem:[%s555 + $0x650] sm:$0xff] %vm1293, %v5046
      %5271 = vst [vmem:[%s555 + $0x658] sm:$0xff] %v5047
      %5272 = vst [vmem:[%s555 + $0x660] sm:$0xff] %v5048
      %5273 = vst [vmem:[%s555 + $0x668] sm:$0xff] %v5049
      %5274 = vst [vmem:[%s555 + $0x670] sm:$0xff] %v5050
      %5275 = vst [vmem:[%s555 + $0x678] sm:$0xff] %v5051
      %5276 = vst [vmem:[%s555 + $0x680] sm:$0xff] %v5052
      %5277 = vst.msk [vmem:[%s555 + $0x688] sm:$0xff] %vm1293, %v5053
      %5278 = vst [vmem:[%s555 + $0x690] sm:$0xff] %v5054
      %5279 = vst [vmem:[%s555 + $0x698] sm:$0xff] %v5055
      %5280 = vst [vmem:[%s555 + $0x6a0] sm:$0xff] %v5056
      %5281 = vst [vmem:[%s555 + $0x6a8] sm:$0xff] %v5057
      %5282 = vst [vmem:[%s555 + $0x6b0] sm:$0xff] %v5058
      %5283 = vst [vmem:[%s555 + $0x6b8] sm:$0xff] %v5059
      %5284 = vst.msk [vmem:[%s555 + $0x6c0] sm:$0xff] %vm1293, %v5060
      %5285 = vst [vmem:[%s555 + $0x6c8] sm:$0xff] %v5061
      %5286 = vst [vmem:[%s555 + $0x6d0] sm:$0xff] %v5062
      %5287 = vst [vmem:[%s555 + $0x6d8] sm:$0xff] %v5063
      %5288 = vst [vmem:[%s555 + $0x6e0] sm:$0xff] %v5064
      %5289 = vst [vmem:[%s555 + $0x6e8] sm:$0xff] %v5065
      %5290 = vst [vmem:[%s555 + $0x6f0] sm:$0xff] %v5066
      %5291 = vst.msk [vmem:[%s555 + $0x6f8] sm:$0xff] %vm1293, %v5067
      %s5292 = smul.u32 32, %s28
      %p5293 = scmp.lt.s32.totalorder %s5292, 127
      %s5294 = scalar_select %p5293, %s5292, 127
      %s5295 = smul.addr %s5294, 7
      %s5296 = smul.addr %s5295, 8
      %s5297 = scalar_lea.vmem %s17, %s5296
      // Predicated region
      $region89: #{tpu_custom_call.1} parent=87 // pred_check
        %p5298 = pneg %p408
      $region90: #{tpu_custom_call.1} parent=87 // pred_check_branch
        %5300 = sbr.rel (%p5298) target = $region92
      $region91: #{tpu_custom_call.1} parent=87 // pred_region
        %s5301 = smul.u32 32, %s28
      $region92: #{tpu_custom_call.1} parent=87 // pred_fallthru
        _
    $region88: #{tpu_custom_call.1} parent=5 // pred_fallthru
      _
    %p5302 = scmp.le.s32.totalorder 2, %s23
    // Predicated region
    $region93: #{tpu_custom_call.1} parent=5 // pred_check
      %p5303 = pneg %p5302
    $region94: #{tpu_custom_call.1} parent=5 // pred_check_branch
      %5305 = sbr.rel (%p5303) target = $region96
    $region95: #{tpu_custom_call.1} parent=5 // pred_region
      %s5306 = ssub.s32 %s23, 2
      // Predicated region
      $region97: #{tpu_custom_call.1} parent=95 // pred_check
        %p5307 = pneg %p414
      $region98: #{tpu_custom_call.1} parent=95 // pred_check_branch
        %5309 = sbr.rel (%p5307) target = $region100
      $region99: #{tpu_custom_call.1} parent=95 // pred_region
        %s5310 = smul.u32 32, %s29
        %p5311 = scmp.lt.s32.totalorder %s5310, 127
        %s5312 = scalar_select %p5311, %s5310, 127
        %s5313 = smul.addr %s5312, 7
        %s5314 = smul.addr %s5313, 8
        %s5315 = scalar_lea.vmem %s17, %s5314
      $region100: #{tpu_custom_call.1} parent=95 // pred_fallthru
        _
    $region96: #{tpu_custom_call.1} parent=5 // pred_fallthru
      _
  $region6: #{tpu_custom_call.1} parent=0 // loop_footer
    %s27 = sadd.s32 1, %s23
  $region7: #{tpu_custom_call.1} parent=0 // loop_footer_branch
    %22 = sbr.rel target = $region3
  $region8: #{tpu_custom_call.1} parent=0 // loop_exit
    _

</llo_original>
